<compile_context>
chip_gen: v5e
topology: v5e:2x2
jax: 0.10.0
libtpu: 0.0.40
codegen_flags: <defaults>
</compile_context>

<pallas_src>
import math

import jax
import jax.numpy as jnp
from jax.experimental import pallas as pl
from jax.experimental.pallas import tpu as pltpu

_LANE = 128  # lane width; Cout padded up to this for lane-dense stores / MXU cols.


def _round_up(x, m):
    return (x + m - 1) // m * m


# ----------------------------------------------------------------------------
# Fused conv (im2col-matmul) + bias + epilogue Pallas kernel
# ----------------------------------------------------------------------------

def _make_conv_kernel(epilogue, relu, has_skip):
    """epilogue in {"in", "in_add", "tanh"}; skip only used for "in_add"."""

    def kernel(*refs):
        if has_skip:
            p_ref, w_ref, b_ref, skip_ref, o_ref, acc_ref = refs
        else:
            p_ref, w_ref, b_ref, o_ref, acc_ref = refs
            skip_ref = None

        k = pl.program_id(1)

        @pl.when(k == 0)
        def _():
            acc_ref[...] = jnp.zeros_like(acc_ref)

        # (HW, block_k) @ (block_k, 128) on the MXU, f32 accumulation.
        acc_ref[...] += jnp.dot(
            p_ref[0], w_ref[...], preferred_element_type=jnp.float32
        )

        @pl.when(k == pl.num_programs(1) - 1)
        def _():
            y = acc_ref[...] + b_ref[...]
            if epilogue in ("in", "in_add"):
                # InstanceNorm2d(affine=False, eps=1e-5): per-(n,c) stats over
                # the full spatial extent, which is resident here.
                mean = jnp.mean(y, axis=0, keepdims=True)
                var = jnp.mean((y - mean) * (y - mean), axis=0, keepdims=True)
                y = (y - mean) * jax.lax.rsqrt(var + 1e-5)
                if relu:
                    y = jnp.maximum(y, 0.0)
                if epilogue == "in_add":
                    y = y + skip_ref[0]          # residual skip-add, fused
            elif epilogue == "tanh":
                y = jnp.tanh(y)
            o_ref[0] = y.astype(o_ref.dtype)

    return kernel


def _fused_conv_matmul(patches, w_mat, bias, *, epilogue, relu, skip=None):
    """patches: (N, HW, K), w_mat: (K, Cout), bias: (Cout,).
    Returns (N, HW, 128) f32 with real channels in the first Cout lanes
    (padded lanes are exactly zero)."""
    N, HW, K = patches.shape
    Cout = w_mat.shape[1]

    k_pad = _round_up(K, 128)
    if k_pad > 1536:                      # tile the reduction for large K
        block_k = 512
        k_pad = _round_up(K, block_k)
    else:
        block_k = k_pad
    n_k = k_pad // block_k

    p = jnp.pad(patches.astype(jnp.bfloat16), ((0, 0), (0, 0), (0, k_pad - K)))
    w = jnp.pad(w_mat.astype(jnp.bfloat16),
                ((0, k_pad - K), (0, _LANE - Cout)))
    b = jnp.pad(bias.astype(jnp.float32), (0, _LANE - Cout)).reshape(1, _LANE)

    in_specs = [
        pl.BlockSpec((1, HW, block_k), lambda n, k: (n, 0, k)),
        pl.BlockSpec((block_k, _LANE), lambda n, k: (k, 0)),
        pl.BlockSpec((1, _LANE), lambda n, k: (0, 0)),
    ]
    args = [p, w, b]
    if skip is not None:
        in_specs.append(pl.BlockSpec((1, HW, _LANE), lambda n, k: (n, 0, 0)))
        args.append(skip)

    return pl.pallas_call(
        _make_conv_kernel(epilogue, relu, skip is not None),
        out_shape=jax.ShapeDtypeStruct((N, HW, _LANE), jnp.float32),
        grid_spec=pltpu.PrefetchScalarGridSpec(
            num_scalar_prefetch=0,
            grid=(N, n_k),
            in_specs=in_specs,
            out_specs=pl.BlockSpec((1, HW, _LANE), lambda n, k: (n, 0, 0)),
            scratch_shapes=[pltpu.VMEM((HW, _LANE), jnp.float32)],
        ),
        compiler_params=pltpu.CompilerParams(
            dimension_semantics=("parallel", "arbitrary"),
            vmem_limit_bytes=32 * 1024 * 1024,
        ),
    )(*args)


# ----------------------------------------------------------------------------
# Conv layers (padding / window extraction in JAX glue, fused matmul in Pallas)
# ----------------------------------------------------------------------------

def conv2d(x, w, b, *, stride=1, reflect_pad=0, zero_pad=0,
           epilogue="in", relu=True, skip=None):
    """x: (N,H,W,Cin) f32, w: (KH,KW,Cin,Cout), b: (Cout,).
    Returns (N,OH,OW,Cout) f32 with the fused epilogue already applied."""
    x = x.astype(jnp.bfloat16)            # bf16 matmul operands (f32 accumulate)
    if reflect_pad:
        pd = reflect_pad
        x = jnp.pad(x, ((0, 0), (pd, pd), (pd, pd), (0, 0)), mode="reflect")
    if zero_pad:
        pd = zero_pad
        x = jnp.pad(x, ((0, 0), (pd, pd), (pd, pd), (0, 0)))
    KH, KW, Cin, Cout = w.shape
    N, Hp, Wp, _ = x.shape
    OH = (Hp - KH) // stride + 1
    OW = (Wp - KW) // stride + 1
    # TODO(synk): im2col patches are still materialized in HBM by XLA (KH*KW x
    # blowup); next step is fusing the tap loop in-kernel with halo DMAs.
    cols = []
    for i in range(KH):
        for j in range(KW):
            cols.append(x[:, i:i + (OH - 1) * stride + 1:stride,
                             j:j + (OW - 1) * stride + 1:stride, :])
    patches = jnp.stack(cols, axis=3).reshape(N, OH * OW, KH * KW * Cin)
    wm = w.reshape(KH * KW * Cin, Cout)

    skip_p = None
    if skip is not None:
        Ns, Hs, Ws, Cs = skip.shape
        skip_p = jnp.pad(skip.astype(jnp.float32).reshape(Ns, Hs * Ws, Cs),
                         ((0, 0), (0, 0), (0, _LANE - Cs)))

    y = _fused_conv_matmul(patches, wm, b, epilogue=epilogue, relu=relu,
                           skip=skip_p)
    return y[:, :, :Cout].reshape(N, OH, OW, Cout)


def conv_transpose2d(x, w, b, *, stride=2, padding=1, output_padding=1,
                     epilogue="in", relu=True):
    """Equivalent to torch ConvTranspose2d(k=3, s=2, p=1, op=1).
    `w` is stored in the equivalent forward-conv layout (KH,KW,Cin,Cout),
    i.e. spatially flipped / channel-transposed relative to the torch tensor.
    Implemented as zero-insertion + asymmetric pad + fused conv."""
    # TODO(synk): replace zero-insertion with a sub-pixel (stride-phase)
    # decomposition to skip the ~75% known-zero MACs in the upsampling path.
    N, H, W, C = x.shape
    KH, KW, Cin, Cout = w.shape
    xd = jnp.zeros((N, (H - 1) * stride + 1, (W - 1) * stride + 1, C), x.dtype)
    xd = xd.at[:, ::stride, ::stride, :].set(x)
    plo = KH - 1 - padding
    phi = KH - 1 - padding + output_padding
    xd = jnp.pad(xd, ((0, 0), (plo, phi), (plo, phi), (0, 0)))
    return conv2d(xd, w, b, stride=1, epilogue=epilogue, relu=relu)


# ----------------------------------------------------------------------------
# Parameter init (deterministic, torch-conv-style uniform fan-in init)
# ----------------------------------------------------------------------------

def init_params(key, *, in_channels, out_channels, ngf, num_down_samp,
                num_resblocks):
    keys = iter(jax.random.split(key, 128))

    def conv_p(kh, kw, cin, cout):
        s = 1.0 / math.sqrt(kh * kw * cin)
        w = jax.random.uniform(next(keys), (kh, kw, cin, cout), jnp.float32, -s, s)
        b = jax.random.uniform(next(keys), (cout,), jnp.float32, -s, s)
        return {"w": w, "b": b}

    p = {"head": conv_p(9, 9, in_channels, ngf), "down": [], "res": [],
         "up": [], "tail": None}
    for i in range(num_down_samp):
        mult = 2 ** i
        p["down"].append(conv_p(3, 3, ngf * mult, ngf * mult * 2))
    mult = 2 ** num_down_samp
    for _ in range(num_resblocks):
        p["res"].append({"a": conv_p(3, 3, ngf * mult, ngf * mult),
                         "b": conv_p(3, 3, ngf * mult, ngf * mult)})
    for i in range(num_down_samp):
        m = 2 ** (num_down_samp - i)
        p["up"].append(conv_p(3, 3, ngf * m, ngf * m // 2))
    p["tail"] = conv_p(9, 9, ngf, out_channels)
    return p


# ----------------------------------------------------------------------------
# Forward pass (mirrors ResNetGen.forward with InstanceNorm, eval-mode dropout)
# ----------------------------------------------------------------------------

def resnet_gen_forward(x_nchw, params):
    x = jnp.transpose(x_nchw.astype(jnp.float32), (0, 2, 3, 1))  # NCHW -> NHWC

    # ReflectionPad2d(4) + Conv2d(k=9) + InstanceNorm + ReLU   (one fused call)
    x = conv2d(x, params["head"]["w"], params["head"]["b"],
               reflect_pad=4, epilogue="in", relu=True)

    # Downsampling: Conv2d(k=3, s=2, p=1) + IN + ReLU          (fused)
    for lp in params["down"]:
        x = conv2d(x, lp["w"], lp["b"], stride=2, zero_pad=1,
                   epilogue="in", relu=True)

    # Residual blocks: conv3x3+IN+ReLU, then conv3x3+IN+skip-add (both fused).
    # dropout=0 / eval mode -> identity
    for rp in params["res"]:
        y = conv2d(x, rp["a"]["w"], rp["a"]["b"], reflect_pad=1,
                   epilogue="in", relu=True)
        x = conv2d(y, rp["b"]["w"], rp["b"]["b"], reflect_pad=1,
                   epilogue="in_add", relu=False, skip=x)

    # Upsampling: ConvTranspose2d(k=3, s=2, p=1, op=1) + IN + ReLU (fused)
    for lp in params["up"]:
        x = conv_transpose2d(x, lp["w"], lp["b"], epilogue="in", relu=True)

    # ReflectionPad2d(4) + Conv2d(k=9) + Tanh                  (fused)
    x = conv2d(x, params["tail"]["w"], params["tail"]["b"],
               reflect_pad=4, epilogue="tanh", relu=False)

    return jnp.transpose(x, (0, 3, 1, 2))  # NHWC -> NCHW


# ----------------------------------------------------------------------------

if __name__ == "__main__":
    cfg = dict(in_channels=4, out_channels=3, ngf=8,
               num_down_samp=2, num_resblocks=2)

    key = jax.random.PRNGKey(0)
    pkey, xkey = jax.random.split(key)
    params = init_params(pkey, **cfg)

    N, H, W = 2, 16, 16
    x = jax.random.normal(xkey, (N, cfg["in_channels"], H, W), jnp.float32)

    fwd = jax.jit(resnet_gen_forward)
    y = fwd(x, params)
    jax.block_until_ready(y)

    assert y.shape == (N, cfg["out_channels"], H, W), y.shape
    assert bool(jnp.all(jnp.isfinite(y)))
    assert bool(jnp.all(jnp.abs(y) <= 1.0 + 1e-6))  # tanh output range
    print("KERNEL_OK")
</pallas_src>

<mosaic_0001>
module attributes {stable_mosaic.version = 11 : i64} {
  func.func @kernel(%arg0: i32, %arg1: i32, %arg2: memref<1x256x384xbf16, #tpu.memory_space<vmem>>, %arg3: memref<384x128xbf16, #tpu.memory_space<vmem>>, %arg4: memref<1x128xf32, #tpu.memory_space<vmem>>, %arg5: memref<1x256x128xf32, #tpu.memory_space<vmem>>, %arg6: memref<256x128xf32, #tpu.memory_space<vmem>>) attributes {dimension_semantics = [#tpu.dimension_semantics<parallel>, #tpu.dimension_semantics<arbitrary>], iteration_bounds = array<i64: 2, 1>, scalar_prefetch = 0 : i64, scratch_operands = 1 : i64, tpu.core_type = #tpu.core_type<tc>, window_params = [{transform_indices = @transform_0, window_bounds = array<i64: 1, 256, 384>}, {transform_indices = @transform_1, window_bounds = array<i64: 384, 128>}, {pipeline_mode = #tpu.pipeline_mode<synchronous>, transform_indices = @transform_2, window_bounds = array<i64: 1, 128>}, {transform_indices = @transform_3, window_bounds = array<i64: 1, 256, 128>}]} {
    %c0_i32 = arith.constant 0 : i32
    %0 = arith.cmpi eq, %arg1, %c0_i32 : i32
    %1 = arith.extui %0 : i1 to i32
    %c0_i32_0 = arith.constant 0 : i32
    %2 = arith.cmpi ne, %1, %c0_i32_0 : i32
    scf.if %2 {
      %cst_11 = arith.constant 0.000000e+00 : f32
      %13 = vector.broadcast %cst_11 : f32 to vector<256x128xf32>
      %c0_12 = arith.constant 0 : index
      %c0_13 = arith.constant 0 : index
      %14 = vector.load %arg6[%c0_12, %c0_13] : memref<256x128xf32, #tpu.memory_space<vmem>>, vector<256x128xf32>
      tpu.vector_store %arg6[%c0_12, %c0_13], %13 {strides = array<i32>} : memref<256x128xf32, #tpu.memory_space<vmem>>, vector<256x128xf32>,
    } else {
    }
    %c0 = arith.constant 0 : index
    %c0_1 = arith.constant 0 : index
    %3 = vector.load %arg6[%c0, %c0_1] : memref<256x128xf32, #tpu.memory_space<vmem>>, vector<256x128xf32>
    %c0_2 = arith.constant 0 : index
    %c0_3 = arith.constant 0 : index
    %c0_4 = arith.constant 0 : index
    %4 = vector.load %arg2[%c0_2, %c0_3, %c0_4] : memref<1x256x384xbf16, #tpu.memory_space<vmem>>, vector<1x256x384xbf16>
    %5 = vector.shape_cast %4 : vector<1x256x384xbf16> to vector<256x384xbf16>
    %c0_5 = arith.constant 0 : index
    %c0_6 = arith.constant 0 : index
    %6 = vector.load %arg3[%c0_5, %c0_6] : memref<384x128xbf16, #tpu.memory_space<vmem>>, vector<384x128xbf16>
    %cst = arith.constant dense<0.000000e+00> : vector<256x128xf32>
    %7 = tpu.matmul %5, %6, %cst {dimension_numbers = #tpu.dot_dimension_numbers<[1], [0], [0], [1], [0, 0, 1, 1], [], []>} : vector<256x384xbf16>, vector<384x128xbf16>, vector<256x128xf32> -> vector<256x128xf32>
    %8 = arith.addf %3, %7 : vector<256x128xf32>
    %c0_7 = arith.constant 0 : index
    %c0_8 = arith.constant 0 : index
    %9 = vector.load %arg6[%c0_7, %c0_8] : memref<256x128xf32, #tpu.memory_space<vmem>>, vector<256x128xf32>
    tpu.vector_store %arg6[%c0_7, %c0_8], %8 {strides = array<i32>} : memref<256x128xf32, #tpu.memory_space<vmem>>, vector<256x128xf32>,
    %c0_i32_9 = arith.constant 0 : i32
    %10 = arith.cmpi eq, %arg1, %c0_i32_9 : i32
    %11 = arith.extui %10 : i1 to i32
    %c0_i32_10 = arith.constant 0 : i32
    %12 = arith.cmpi ne, %11, %c0_i32_10 : i32
    scf.if %12 {
      %c0_11 = arith.constant 0 : index
      %c0_12 = arith.constant 0 : index
      %13 = vector.load %arg6[%c0_11, %c0_12] : memref<256x128xf32, #tpu.memory_space<vmem>>, vector<256x128xf32>
      %c0_13 = arith.constant 0 : index
      %c0_14 = arith.constant 0 : index
      %14 = vector.load %arg4[%c0_13, %c0_14] : memref<1x128xf32, #tpu.memory_space<vmem>>, vector<1x128xf32>
      %15 = vector.broadcast %14 : vector<1x128xf32> to vector<256x128xf32>
      %16 = arith.addf %13, %15 : vector<256x128xf32>
      %cst_15 = arith.constant dense<0.000000e+00> : vector<128xf32>
      %17 = vector.multi_reduction <add>, %16, %cst_15 [0] : vector<256x128xf32> to vector<128xf32>
      %18 = vector.shape_cast %17 : vector<128xf32> to vector<1x128xf32>
      %cst_16 = arith.constant 2.560000e+02 : f32
      %19 = vector.broadcast %cst_16 : f32 to vector<1x128xf32>
      %20 = arith.divf %18, %19 : vector<1x128xf32>
      %21 = vector.broadcast %20 : vector<1x128xf32> to vector<256x128xf32>
      %22 = arith.subf %16, %21 : vector<256x128xf32>
      %23 = vector.broadcast %20 : vector<1x128xf32> to vector<256x128xf32>
      %24 = arith.subf %16, %23 : vector<256x128xf32>
      %25 = arith.mulf %22, %24 : vector<256x128xf32>
      %cst_17 = arith.constant dense<0.000000e+00> : vector<128xf32>
      %26 = vector.multi_reduction <add>, %25, %cst_17 [0] : vector<256x128xf32> to vector<128xf32>
      %27 = vector.shape_cast %26 : vector<128xf32> to vector<1x128xf32>
      %cst_18 = arith.constant 2.560000e+02 : f32
      %28 = vector.broadcast %cst_18 : f32 to vector<1x128xf32>
      %29 = arith.divf %27, %28 : vector<1x128xf32>
      %30 = vector.broadcast %20 : vector<1x128xf32> to vector<256x128xf32>
      %31 = arith.subf %16, %30 : vector<256x128xf32>
      %cst_19 = arith.constant 9.99999974E-6 : f32
      %32 = vector.broadcast %cst_19 : f32 to vector<1x128xf32>
      %33 = arith.addf %29, %32 : vector<1x128xf32>
      %34 = math.rsqrt %33 : vector<1x128xf32>
      %35 = vector.broadcast %34 : vector<1x128xf32> to vector<256x128xf32>
      %36 = arith.mulf %31, %35 : vector<256x128xf32>
      %cst_20 = arith.constant 0.000000e+00 : f32
      %37 = vector.broadcast %cst_20 : f32 to vector<256x128xf32>
      %38 = arith.maximumf %36, %37 : vector<256x128xf32>
      %c0_21 = arith.constant 0 : index
      %c0_22 = arith.constant 0 : index
      %c0_23 = arith.constant 0 : index
      %39 = vector.load %arg5[%c0_21, %c0_22, %c0_23] : memref<1x256x128xf32, #tpu.memory_space<vmem>>, vector<1x256x128xf32>
      %40 = vector.shape_cast %39 : vector<1x256x128xf32> to vector<256x128xf32>
      %41 = vector.shape_cast %38 : vector<256x128xf32> to vector<1x256x128xf32>
      tpu.vector_store %arg5[%c0_21, %c0_22, %c0_23], %41 {strides = array<i32>} : memref<1x256x128xf32, #tpu.memory_space<vmem>>, vector<1x256x128xf32>,
    } else {
    }
    return
  }
  func.func @transform_0(%arg0: i32, %arg1: i32) -> (i32, i32, i32) {
    %c0_i32 = arith.constant 0 : i32
    %c0_i32_0 = arith.constant 0 : i32
    return %arg0, %c0_i32, %arg1 : i32, i32, i32
  }
  func.func @transform_1(%arg0: i32, %arg1: i32) -> (i32, i32) {
    %c0_i32 = arith.constant 0 : i32
    %c0_i32_0 = arith.constant 0 : i32
    return %arg1, %c0_i32 : i32, i32
  }
  func.func @transform_2(%arg0: i32, %arg1: i32) -> (i32, i32) {
    %c0_i32 = arith.constant 0 : i32
    %c0_i32_0 = arith.constant 0 : i32
    %c0_i32_1 = arith.constant 0 : i32
    return %c0_i32, %c0_i32_0 : i32, i32
  }
  func.func @transform_3(%arg0: i32, %arg1: i32) -> (i32, i32, i32) {
    %c0_i32 = arith.constant 0 : i32
    %c0_i32_0 = arith.constant 0 : i32
    %c0_i32_1 = arith.constant 0 : i32
    return %arg0, %c0_i32, %c0_i32_0 : i32, i32, i32
  }
}

module attributes {stable_mosaic.version = 11 : i64} {
  func.func @kernel(%arg0: i32, %arg1: i32, %arg2: memref<1x64x128xbf16, #tpu.memory_space<vmem>>, %arg3: memref<128x128xbf16, #tpu.memory_space<vmem>>, %arg4: memref<1x128xf32, #tpu.memory_space<vmem>>, %arg5: memref<1x64x128xf32, #tpu.memory_space<vmem>>, %arg6: memref<64x128xf32, #tpu.memory_space<vmem>>) attributes {dimension_semantics = [#tpu.dimension_semantics<parallel>, #tpu.dimension_semantics<arbitrary>], iteration_bounds = array<i64: 2, 1>, scalar_prefetch = 0 : i64, scratch_operands = 1 : i64, tpu.core_type = #tpu.core_type<tc>, window_params = [{transform_indices = @transform_0, window_bounds = array<i64: 1, 64, 128>}, {transform_indices = @transform_1, window_bounds = array<i64: 128, 128>}, {pipeline_mode = #tpu.pipeline_mode<synchronous>, transform_indices = @transform_2, window_bounds = array<i64: 1, 128>}, {transform_indices = @transform_3, window_bounds = array<i64: 1, 64, 128>}]} {
    %c0_i32 = arith.constant 0 : i32
    %0 = arith.cmpi eq, %arg1, %c0_i32 : i32
    %1 = arith.extui %0 : i1 to i32
    %c0_i32_0 = arith.constant 0 : i32
    %2 = arith.cmpi ne, %1, %c0_i32_0 : i32
    scf.if %2 {
      %cst_11 = arith.constant 0.000000e+00 : f32
      %13 = vector.broadcast %cst_11 : f32 to vector<64x128xf32>
      %c0_12 = arith.constant 0 : index
      %c0_13 = arith.constant 0 : index
      %14 = vector.load %arg6[%c0_12, %c0_13] : memref<64x128xf32, #tpu.memory_space<vmem>>, vector<64x128xf32>
      tpu.vector_store %arg6[%c0_12, %c0_13], %13 {strides = array<i32>} : memref<64x128xf32, #tpu.memory_space<vmem>>, vector<64x128xf32>,
    } else {
    }
    %c0 = arith.constant 0 : index
    %c0_1 = arith.constant 0 : index
    %3 = vector.load %arg6[%c0, %c0_1] : memref<64x128xf32, #tpu.memory_space<vmem>>, vector<64x128xf32>
    %c0_2 = arith.constant 0 : index
    %c0_3 = arith.constant 0 : index
    %c0_4 = arith.constant 0 : index
    %4 = vector.load %arg2[%c0_2, %c0_3, %c0_4] : memref<1x64x128xbf16, #tpu.memory_space<vmem>>, vector<1x64x128xbf16>
    %5 = vector.shape_cast %4 : vector<1x64x128xbf16> to vector<64x128xbf16>
    %c0_5 = arith.constant 0 : index
    %c0_6 = arith.constant 0 : index
    %6 = vector.load %arg3[%c0_5, %c0_6] : memref<128x128xbf16, #tpu.memory_space<vmem>>, vector<128x128xbf16>
    %cst = arith.constant dense<0.000000e+00> : vector<64x128xf32>
    %7 = tpu.matmul %5, %6, %cst {dimension_numbers = #tpu.dot_dimension_numbers<[1], [0], [0], [1], [0, 0, 1, 1], [], []>} : vector<64x128xbf16>, vector<128x128xbf16>, vector<64x128xf32> -> vector<64x128xf32>
    %8 = arith.addf %3, %7 : vector<64x128xf32>
    %c0_7 = arith.constant 0 : index
    %c0_8 = arith.constant 0 : index
    %9 = vector.load %arg6[%c0_7, %c0_8] : memref<64x128xf32, #tpu.memory_space<vmem>>, vector<64x128xf32>
    tpu.vector_store %arg6[%c0_7, %c0_8], %8 {strides = array<i32>} : memref<64x128xf32, #tpu.memory_space<vmem>>, vector<64x128xf32>,
    %c0_i32_9 = arith.constant 0 : i32
    %10 = arith.cmpi eq, %arg1, %c0_i32_9 : i32
    %11 = arith.extui %10 : i1 to i32
    %c0_i32_10 = arith.constant 0 : i32
    %12 = arith.cmpi ne, %11, %c0_i32_10 : i32
    scf.if %12 {
      %c0_11 = arith.constant 0 : index
      %c0_12 = arith.constant 0 : index
      %13 = vector.load %arg6[%c0_11, %c0_12] : memref<64x128xf32, #tpu.memory_space<vmem>>, vector<64x128xf32>
      %c0_13 = arith.constant 0 : index
      %c0_14 = arith.constant 0 : index
      %14 = vector.load %arg4[%c0_13, %c0_14] : memref<1x128xf32, #tpu.memory_space<vmem>>, vector<1x128xf32>
      %15 = vector.broadcast %14 : vector<1x128xf32> to vector<64x128xf32>
      %16 = arith.addf %13, %15 : vector<64x128xf32>
      %cst_15 = arith.constant dense<0.000000e+00> : vector<128xf32>
      %17 = vector.multi_reduction <add>, %16, %cst_15 [0] : vector<64x128xf32> to vector<128xf32>
      %18 = vector.shape_cast %17 : vector<128xf32> to vector<1x128xf32>
      %cst_16 = arith.constant 6.400000e+01 : f32
      %19 = vector.broadcast %cst_16 : f32 to vector<1x128xf32>
      %20 = arith.divf %18, %19 : vector<1x128xf32>
      %21 = vector.broadcast %20 : vector<1x128xf32> to vector<64x128xf32>
      %22 = arith.subf %16, %21 : vector<64x128xf32>
      %23 = vector.broadcast %20 : vector<1x128xf32> to vector<64x128xf32>
      %24 = arith.subf %16, %23 : vector<64x128xf32>
      %25 = arith.mulf %22, %24 : vector<64x128xf32>
      %cst_17 = arith.constant dense<0.000000e+00> : vector<128xf32>
      %26 = vector.multi_reduction <add>, %25, %cst_17 [0] : vector<64x128xf32> to vector<128xf32>
      %27 = vector.shape_cast %26 : vector<128xf32> to vector<1x128xf32>
      %cst_18 = arith.constant 6.400000e+01 : f32
      %28 = vector.broadcast %cst_18 : f32 to vector<1x128xf32>
      %29 = arith.divf %27, %28 : vector<1x128xf32>
      %30 = vector.broadcast %20 : vector<1x128xf32> to vector<64x128xf32>
      %31 = arith.subf %16, %30 : vector<64x128xf32>
      %cst_19 = arith.constant 9.99999974E-6 : f32
      %32 = vector.broadcast %cst_19 : f32 to vector<1x128xf32>
      %33 = arith.addf %29, %32 : vector<1x128xf32>
      %34 = math.rsqrt %33 : vector<1x128xf32>
      %35 = vector.broadcast %34 : vector<1x128xf32> to vector<64x128xf32>
      %36 = arith.mulf %31, %35 : vector<64x128xf32>
      %cst_20 = arith.constant 0.000000e+00 : f32
      %37 = vector.broadcast %cst_20 : f32 to vector<64x128xf32>
      %38 = arith.maximumf %36, %37 : vector<64x128xf32>
      %c0_21 = arith.constant 0 : index
      %c0_22 = arith.constant 0 : index
      %c0_23 = arith.constant 0 : index
      %39 = vector.load %arg5[%c0_21, %c0_22, %c0_23] : memref<1x64x128xf32, #tpu.memory_space<vmem>>, vector<1x64x128xf32>
      %40 = vector.shape_cast %39 : vector<1x64x128xf32> to vector<64x128xf32>
      %41 = vector.shape_cast %38 : vector<64x128xf32> to vector<1x64x128xf32>
      tpu.vector_store %arg5[%c0_21, %c0_22, %c0_23], %41 {strides = array<i32>} : memref<1x64x128xf32, #tpu.memory_space<vmem>>, vector<1x64x128xf32>,
    } else {
    }
    return
  }
  func.func @transform_0(%arg0: i32, %arg1: i32) -> (i32, i32, i32) {
    %c0_i32 = arith.constant 0 : i32
    %c0_i32_0 = arith.constant 0 : i32
    return %arg0, %c0_i32, %arg1 : i32, i32, i32
  }
  func.func @transform_1(%arg0: i32, %arg1: i32) -> (i32, i32) {
    %c0_i32 = arith.constant 0 : i32
    %c0_i32_0 = arith.constant 0 : i32
    return %arg1, %c0_i32 : i32, i32
  }
  func.func @transform_2(%arg0: i32, %arg1: i32) -> (i32, i32) {
    %c0_i32 = arith.constant 0 : i32
    %c0_i32_0 = arith.constant 0 : i32
    %c0_i32_1 = arith.constant 0 : i32
    return %c0_i32, %c0_i32_0 : i32, i32
  }
  func.func @transform_3(%arg0: i32, %arg1: i32) -> (i32, i32, i32) {
    %c0_i32 = arith.constant 0 : i32
    %c0_i32_0 = arith.constant 0 : i32
    %c0_i32_1 = arith.constant 0 : i32
    return %arg0, %c0_i32, %c0_i32_0 : i32, i32, i32
  }
}

module attributes {stable_mosaic.version = 11 : i64} {
  func.func @kernel(%arg0: i32, %arg1: i32, %arg2: memref<1x16x256xbf16, #tpu.memory_space<vmem>>, %arg3: memref<256x128xbf16, #tpu.memory_space<vmem>>, %arg4: memref<1x128xf32, #tpu.memory_space<vmem>>, %arg5: memref<1x16x128xf32, #tpu.memory_space<vmem>>, %arg6: memref<16x128xf32, #tpu.memory_space<vmem>>) attributes {dimension_semantics = [#tpu.dimension_semantics<parallel>, #tpu.dimension_semantics<arbitrary>], iteration_bounds = array<i64: 2, 1>, scalar_prefetch = 0 : i64, scratch_operands = 1 : i64, tpu.core_type = #tpu.core_type<tc>, window_params = [{transform_indices = @transform_0, window_bounds = array<i64: 1, 16, 256>}, {transform_indices = @transform_1, window_bounds = array<i64: 256, 128>}, {pipeline_mode = #tpu.pipeline_mode<synchronous>, transform_indices = @transform_2, window_bounds = array<i64: 1, 128>}, {transform_indices = @transform_3, window_bounds = array<i64: 1, 16, 128>}]} {
    %c0_i32 = arith.constant 0 : i32
    %0 = arith.cmpi eq, %arg1, %c0_i32 : i32
    %1 = arith.extui %0 : i1 to i32
    %c0_i32_0 = arith.constant 0 : i32
    %2 = arith.cmpi ne, %1, %c0_i32_0 : i32
    scf.if %2 {
      %cst_11 = arith.constant 0.000000e+00 : f32
      %13 = vector.broadcast %cst_11 : f32 to vector<16x128xf32>
      %c0_12 = arith.constant 0 : index
      %c0_13 = arith.constant 0 : index
      %14 = vector.load %arg6[%c0_12, %c0_13] : memref<16x128xf32, #tpu.memory_space<vmem>>, vector<16x128xf32>
      tpu.vector_store %arg6[%c0_12, %c0_13], %13 {strides = array<i32>} : memref<16x128xf32, #tpu.memory_space<vmem>>, vector<16x128xf32>,
    } else {
    }
    %c0 = arith.constant 0 : index
    %c0_1 = arith.constant 0 : index
    %3 = vector.load %arg6[%c0, %c0_1] : memref<16x128xf32, #tpu.memory_space<vmem>>, vector<16x128xf32>
    %c0_2 = arith.constant 0 : index
    %c0_3 = arith.constant 0 : index
    %c0_4 = arith.constant 0 : index
    %4 = vector.load %arg2[%c0_2, %c0_3, %c0_4] : memref<1x16x256xbf16, #tpu.memory_space<vmem>>, vector<1x16x256xbf16>
    %5 = vector.shape_cast %4 : vector<1x16x256xbf16> to vector<16x256xbf16>
    %c0_5 = arith.constant 0 : index
    %c0_6 = arith.constant 0 : index
    %6 = vector.load %arg3[%c0_5, %c0_6] : memref<256x128xbf16, #tpu.memory_space<vmem>>, vector<256x128xbf16>
    %cst = arith.constant dense<0.000000e+00> : vector<16x128xf32>
    %7 = tpu.matmul %5, %6, %cst {dimension_numbers = #tpu.dot_dimension_numbers<[1], [0], [0], [1], [0, 0, 1, 1], [], []>} : vector<16x256xbf16>, vector<256x128xbf16>, vector<16x128xf32> -> vector<16x128xf32>
    %8 = arith.addf %3, %7 : vector<16x128xf32>
    %c0_7 = arith.constant 0 : index
    %c0_8 = arith.constant 0 : index
    %9 = vector.load %arg6[%c0_7, %c0_8] : memref<16x128xf32, #tpu.memory_space<vmem>>, vector<16x128xf32>
    tpu.vector_store %arg6[%c0_7, %c0_8], %8 {strides = array<i32>} : memref<16x128xf32, #tpu.memory_space<vmem>>, vector<16x128xf32>,
    %c0_i32_9 = arith.constant 0 : i32
    %10 = arith.cmpi eq, %arg1, %c0_i32_9 : i32
    %11 = arith.extui %10 : i1 to i32
    %c0_i32_10 = arith.constant 0 : i32
    %12 = arith.cmpi ne, %11, %c0_i32_10 : i32
    scf.if %12 {
      %c0_11 = arith.constant 0 : index
      %c0_12 = arith.constant 0 : index
      %13 = vector.load %arg6[%c0_11, %c0_12] : memref<16x128xf32, #tpu.memory_space<vmem>>, vector<16x128xf32>
      %c0_13 = arith.constant 0 : index
      %c0_14 = arith.constant 0 : index
      %14 = vector.load %arg4[%c0_13, %c0_14] : memref<1x128xf32, #tpu.memory_space<vmem>>, vector<1x128xf32>
      %15 = vector.broadcast %14 : vector<1x128xf32> to vector<16x128xf32>
      %16 = arith.addf %13, %15 : vector<16x128xf32>
      %cst_15 = arith.constant dense<0.000000e+00> : vector<128xf32>
      %17 = vector.multi_reduction <add>, %16, %cst_15 [0] : vector<16x128xf32> to vector<128xf32>
      %18 = vector.shape_cast %17 : vector<128xf32> to vector<1x128xf32>
      %cst_16 = arith.constant 1.600000e+01 : f32
      %19 = vector.broadcast %cst_16 : f32 to vector<1x128xf32>
      %20 = arith.divf %18, %19 : vector<1x128xf32>
      %21 = vector.broadcast %20 : vector<1x128xf32> to vector<16x128xf32>
      %22 = arith.subf %16, %21 : vector<16x128xf32>
      %23 = vector.broadcast %20 : vector<1x128xf32> to vector<16x128xf32>
      %24 = arith.subf %16, %23 : vector<16x128xf32>
      %25 = arith.mulf %22, %24 : vector<16x128xf32>
      %cst_17 = arith.constant dense<0.000000e+00> : vector<128xf32>
      %26 = vector.multi_reduction <add>, %25, %cst_17 [0] : vector<16x128xf32> to vector<128xf32>
      %27 = vector.shape_cast %26 : vector<128xf32> to vector<1x128xf32>
      %cst_18 = arith.constant 1.600000e+01 : f32
      %28 = vector.broadcast %cst_18 : f32 to vector<1x128xf32>
      %29 = arith.divf %27, %28 : vector<1x128xf32>
      %30 = vector.broadcast %20 : vector<1x128xf32> to vector<16x128xf32>
      %31 = arith.subf %16, %30 : vector<16x128xf32>
      %cst_19 = arith.constant 9.99999974E-6 : f32
      %32 = vector.broadcast %cst_19 : f32 to vector<1x128xf32>
      %33 = arith.addf %29, %32 : vector<1x128xf32>
      %34 = math.rsqrt %33 : vector<1x128xf32>
      %35 = vector.broadcast %34 : vector<1x128xf32> to vector<16x128xf32>
      %36 = arith.mulf %31, %35 : vector<16x128xf32>
      %cst_20 = arith.constant 0.000000e+00 : f32
      %37 = vector.broadcast %cst_20 : f32 to vector<16x128xf32>
      %38 = arith.maximumf %36, %37 : vector<16x128xf32>
      %c0_21 = arith.constant 0 : index
      %c0_22 = arith.constant 0 : index
      %c0_23 = arith.constant 0 : index
      %39 = vector.load %arg5[%c0_21, %c0_22, %c0_23] : memref<1x16x128xf32, #tpu.memory_space<vmem>>, vector<1x16x128xf32>
      %40 = vector.shape_cast %39 : vector<1x16x128xf32> to vector<16x128xf32>
      %41 = vector.shape_cast %38 : vector<16x128xf32> to vector<1x16x128xf32>
      tpu.vector_store %arg5[%c0_21, %c0_22, %c0_23], %41 {strides = array<i32>} : memref<1x16x128xf32, #tpu.memory_space<vmem>>, vector<1x16x128xf32>,
    } else {
    }
    return
  }
  func.func @transform_0(%arg0: i32, %arg1: i32) -> (i32, i32, i32) {
    %c0_i32 = arith.constant 0 : i32
    %c0_i32_0 = arith.constant 0 : i32
    return %arg0, %c0_i32, %arg1 : i32, i32, i32
  }
  func.func @transform_1(%arg0: i32, %arg1: i32) -> (i32, i32) {
    %c0_i32 = arith.constant 0 : i32
    %c0_i32_0 = arith.constant 0 : i32
    return %arg1, %c0_i32 : i32, i32
  }
  func.func @transform_2(%arg0: i32, %arg1: i32) -> (i32, i32) {
    %c0_i32 = arith.constant 0 : i32
    %c0_i32_0 = arith.constant 0 : i32
    %c0_i32_1 = arith.constant 0 : i32
    return %c0_i32, %c0_i32_0 : i32, i32
  }
  func.func @transform_3(%arg0: i32, %arg1: i32) -> (i32, i32, i32) {
    %c0_i32 = arith.constant 0 : i32
    %c0_i32_0 = arith.constant 0 : i32
    %c0_i32_1 = arith.constant 0 : i32
    return %arg0, %c0_i32, %c0_i32_0 : i32, i32, i32
  }
}

module attributes {stable_mosaic.version = 11 : i64} {
  func.func @kernel(%arg0: i32, %arg1: i32, %arg2: memref<1x16x384xbf16, #tpu.memory_space<vmem>>, %arg3: memref<384x128xbf16, #tpu.memory_space<vmem>>, %arg4: memref<1x128xf32, #tpu.memory_space<vmem>>, %arg5: memref<1x16x128xf32, #tpu.memory_space<vmem>>, %arg6: memref<16x128xf32, #tpu.memory_space<vmem>>) attributes {dimension_semantics = [#tpu.dimension_semantics<parallel>, #tpu.dimension_semantics<arbitrary>], iteration_bounds = array<i64: 2, 1>, scalar_prefetch = 0 : i64, scratch_operands = 1 : i64, tpu.core_type = #tpu.core_type<tc>, window_params = [{transform_indices = @transform_0, window_bounds = array<i64: 1, 16, 384>}, {transform_indices = @transform_1, window_bounds = array<i64: 384, 128>}, {pipeline_mode = #tpu.pipeline_mode<synchronous>, transform_indices = @transform_2, window_bounds = array<i64: 1, 128>}, {transform_indices = @transform_3, window_bounds = array<i64: 1, 16, 128>}]} {
    %c0_i32 = arith.constant 0 : i32
    %0 = arith.cmpi eq, %arg1, %c0_i32 : i32
    %1 = arith.extui %0 : i1 to i32
    %c0_i32_0 = arith.constant 0 : i32
    %2 = arith.cmpi ne, %1, %c0_i32_0 : i32
    scf.if %2 {
      %cst_11 = arith.constant 0.000000e+00 : f32
      %13 = vector.broadcast %cst_11 : f32 to vector<16x128xf32>
      %c0_12 = arith.constant 0 : index
      %c0_13 = arith.constant 0 : index
      %14 = vector.load %arg6[%c0_12, %c0_13] : memref<16x128xf32, #tpu.memory_space<vmem>>, vector<16x128xf32>
      tpu.vector_store %arg6[%c0_12, %c0_13], %13 {strides = array<i32>} : memref<16x128xf32, #tpu.memory_space<vmem>>, vector<16x128xf32>,
    } else {
    }
    %c0 = arith.constant 0 : index
    %c0_1 = arith.constant 0 : index
    %3 = vector.load %arg6[%c0, %c0_1] : memref<16x128xf32, #tpu.memory_space<vmem>>, vector<16x128xf32>
    %c0_2 = arith.constant 0 : index
    %c0_3 = arith.constant 0 : index
    %c0_4 = arith.constant 0 : index
    %4 = vector.load %arg2[%c0_2, %c0_3, %c0_4] : memref<1x16x384xbf16, #tpu.memory_space<vmem>>, vector<1x16x384xbf16>
    %5 = vector.shape_cast %4 : vector<1x16x384xbf16> to vector<16x384xbf16>
    %c0_5 = arith.constant 0 : index
    %c0_6 = arith.constant 0 : index
    %6 = vector.load %arg3[%c0_5, %c0_6] : memref<384x128xbf16, #tpu.memory_space<vmem>>, vector<384x128xbf16>
    %cst = arith.constant dense<0.000000e+00> : vector<16x128xf32>
    %7 = tpu.matmul %5, %6, %cst {dimension_numbers = #tpu.dot_dimension_numbers<[1], [0], [0], [1], [0, 0, 1, 1], [], []>} : vector<16x384xbf16>, vector<384x128xbf16>, vector<16x128xf32> -> vector<16x128xf32>
    %8 = arith.addf %3, %7 : vector<16x128xf32>
    %c0_7 = arith.constant 0 : index
    %c0_8 = arith.constant 0 : index
    %9 = vector.load %arg6[%c0_7, %c0_8] : memref<16x128xf32, #tpu.memory_space<vmem>>, vector<16x128xf32>
    tpu.vector_store %arg6[%c0_7, %c0_8], %8 {strides = array<i32>} : memref<16x128xf32, #tpu.memory_space<vmem>>, vector<16x128xf32>,
    %c0_i32_9 = arith.constant 0 : i32
    %10 = arith.cmpi eq, %arg1, %c0_i32_9 : i32
    %11 = arith.extui %10 : i1 to i32
    %c0_i32_10 = arith.constant 0 : i32
    %12 = arith.cmpi ne, %11, %c0_i32_10 : i32
    scf.if %12 {
      %c0_11 = arith.constant 0 : index
      %c0_12 = arith.constant 0 : index
      %13 = vector.load %arg6[%c0_11, %c0_12] : memref<16x128xf32, #tpu.memory_space<vmem>>, vector<16x128xf32>
      %c0_13 = arith.constant 0 : index
      %c0_14 = arith.constant 0 : index
      %14 = vector.load %arg4[%c0_13, %c0_14] : memref<1x128xf32, #tpu.memory_space<vmem>>, vector<1x128xf32>
      %15 = vector.broadcast %14 : vector<1x128xf32> to vector<16x128xf32>
      %16 = arith.addf %13, %15 : vector<16x128xf32>
      %cst_15 = arith.constant dense<0.000000e+00> : vector<128xf32>
      %17 = vector.multi_reduction <add>, %16, %cst_15 [0] : vector<16x128xf32> to vector<128xf32>
      %18 = vector.shape_cast %17 : vector<128xf32> to vector<1x128xf32>
      %cst_16 = arith.constant 1.600000e+01 : f32
      %19 = vector.broadcast %cst_16 : f32 to vector<1x128xf32>
      %20 = arith.divf %18, %19 : vector<1x128xf32>
      %21 = vector.broadcast %20 : vector<1x128xf32> to vector<16x128xf32>
      %22 = arith.subf %16, %21 : vector<16x128xf32>
      %23 = vector.broadcast %20 : vector<1x128xf32> to vector<16x128xf32>
      %24 = arith.subf %16, %23 : vector<16x128xf32>
      %25 = arith.mulf %22, %24 : vector<16x128xf32>
      %cst_17 = arith.constant dense<0.000000e+00> : vector<128xf32>
      %26 = vector.multi_reduction <add>, %25, %cst_17 [0] : vector<16x128xf32> to vector<128xf32>
      %27 = vector.shape_cast %26 : vector<128xf32> to vector<1x128xf32>
      %cst_18 = arith.constant 1.600000e+01 : f32
      %28 = vector.broadcast %cst_18 : f32 to vector<1x128xf32>
      %29 = arith.divf %27, %28 : vector<1x128xf32>
      %30 = vector.broadcast %20 : vector<1x128xf32> to vector<16x128xf32>
      %31 = arith.subf %16, %30 : vector<16x128xf32>
      %cst_19 = arith.constant 9.99999974E-6 : f32
      %32 = vector.broadcast %cst_19 : f32 to vector<1x128xf32>
      %33 = arith.addf %29, %32 : vector<1x128xf32>
      %34 = math.rsqrt %33 : vector<1x128xf32>
      %35 = vector.broadcast %34 : vector<1x128xf32> to vector<16x128xf32>
      %36 = arith.mulf %31, %35 : vector<16x128xf32>
      %cst_20 = arith.constant 0.000000e+00 : f32
      %37 = vector.broadcast %cst_20 : f32 to vector<16x128xf32>
      %38 = arith.maximumf %36, %37 : vector<16x128xf32>
      %c0_21 = arith.constant 0 : index
      %c0_22 = arith.constant 0 : index
      %c0_23 = arith.constant 0 : index
      %39 = vector.load %arg5[%c0_21, %c0_22, %c0_23] : memref<1x16x128xf32, #tpu.memory_space<vmem>>, vector<1x16x128xf32>
      %40 = vector.shape_cast %39 : vector<1x16x128xf32> to vector<16x128xf32>
      %41 = vector.shape_cast %38 : vector<16x128xf32> to vector<1x16x128xf32>
      tpu.vector_store %arg5[%c0_21, %c0_22, %c0_23], %41 {strides = array<i32>} : memref<1x16x128xf32, #tpu.memory_space<vmem>>, vector<1x16x128xf32>,
    } else {
    }
    return
  }
  func.func @transform_0(%arg0: i32, %arg1: i32) -> (i32, i32, i32) {
    %c0_i32 = arith.constant 0 : i32
    %c0_i32_0 = arith.constant 0 : i32
    return %arg0, %c0_i32, %arg1 : i32, i32, i32
  }
  func.func @transform_1(%arg0: i32, %arg1: i32) -> (i32, i32) {
    %c0_i32 = arith.constant 0 : i32
    %c0_i32_0 = arith.constant 0 : i32
    return %arg1, %c0_i32 : i32, i32
  }
  func.func @transform_2(%arg0: i32, %arg1: i32) -> (i32, i32) {
    %c0_i32 = arith.constant 0 : i32
    %c0_i32_0 = arith.constant 0 : i32
    %c0_i32_1 = arith.constant 0 : i32
    return %c0_i32, %c0_i32_0 : i32, i32
  }
  func.func @transform_3(%arg0: i32, %arg1: i32) -> (i32, i32, i32) {
    %c0_i32 = arith.constant 0 : i32
    %c0_i32_0 = arith.constant 0 : i32
    %c0_i32_1 = arith.constant 0 : i32
    return %arg0, %c0_i32, %c0_i32_0 : i32, i32, i32
  }
}

module attributes {stable_mosaic.version = 11 : i64} {
  func.func @kernel(%arg0: i32, %arg1: i32, %arg2: memref<1x16x384xbf16, #tpu.memory_space<vmem>>, %arg3: memref<384x128xbf16, #tpu.memory_space<vmem>>, %arg4: memref<1x128xf32, #tpu.memory_space<vmem>>, %arg5: memref<1x16x128xf32, #tpu.memory_space<vmem>>, %arg6: memref<1x16x128xf32, #tpu.memory_space<vmem>>, %arg7: memref<16x128xf32, #tpu.memory_space<vmem>>) attributes {dimension_semantics = [#tpu.dimension_semantics<parallel>, #tpu.dimension_semantics<arbitrary>], iteration_bounds = array<i64: 2, 1>, scalar_prefetch = 0 : i64, scratch_operands = 1 : i64, tpu.core_type = #tpu.core_type<tc>, window_params = [{transform_indices = @transform_0, window_bounds = array<i64: 1, 16, 384>}, {transform_indices = @transform_1, window_bounds = array<i64: 384, 128>}, {pipeline_mode = #tpu.pipeline_mode<synchronous>, transform_indices = @transform_2, window_bounds = array<i64: 1, 128>}, {transform_indices = @transform_3, window_bounds = array<i64: 1, 16, 128>}, {transform_indices = @transform_4, window_bounds = array<i64: 1, 16, 128>}]} {
    %c0_i32 = arith.constant 0 : i32
    %0 = arith.cmpi eq, %arg1, %c0_i32 : i32
    %1 = arith.extui %0 : i1 to i32
    %c0_i32_0 = arith.constant 0 : i32
    %2 = arith.cmpi ne, %1, %c0_i32_0 : i32
    scf.if %2 {
      %cst_11 = arith.constant 0.000000e+00 : f32
      %13 = vector.broadcast %cst_11 : f32 to vector<16x128xf32>
      %c0_12 = arith.constant 0 : index
      %c0_13 = arith.constant 0 : index
      %14 = vector.load %arg7[%c0_12, %c0_13] : memref<16x128xf32, #tpu.memory_space<vmem>>, vector<16x128xf32>
      tpu.vector_store %arg7[%c0_12, %c0_13], %13 {strides = array<i32>} : memref<16x128xf32, #tpu.memory_space<vmem>>, vector<16x128xf32>,
    } else {
    }
    %c0 = arith.constant 0 : index
    %c0_1 = arith.constant 0 : index
    %3 = vector.load %arg7[%c0, %c0_1] : memref<16x128xf32, #tpu.memory_space<vmem>>, vector<16x128xf32>
    %c0_2 = arith.constant 0 : index
    %c0_3 = arith.constant 0 : index
    %c0_4 = arith.constant 0 : index
    %4 = vector.load %arg2[%c0_2, %c0_3, %c0_4] : memref<1x16x384xbf16, #tpu.memory_space<vmem>>, vector<1x16x384xbf16>
    %5 = vector.shape_cast %4 : vector<1x16x384xbf16> to vector<16x384xbf16>
    %c0_5 = arith.constant 0 : index
    %c0_6 = arith.constant 0 : index
    %6 = vector.load %arg3[%c0_5, %c0_6] : memref<384x128xbf16, #tpu.memory_space<vmem>>, vector<384x128xbf16>
    %cst = arith.constant dense<0.000000e+00> : vector<16x128xf32>
    %7 = tpu.matmul %5, %6, %cst {dimension_numbers = #tpu.dot_dimension_numbers<[1], [0], [0], [1], [0, 0, 1, 1], [], []>} : vector<16x384xbf16>, vector<384x128xbf16>, vector<16x128xf32> -> vector<16x128xf32>
    %8 = arith.addf %3, %7 : vector<16x128xf32>
    %c0_7 = arith.constant 0 : index
    %c0_8 = arith.constant 0 : index
    %9 = vector.load %arg7[%c0_7, %c0_8] : memref<16x128xf32, #tpu.memory_space<vmem>>, vector<16x128xf32>
    tpu.vector_store %arg7[%c0_7, %c0_8], %8 {strides = array<i32>} : memref<16x128xf32, #tpu.memory_space<vmem>>, vector<16x128xf32>,
    %c0_i32_9 = arith.constant 0 : i32
    %10 = arith.cmpi eq, %arg1, %c0_i32_9 : i32
    %11 = arith.extui %10 : i1 to i32
    %c0_i32_10 = arith.constant 0 : i32
    %12 = arith.cmpi ne, %11, %c0_i32_10 : i32
    scf.if %12 {
      %c0_11 = arith.constant 0 : index
      %c0_12 = arith.constant 0 : index
      %13 = vector.load %arg7[%c0_11, %c0_12] : memref<16x128xf32, #tpu.memory_space<vmem>>, vector<16x128xf32>
      %c0_13 = arith.constant 0 : index
      %c0_14 = arith.constant 0 : index
      %14 = vector.load %arg4[%c0_13, %c0_14] : memref<1x128xf32, #tpu.memory_space<vmem>>, vector<1x128xf32>
      %15 = vector.broadcast %14 : vector<1x128xf32> to vector<16x128xf32>
      %16 = arith.addf %13, %15 : vector<16x128xf32>
      %cst_15 = arith.constant dense<0.000000e+00> : vector<128xf32>
      %17 = vector.multi_reduction <add>, %16, %cst_15 [0] : vector<16x128xf32> to vector<128xf32>
      %18 = vector.shape_cast %17 : vector<128xf32> to vector<1x128xf32>
      %cst_16 = arith.constant 1.600000e+01 : f32
      %19 = vector.broadcast %cst_16 : f32 to vector<1x128xf32>
      %20 = arith.divf %18, %19 : vector<1x128xf32>
      %21 = vector.broadcast %20 : vector<1x128xf32> to vector<16x128xf32>
      %22 = arith.subf %16, %21 : vector<16x128xf32>
      %23 = vector.broadcast %20 : vector<1x128xf32> to vector<16x128xf32>
      %24 = arith.subf %16, %23 : vector<16x128xf32>
      %25 = arith.mulf %22, %24 : vector<16x128xf32>
      %cst_17 = arith.constant dense<0.000000e+00> : vector<128xf32>
      %26 = vector.multi_reduction <add>, %25, %cst_17 [0] : vector<16x128xf32> to vector<128xf32>
      %27 = vector.shape_cast %26 : vector<128xf32> to vector<1x128xf32>
      %cst_18 = arith.constant 1.600000e+01 : f32
      %28 = vector.broadcast %cst_18 : f32 to vector<1x128xf32>
      %29 = arith.divf %27, %28 : vector<1x128xf32>
      %30 = vector.broadcast %20 : vector<1x128xf32> to vector<16x128xf32>
      %31 = arith.subf %16, %30 : vector<16x128xf32>
      %cst_19 = arith.constant 9.99999974E-6 : f32
      %32 = vector.broadcast %cst_19 : f32 to vector<1x128xf32>
      %33 = arith.addf %29, %32 : vector<1x128xf32>
      %34 = math.rsqrt %33 : vector<1x128xf32>
      %35 = vector.broadcast %34 : vector<1x128xf32> to vector<16x128xf32>
      %36 = arith.mulf %31, %35 : vector<16x128xf32>
      %c0_20 = arith.constant 0 : index
      %c0_21 = arith.constant 0 : index
      %c0_22 = arith.constant 0 : index
      %37 = vector.load %arg5[%c0_20, %c0_21, %c0_22] : memref<1x16x128xf32, #tpu.memory_space<vmem>>, vector<1x16x128xf32>
      %38 = vector.shape_cast %37 : vector<1x16x128xf32> to vector<16x128xf32>
      %39 = arith.addf %36, %38 : vector<16x128xf32>
      %c0_23 = arith.constant 0 : index
      %c0_24 = arith.constant 0 : index
      %c0_25 = arith.constant 0 : index
      %40 = vector.load %arg6[%c0_23, %c0_24, %c0_25] : memref<1x16x128xf32, #tpu.memory_space<vmem>>, vector<1x16x128xf32>
      %41 = vector.shape_cast %40 : vector<1x16x128xf32> to vector<16x128xf32>
      %42 = vector.shape_cast %39 : vector<16x128xf32> to vector<1x16x128xf32>
      tpu.vector_store %arg6[%c0_23, %c0_24, %c0_25], %42 {strides = array<i32>} : memref<1x16x128xf32, #tpu.memory_space<vmem>>, vector<1x16x128xf32>,
    } else {
    }
    return
  }
  func.func @transform_0(%arg0: i32, %arg1: i32) -> (i32, i32, i32) {
    %c0_i32 = arith.constant 0 : i32
    %c0_i32_0 = arith.constant 0 : i32
    return %arg0, %c0_i32, %arg1 : i32, i32, i32
  }
  func.func @transform_1(%arg0: i32, %arg1: i32) -> (i32, i32) {
    %c0_i32 = arith.constant 0 : i32
    %c0_i32_0 = arith.constant 0 : i32
    return %arg1, %c0_i32 : i32, i32
  }
  func.func @transform_2(%arg0: i32, %arg1: i32) -> (i32, i32) {
    %c0_i32 = arith.constant 0 : i32
    %c0_i32_0 = arith.constant 0 : i32
    %c0_i32_1 = arith.constant 0 : i32
    return %c0_i32, %c0_i32_0 : i32, i32
  }
  func.func @transform_3(%arg0: i32, %arg1: i32) -> (i32, i32, i32) {
    %c0_i32 = arith.constant 0 : i32
    %c0_i32_0 = arith.constant 0 : i32
    %c0_i32_1 = arith.constant 0 : i32
    return %arg0, %c0_i32, %c0_i32_0 : i32, i32, i32
  }
  func.func @transform_4(%arg0: i32, %arg1: i32) -> (i32, i32, i32) {
    %c0_i32 = arith.constant 0 : i32
    %c0_i32_0 = arith.constant 0 : i32
    %c0_i32_1 = arith.constant 0 : i32
    return %arg0, %c0_i32, %c0_i32_0 : i32, i32, i32
  }
}

module attributes {stable_mosaic.version = 11 : i64} {
  func.func @kernel(%arg0: i32, %arg1: i32, %arg2: memref<1x64x384xbf16, #tpu.memory_space<vmem>>, %arg3: memref<384x128xbf16, #tpu.memory_space<vmem>>, %arg4: memref<1x128xf32, #tpu.memory_space<vmem>>, %arg5: memref<1x64x128xf32, #tpu.memory_space<vmem>>, %arg6: memref<64x128xf32, #tpu.memory_space<vmem>>) attributes {dimension_semantics = [#tpu.dimension_semantics<parallel>, #tpu.dimension_semantics<arbitrary>], iteration_bounds = array<i64: 2, 1>, scalar_prefetch = 0 : i64, scratch_operands = 1 : i64, tpu.core_type = #tpu.core_type<tc>, window_params = [{transform_indices = @transform_0, window_bounds = array<i64: 1, 64, 384>}, {transform_indices = @transform_1, window_bounds = array<i64: 384, 128>}, {pipeline_mode = #tpu.pipeline_mode<synchronous>, transform_indices = @transform_2, window_bounds = array<i64: 1, 128>}, {transform_indices = @transform_3, window_bounds = array<i64: 1, 64, 128>}]} {
    %c0_i32 = arith.constant 0 : i32
    %0 = arith.cmpi eq, %arg1, %c0_i32 : i32
    %1 = arith.extui %0 : i1 to i32
    %c0_i32_0 = arith.constant 0 : i32
    %2 = arith.cmpi ne, %1, %c0_i32_0 : i32
    scf.if %2 {
      %cst_11 = arith.constant 0.000000e+00 : f32
      %13 = vector.broadcast %cst_11 : f32 to vector<64x128xf32>
      %c0_12 = arith.constant 0 : index
      %c0_13 = arith.constant 0 : index
      %14 = vector.load %arg6[%c0_12, %c0_13] : memref<64x128xf32, #tpu.memory_space<vmem>>, vector<64x128xf32>
      tpu.vector_store %arg6[%c0_12, %c0_13], %13 {strides = array<i32>} : memref<64x128xf32, #tpu.memory_space<vmem>>, vector<64x128xf32>,
    } else {
    }
    %c0 = arith.constant 0 : index
    %c0_1 = arith.constant 0 : index
    %3 = vector.load %arg6[%c0, %c0_1] : memref<64x128xf32, #tpu.memory_space<vmem>>, vector<64x128xf32>
    %c0_2 = arith.constant 0 : index
    %c0_3 = arith.constant 0 : index
    %c0_4 = arith.constant 0 : index
    %4 = vector.load %arg2[%c0_2, %c0_3, %c0_4] : memref<1x64x384xbf16, #tpu.memory_space<vmem>>, vector<1x64x384xbf16>
    %5 = vector.shape_cast %4 : vector<1x64x384xbf16> to vector<64x384xbf16>
    %c0_5 = arith.constant 0 : index
    %c0_6 = arith.constant 0 : index
    %6 = vector.load %arg3[%c0_5, %c0_6] : memref<384x128xbf16, #tpu.memory_space<vmem>>, vector<384x128xbf16>
    %cst = arith.constant dense<0.000000e+00> : vector<64x128xf32>
    %7 = tpu.matmul %5, %6, %cst {dimension_numbers = #tpu.dot_dimension_numbers<[1], [0], [0], [1], [0, 0, 1, 1], [], []>} : vector<64x384xbf16>, vector<384x128xbf16>, vector<64x128xf32> -> vector<64x128xf32>
    %8 = arith.addf %3, %7 : vector<64x128xf32>
    %c0_7 = arith.constant 0 : index
    %c0_8 = arith.constant 0 : index
    %9 = vector.load %arg6[%c0_7, %c0_8] : memref<64x128xf32, #tpu.memory_space<vmem>>, vector<64x128xf32>
    tpu.vector_store %arg6[%c0_7, %c0_8], %8 {strides = array<i32>} : memref<64x128xf32, #tpu.memory_space<vmem>>, vector<64x128xf32>,
    %c0_i32_9 = arith.constant 0 : i32
    %10 = arith.cmpi eq, %arg1, %c0_i32_9 : i32
    %11 = arith.extui %10 : i1 to i32
    %c0_i32_10 = arith.constant 0 : i32
    %12 = arith.cmpi ne, %11, %c0_i32_10 : i32
    scf.if %12 {
      %c0_11 = arith.constant 0 : index
      %c0_12 = arith.constant 0 : index
      %13 = vector.load %arg6[%c0_11, %c0_12] : memref<64x128xf32, #tpu.memory_space<vmem>>, vector<64x128xf32>
      %c0_13 = arith.constant 0 : index
      %c0_14 = arith.constant 0 : index
      %14 = vector.load %arg4[%c0_13, %c0_14] : memref<1x128xf32, #tpu.memory_space<vmem>>, vector<1x128xf32>
      %15 = vector.broadcast %14 : vector<1x128xf32> to vector<64x128xf32>
      %16 = arith.addf %13, %15 : vector<64x128xf32>
      %cst_15 = arith.constant dense<0.000000e+00> : vector<128xf32>
      %17 = vector.multi_reduction <add>, %16, %cst_15 [0] : vector<64x128xf32> to vector<128xf32>
      %18 = vector.shape_cast %17 : vector<128xf32> to vector<1x128xf32>
      %cst_16 = arith.constant 6.400000e+01 : f32
      %19 = vector.broadcast %cst_16 : f32 to vector<1x128xf32>
      %20 = arith.divf %18, %19 : vector<1x128xf32>
      %21 = vector.broadcast %20 : vector<1x128xf32> to vector<64x128xf32>
      %22 = arith.subf %16, %21 : vector<64x128xf32>
      %23 = vector.broadcast %20 : vector<1x128xf32> to vector<64x128xf32>
      %24 = arith.subf %16, %23 : vector<64x128xf32>
      %25 = arith.mulf %22, %24 : vector<64x128xf32>
      %cst_17 = arith.constant dense<0.000000e+00> : vector<128xf32>
      %26 = vector.multi_reduction <add>, %25, %cst_17 [0] : vector<64x128xf32> to vector<128xf32>
      %27 = vector.shape_cast %26 : vector<128xf32> to vector<1x128xf32>
      %cst_18 = arith.constant 6.400000e+01 : f32
      %28 = vector.broadcast %cst_18 : f32 to vector<1x128xf32>
      %29 = arith.divf %27, %28 : vector<1x128xf32>
      %30 = vector.broadcast %20 : vector<1x128xf32> to vector<64x128xf32>
      %31 = arith.subf %16, %30 : vector<64x128xf32>
      %cst_19 = arith.constant 9.99999974E-6 : f32
      %32 = vector.broadcast %cst_19 : f32 to vector<1x128xf32>
      %33 = arith.addf %29, %32 : vector<1x128xf32>
      %34 = math.rsqrt %33 : vector<1x128xf32>
      %35 = vector.broadcast %34 : vector<1x128xf32> to vector<64x128xf32>
      %36 = arith.mulf %31, %35 : vector<64x128xf32>
      %cst_20 = arith.constant 0.000000e+00 : f32
      %37 = vector.broadcast %cst_20 : f32 to vector<64x128xf32>
      %38 = arith.maximumf %36, %37 : vector<64x128xf32>
      %c0_21 = arith.constant 0 : index
      %c0_22 = arith.constant 0 : index
      %c0_23 = arith.constant 0 : index
      %39 = vector.load %arg5[%c0_21, %c0_22, %c0_23] : memref<1x64x128xf32, #tpu.memory_space<vmem>>, vector<1x64x128xf32>
      %40 = vector.shape_cast %39 : vector<1x64x128xf32> to vector<64x128xf32>
      %41 = vector.shape_cast %38 : vector<64x128xf32> to vector<1x64x128xf32>
      tpu.vector_store %arg5[%c0_21, %c0_22, %c0_23], %41 {strides = array<i32>} : memref<1x64x128xf32, #tpu.memory_space<vmem>>, vector<1x64x128xf32>,
    } else {
    }
    return
  }
  func.func @transform_0(%arg0: i32, %arg1: i32) -> (i32, i32, i32) {
    %c0_i32 = arith.constant 0 : i32
    %c0_i32_0 = arith.constant 0 : i32
    return %arg0, %c0_i32, %arg1 : i32, i32, i32
  }
  func.func @transform_1(%arg0: i32, %arg1: i32) -> (i32, i32) {
    %c0_i32 = arith.constant 0 : i32
    %c0_i32_0 = arith.constant 0 : i32
    return %arg1, %c0_i32 : i32, i32
  }
  func.func @transform_2(%arg0: i32, %arg1: i32) -> (i32, i32) {
    %c0_i32 = arith.constant 0 : i32
    %c0_i32_0 = arith.constant 0 : i32
    %c0_i32_1 = arith.constant 0 : i32
    return %c0_i32, %c0_i32_0 : i32, i32
  }
  func.func @transform_3(%arg0: i32, %arg1: i32) -> (i32, i32, i32) {
    %c0_i32 = arith.constant 0 : i32
    %c0_i32_0 = arith.constant 0 : i32
    %c0_i32_1 = arith.constant 0 : i32
    return %arg0, %c0_i32, %c0_i32_0 : i32, i32, i32
  }
}

module attributes {stable_mosaic.version = 11 : i64} {
  func.func @kernel(%arg0: i32, %arg1: i32, %arg2: memref<1x256x256xbf16, #tpu.memory_space<vmem>>, %arg3: memref<256x128xbf16, #tpu.memory_space<vmem>>, %arg4: memref<1x128xf32, #tpu.memory_space<vmem>>, %arg5: memref<1x256x128xf32, #tpu.memory_space<vmem>>, %arg6: memref<256x128xf32, #tpu.memory_space<vmem>>) attributes {dimension_semantics = [#tpu.dimension_semantics<parallel>, #tpu.dimension_semantics<arbitrary>], iteration_bounds = array<i64: 2, 1>, scalar_prefetch = 0 : i64, scratch_operands = 1 : i64, tpu.core_type = #tpu.core_type<tc>, window_params = [{transform_indices = @transform_0, window_bounds = array<i64: 1, 256, 256>}, {transform_indices = @transform_1, window_bounds = array<i64: 256, 128>}, {pipeline_mode = #tpu.pipeline_mode<synchronous>, transform_indices = @transform_2, window_bounds = array<i64: 1, 128>}, {transform_indices = @transform_3, window_bounds = array<i64: 1, 256, 128>}]} {
    %c0_i32 = arith.constant 0 : i32
    %0 = arith.cmpi eq, %arg1, %c0_i32 : i32
    %1 = arith.extui %0 : i1 to i32
    %c0_i32_0 = arith.constant 0 : i32
    %2 = arith.cmpi ne, %1, %c0_i32_0 : i32
    scf.if %2 {
      %cst_11 = arith.constant 0.000000e+00 : f32
      %13 = vector.broadcast %cst_11 : f32 to vector<256x128xf32>
      %c0_12 = arith.constant 0 : index
      %c0_13 = arith.constant 0 : index
      %14 = vector.load %arg6[%c0_12, %c0_13] : memref<256x128xf32, #tpu.memory_space<vmem>>, vector<256x128xf32>
      tpu.vector_store %arg6[%c0_12, %c0_13], %13 {strides = array<i32>} : memref<256x128xf32, #tpu.memory_space<vmem>>, vector<256x128xf32>,
    } else {
    }
    %c0 = arith.constant 0 : index
    %c0_1 = arith.constant 0 : index
    %3 = vector.load %arg6[%c0, %c0_1] : memref<256x128xf32, #tpu.memory_space<vmem>>, vector<256x128xf32>
    %c0_2 = arith.constant 0 : index
    %c0_3 = arith.constant 0 : index
    %c0_4 = arith.constant 0 : index
    %4 = vector.load %arg2[%c0_2, %c0_3, %c0_4] : memref<1x256x256xbf16, #tpu.memory_space<vmem>>, vector<1x256x256xbf16>
    %5 = vector.shape_cast %4 : vector<1x256x256xbf16> to vector<256x256xbf16>
    %c0_5 = arith.constant 0 : index
    %c0_6 = arith.constant 0 : index
    %6 = vector.load %arg3[%c0_5, %c0_6] : memref<256x128xbf16, #tpu.memory_space<vmem>>, vector<256x128xbf16>
    %cst = arith.constant dense<0.000000e+00> : vector<256x128xf32>
    %7 = tpu.matmul %5, %6, %cst {dimension_numbers = #tpu.dot_dimension_numbers<[1], [0], [0], [1], [0, 0, 1, 1], [], []>} : vector<256x256xbf16>, vector<256x128xbf16>, vector<256x128xf32> -> vector<256x128xf32>
    %8 = arith.addf %3, %7 : vector<256x128xf32>
    %c0_7 = arith.constant 0 : index
    %c0_8 = arith.constant 0 : index
    %9 = vector.load %arg6[%c0_7, %c0_8] : memref<256x128xf32, #tpu.memory_space<vmem>>, vector<256x128xf32>
    tpu.vector_store %arg6[%c0_7, %c0_8], %8 {strides = array<i32>} : memref<256x128xf32, #tpu.memory_space<vmem>>, vector<256x128xf32>,
    %c0_i32_9 = arith.constant 0 : i32
    %10 = arith.cmpi eq, %arg1, %c0_i32_9 : i32
    %11 = arith.extui %10 : i1 to i32
    %c0_i32_10 = arith.constant 0 : i32
    %12 = arith.cmpi ne, %11, %c0_i32_10 : i32
    scf.if %12 {
      %c0_11 = arith.constant 0 : index
      %c0_12 = arith.constant 0 : index
      %13 = vector.load %arg6[%c0_11, %c0_12] : memref<256x128xf32, #tpu.memory_space<vmem>>, vector<256x128xf32>
      %c0_13 = arith.constant 0 : index
      %c0_14 = arith.constant 0 : index
      %14 = vector.load %arg4[%c0_13, %c0_14] : memref<1x128xf32, #tpu.memory_space<vmem>>, vector<1x128xf32>
      %15 = vector.broadcast %14 : vector<1x128xf32> to vector<256x128xf32>
      %16 = arith.addf %13, %15 : vector<256x128xf32>
      %cst_15 = arith.constant dense<0.000000e+00> : vector<128xf32>
      %17 = vector.multi_reduction <add>, %16, %cst_15 [0] : vector<256x128xf32> to vector<128xf32>
      %18 = vector.shape_cast %17 : vector<128xf32> to vector<1x128xf32>
      %cst_16 = arith.constant 2.560000e+02 : f32
      %19 = vector.broadcast %cst_16 : f32 to vector<1x128xf32>
      %20 = arith.divf %18, %19 : vector<1x128xf32>
      %21 = vector.broadcast %20 : vector<1x128xf32> to vector<256x128xf32>
      %22 = arith.subf %16, %21 : vector<256x128xf32>
      %23 = vector.broadcast %20 : vector<1x128xf32> to vector<256x128xf32>
      %24 = arith.subf %16, %23 : vector<256x128xf32>
      %25 = arith.mulf %22, %24 : vector<256x128xf32>
      %cst_17 = arith.constant dense<0.000000e+00> : vector<128xf32>
      %26 = vector.multi_reduction <add>, %25, %cst_17 [0] : vector<256x128xf32> to vector<128xf32>
      %27 = vector.shape_cast %26 : vector<128xf32> to vector<1x128xf32>
      %cst_18 = arith.constant 2.560000e+02 : f32
      %28 = vector.broadcast %cst_18 : f32 to vector<1x128xf32>
      %29 = arith.divf %27, %28 : vector<1x128xf32>
      %30 = vector.broadcast %20 : vector<1x128xf32> to vector<256x128xf32>
      %31 = arith.subf %16, %30 : vector<256x128xf32>
      %cst_19 = arith.constant 9.99999974E-6 : f32
      %32 = vector.broadcast %cst_19 : f32 to vector<1x128xf32>
      %33 = arith.addf %29, %32 : vector<1x128xf32>
      %34 = math.rsqrt %33 : vector<1x128xf32>
      %35 = vector.broadcast %34 : vector<1x128xf32> to vector<256x128xf32>
      %36 = arith.mulf %31, %35 : vector<256x128xf32>
      %cst_20 = arith.constant 0.000000e+00 : f32
      %37 = vector.broadcast %cst_20 : f32 to vector<256x128xf32>
      %38 = arith.maximumf %36, %37 : vector<256x128xf32>
      %c0_21 = arith.constant 0 : index
      %c0_22 = arith.constant 0 : index
      %c0_23 = arith.constant 0 : index
      %39 = vector.load %arg5[%c0_21, %c0_22, %c0_23] : memref<1x256x128xf32, #tpu.memory_space<vmem>>, vector<1x256x128xf32>
      %40 = vector.shape_cast %39 : vector<1x256x128xf32> to vector<256x128xf32>
      %41 = vector.shape_cast %38 : vector<256x128xf32> to vector<1x256x128xf32>
      tpu.vector_store %arg5[%c0_21, %c0_22, %c0_23], %41 {strides = array<i32>} : memref<1x256x128xf32, #tpu.memory_space<vmem>>, vector<1x256x128xf32>,
    } else {
    }
    return
  }
  func.func @transform_0(%arg0: i32, %arg1: i32) -> (i32, i32, i32) {
    %c0_i32 = arith.constant 0 : i32
    %c0_i32_0 = arith.constant 0 : i32
    return %arg0, %c0_i32, %arg1 : i32, i32, i32
  }
  func.func @transform_1(%arg0: i32, %arg1: i32) -> (i32, i32) {
    %c0_i32 = arith.constant 0 : i32
    %c0_i32_0 = arith.constant 0 : i32
    return %arg1, %c0_i32 : i32, i32
  }
  func.func @transform_2(%arg0: i32, %arg1: i32) -> (i32, i32) {
    %c0_i32 = arith.constant 0 : i32
    %c0_i32_0 = arith.constant 0 : i32
    %c0_i32_1 = arith.constant 0 : i32
    return %c0_i32, %c0_i32_0 : i32, i32
  }
  func.func @transform_3(%arg0: i32, %arg1: i32) -> (i32, i32, i32) {
    %c0_i32 = arith.constant 0 : i32
    %c0_i32_0 = arith.constant 0 : i32
    %c0_i32_1 = arith.constant 0 : i32
    return %arg0, %c0_i32, %c0_i32_0 : i32, i32, i32
  }
}

module attributes {stable_mosaic.version = 11 : i64} {
  func.func @kernel(%arg0: i32, %arg1: i32, %arg2: memref<1x256x768xbf16, #tpu.memory_space<vmem>>, %arg3: memref<768x128xbf16, #tpu.memory_space<vmem>>, %arg4: memref<1x128xf32, #tpu.memory_space<vmem>>, %arg5: memref<1x256x128xf32, #tpu.memory_space<vmem>>, %arg6: memref<256x128xf32, #tpu.memory_space<vmem>>) attributes {dimension_semantics = [#tpu.dimension_semantics<parallel>, #tpu.dimension_semantics<arbitrary>], iteration_bounds = array<i64: 2, 1>, scalar_prefetch = 0 : i64, scratch_operands = 1 : i64, tpu.core_type = #tpu.core_type<tc>, window_params = [{transform_indices = @transform_0, window_bounds = array<i64: 1, 256, 768>}, {transform_indices = @transform_1, window_bounds = array<i64: 768, 128>}, {pipeline_mode = #tpu.pipeline_mode<synchronous>, transform_indices = @transform_2, window_bounds = array<i64: 1, 128>}, {transform_indices = @transform_3, window_bounds = array<i64: 1, 256, 128>}]} {
    %c0_i32 = arith.constant 0 : i32
    %0 = arith.cmpi eq, %arg1, %c0_i32 : i32
    %1 = arith.extui %0 : i1 to i32
    %c0_i32_0 = arith.constant 0 : i32
    %2 = arith.cmpi ne, %1, %c0_i32_0 : i32
    scf.if %2 {
      %cst_11 = arith.constant 0.000000e+00 : f32
      %13 = vector.broadcast %cst_11 : f32 to vector<256x128xf32>
      %c0_12 = arith.constant 0 : index
      %c0_13 = arith.constant 0 : index
      %14 = vector.load %arg6[%c0_12, %c0_13] : memref<256x128xf32, #tpu.memory_space<vmem>>, vector<256x128xf32>
      tpu.vector_store %arg6[%c0_12, %c0_13], %13 {strides = array<i32>} : memref<256x128xf32, #tpu.memory_space<vmem>>, vector<256x128xf32>,
    } else {
    }
    %c0 = arith.constant 0 : index
    %c0_1 = arith.constant 0 : index
    %3 = vector.load %arg6[%c0, %c0_1] : memref<256x128xf32, #tpu.memory_space<vmem>>, vector<256x128xf32>
    %c0_2 = arith.constant 0 : index
    %c0_3 = arith.constant 0 : index
    %c0_4 = arith.constant 0 : index
    %4 = vector.load %arg2[%c0_2, %c0_3, %c0_4] : memref<1x256x768xbf16, #tpu.memory_space<vmem>>, vector<1x256x768xbf16>
    %5 = vector.shape_cast %4 : vector<1x256x768xbf16> to vector<256x768xbf16>
    %c0_5 = arith.constant 0 : index
    %c0_6 = arith.constant 0 : index
    %6 = vector.load %arg3[%c0_5, %c0_6] : memref<768x128xbf16, #tpu.memory_space<vmem>>, vector<768x128xbf16>
    %cst = arith.constant dense<0.000000e+00> : vector<256x128xf32>
    %7 = tpu.matmul %5, %6, %cst {dimension_numbers = #tpu.dot_dimension_numbers<[1], [0], [0], [1], [0, 0, 1, 1], [], []>} : vector<256x768xbf16>, vector<768x128xbf16>, vector<256x128xf32> -> vector<256x128xf32>
    %8 = arith.addf %3, %7 : vector<256x128xf32>
    %c0_7 = arith.constant 0 : index
    %c0_8 = arith.constant 0 : index
    %9 = vector.load %arg6[%c0_7, %c0_8] : memref<256x128xf32, #tpu.memory_space<vmem>>, vector<256x128xf32>
    tpu.vector_store %arg6[%c0_7, %c0_8], %8 {strides = array<i32>} : memref<256x128xf32, #tpu.memory_space<vmem>>, vector<256x128xf32>,
    %c0_i32_9 = arith.constant 0 : i32
    %10 = arith.cmpi eq, %arg1, %c0_i32_9 : i32
    %11 = arith.extui %10 : i1 to i32
    %c0_i32_10 = arith.constant 0 : i32
    %12 = arith.cmpi ne, %11, %c0_i32_10 : i32
    scf.if %12 {
      %c0_11 = arith.constant 0 : index
      %c0_12 = arith.constant 0 : index
      %13 = vector.load %arg6[%c0_11, %c0_12] : memref<256x128xf32, #tpu.memory_space<vmem>>, vector<256x128xf32>
      %c0_13 = arith.constant 0 : index
      %c0_14 = arith.constant 0 : index
      %14 = vector.load %arg4[%c0_13, %c0_14] : memref<1x128xf32, #tpu.memory_space<vmem>>, vector<1x128xf32>
      %15 = vector.broadcast %14 : vector<1x128xf32> to vector<256x128xf32>
      %16 = arith.addf %13, %15 : vector<256x128xf32>
      %17 = math.tanh %16 : vector<256x128xf32>
      %c0_15 = arith.constant 0 : index
      %c0_16 = arith.constant 0 : index
      %c0_17 = arith.constant 0 : index
      %18 = vector.load %arg5[%c0_15, %c0_16, %c0_17] : memref<1x256x128xf32, #tpu.memory_space<vmem>>, vector<1x256x128xf32>
      %19 = vector.shape_cast %18 : vector<1x256x128xf32> to vector<256x128xf32>
      %20 = vector.shape_cast %17 : vector<256x128xf32> to vector<1x256x128xf32>
      tpu.vector_store %arg5[%c0_15, %c0_16, %c0_17], %20 {strides = array<i32>} : memref<1x256x128xf32, #tpu.memory_space<vmem>>, vector<1x256x128xf32>,
    } else {
    }
    return
  }
  func.func @transform_0(%arg0: i32, %arg1: i32) -> (i32, i32, i32) {
    %c0_i32 = arith.constant 0 : i32
    %c0_i32_0 = arith.constant 0 : i32
    return %arg0, %c0_i32, %arg1 : i32, i32, i32
  }
  func.func @transform_1(%arg0: i32, %arg1: i32) -> (i32, i32) {
    %c0_i32 = arith.constant 0 : i32
    %c0_i32_0 = arith.constant 0 : i32
    return %arg1, %c0_i32 : i32, i32
  }
  func.func @transform_2(%arg0: i32, %arg1: i32) -> (i32, i32) {
    %c0_i32 = arith.constant 0 : i32
    %c0_i32_0 = arith.constant 0 : i32
    %c0_i32_1 = arith.constant 0 : i32
    return %c0_i32, %c0_i32_0 : i32, i32
  }
  func.func @transform_3(%arg0: i32, %arg1: i32) -> (i32, i32, i32) {
    %c0_i32 = arith.constant 0 : i32
    %c0_i32_0 = arith.constant 0 : i32
    %c0_i32_1 = arith.constant 0 : i32
    return %arg0, %c0_i32, %c0_i32_0 : i32, i32, i32
  }
}

</mosaic_0001>

<llo_original>
// kernel: resnet_gen_forward.10
$region0: #{resnet_gen_forward.10}
  #allocation0 [shape = 'u32[]', space=smem, size = 0x4, offset = 0x4, fixed_abs, tag = 'smem constant byte address 0x4 - core index']
  #allocation1 [shape = 'u32[72,128]{1,0:T(1,128)}', space=vmem, size = 0x9000, scoped, tag = 'internal scratch']
  #allocation2 [shape = 'f32[256,128]{1,0:T(8,128)}', space=vmem, size = 0x20000, scoped, tag = 'scratch operand']
  %s0 = inlined_call_operand.vmem [shape: bf16[2,256,384], index: 0, kind: input, shape index: {}]
  %s1 = inlined_call_operand.vmem [shape: bf16[384,128], index: 1, kind: input, shape index: {}]
  %s2 = inlined_call_operand.vmem [shape: f32[1,128], index: 2, kind: input, shape index: {}]
  %s3 = inlined_call_operand.vmem [shape: f32[2,256,128], index: 3, kind: output, shape index: {}]
  %s4 = sld [smem:[#allocation0]]
  $region53: #{resnet_gen_forward.10} parent=0
    _
  %s6 = ssub.s32 1, %s4
  %s7 = scalar_select 0, %s6, %s4
  loop: start=0, step=1, limit=4
  $region2: #{resnet_gen_forward.10} parent=0 // loop_pre_header
    _
  $region3: #{resnet_gen_forward.10} parent=0 // loop_header
    %s9 = sphi 0, %s13
    %p10 = scmp.ge.s32.totalorder %s9, 4
    %s16 = sphi 0, %s28
    %s17 = sphi 0, %s24
    %s18 = sphi 0, %s16
    %s19 = sphi 0, %s17
    %s20 = sphi 0, %s18
    %s21 = sphi 0, %s19
    %s33 = sphi 0, %s35
    %s36 = sphi 0, %s33
    %s37 = sphi 0, %s36
    %s53 = sphi 0, %s37
    %s59 = sphi 0, %s61
    %s62 = sphi 0, %s59
    %s63 = sphi 0, %s62
    %s79 = sphi 0, %s63
    %s83 = sphi 0, %s83
    %s85 = sphi 0, %s83
    %s86 = sphi 0, %s85
    %s100 = sphi 0, %s86
    %s106 = sphi 0, %s108
    %s109 = sphi 0, %s106
    %s110 = sphi 0, %s109
    %s126 = sphi 0, %s110
  $region4: #{resnet_gen_forward.10} parent=0 // loop_header_branch
    %12 = sbr.rel (%p10) target = $region8
  $region5: #{resnet_gen_forward.10} parent=0 // loop_body
    %s14 = ssub.s32 %s9, 1
    %s15 = ssub.s32 %s9, 2
    %s22 = sadd.s32 1, %s17
    %p23 = scmp.ge.s32.totalorder %s22, 1
    %s24 = scalar_select %p23, 0, %s22
    %s25 = sadd.s32 1, %s16
    %s26 = scalar_select %p23, %s25, %s16
    %p27 = scmp.ge.s32.totalorder %s26, 2
    %s28 = scalar_select %p27, 0, %s26
    %s29 = ssub.s32 %s16, %s28
    %s30 = ssub.s32 %s17, %s24
    %s31 = sor.u32 %s29, %s30
    %p32 = scmp.eq.s32.totalorder %s31, 0
    %s34 = sadd.s32 %s33, 1
    %s35 = scalar_select %p32, %s33, %s34
    %p38 = pneg %p32
    %p39 = scmp.eq.s32.totalorder %s9, 1
    %p40 = por %p38, %p39
    %p41 = scmp.ne.s32.totalorder %s33, %s36
    %p42 = scmp.eq.s32.totalorder %s9, 0
    %p43 = por %p41, %p42
    %p44 = scmp.ne.s32.totalorder %s33, %s36
    %p45 = scmp.eq.s32.totalorder %s14, 1
    %p46 = por %p44, %p45
    %p47 = scmp.ne.s32.totalorder %s36, %s37
    %p48 = scmp.eq.s32.totalorder %s14, 0
    %p49 = por %p47, %p48
    %p50 = scmp.ne.s32.totalorder %s36, %s37
    %p51 = scmp.eq.s32.totalorder %s15, 1
    %p52 = por %p50, %p51
    %p54 = scmp.ne.s32.totalorder %s37, %s53
    %p55 = scmp.eq.s32.totalorder %s15, 0
    %p56 = por %p54, %p55
    %s57 = ssub.s32 %s17, %s24
    %p58 = scmp.eq.s32.totalorder %s57, 0
    %s60 = sadd.s32 %s59, 1
    %s61 = scalar_select %p58, %s59, %s60
    %p64 = pneg %p58
    %p65 = scmp.eq.s32.totalorder %s9, 1
    %p66 = por %p64, %p65
    %p67 = scmp.ne.s32.totalorder %s59, %s62
    %p68 = scmp.eq.s32.totalorder %s9, 0
    %p69 = por %p67, %p68
    %p70 = scmp.ne.s32.totalorder %s59, %s62
    %p71 = scmp.eq.s32.totalorder %s14, 1
    %p72 = por %p70, %p71
    %p73 = scmp.ne.s32.totalorder %s62, %s63
    %p74 = scmp.eq.s32.totalorder %s14, 0
    %p75 = por %p73, %p74
    %p76 = scmp.ne.s32.totalorder %s62, %s63
    %p77 = scmp.eq.s32.totalorder %s15, 1
    %p78 = por %p76, %p77
    %p80 = scmp.ne.s32.totalorder %s63, %s79
    %p81 = scmp.eq.s32.totalorder %s15, 0
    %p82 = por %p80, %p81
    %s84 = sadd.s32 %s83, 1
    %p87 = scmp.eq.s32.totalorder %s9, 1
    %p88 = scmp.ne.s32.totalorder %s83, %s85
    %p89 = scmp.eq.s32.totalorder %s9, 0
    %p90 = por %p88, %p89
    %p91 = scmp.ne.s32.totalorder %s83, %s85
    %p92 = scmp.eq.s32.totalorder %s14, 1
    %p93 = por %p91, %p92
    %p94 = scmp.ne.s32.totalorder %s85, %s86
    %p95 = scmp.eq.s32.totalorder %s14, 0
    %p96 = por %p94, %p95
    %p97 = scmp.ne.s32.totalorder %s85, %s86
    %p98 = scmp.eq.s32.totalorder %s15, 1
    %p99 = por %p97, %p98
    %p101 = scmp.ne.s32.totalorder %s86, %s100
    %p102 = scmp.eq.s32.totalorder %s15, 0
    %p103 = por %p101, %p102
    %s104 = ssub.s32 %s16, %s28
    %p105 = scmp.eq.s32.totalorder %s104, 0
    %s107 = sadd.s32 %s106, 1
    %s108 = scalar_select %p105, %s106, %s107
    %p111 = pneg %p105
    %p112 = scmp.eq.s32.totalorder %s9, 1
    %p113 = por %p111, %p112
    %p114 = scmp.ne.s32.totalorder %s106, %s109
    %p115 = scmp.eq.s32.totalorder %s9, 0
    %p116 = por %p114, %p115
    %p117 = scmp.ne.s32.totalorder %s106, %s109
    %p118 = scmp.eq.s32.totalorder %s14, 1
    %p119 = por %p117, %p118
    %p120 = scmp.ne.s32.totalorder %s109, %s110
    %p121 = scmp.eq.s32.totalorder %s14, 0
    %p122 = por %p120, %p121
    %p123 = scmp.ne.s32.totalorder %s109, %s110
    %p124 = scmp.eq.s32.totalorder %s15, 1
    %p125 = por %p123, %p124
    %p127 = scmp.ne.s32.totalorder %s110, %s126
    %p128 = scmp.eq.s32.totalorder %s15, 0
    %p129 = por %p127, %p128
    %p130 = scmp.le.s32.totalorder 1, %s9
    %p131 = scmp.lt.s32.totalorder %s9, 3
    %p132 = pnand %p130, %p131
    %p133 = pneg %p132
    // Predicated region
    $region9: #{resnet_gen_forward.10} parent=5 // pred_check
      _
    $region10: #{resnet_gen_forward.10} parent=5 // pred_check_branch
      %135 = sbr.rel (%p132) target = $region12
    $region11: #{resnet_gen_forward.10} parent=5 // pred_region
      %s136 = ssub.s32 %s9, 1
      // Predicated region
      $region13: #{resnet_gen_forward.10} parent=11 // pred_check
        %p137 = pneg %p75
      $region14: #{resnet_gen_forward.10} parent=11 // pred_check_branch
        %139 = sbr.rel (%p137) target = $region16
      $region15: #{resnet_gen_forward.10} parent=11 // pred_region
        %s140 = smul.u32 48, %s19
        %p141 = scmp.lt.s32.totalorder %s140, 47
        %s142 = scalar_select %p141, %s140, 47
        %s143 = smul.addr %s142, 4
        %s144 = scalar_lea.vmem %s1, %s143
        %s145 = smul.u32 48, %s19
      $region16: #{resnet_gen_forward.10} parent=11 // pred_fallthru
        _
      // Predicated region
      $region17: #{resnet_gen_forward.10} parent=11 // pred_check
        %p146 = pneg %p96
      $region18: #{resnet_gen_forward.10} parent=11 // pred_check_branch
        %148 = sbr.rel (%p146) target = $region20
      $region19: #{resnet_gen_forward.10} parent=11 // pred_region
        _
      $region20: #{resnet_gen_forward.10} parent=11 // pred_fallthru
        _
    $region12: #{resnet_gen_forward.10} parent=5 // pred_fallthru
      _
    %p149 = scmp.lt.s32.totalorder %s9, 2
    // Predicated region
    $region21: #{resnet_gen_forward.10} parent=5 // pred_check
      %p150 = pneg %p149
    $region22: #{resnet_gen_forward.10} parent=5 // pred_check_branch
      %152 = sbr.rel (%p150) target = $region24
    $region23: #{resnet_gen_forward.10} parent=5 // pred_region
      // Predicated region
      $region25: #{resnet_gen_forward.10} parent=23 // pred_check
        %p153 = pneg %p43
      $region26: #{resnet_gen_forward.10} parent=23 // pred_check_branch
        %155 = sbr.rel (%p153) target = $region28
      $region27: #{resnet_gen_forward.10} parent=23 // pred_region
        %s156 = smul.u32 3, %s17
        %p157 = scmp.lt.s32.totalorder %s16, 1
        %s158 = scalar_select %p157, %s16, 1
        %p159 = scmp.lt.s32.totalorder %s156, 2
        %s160 = scalar_select %p159, %s156, 2
        %s161 = smul.addr %s158, 96
        %s162 = sadd.s32 %s160, %s161
        %s163 = smul.addr %s162, 4
        %s164 = scalar_lea.vmem %s0, %s163
        %s165 = smul.u32 3, %s17
      $region28: #{resnet_gen_forward.10} parent=23 // pred_fallthru
        _
    $region24: #{resnet_gen_forward.10} parent=5 // pred_fallthru
      _
    %p166 = scmp.le.s32.totalorder 1, %s9
    %p167 = scmp.lt.s32.totalorder %s9, 3
    %p168 = pnand %p166, %p167
    %p169 = pneg %p168
    // Predicated region
    $region29: #{resnet_gen_forward.10} parent=5 // pred_check
      _
    $region30: #{resnet_gen_forward.10} parent=5 // pred_check_branch
      %171 = sbr.rel (%p168) target = $region32
    $region31: #{resnet_gen_forward.10} parent=5 // pred_region
      %s172 = ssub.s32 %s9, 1
      %s173 = smul.u32 3, %s19
      %p174 = scmp.lt.s32.totalorder %s18, 1
      %s175 = scalar_select %p174, %s18, 1
      %p176 = scmp.lt.s32.totalorder %s173, 2
      %s177 = scalar_select %p176, %s173, 2
      %s178 = smul.addr %s175, 96
      %s179 = sadd.s32 %s177, %s178
      %s180 = smul.addr %s179, 4
      %s181 = scalar_lea.vmem %s0, %s180
      %p182 = pneg %p49
      %p183 = pneg %p46
      %s184 = smul.u32 48, %s19
      %p185 = scmp.lt.s32.totalorder %s184, 47
      %s186 = scalar_select %p185, %s184, 47
      %s187 = smul.addr %s186, 4
      %s188 = scalar_lea.vmem %s1, %s187
      %p189 = pneg %p75
      %p190 = pneg %p72
      %p191 = pneg %p96
      %p192 = pneg %p93
      %p193 = pneg %p122
      %p194 = pneg %p119
      %p195 = scmp.lt.s32.totalorder %s18, 1
      %s196 = scalar_select %p195, %s18, 1
      %s197 = smul.addr %s196, 32
      %s198 = smul.addr %s197, 8
      %s199 = scalar_lea.vmem %s3, %s198
      %s200 = smul.u32 3, %s19
      %p201 = scmp.lt.s32.totalorder %s18, 1
      %s202 = scalar_select %p201, %s18, 1
      %p203 = scmp.lt.s32.totalorder %s200, 2
      %s204 = scalar_select %p203, %s200, 2
      %s205 = smul.addr %s202, 96
      %s206 = sadd.s32 %s204, %s205
      %s207 = smul.addr %s206, 4
      %s208 = scalar_lea.vmem %s0, %s207
      %s209 = smul.u32 3, %s19
      %s210 = smul.u32 48, %s19
      %p211 = scmp.lt.s32.totalorder %s210, 47
      %s212 = scalar_select %p211, %s210, 47
      %s213 = smul.addr %s212, 4
      %s214 = scalar_lea.vmem %s1, %s213
      %s215 = smul.u32 48, %s19
      %p216 = scmp.lt.s32.totalorder %s18, 1
      %s217 = scalar_select %p216, %s18, 1
      %s218 = smul.addr %s217, 32
      %s219 = smul.addr %s218, 8
      %s220 = scalar_lea.vmem %s3, %s219
      %p221 = scmp.eq.s32.totalorder %s19, 0
      // Predicated region
      $region33: #{resnet_gen_forward.10} parent=31 // pred_check
        %p222 = pneg %p221
      $region34: #{resnet_gen_forward.10} parent=31 // pred_check_branch
        %224 = sbr.rel (%p222) target = $region36
      $region35: #{resnet_gen_forward.10} parent=31 // pred_region
        %225 = vst [vmem:[#allocation2] sm:$0xff] 0.0
        %226 = vst [vmem:[#allocation2 + $0x8] sm:$0xff] 0.0
        %227 = vst [vmem:[#allocation2 + $0x10] sm:$0xff] 0.0
        %228 = vst [vmem:[#allocation2 + $0x18] sm:$0xff] 0.0
        %229 = vst [vmem:[#allocation2 + $0x20] sm:$0xff] 0.0
        %230 = vst [vmem:[#allocation2 + $0x28] sm:$0xff] 0.0
        %231 = vst [vmem:[#allocation2 + $0x30] sm:$0xff] 0.0
        %232 = vst [vmem:[#allocation2 + $0x38] sm:$0xff] 0.0
        %233 = vst [vmem:[#allocation2 + $0x40] sm:$0xff] 0.0
        %234 = vst [vmem:[#allocation2 + $0x48] sm:$0xff] 0.0
        %235 = vst [vmem:[#allocation2 + $0x50] sm:$0xff] 0.0
        %236 = vst [vmem:[#allocation2 + $0x58] sm:$0xff] 0.0
        %237 = vst [vmem:[#allocation2 + $0x60] sm:$0xff] 0.0
        %238 = vst [vmem:[#allocation2 + $0x68] sm:$0xff] 0.0
        %239 = vst [vmem:[#allocation2 + $0x70] sm:$0xff] 0.0
        %240 = vst [vmem:[#allocation2 + $0x78] sm:$0xff] 0.0
        %241 = vst [vmem:[#allocation2 + $0x80] sm:$0xff] 0.0
        %242 = vst [vmem:[#allocation2 + $0x88] sm:$0xff] 0.0
        %243 = vst [vmem:[#allocation2 + $0x90] sm:$0xff] 0.0
        %244 = vst [vmem:[#allocation2 + $0x98] sm:$0xff] 0.0
        %245 = vst [vmem:[#allocation2 + $0xa0] sm:$0xff] 0.0
        %246 = vst [vmem:[#allocation2 + $0xa8] sm:$0xff] 0.0
        %247 = vst [vmem:[#allocation2 + $0xb0] sm:$0xff] 0.0
        %248 = vst [vmem:[#allocation2 + $0xb8] sm:$0xff] 0.0
        %249 = vst [vmem:[#allocation2 + $0xc0] sm:$0xff] 0.0
        %250 = vst [vmem:[#allocation2 + $0xc8] sm:$0xff] 0.0
        %251 = vst [vmem:[#allocation2 + $0xd0] sm:$0xff] 0.0
        %252 = vst [vmem:[#allocation2 + $0xd8] sm:$0xff] 0.0
        %253 = vst [vmem:[#allocation2 + $0xe0] sm:$0xff] 0.0
        %254 = vst [vmem:[#allocation2 + $0xe8] sm:$0xff] 0.0
        %255 = vst [vmem:[#allocation2 + $0xf0] sm:$0xff] 0.0
        %256 = vst [vmem:[#allocation2 + $0xf8] sm:$0xff] 0.0
      $region36: #{resnet_gen_forward.10} parent=31 // pred_fallthru
        _
      %v257 = vld [vmem:[#allocation2] sm:$0xff]
      %v258 = vld [vmem:[#allocation2 + $0x8] sm:$0xff]
      %v259 = vld [vmem:[#allocation2 + $0x10] sm:$0xff]
      %v260 = vld [vmem:[#allocation2 + $0x18] sm:$0xff]
      %v261 = vld [vmem:[#allocation2 + $0x20] sm:$0xff]
      %v262 = vld [vmem:[#allocation2 + $0x28] sm:$0xff]
      %v263 = vld [vmem:[#allocation2 + $0x30] sm:$0xff]
      %v264 = vld [vmem:[#allocation2 + $0x38] sm:$0xff]
      %v265 = vld [vmem:[#allocation2 + $0x40] sm:$0xff]
      %v266 = vld [vmem:[#allocation2 + $0x48] sm:$0xff]
      %v267 = vld [vmem:[#allocation2 + $0x50] sm:$0xff]
      %v268 = vld [vmem:[#allocation2 + $0x58] sm:$0xff]
      %v269 = vld [vmem:[#allocation2 + $0x60] sm:$0xff]
      %v270 = vld [vmem:[#allocation2 + $0x68] sm:$0xff]
      %v271 = vld [vmem:[#allocation2 + $0x70] sm:$0xff]
      %v272 = vld [vmem:[#allocation2 + $0x78] sm:$0xff]
      %v273 = vld [vmem:[#allocation2 + $0x80] sm:$0xff]
      %v274 = vld [vmem:[#allocation2 + $0x88] sm:$0xff]
      %v275 = vld [vmem:[#allocation2 + $0x90] sm:$0xff]
      %v276 = vld [vmem:[#allocation2 + $0x98] sm:$0xff]
      %v277 = vld [vmem:[#allocation2 + $0xa0] sm:$0xff]
      %v278 = vld [vmem:[#allocation2 + $0xa8] sm:$0xff]
      %v279 = vld [vmem:[#allocation2 + $0xb0] sm:$0xff]
      %v280 = vld [vmem:[#allocation2 + $0xb8] sm:$0xff]
      %v281 = vld [vmem:[#allocation2 + $0xc0] sm:$0xff]
      %v282 = vld [vmem:[#allocation2 + $0xc8] sm:$0xff]
      %v283 = vld [vmem:[#allocation2 + $0xd0] sm:$0xff]
      %v284 = vld [vmem:[#allocation2 + $0xd8] sm:$0xff]
      %v285 = vld [vmem:[#allocation2 + $0xe0] sm:$0xff]
      %v286 = vld [vmem:[#allocation2 + $0xe8] sm:$0xff]
      %v287 = vld [vmem:[#allocation2 + $0xf0] sm:$0xff]
      %v288 = vld [vmem:[#allocation2 + $0xf8] sm:$0xff]
      %v289 = vld [vmem:[%s208] sm:$0xff]
      %v290 = vld [vmem:[%s208 + $0x8] sm:$0xf]
      %v291 = vld [vmem:[%s208 + $0xc] sm:$0xff]
      %v292 = vld [vmem:[%s208 + $0x14] sm:$0xf]
      %v293 = vld [vmem:[%s208 + $0x18] sm:$0xff]
      %v294 = vld [vmem:[%s208 + $0x20] sm:$0xf]
      %v295 = vld [vmem:[%s208 + $0x24] sm:$0xff]
      %v296 = vld [vmem:[%s208 + $0x2c] sm:$0xf]
      %v297 = vld [vmem:[%s208 + $0x30] sm:$0xff]
      %v298 = vld [vmem:[%s208 + $0x38] sm:$0xf]
      %v299 = vld [vmem:[%s208 + $0x3c] sm:$0xff]
      %v300 = vld [vmem:[%s208 + $0x44] sm:$0xf]
      %v301 = vld [vmem:[%s208 + $0x48] sm:$0xff]
      %v302 = vld [vmem:[%s208 + $0x50] sm:$0xf]
      %v303 = vld [vmem:[%s208 + $0x54] sm:$0xff]
      %v304 = vld [vmem:[%s208 + $0x5c] sm:$0xf]
      %v305 = vld [vmem:[%s208 + $0x60] sm:$0xff]
      %v306 = vld [vmem:[%s208 + $0x68] sm:$0xf]
      %v307 = vld [vmem:[%s208 + $0x6c] sm:$0xff]
      %v308 = vld [vmem:[%s208 + $0x74] sm:$0xf]
      %v309 = vld [vmem:[%s208 + $0x78] sm:$0xff]
      %v310 = vld [vmem:[%s208 + $0x80] sm:$0xf]
      %v311 = vld [vmem:[%s208 + $0x84] sm:$0xff]
      %v312 = vld [vmem:[%s208 + $0x8c] sm:$0xf]
      %v313 = vld [vmem:[%s208 + $0x90] sm:$0xff]
      %v314 = vld [vmem:[%s208 + $0x98] sm:$0xf]
      %v315 = vld [vmem:[%s208 + $0x9c] sm:$0xff]
      %v316 = vld [vmem:[%s208 + $0xa4] sm:$0xf]
      %v317 = vld [vmem:[%s208 + $0xa8] sm:$0xff]
      %v318 = vld [vmem:[%s208 + $0xb0] sm:$0xf]
      %v319 = vld [vmem:[%s208 + $0xb4] sm:$0xff]
      %v320 = vld [vmem:[%s208 + $0xbc] sm:$0xf]
      %v321 = vld [vmem:[%s208 + $0xc0] sm:$0xff]
      %v322 = vld [vmem:[%s208 + $0xc8] sm:$0xf]
      %v323 = vld [vmem:[%s208 + $0xcc] sm:$0xff]
      %v324 = vld [vmem:[%s208 + $0xd4] sm:$0xf]
      %v325 = vld [vmem:[%s208 + $0xd8] sm:$0xff]
      %v326 = vld [vmem:[%s208 + $0xe0] sm:$0xf]
      %v327 = vld [vmem:[%s208 + $0xe4] sm:$0xff]
      %v328 = vld [vmem:[%s208 + $0xec] sm:$0xf]
      %v329 = vld [vmem:[%s208 + $0xf0] sm:$0xff]
      %v330 = vld [vmem:[%s208 + $0xf8] sm:$0xf]
      %v331 = vld [vmem:[%s208 + $0xfc] sm:$0xff]
      %v332 = vld [vmem:[%s208 + $0x104] sm:$0xf]
      %v333 = vld [vmem:[%s208 + $0x108] sm:$0xff]
      %v334 = vld [vmem:[%s208 + $0x110] sm:$0xf]
      %v335 = vld [vmem:[%s208 + $0x114] sm:$0xff]
      %v336 = vld [vmem:[%s208 + $0x11c] sm:$0xf]
      %v337 = vld [vmem:[%s208 + $0x120] sm:$0xff]
      %v338 = vld [vmem:[%s208 + $0x128] sm:$0xf]
      %v339 = vld [vmem:[%s208 + $0x12c] sm:$0xff]
      %v340 = vld [vmem:[%s208 + $0x134] sm:$0xf]
      %v341 = vld [vmem:[%s208 + $0x138] sm:$0xff]
      %v342 = vld [vmem:[%s208 + $0x140] sm:$0xf]
      %v343 = vld [vmem:[%s208 + $0x144] sm:$0xff]
      %v344 = vld [vmem:[%s208 + $0x14c] sm:$0xf]
      %v345 = vld [vmem:[%s208 + $0x150] sm:$0xff]
      %v346 = vld [vmem:[%s208 + $0x158] sm:$0xf]
      %v347 = vld [vmem:[%s208 + $0x15c] sm:$0xff]
      %v348 = vld [vmem:[%s208 + $0x164] sm:$0xf]
      %v349 = vld [vmem:[%s208 + $0x168] sm:$0xff]
      %v350 = vld [vmem:[%s208 + $0x170] sm:$0xf]
      %v351 = vld [vmem:[%s208 + $0x174] sm:$0xff]
      %v352 = vld [vmem:[%s208 + $0x17c] sm:$0xf]
      %v353 = vld [vmem:[%s214] sm:$0xf]
      %v354 = vld [vmem:[%s214 + $0x4] sm:$0xf]
      %v355 = vld [vmem:[%s214 + $0x8] sm:$0xf]
      %v356 = vld [vmem:[%s214 + $0xc] sm:$0xf]
      %v357 = vld [vmem:[%s214 + $0x10] sm:$0xf]
      %v358 = vld [vmem:[%s214 + $0x14] sm:$0xf]
      %v359 = vld [vmem:[%s214 + $0x18] sm:$0xf]
      %v360 = vld [vmem:[%s214 + $0x1c] sm:$0xf]
      %v361 = vld [vmem:[%s214 + $0x20] sm:$0xf]
      %v362 = vld [vmem:[%s214 + $0x24] sm:$0xf]
      %v363 = vld [vmem:[%s214 + $0x28] sm:$0xf]
      %v364 = vld [vmem:[%s214 + $0x2c] sm:$0xf]
      %v365 = vld [vmem:[%s214 + $0x30] sm:$0xf]
      %v366 = vld [vmem:[%s214 + $0x34] sm:$0xf]
      %v367 = vld [vmem:[%s214 + $0x38] sm:$0xf]
      %v368 = vld [vmem:[%s214 + $0x3c] sm:$0xf]
      %v369 = vld [vmem:[%s214 + $0x40] sm:$0xf]
      %v370 = vld [vmem:[%s214 + $0x44] sm:$0xf]
      %v371 = vld [vmem:[%s214 + $0x48] sm:$0xf]
      %v372 = vld [vmem:[%s214 + $0x4c] sm:$0xf]
      %v373 = vld [vmem:[%s214 + $0x50] sm:$0xf]
      %v374 = vld [vmem:[%s214 + $0x54] sm:$0xf]
      %v375 = vld [vmem:[%s214 + $0x58] sm:$0xf]
      %v376 = vld [vmem:[%s214 + $0x5c] sm:$0xf]
      %v377 = vld [vmem:[%s214 + $0x60] sm:$0xf]
      %v378 = vld [vmem:[%s214 + $0x64] sm:$0xf]
      %v379 = vld [vmem:[%s214 + $0x68] sm:$0xf]
      %v380 = vld [vmem:[%s214 + $0x6c] sm:$0xf]
      %v381 = vld [vmem:[%s214 + $0x70] sm:$0xf]
      %v382 = vld [vmem:[%s214 + $0x74] sm:$0xf]
      %v383 = vld [vmem:[%s214 + $0x78] sm:$0xf]
      %v384 = vld [vmem:[%s214 + $0x7c] sm:$0xf]
      %v385 = vld [vmem:[%s214 + $0x80] sm:$0xf]
      %v386 = vld [vmem:[%s214 + $0x84] sm:$0xf]
      %v387 = vld [vmem:[%s214 + $0x88] sm:$0xf]
      %v388 = vld [vmem:[%s214 + $0x8c] sm:$0xf]
      %v389 = vld [vmem:[%s214 + $0x90] sm:$0xf]
      %v390 = vld [vmem:[%s214 + $0x94] sm:$0xf]
      %v391 = vld [vmem:[%s214 + $0x98] sm:$0xf]
      %v392 = vld [vmem:[%s214 + $0x9c] sm:$0xf]
      %v393 = vld [vmem:[%s214 + $0xa0] sm:$0xf]
      %v394 = vld [vmem:[%s214 + $0xa4] sm:$0xf]
      %v395 = vld [vmem:[%s214 + $0xa8] sm:$0xf]
      %v396 = vld [vmem:[%s214 + $0xac] sm:$0xf]
      %v397 = vld [vmem:[%s214 + $0xb0] sm:$0xf]
      %v398 = vld [vmem:[%s214 + $0xb4] sm:$0xf]
      %v399 = vld [vmem:[%s214 + $0xb8] sm:$0xf]
      %v400 = vld [vmem:[%s214 + $0xbc] sm:$0xf]
      %v465 = vunpack.c.l.b16 %v289
      %v466 = vunpack.c.h.b16 %v289
      %v467 = vunpack.c.l.b16 %v290
      %v468 = vunpack.c.l.b16 %v291
      %v469 = vunpack.c.h.b16 %v291
      %v470 = vunpack.c.l.b16 %v292
      %v471 = vunpack.c.l.b16 %v293
      %v472 = vunpack.c.h.b16 %v293
      %v473 = vunpack.c.l.b16 %v294
      %v474 = vunpack.c.l.b16 %v295
      %v475 = vunpack.c.h.b16 %v295
      %v476 = vunpack.c.l.b16 %v296
      %v477 = vunpack.c.l.b16 %v297
      %v478 = vunpack.c.h.b16 %v297
      %v479 = vunpack.c.l.b16 %v298
      %v480 = vunpack.c.l.b16 %v299
      %v481 = vunpack.c.h.b16 %v299
      %v482 = vunpack.c.l.b16 %v300
      %v483 = vunpack.c.l.b16 %v301
      %v484 = vunpack.c.h.b16 %v301
      %v485 = vunpack.c.l.b16 %v302
      %v486 = vunpack.c.l.b16 %v303
      %v487 = vunpack.c.h.b16 %v303
      %v488 = vunpack.c.l.b16 %v304
      %v489 = vunpack.c.l.b16 %v305
      %v490 = vunpack.c.h.b16 %v305
      %v491 = vunpack.c.l.b16 %v306
      %v492 = vunpack.c.l.b16 %v307
      %v493 = vunpack.c.h.b16 %v307
      %v494 = vunpack.c.l.b16 %v308
      %v495 = vunpack.c.l.b16 %v309
      %v496 = vunpack.c.h.b16 %v309
      %v497 = vunpack.c.l.b16 %v310
      %v498 = vunpack.c.l.b16 %v311
      %v499 = vunpack.c.h.b16 %v311
      %v500 = vunpack.c.l.b16 %v312
      %v501 = vunpack.c.l.b16 %v313
      %v502 = vunpack.c.h.b16 %v313
      %v503 = vunpack.c.l.b16 %v314
      %v504 = vunpack.c.l.b16 %v315
      %v505 = vunpack.c.h.b16 %v315
      %v506 = vunpack.c.l.b16 %v316
      %v507 = vunpack.c.l.b16 %v317
      %v508 = vunpack.c.h.b16 %v317
      %v509 = vunpack.c.l.b16 %v318
      %v510 = vunpack.c.l.b16 %v319
      %v511 = vunpack.c.h.b16 %v319
      %v512 = vunpack.c.l.b16 %v320
      %v513 = vunpack.c.l.b16 %v321
      %v514 = vunpack.c.h.b16 %v321
      %v515 = vunpack.c.l.b16 %v322
      %v516 = vunpack.c.l.b16 %v323
      %v517 = vunpack.c.h.b16 %v323
      %v518 = vunpack.c.l.b16 %v324
      %v519 = vunpack.c.l.b16 %v325
      %v520 = vunpack.c.h.b16 %v325
      %v521 = vunpack.c.l.b16 %v326
      %v522 = vunpack.c.l.b16 %v327
      %v523 = vunpack.c.h.b16 %v327
      %v524 = vunpack.c.l.b16 %v328
      %v525 = vunpack.c.l.b16 %v329
      %v526 = vunpack.c.h.b16 %v329
      %v527 = vunpack.c.l.b16 %v330
      %v528 = vunpack.c.l.b16 %v331
      %v529 = vunpack.c.h.b16 %v331
      %v530 = vunpack.c.l.b16 %v332
      %v531 = vunpack.c.l.b16 %v333
      %v532 = vunpack.c.h.b16 %v333
      %v533 = vunpack.c.l.b16 %v334
      %v534 = vunpack.c.l.b16 %v335
      %v535 = vunpack.c.h.b16 %v335
      %v536 = vunpack.c.l.b16 %v336
      %v537 = vunpack.c.l.b16 %v337
      %v538 = vunpack.c.h.b16 %v337
      %v539 = vunpack.c.l.b16 %v338
      %v540 = vunpack.c.l.b16 %v339
      %v541 = vunpack.c.h.b16 %v339
      %v542 = vunpack.c.l.b16 %v340
      %v543 = vunpack.c.l.b16 %v341
      %v544 = vunpack.c.h.b16 %v341
      %v545 = vunpack.c.l.b16 %v342
      %v546 = vunpack.c.l.b16 %v343
      %v547 = vunpack.c.h.b16 %v343
      %v548 = vunpack.c.l.b16 %v344
      %v549 = vunpack.c.l.b16 %v345
      %v550 = vunpack.c.h.b16 %v345
      %v551 = vunpack.c.l.b16 %v346
      %v552 = vunpack.c.l.b16 %v347
      %v553 = vunpack.c.h.b16 %v347
      %v554 = vunpack.c.l.b16 %v348
      %v555 = vunpack.c.l.b16 %v349
      %v556 = vunpack.c.h.b16 %v349
      %v557 = vunpack.c.l.b16 %v350
      %v558 = vunpack.c.l.b16 %v351
      %v559 = vunpack.c.h.b16 %v351
      %v560 = vunpack.c.l.b16 %v352
      %v561 = vpack.c.b16 %v468, %v465
      %v562 = vpack.c.b16 %v469, %v466
      %v563 = vpack.c.b16 %v470, %v467
      %v564 = vpack.c.b16 %v474, %v471
      %v565 = vpack.c.b16 %v475, %v472
      %v566 = vpack.c.b16 %v476, %v473
      %v567 = vpack.c.b16 %v480, %v477
      %v568 = vpack.c.b16 %v481, %v478
      %v569 = vpack.c.b16 %v482, %v479
      %v570 = vpack.c.b16 %v486, %v483
      %v571 = vpack.c.b16 %v487, %v484
      %v572 = vpack.c.b16 %v488, %v485
      %v573 = vpack.c.b16 %v492, %v489
      %v574 = vpack.c.b16 %v493, %v490
      %v575 = vpack.c.b16 %v494, %v491
      %v576 = vpack.c.b16 %v498, %v495
      %v577 = vpack.c.b16 %v499, %v496
      %v578 = vpack.c.b16 %v500, %v497
      %v579 = vpack.c.b16 %v504, %v501
      %v580 = vpack.c.b16 %v505, %v502
      %v581 = vpack.c.b16 %v506, %v503
      %v582 = vpack.c.b16 %v510, %v507
      %v583 = vpack.c.b16 %v511, %v508
      %v584 = vpack.c.b16 %v512, %v509
      %v585 = vpack.c.b16 %v516, %v513
      %v586 = vpack.c.b16 %v517, %v514
      %v587 = vpack.c.b16 %v518, %v515
      %v588 = vpack.c.b16 %v522, %v519
      %v589 = vpack.c.b16 %v523, %v520
      %v590 = vpack.c.b16 %v524, %v521
      %v591 = vpack.c.b16 %v528, %v525
      %v592 = vpack.c.b16 %v529, %v526
      %v593 = vpack.c.b16 %v530, %v527
      %v594 = vpack.c.b16 %v534, %v531
      %v595 = vpack.c.b16 %v535, %v532
      %v596 = vpack.c.b16 %v536, %v533
      %v597 = vpack.c.b16 %v540, %v537
      %v598 = vpack.c.b16 %v541, %v538
      %v599 = vpack.c.b16 %v542, %v539
      %v600 = vpack.c.b16 %v546, %v543
      %v601 = vpack.c.b16 %v547, %v544
      %v602 = vpack.c.b16 %v548, %v545
      %v603 = vpack.c.b16 %v552, %v549
      %v604 = vpack.c.b16 %v553, %v550
      %v605 = vpack.c.b16 %v554, %v551
      %v606 = vpack.c.b16 %v558, %v555
      %v607 = vpack.c.b16 %v559, %v556
      %v608 = vpack.c.b16 %v560, %v557
      %v705 = vunpack.c.l.b16 %v353
      %v706 = vunpack.c.l.b16 %v354
      %v707 = vunpack.c.l.b16 %v355
      %v708 = vunpack.c.l.b16 %v356
      %v709 = vunpack.c.l.b16 %v357
      %v710 = vunpack.c.l.b16 %v358
      %v711 = vunpack.c.l.b16 %v359
      %v712 = vunpack.c.l.b16 %v360
      %v713 = vunpack.c.l.b16 %v361
      %v714 = vunpack.c.l.b16 %v362
      %v715 = vunpack.c.l.b16 %v363
      %v716 = vunpack.c.l.b16 %v364
      %v717 = vunpack.c.l.b16 %v365
      %v718 = vunpack.c.l.b16 %v366
      %v719 = vunpack.c.l.b16 %v367
      %v720 = vunpack.c.l.b16 %v368
      %v721 = vunpack.c.l.b16 %v369
      %v722 = vunpack.c.l.b16 %v370
      %v723 = vunpack.c.l.b16 %v371
      %v724 = vunpack.c.l.b16 %v372
      %v725 = vunpack.c.l.b16 %v373
      %v726 = vunpack.c.l.b16 %v374
      %v727 = vunpack.c.l.b16 %v375
      %v728 = vunpack.c.l.b16 %v376
      %v729 = vunpack.c.l.b16 %v377
      %v730 = vunpack.c.l.b16 %v378
      %v731 = vunpack.c.l.b16 %v379
      %v732 = vunpack.c.l.b16 %v380
      %v733 = vunpack.c.l.b16 %v381
      %v734 = vunpack.c.l.b16 %v382
      %v735 = vunpack.c.l.b16 %v383
      %v736 = vunpack.c.l.b16 %v384
      %v737 = vunpack.c.l.b16 %v385
      %v738 = vunpack.c.l.b16 %v386
      %v739 = vunpack.c.l.b16 %v387
      %v740 = vunpack.c.l.b16 %v388
      %v741 = vunpack.c.l.b16 %v389
      %v742 = vunpack.c.l.b16 %v390
      %v743 = vunpack.c.l.b16 %v391
      %v744 = vunpack.c.l.b16 %v392
      %v745 = vunpack.c.l.b16 %v393
      %v746 = vunpack.c.l.b16 %v394
      %v747 = vunpack.c.l.b16 %v395
      %v748 = vunpack.c.l.b16 %v396
      %v749 = vunpack.c.l.b16 %v397
      %v750 = vunpack.c.l.b16 %v398
      %v751 = vunpack.c.l.b16 %v399
      %v752 = vunpack.c.l.b16 %v400
      %v753 = vpack.c.b16 %v706, %v705
      %v754 = vpack.c.b16 %v708, %v707
      %v755 = vpack.c.b16 %v710, %v709
      %v756 = vpack.c.b16 %v712, %v711
      %v757 = vpack.c.b16 %v714, %v713
      %v758 = vpack.c.b16 %v716, %v715
      %v759 = vpack.c.b16 %v718, %v717
      %v760 = vpack.c.b16 %v720, %v719
      %v761 = vpack.c.b16 %v722, %v721
      %v762 = vpack.c.b16 %v724, %v723
      %v763 = vpack.c.b16 %v726, %v725
      %v764 = vpack.c.b16 %v728, %v727
      %v765 = vpack.c.b16 %v730, %v729
      %v766 = vpack.c.b16 %v732, %v731
      %v767 = vpack.c.b16 %v734, %v733
      %v768 = vpack.c.b16 %v736, %v735
      %v769 = vpack.c.b16 %v738, %v737
      %v770 = vpack.c.b16 %v740, %v739
      %v771 = vpack.c.b16 %v742, %v741
      %v772 = vpack.c.b16 %v744, %v743
      %v773 = vpack.c.b16 %v746, %v745
      %v774 = vpack.c.b16 %v748, %v747
      %v775 = vpack.c.b16 %v750, %v749
      %v776 = vpack.c.b16 %v752, %v751
      %801 = vmatpush.bf16.msra.mxu0 %v760
      %802 = vmatpush.bf16.msra.mxu0 %v759
      %803 = vmatpush.bf16.msra.mxu0 %v758
      %804 = vmatpush.bf16.msra.mxu0 %v757
      %805 = vmatpush.bf16.msra.mxu0 %v756
      %806 = vmatpush.bf16.msra.mxu0 %v755
      %807 = vmatpush.bf16.msra.mxu0 %v754
      %808 = vmatpush.bf16.msra.mxu0 %v753
      %809 = vmatmul.bf16.gmra.mxu0 %v561
      %v810 = vpop.f32.mrf.mxu0
      %v811 = vadd.f32 0.0, %v810
      %v812 = vpop.f32.mrf.mxu0
      %v813 = vadd.f32 0.0, %v812
      %814 = vmatmul.bf16.gmra.mxu0 %v564
      %v815 = vpop.f32.mrf.mxu0
      %v816 = vadd.f32 0.0, %v815
      %v817 = vpop.f32.mrf.mxu0
      %v818 = vadd.f32 0.0, %v817
      %819 = vmatmul.bf16.gmra.mxu0 %v567
      %v820 = vpop.f32.mrf.mxu0
      %v821 = vadd.f32 0.0, %v820
      %v822 = vpop.f32.mrf.mxu0
      %v823 = vadd.f32 0.0, %v822
      %824 = vmatmul.bf16.gmra.mxu0 %v570
      %v825 = vpop.f32.mrf.mxu0
      %v826 = vadd.f32 0.0, %v825
      %v827 = vpop.f32.mrf.mxu0
      %v828 = vadd.f32 0.0, %v827
      %829 = vmatmul.bf16.gmra.mxu0 %v573
      %v830 = vpop.f32.mrf.mxu0
      %v831 = vadd.f32 0.0, %v830
      %v832 = vpop.f32.mrf.mxu0
      %v833 = vadd.f32 0.0, %v832
      %834 = vmatmul.bf16.gmra.mxu0 %v576
      %v835 = vpop.f32.mrf.mxu0
      %v836 = vadd.f32 0.0, %v835
      %v837 = vpop.f32.mrf.mxu0
      %v838 = vadd.f32 0.0, %v837
      %839 = vmatmul.bf16.gmra.mxu0 %v579
      %v840 = vpop.f32.mrf.mxu0
      %v841 = vadd.f32 0.0, %v840
      %v842 = vpop.f32.mrf.mxu0
      %v843 = vadd.f32 0.0, %v842
      %844 = vmatmul.bf16.gmra.mxu0 %v582
      %v845 = vpop.f32.mrf.mxu0
      %v846 = vadd.f32 0.0, %v845
      %v847 = vpop.f32.mrf.mxu0
      %v848 = vadd.f32 0.0, %v847
      %849 = vmatmul.bf16.gmra.mxu0 %v585
      %v850 = vpop.f32.mrf.mxu0
      %v851 = vadd.f32 0.0, %v850
      %v852 = vpop.f32.mrf.mxu0
      %v853 = vadd.f32 0.0, %v852
      %854 = vmatmul.bf16.gmra.mxu0 %v588
      %v855 = vpop.f32.mrf.mxu0
      %v856 = vadd.f32 0.0, %v855
      %v857 = vpop.f32.mrf.mxu0
      %v858 = vadd.f32 0.0, %v857
      %859 = vmatmul.bf16.gmra.mxu0 %v591
      %v860 = vpop.f32.mrf.mxu0
      %v861 = vadd.f32 0.0, %v860
      %v862 = vpop.f32.mrf.mxu0
      %v863 = vadd.f32 0.0, %v862
      %864 = vmatmul.bf16.gmra.mxu0 %v594
      %v865 = vpop.f32.mrf.mxu0
      %v866 = vadd.f32 0.0, %v865
      %v867 = vpop.f32.mrf.mxu0
      %v868 = vadd.f32 0.0, %v867
      %869 = vmatmul.bf16.gmra.mxu0 %v597
      %v870 = vpop.f32.mrf.mxu0
      %v871 = vadd.f32 0.0, %v870
      %v872 = vpop.f32.mrf.mxu0
      %v873 = vadd.f32 0.0, %v872
      %874 = vmatmul.bf16.gmra.mxu0 %v600
      %v875 = vpop.f32.mrf.mxu0
      %v876 = vadd.f32 0.0, %v875
      %v877 = vpop.f32.mrf.mxu0
      %v878 = vadd.f32 0.0, %v877
      %879 = vmatmul.bf16.gmra.mxu0 %v603
      %v880 = vpop.f32.mrf.mxu0
      %v881 = vadd.f32 0.0, %v880
      %v882 = vpop.f32.mrf.mxu0
      %v883 = vadd.f32 0.0, %v882
      %884 = vmatmul.bf16.gmra.mxu0 %v606
      %v885 = vpop.f32.mrf.mxu0
      %v886 = vadd.f32 0.0, %v885
      %v887 = vpop.f32.mrf.mxu0
      %v888 = vadd.f32 0.0, %v887
      %889 = vdwg.mxu0
      %890 = vmatpush.bf16.msra.mxu0 %v768
      %891 = vmatpush.bf16.msra.mxu0 %v767
      %892 = vmatpush.bf16.msra.mxu0 %v766
      %893 = vmatpush.bf16.msra.mxu0 %v765
      %894 = vmatpush.bf16.msra.mxu0 %v764
      %895 = vmatpush.bf16.msra.mxu0 %v763
      %896 = vmatpush.bf16.msra.mxu0 %v762
      %897 = vmatpush.bf16.msra.mxu0 %v761
      %898 = vmatmul.bf16.gmra.mxu0 %v562
      %v899 = vpop.f32.mrf.mxu0
      %v900 = vadd.f32 %v811, %v899
      %v901 = vpop.f32.mrf.mxu0
      %v902 = vadd.f32 %v813, %v901
      %903 = vmatmul.bf16.gmra.mxu0 %v565
      %v904 = vpop.f32.mrf.mxu0
      %v905 = vadd.f32 %v816, %v904
      %v906 = vpop.f32.mrf.mxu0
      %v907 = vadd.f32 %v818, %v906
      %908 = vmatmul.bf16.gmra.mxu0 %v568
      %v909 = vpop.f32.mrf.mxu0
      %v910 = vadd.f32 %v821, %v909
      %v911 = vpop.f32.mrf.mxu0
      %v912 = vadd.f32 %v823, %v911
      %913 = vmatmul.bf16.gmra.mxu0 %v571
      %v914 = vpop.f32.mrf.mxu0
      %v915 = vadd.f32 %v826, %v914
      %v916 = vpop.f32.mrf.mxu0
      %v917 = vadd.f32 %v828, %v916
      %918 = vmatmul.bf16.gmra.mxu0 %v574
      %v919 = vpop.f32.mrf.mxu0
      %v920 = vadd.f32 %v831, %v919
      %v921 = vpop.f32.mrf.mxu0
      %v922 = vadd.f32 %v833, %v921
      %923 = vmatmul.bf16.gmra.mxu0 %v577
      %v924 = vpop.f32.mrf.mxu0
      %v925 = vadd.f32 %v836, %v924
      %v926 = vpop.f32.mrf.mxu0
      %v927 = vadd.f32 %v838, %v926
      %928 = vmatmul.bf16.gmra.mxu0 %v580
      %v929 = vpop.f32.mrf.mxu0
      %v930 = vadd.f32 %v841, %v929
      %v931 = vpop.f32.mrf.mxu0
      %v932 = vadd.f32 %v843, %v931
      %933 = vmatmul.bf16.gmra.mxu0 %v583
      %v934 = vpop.f32.mrf.mxu0
      %v935 = vadd.f32 %v846, %v934
      %v936 = vpop.f32.mrf.mxu0
      %v937 = vadd.f32 %v848, %v936
      %938 = vmatmul.bf16.gmra.mxu0 %v586
      %v939 = vpop.f32.mrf.mxu0
      %v940 = vadd.f32 %v851, %v939
      %v941 = vpop.f32.mrf.mxu0
      %v942 = vadd.f32 %v853, %v941
      %943 = vmatmul.bf16.gmra.mxu0 %v589
      %v944 = vpop.f32.mrf.mxu0
      %v945 = vadd.f32 %v856, %v944
      %v946 = vpop.f32.mrf.mxu0
      %v947 = vadd.f32 %v858, %v946
      %948 = vmatmul.bf16.gmra.mxu0 %v592
      %v949 = vpop.f32.mrf.mxu0
      %v950 = vadd.f32 %v861, %v949
      %v951 = vpop.f32.mrf.mxu0
      %v952 = vadd.f32 %v863, %v951
      %953 = vmatmul.bf16.gmra.mxu0 %v595
      %v954 = vpop.f32.mrf.mxu0
      %v955 = vadd.f32 %v866, %v954
      %v956 = vpop.f32.mrf.mxu0
      %v957 = vadd.f32 %v868, %v956
      %958 = vmatmul.bf16.gmra.mxu0 %v598
      %v959 = vpop.f32.mrf.mxu0
      %v960 = vadd.f32 %v871, %v959
      %v961 = vpop.f32.mrf.mxu0
      %v962 = vadd.f32 %v873, %v961
      %963 = vmatmul.bf16.gmra.mxu0 %v601
      %v964 = vpop.f32.mrf.mxu0
      %v965 = vadd.f32 %v876, %v964
      %v966 = vpop.f32.mrf.mxu0
      %v967 = vadd.f32 %v878, %v966
      %968 = vmatmul.bf16.gmra.mxu0 %v604
      %v969 = vpop.f32.mrf.mxu0
      %v970 = vadd.f32 %v881, %v969
      %v971 = vpop.f32.mrf.mxu0
      %v972 = vadd.f32 %v883, %v971
      %973 = vmatmul.bf16.gmra.mxu0 %v607
      %v974 = vpop.f32.mrf.mxu0
      %v975 = vadd.f32 %v886, %v974
      %v976 = vpop.f32.mrf.mxu0
      %v977 = vadd.f32 %v888, %v976
      %978 = vdwg.mxu0
      %979 = vmatpush.bf16.msra.mxu0 %v776
      %980 = vmatpush.bf16.msra.mxu0 %v775
      %981 = vmatpush.bf16.msra.mxu0 %v774
      %982 = vmatpush.bf16.msra.mxu0 %v773
      %983 = vmatpush.bf16.msra.mxu0 %v772
      %984 = vmatpush.bf16.msra.mxu0 %v771
      %985 = vmatpush.bf16.msra.mxu0 %v770
      %986 = vmatpush.bf16.msra.mxu0 %v769
      %987 = vmatmul.bf16.gmra.mxu0 %v563
      %v988 = vpop.f32.mrf.mxu0
      %v989 = vadd.f32 %v900, %v988
      %v990 = vpop.f32.mrf.mxu0
      %v991 = vadd.f32 %v902, %v990
      %992 = vmatmul.bf16.gmra.mxu0 %v566
      %v993 = vpop.f32.mrf.mxu0
      %v994 = vadd.f32 %v905, %v993
      %v995 = vpop.f32.mrf.mxu0
      %v996 = vadd.f32 %v907, %v995
      %997 = vmatmul.bf16.gmra.mxu0 %v569
      %v998 = vpop.f32.mrf.mxu0
      %v999 = vadd.f32 %v910, %v998
      %v1000 = vpop.f32.mrf.mxu0
      %v1001 = vadd.f32 %v912, %v1000
      %1002 = vmatmul.bf16.gmra.mxu0 %v572
      %v1003 = vpop.f32.mrf.mxu0
      %v1004 = vadd.f32 %v915, %v1003
      %v1005 = vpop.f32.mrf.mxu0
      %v1006 = vadd.f32 %v917, %v1005
      %1007 = vmatmul.bf16.gmra.mxu0 %v575
      %v1008 = vpop.f32.mrf.mxu0
      %v1009 = vadd.f32 %v920, %v1008
      %v1010 = vpop.f32.mrf.mxu0
      %v1011 = vadd.f32 %v922, %v1010
      %1012 = vmatmul.bf16.gmra.mxu0 %v578
      %v1013 = vpop.f32.mrf.mxu0
      %v1014 = vadd.f32 %v925, %v1013
      %v1015 = vpop.f32.mrf.mxu0
      %v1016 = vadd.f32 %v927, %v1015
      %1017 = vmatmul.bf16.gmra.mxu0 %v581
      %v1018 = vpop.f32.mrf.mxu0
      %v1019 = vadd.f32 %v930, %v1018
      %v1020 = vpop.f32.mrf.mxu0
      %v1021 = vadd.f32 %v932, %v1020
      %1022 = vmatmul.bf16.gmra.mxu0 %v584
      %v1023 = vpop.f32.mrf.mxu0
      %v1024 = vadd.f32 %v935, %v1023
      %v1025 = vpop.f32.mrf.mxu0
      %v1026 = vadd.f32 %v937, %v1025
      %1027 = vmatmul.bf16.gmra.mxu0 %v587
      %v1028 = vpop.f32.mrf.mxu0
      %v1029 = vadd.f32 %v940, %v1028
      %v1030 = vpop.f32.mrf.mxu0
      %v1031 = vadd.f32 %v942, %v1030
      %1032 = vmatmul.bf16.gmra.mxu0 %v590
      %v1033 = vpop.f32.mrf.mxu0
      %v1034 = vadd.f32 %v945, %v1033
      %v1035 = vpop.f32.mrf.mxu0
      %v1036 = vadd.f32 %v947, %v1035
      %1037 = vmatmul.bf16.gmra.mxu0 %v593
      %v1038 = vpop.f32.mrf.mxu0
      %v1039 = vadd.f32 %v950, %v1038
      %v1040 = vpop.f32.mrf.mxu0
      %v1041 = vadd.f32 %v952, %v1040
      %1042 = vmatmul.bf16.gmra.mxu0 %v596
      %v1043 = vpop.f32.mrf.mxu0
      %v1044 = vadd.f32 %v955, %v1043
      %v1045 = vpop.f32.mrf.mxu0
      %v1046 = vadd.f32 %v957, %v1045
      %1047 = vmatmul.bf16.gmra.mxu0 %v599
      %v1048 = vpop.f32.mrf.mxu0
      %v1049 = vadd.f32 %v960, %v1048
      %v1050 = vpop.f32.mrf.mxu0
      %v1051 = vadd.f32 %v962, %v1050
      %1052 = vmatmul.bf16.gmra.mxu0 %v602
      %v1053 = vpop.f32.mrf.mxu0
      %v1054 = vadd.f32 %v965, %v1053
      %v1055 = vpop.f32.mrf.mxu0
      %v1056 = vadd.f32 %v967, %v1055
      %1057 = vmatmul.bf16.gmra.mxu0 %v605
      %v1058 = vpop.f32.mrf.mxu0
      %v1059 = vadd.f32 %v970, %v1058
      %v1060 = vpop.f32.mrf.mxu0
      %v1061 = vadd.f32 %v972, %v1060
      %1062 = vmatmul.bf16.gmra.mxu0 %v608
      %v1063 = vpop.f32.mrf.mxu0
      %v1064 = vadd.f32 %v975, %v1063
      %v1065 = vpop.f32.mrf.mxu0
      %v1066 = vadd.f32 %v977, %v1065
      %1067 = vdwg.mxu0
      %v1068 = vadd.f32 %v257, %v989
      %v1069 = vadd.f32 %v258, %v991
      %v1070 = vadd.f32 %v259, %v994
      %v1071 = vadd.f32 %v260, %v996
      %v1072 = vadd.f32 %v261, %v999
      %v1073 = vadd.f32 %v262, %v1001
      %v1074 = vadd.f32 %v263, %v1004
      %v1075 = vadd.f32 %v264, %v1006
      %v1076 = vadd.f32 %v265, %v1009
      %v1077 = vadd.f32 %v266, %v1011
      %v1078 = vadd.f32 %v267, %v1014
      %v1079 = vadd.f32 %v268, %v1016
      %v1080 = vadd.f32 %v269, %v1019
      %v1081 = vadd.f32 %v270, %v1021
      %v1082 = vadd.f32 %v271, %v1024
      %v1083 = vadd.f32 %v272, %v1026
      %v1084 = vadd.f32 %v273, %v1029
      %v1085 = vadd.f32 %v274, %v1031
      %v1086 = vadd.f32 %v275, %v1034
      %v1087 = vadd.f32 %v276, %v1036
      %v1088 = vadd.f32 %v277, %v1039
      %v1089 = vadd.f32 %v278, %v1041
      %v1090 = vadd.f32 %v279, %v1044
      %v1091 = vadd.f32 %v280, %v1046
      %v1092 = vadd.f32 %v281, %v1049
      %v1093 = vadd.f32 %v282, %v1051
      %v1094 = vadd.f32 %v283, %v1054
      %v1095 = vadd.f32 %v284, %v1056
      %v1096 = vadd.f32 %v285, %v1059
      %v1097 = vadd.f32 %v286, %v1061
      %v1098 = vadd.f32 %v287, %v1064
      %v1099 = vadd.f32 %v288, %v1066
      %1100 = vst [vmem:[#allocation2] sm:$0xff] %v1068
      %1101 = vst [vmem:[#allocation2 + $0x8] sm:$0xff] %v1069
      %1102 = vst [vmem:[#allocation2 + $0x10] sm:$0xff] %v1070
      %1103 = vst [vmem:[#allocation2 + $0x18] sm:$0xff] %v1071
      %1104 = vst [vmem:[#allocation2 + $0x20] sm:$0xff] %v1072
      %1105 = vst [vmem:[#allocation2 + $0x28] sm:$0xff] %v1073
      %1106 = vst [vmem:[#allocation2 + $0x30] sm:$0xff] %v1074
      %1107 = vst [vmem:[#allocation2 + $0x38] sm:$0xff] %v1075
      %1108 = vst [vmem:[#allocation2 + $0x40] sm:$0xff] %v1076
      %1109 = vst [vmem:[#allocation2 + $0x48] sm:$0xff] %v1077
      %1110 = vst [vmem:[#allocation2 + $0x50] sm:$0xff] %v1078
      %1111 = vst [vmem:[#allocation2 + $0x58] sm:$0xff] %v1079
      %1112 = vst [vmem:[#allocation2 + $0x60] sm:$0xff] %v1080
      %1113 = vst [vmem:[#allocation2 + $0x68] sm:$0xff] %v1081
      %1114 = vst [vmem:[#allocation2 + $0x70] sm:$0xff] %v1082
      %1115 = vst [vmem:[#allocation2 + $0x78] sm:$0xff] %v1083
      %1116 = vst [vmem:[#allocation2 + $0x80] sm:$0xff] %v1084
      %1117 = vst [vmem:[#allocation2 + $0x88] sm:$0xff] %v1085
      %1118 = vst [vmem:[#allocation2 + $0x90] sm:$0xff] %v1086
      %1119 = vst [vmem:[#allocation2 + $0x98] sm:$0xff] %v1087
      %1120 = vst [vmem:[#allocation2 + $0xa0] sm:$0xff] %v1088
      %1121 = vst [vmem:[#allocation2 + $0xa8] sm:$0xff] %v1089
      %1122 = vst [vmem:[#allocation2 + $0xb0] sm:$0xff] %v1090
      %1123 = vst [vmem:[#allocation2 + $0xb8] sm:$0xff] %v1091
      %1124 = vst [vmem:[#allocation2 + $0xc0] sm:$0xff] %v1092
      %1125 = vst [vmem:[#allocation2 + $0xc8] sm:$0xff] %v1093
      %1126 = vst [vmem:[#allocation2 + $0xd0] sm:$0xff] %v1094
      %1127 = vst [vmem:[#allocation2 + $0xd8] sm:$0xff] %v1095
      %1128 = vst [vmem:[#allocation2 + $0xe0] sm:$0xff] %v1096
      %1129 = vst [vmem:[#allocation2 + $0xe8] sm:$0xff] %v1097
      %1130 = vst [vmem:[#allocation2 + $0xf0] sm:$0xff] %v1098
      %1131 = vst [vmem:[#allocation2 + $0xf8] sm:$0xff] %v1099
      // Predicated region
      $region37: #{resnet_gen_forward.10} parent=31 // pred_check
        %p1132 = pneg %p221
      $region38: #{resnet_gen_forward.10} parent=31 // pred_check_branch
        %1134 = sbr.rel (%p1132) target = $region40
      $region39: #{resnet_gen_forward.10} parent=31 // pred_region
        %v1135 = vld [vmem:[#allocation2] sm:$0xff]
        %v1136 = vld [vmem:[#allocation2 + $0x8] sm:$0xff]
        %v1137 = vld [vmem:[#allocation2 + $0x10] sm:$0xff]
        %v1138 = vld [vmem:[#allocation2 + $0x18] sm:$0xff]
        %v1139 = vld [vmem:[#allocation2 + $0x20] sm:$0xff]
        %v1140 = vld [vmem:[#allocation2 + $0x28] sm:$0xff]
        %v1141 = vld [vmem:[#allocation2 + $0x30] sm:$0xff]
        %v1142 = vld [vmem:[#allocation2 + $0x38] sm:$0xff]
        %v1143 = vld [vmem:[#allocation2 + $0x40] sm:$0xff]
        %v1144 = vld [vmem:[#allocation2 + $0x48] sm:$0xff]
        %v1145 = vld [vmem:[#allocation2 + $0x50] sm:$0xff]
        %v1146 = vld [vmem:[#allocation2 + $0x58] sm:$0xff]
        %v1147 = vld [vmem:[#allocation2 + $0x60] sm:$0xff]
        %v1148 = vld [vmem:[#allocation2 + $0x68] sm:$0xff]
        %v1149 = vld [vmem:[#allocation2 + $0x70] sm:$0xff]
        %v1150 = vld [vmem:[#allocation2 + $0x78] sm:$0xff]
        %v1151 = vld [vmem:[#allocation2 + $0x80] sm:$0xff]
        %v1152 = vld [vmem:[#allocation2 + $0x88] sm:$0xff]
        %v1153 = vld [vmem:[#allocation2 + $0x90] sm:$0xff]
        %v1154 = vld [vmem:[#allocation2 + $0x98] sm:$0xff]
        %v1155 = vld [vmem:[#allocation2 + $0xa0] sm:$0xff]
        %v1156 = vld [vmem:[#allocation2 + $0xa8] sm:$0xff]
        %v1157 = vld [vmem:[#allocation2 + $0xb0] sm:$0xff]
        %v1158 = vld [vmem:[#allocation2 + $0xb8] sm:$0xff]
        %v1159 = vld [vmem:[#allocation2 + $0xc0] sm:$0xff]
        %v1160 = vld [vmem:[#allocation2 + $0xc8] sm:$0xff]
        %v1161 = vld [vmem:[#allocation2 + $0xd0] sm:$0xff]
        %v1162 = vld [vmem:[#allocation2 + $0xd8] sm:$0xff]
        %v1163 = vld [vmem:[#allocation2 + $0xe0] sm:$0xff]
        %v1164 = vld [vmem:[#allocation2 + $0xe8] sm:$0xff]
        %v1165 = vld [vmem:[#allocation2 + $0xf0] sm:$0xff]
        %v1166 = vld [vmem:[#allocation2 + $0xf8] sm:$0xff]
        %v1167 = vld [vmem:[%s2] sm:$0x1]
        %v1169 = vperm.slane %v1167, 0
        %v1171 = vadd.f32 %v1135, %v1169
        %v1172 = vadd.f32 %v1136, %v1169
        %v1173 = vadd.f32 %v1137, %v1169
        %v1174 = vadd.f32 %v1138, %v1169
        %v1175 = vadd.f32 %v1139, %v1169
        %v1176 = vadd.f32 %v1140, %v1169
        %v1177 = vadd.f32 %v1141, %v1169
        %v1178 = vadd.f32 %v1142, %v1169
        %v1179 = vadd.f32 %v1143, %v1169
        %v1180 = vadd.f32 %v1144, %v1169
        %v1181 = vadd.f32 %v1145, %v1169
        %v1182 = vadd.f32 %v1146, %v1169
        %v1183 = vadd.f32 %v1147, %v1169
        %v1184 = vadd.f32 %v1148, %v1169
        %v1185 = vadd.f32 %v1149, %v1169
        %v1186 = vadd.f32 %v1150, %v1169
        %v1187 = vadd.f32 %v1151, %v1169
        %v1188 = vadd.f32 %v1152, %v1169
        %v1189 = vadd.f32 %v1153, %v1169
        %v1190 = vadd.f32 %v1154, %v1169
        %v1191 = vadd.f32 %v1155, %v1169
        %v1192 = vadd.f32 %v1156, %v1169
        %v1193 = vadd.f32 %v1157, %v1169
        %v1194 = vadd.f32 %v1158, %v1169
        %v1195 = vadd.f32 %v1159, %v1169
        %v1196 = vadd.f32 %v1160, %v1169
        %v1197 = vadd.f32 %v1161, %v1169
        %v1198 = vadd.f32 %v1162, %v1169
        %v1199 = vadd.f32 %v1163, %v1169
        %v1200 = vadd.f32 %v1164, %v1169
        %v1201 = vadd.f32 %v1165, %v1169
        %v1202 = vadd.f32 %v1166, %v1169
        %v1203 = vadd.f32 %v1171, %v1172
        %v1204 = vadd.f32 %v1203, %v1173
        %v1205 = vadd.f32 %v1204, %v1174
        %v1206 = vadd.f32 %v1205, %v1175
        %v1207 = vadd.f32 %v1206, %v1176
        %v1208 = vadd.f32 %v1207, %v1177
        %v1209 = vadd.f32 %v1208, %v1178
        %v1210 = vadd.f32 %v1209, %v1179
        %v1211 = vadd.f32 %v1210, %v1180
        %v1212 = vadd.f32 %v1211, %v1181
        %v1213 = vadd.f32 %v1212, %v1182
        %v1214 = vadd.f32 %v1213, %v1183
        %v1215 = vadd.f32 %v1214, %v1184
        %v1216 = vadd.f32 %v1215, %v1185
        %v1217 = vadd.f32 %v1216, %v1186
        %v1218 = vadd.f32 %v1217, %v1187
        %v1219 = vadd.f32 %v1218, %v1188
        %v1220 = vadd.f32 %v1219, %v1189
        %v1221 = vadd.f32 %v1220, %v1190
        %v1222 = vadd.f32 %v1221, %v1191
        %v1223 = vadd.f32 %v1222, %v1192
        %v1224 = vadd.f32 %v1223, %v1193
        %v1225 = vadd.f32 %v1224, %v1194
        %v1226 = vadd.f32 %v1225, %v1195
        %v1227 = vadd.f32 %v1226, %v1196
        %v1228 = vadd.f32 %v1227, %v1197
        %v1229 = vadd.f32 %v1228, %v1198
        %v1230 = vadd.f32 %v1229, %v1199
        %v1231 = vadd.f32 %v1230, %v1200
        %v1232 = vadd.f32 %v1231, %v1201
        %v1233 = vadd.f32 %v1232, %v1202
        %v1234 = vrot.slane %v1233, 4
        %v1235 = vadd.f32 %v1233, %v1234
        %v1236 = vrot.slane %v1235, 2
        %v1237 = vadd.f32 %v1235, %v1236
        %v1238 = vrot.slane %v1237, 1
        %v1239 = vadd.f32 %v1237, %v1238
        %v1240 = vrcp.pop 256.0
        %v1241 = vmul.f32 256.0, %v1240
        %v1242 = vsub.f32 1.0, %v1241
        %v1243 = vmul.f32 %v1240, %v1242
        %v1244 = vadd.f32 %v1240, %v1243
        %vm1245 = vweird.f32 %v1240
        %v1246 = vsel %vm1245, %v1240, %v1244
        %v1247 = vmul.f32 %v1239, %v1246
        %v1248 = vsub.f32 %v1171, %v1247
        %v1249 = vsub.f32 %v1172, %v1247
        %v1250 = vsub.f32 %v1173, %v1247
        %v1251 = vsub.f32 %v1174, %v1247
        %v1252 = vsub.f32 %v1175, %v1247
        %v1253 = vsub.f32 %v1176, %v1247
        %v1254 = vsub.f32 %v1177, %v1247
        %v1255 = vsub.f32 %v1178, %v1247
        %v1256 = vsub.f32 %v1179, %v1247
        %v1257 = vsub.f32 %v1180, %v1247
        %v1258 = vsub.f32 %v1181, %v1247
        %v1259 = vsub.f32 %v1182, %v1247
        %v1260 = vsub.f32 %v1183, %v1247
        %v1261 = vsub.f32 %v1184, %v1247
        %v1262 = vsub.f32 %v1185, %v1247
        %v1263 = vsub.f32 %v1186, %v1247
        %v1264 = vsub.f32 %v1187, %v1247
        %v1265 = vsub.f32 %v1188, %v1247
        %v1266 = vsub.f32 %v1189, %v1247
        %v1267 = vsub.f32 %v1190, %v1247
        %v1268 = vsub.f32 %v1191, %v1247
        %v1269 = vsub.f32 %v1192, %v1247
        %v1270 = vsub.f32 %v1193, %v1247
        %v1271 = vsub.f32 %v1194, %v1247
        %v1272 = vsub.f32 %v1195, %v1247
        %v1273 = vsub.f32 %v1196, %v1247
        %v1274 = vsub.f32 %v1197, %v1247
        %v1275 = vsub.f32 %v1198, %v1247
        %v1276 = vsub.f32 %v1199, %v1247
        %v1277 = vsub.f32 %v1200, %v1247
        %v1278 = vsub.f32 %v1201, %v1247
        %v1279 = vsub.f32 %v1202, %v1247
        %v1280 = vmul.f32 %v1248, %v1248
        %v1281 = vmul.f32 %v1249, %v1249
        %v1282 = vmul.f32 %v1250, %v1250
        %v1283 = vmul.f32 %v1251, %v1251
        %v1284 = vmul.f32 %v1252, %v1252
        %v1285 = vmul.f32 %v1253, %v1253
        %v1286 = vmul.f32 %v1254, %v1254
        %v1287 = vmul.f32 %v1255, %v1255
        %v1288 = vmul.f32 %v1256, %v1256
        %v1289 = vmul.f32 %v1257, %v1257
        %v1290 = vmul.f32 %v1258, %v1258
        %v1291 = vmul.f32 %v1259, %v1259
        %v1292 = vmul.f32 %v1260, %v1260
        %v1293 = vmul.f32 %v1261, %v1261
        %v1294 = vmul.f32 %v1262, %v1262
        %v1295 = vmul.f32 %v1263, %v1263
        %v1296 = vmul.f32 %v1264, %v1264
        %v1297 = vmul.f32 %v1265, %v1265
        %v1298 = vmul.f32 %v1266, %v1266
        %v1299 = vmul.f32 %v1267, %v1267
        %v1300 = vmul.f32 %v1268, %v1268
        %v1301 = vmul.f32 %v1269, %v1269
        %v1302 = vmul.f32 %v1270, %v1270
        %v1303 = vmul.f32 %v1271, %v1271
        %v1304 = vmul.f32 %v1272, %v1272
        %v1305 = vmul.f32 %v1273, %v1273
        %v1306 = vmul.f32 %v1274, %v1274
        %v1307 = vmul.f32 %v1275, %v1275
        %v1308 = vmul.f32 %v1276, %v1276
        %v1309 = vmul.f32 %v1277, %v1277
        %v1310 = vmul.f32 %v1278, %v1278
        %v1311 = vmul.f32 %v1279, %v1279
        %v1312 = vadd.f32 %v1280, %v1281
        %v1313 = vadd.f32 %v1312, %v1282
        %v1314 = vadd.f32 %v1313, %v1283
        %v1315 = vadd.f32 %v1314, %v1284
        %v1316 = vadd.f32 %v1315, %v1285
        %v1317 = vadd.f32 %v1316, %v1286
        %v1318 = vadd.f32 %v1317, %v1287
        %v1319 = vadd.f32 %v1318, %v1288
        %v1320 = vadd.f32 %v1319, %v1289
        %v1321 = vadd.f32 %v1320, %v1290
        %v1322 = vadd.f32 %v1321, %v1291
        %v1323 = vadd.f32 %v1322, %v1292
        %v1324 = vadd.f32 %v1323, %v1293
        %v1325 = vadd.f32 %v1324, %v1294
        %v1326 = vadd.f32 %v1325, %v1295
        %v1327 = vadd.f32 %v1326, %v1296
        %v1328 = vadd.f32 %v1327, %v1297
        %v1329 = vadd.f32 %v1328, %v1298
        %v1330 = vadd.f32 %v1329, %v1299
        %v1331 = vadd.f32 %v1330, %v1300
        %v1332 = vadd.f32 %v1331, %v1301
        %v1333 = vadd.f32 %v1332, %v1302
        %v1334 = vadd.f32 %v1333, %v1303
        %v1335 = vadd.f32 %v1334, %v1304
        %v1336 = vadd.f32 %v1335, %v1305
        %v1337 = vadd.f32 %v1336, %v1306
        %v1338 = vadd.f32 %v1337, %v1307
        %v1339 = vadd.f32 %v1338, %v1308
        %v1340 = vadd.f32 %v1339, %v1309
        %v1341 = vadd.f32 %v1340, %v1310
        %v1342 = vadd.f32 %v1341, %v1311
        %v1343 = vrot.slane %v1342, 4
        %v1344 = vadd.f32 %v1342, %v1343
        %v1345 = vrot.slane %v1344, 2
        %v1346 = vadd.f32 %v1344, %v1345
        %v1347 = vrot.slane %v1346, 1
        %v1348 = vadd.f32 %v1346, %v1347
        %v1349 = vmul.f32 %v1348, %v1246
        %v1350 = vadd.f32 %v1349, 1e-05
        %v1351 = vrsqrt.pop %v1350
        %v1352 = vmul.f32 %v1351, %v1350
        %v1353 = vmul.f32 %v1352, %v1351
        %v1354 = vmul.f32 0.5, %v1353
        %v1355 = vsub.f32 1.5, %v1354
        %v1356 = vmul.f32 %v1351, %v1355
        %vm1357 = vweird.f32 %v1350
        %vm1358 = vweird.f32 %v1351
        %vm1359 = vmor %vm1357, %vm1358
        %v1360 = vsel %vm1359, %v1351, %v1356
        %v1361 = vmul.f32 %v1248, %v1360
        %v1362 = vmul.f32 %v1249, %v1360
        %v1363 = vmul.f32 %v1250, %v1360
        %v1364 = vmul.f32 %v1251, %v1360
        %v1365 = vmul.f32 %v1252, %v1360
        %v1366 = vmul.f32 %v1253, %v1360
        %v1367 = vmul.f32 %v1254, %v1360
        %v1368 = vmul.f32 %v1255, %v1360
        %v1369 = vmul.f32 %v1256, %v1360
        %v1370 = vmul.f32 %v1257, %v1360
        %v1371 = vmul.f32 %v1258, %v1360
        %v1372 = vmul.f32 %v1259, %v1360
        %v1373 = vmul.f32 %v1260, %v1360
        %v1374 = vmul.f32 %v1261, %v1360
        %v1375 = vmul.f32 %v1262, %v1360
        %v1376 = vmul.f32 %v1263, %v1360
        %v1377 = vmul.f32 %v1264, %v1360
        %v1378 = vmul.f32 %v1265, %v1360
        %v1379 = vmul.f32 %v1266, %v1360
        %v1380 = vmul.f32 %v1267, %v1360
        %v1381 = vmul.f32 %v1268, %v1360
        %v1382 = vmul.f32 %v1269, %v1360
        %v1383 = vmul.f32 %v1270, %v1360
        %v1384 = vmul.f32 %v1271, %v1360
        %v1385 = vmul.f32 %v1272, %v1360
        %v1386 = vmul.f32 %v1273, %v1360
        %v1387 = vmul.f32 %v1274, %v1360
        %v1388 = vmul.f32 %v1275, %v1360
        %v1389 = vmul.f32 %v1276, %v1360
        %v1390 = vmul.f32 %v1277, %v1360
        %v1391 = vmul.f32 %v1278, %v1360
        %v1392 = vmul.f32 %v1279, %v1360
        %v1393 = vmax.f32 %v1361, 0.0
        %v1394 = vmax.f32 %v1362, 0.0
        %v1395 = vmax.f32 %v1363, 0.0
        %v1396 = vmax.f32 %v1364, 0.0
        %v1397 = vmax.f32 %v1365, 0.0
        %v1398 = vmax.f32 %v1366, 0.0
        %v1399 = vmax.f32 %v1367, 0.0
        %v1400 = vmax.f32 %v1368, 0.0
        %v1401 = vmax.f32 %v1369, 0.0
        %v1402 = vmax.f32 %v1370, 0.0
        %v1403 = vmax.f32 %v1371, 0.0
        %v1404 = vmax.f32 %v1372, 0.0
        %v1405 = vmax.f32 %v1373, 0.0
        %v1406 = vmax.f32 %v1374, 0.0
        %v1407 = vmax.f32 %v1375, 0.0
        %v1408 = vmax.f32 %v1376, 0.0
        %v1409 = vmax.f32 %v1377, 0.0
        %v1410 = vmax.f32 %v1378, 0.0
        %v1411 = vmax.f32 %v1379, 0.0
        %v1412 = vmax.f32 %v1380, 0.0
        %v1413 = vmax.f32 %v1381, 0.0
        %v1414 = vmax.f32 %v1382, 0.0
        %v1415 = vmax.f32 %v1383, 0.0
        %v1416 = vmax.f32 %v1384, 0.0
        %v1417 = vmax.f32 %v1385, 0.0
        %v1418 = vmax.f32 %v1386, 0.0
        %v1419 = vmax.f32 %v1387, 0.0
        %v1420 = vmax.f32 %v1388, 0.0
        %v1421 = vmax.f32 %v1389, 0.0
        %v1422 = vmax.f32 %v1390, 0.0
        %v1423 = vmax.f32 %v1391, 0.0
        %v1424 = vmax.f32 %v1392, 0.0
        %1425 = vst [vmem:[%s220] sm:$0xff] %v1393
        %1426 = vst [vmem:[%s220 + $0x8] sm:$0xff] %v1394
        %1427 = vst [vmem:[%s220 + $0x10] sm:$0xff] %v1395
        %1428 = vst [vmem:[%s220 + $0x18] sm:$0xff] %v1396
        %1429 = vst [vmem:[%s220 + $0x20] sm:$0xff] %v1397
        %1430 = vst [vmem:[%s220 + $0x28] sm:$0xff] %v1398
        %1431 = vst [vmem:[%s220 + $0x30] sm:$0xff] %v1399
        %1432 = vst [vmem:[%s220 + $0x38] sm:$0xff] %v1400
        %1433 = vst [vmem:[%s220 + $0x40] sm:$0xff] %v1401
        %1434 = vst [vmem:[%s220 + $0x48] sm:$0xff] %v1402
        %1435 = vst [vmem:[%s220 + $0x50] sm:$0xff] %v1403
        %1436 = vst [vmem:[%s220 + $0x58] sm:$0xff] %v1404
        %1437 = vst [vmem:[%s220 + $0x60] sm:$0xff] %v1405
        %1438 = vst [vmem:[%s220 + $0x68] sm:$0xff] %v1406
        %1439 = vst [vmem:[%s220 + $0x70] sm:$0xff] %v1407
        %1440 = vst [vmem:[%s220 + $0x78] sm:$0xff] %v1408
        %1441 = vst [vmem:[%s220 + $0x80] sm:$0xff] %v1409
        %1442 = vst [vmem:[%s220 + $0x88] sm:$0xff] %v1410
        %1443 = vst [vmem:[%s220 + $0x90] sm:$0xff] %v1411
        %1444 = vst [vmem:[%s220 + $0x98] sm:$0xff] %v1412
        %1445 = vst [vmem:[%s220 + $0xa0] sm:$0xff] %v1413
        %1446 = vst [vmem:[%s220 + $0xa8] sm:$0xff] %v1414
        %1447 = vst [vmem:[%s220 + $0xb0] sm:$0xff] %v1415
        %1448 = vst [vmem:[%s220 + $0xb8] sm:$0xff] %v1416
        %1449 = vst [vmem:[%s220 + $0xc0] sm:$0xff] %v1417
        %1450 = vst [vmem:[%s220 + $0xc8] sm:$0xff] %v1418
        %1451 = vst [vmem:[%s220 + $0xd0] sm:$0xff] %v1419
        %1452 = vst [vmem:[%s220 + $0xd8] sm:$0xff] %v1420
        %1453 = vst [vmem:[%s220 + $0xe0] sm:$0xff] %v1421
        %1454 = vst [vmem:[%s220 + $0xe8] sm:$0xff] %v1422
        %1455 = vst [vmem:[%s220 + $0xf0] sm:$0xff] %v1423
        %1456 = vst [vmem:[%s220 + $0xf8] sm:$0xff] %v1424
      $region40: #{resnet_gen_forward.10} parent=31 // pred_fallthru
        _
      %p1457 = scmp.lt.s32.totalorder %s18, 1
      %s1458 = scalar_select %p1457, %s18, 1
      %s1459 = smul.addr %s1458, 32
      %s1460 = smul.addr %s1459, 8
      %s1461 = scalar_lea.vmem %s3, %s1460
      // Predicated region
      $region41: #{resnet_gen_forward.10} parent=31 // pred_check
        %p1462 = pneg %p119
      $region42: #{resnet_gen_forward.10} parent=31 // pred_check_branch
        %1464 = sbr.rel (%p1462) target = $region44
      $region43: #{resnet_gen_forward.10} parent=31 // pred_region
        _
      $region44: #{resnet_gen_forward.10} parent=31 // pred_fallthru
        _
    $region32: #{resnet_gen_forward.10} parent=5 // pred_fallthru
      _
    %p1465 = scmp.le.s32.totalorder 2, %s9
    // Predicated region
    $region45: #{resnet_gen_forward.10} parent=5 // pred_check
      %p1466 = pneg %p1465
    $region46: #{resnet_gen_forward.10} parent=5 // pred_check_branch
      %1468 = sbr.rel (%p1466) target = $region48
    $region47: #{resnet_gen_forward.10} parent=5 // pred_region
      %s1469 = ssub.s32 %s9, 2
      // Predicated region
      $region49: #{resnet_gen_forward.10} parent=47 // pred_check
        %p1470 = pneg %p125
      $region50: #{resnet_gen_forward.10} parent=47 // pred_check_branch
        %1472 = sbr.rel (%p1470) target = $region52
      $region51: #{resnet_gen_forward.10} parent=47 // pred_region
        %p1473 = scmp.lt.s32.totalorder %s20, 1
        %s1474 = scalar_select %p1473, %s20, 1
        %s1475 = smul.addr %s1474, 32
        %s1476 = smul.addr %s1475, 8
        %s1477 = scalar_lea.vmem %s3, %s1476
      $region52: #{resnet_gen_forward.10} parent=47 // pred_fallthru
        _
    $region48: #{resnet_gen_forward.10} parent=5 // pred_fallthru
      _
  $region6: #{resnet_gen_forward.10} parent=0 // loop_footer
    %s13 = sadd.s32 1, %s9
  $region7: #{resnet_gen_forward.10} parent=0 // loop_footer_branch
    %8 = sbr.rel target = $region3
  $region8: #{resnet_gen_forward.10} parent=0 // loop_exit
    _

// kernel: resnet_gen_forward.11
$region0: #{resnet_gen_forward.11}
  #allocation0 [shape = 'u32[]', space=smem, size = 0x4, offset = 0x4, fixed_abs, tag = 'smem constant byte address 0x4 - core index']
  #allocation1 [shape = 'u32[72,128]{1,0:T(1,128)}', space=vmem, size = 0x9000, scoped, tag = 'internal scratch']
  #allocation2 [shape = 'f32[64,128]{1,0:T(8,128)}', space=vmem, size = 0x8000, scoped, tag = 'scratch operand']
  %s0 = inlined_call_operand.vmem [shape: bf16[2,64,128], index: 0, kind: input, shape index: {}]
  %s1 = inlined_call_operand.vmem [shape: bf16[128,128], index: 1, kind: input, shape index: {}]
  %s2 = inlined_call_operand.vmem [shape: f32[1,128], index: 2, kind: input, shape index: {}]
  %s3 = inlined_call_operand.vmem [shape: f32[2,64,128], index: 3, kind: output, shape index: {}]
  %s4 = sld [smem:[#allocation0]]
  $region53: #{resnet_gen_forward.11} parent=0
    _
  %s6 = ssub.s32 1, %s4
  %s7 = scalar_select 0, %s6, %s4
  loop: start=0, step=1, limit=4
  $region2: #{resnet_gen_forward.11} parent=0 // loop_pre_header
    _
  $region3: #{resnet_gen_forward.11} parent=0 // loop_header
    %s9 = sphi 0, %s13
    %p10 = scmp.ge.s32.totalorder %s9, 4
    %s16 = sphi 0, %s28
    %s17 = sphi 0, %s24
    %s18 = sphi 0, %s16
    %s19 = sphi 0, %s17
    %s20 = sphi 0, %s18
    %s21 = sphi 0, %s19
    %s33 = sphi 0, %s35
    %s36 = sphi 0, %s33
    %s37 = sphi 0, %s36
    %s53 = sphi 0, %s37
    %s59 = sphi 0, %s61
    %s62 = sphi 0, %s59
    %s63 = sphi 0, %s62
    %s79 = sphi 0, %s63
    %s83 = sphi 0, %s83
    %s85 = sphi 0, %s83
    %s86 = sphi 0, %s85
    %s100 = sphi 0, %s86
    %s106 = sphi 0, %s108
    %s109 = sphi 0, %s106
    %s110 = sphi 0, %s109
    %s126 = sphi 0, %s110
  $region4: #{resnet_gen_forward.11} parent=0 // loop_header_branch
    %12 = sbr.rel (%p10) target = $region8
  $region5: #{resnet_gen_forward.11} parent=0 // loop_body
    %s14 = ssub.s32 %s9, 1
    %s15 = ssub.s32 %s9, 2
    %s22 = sadd.s32 1, %s17
    %p23 = scmp.ge.s32.totalorder %s22, 1
    %s24 = scalar_select %p23, 0, %s22
    %s25 = sadd.s32 1, %s16
    %s26 = scalar_select %p23, %s25, %s16
    %p27 = scmp.ge.s32.totalorder %s26, 2
    %s28 = scalar_select %p27, 0, %s26
    %s29 = ssub.s32 %s16, %s28
    %s30 = ssub.s32 %s17, %s24
    %s31 = sor.u32 %s29, %s30
    %p32 = scmp.eq.s32.totalorder %s31, 0
    %s34 = sadd.s32 %s33, 1
    %s35 = scalar_select %p32, %s33, %s34
    %p38 = pneg %p32
    %p39 = scmp.eq.s32.totalorder %s9, 1
    %p40 = por %p38, %p39
    %p41 = scmp.ne.s32.totalorder %s33, %s36
    %p42 = scmp.eq.s32.totalorder %s9, 0
    %p43 = por %p41, %p42
    %p44 = scmp.ne.s32.totalorder %s33, %s36
    %p45 = scmp.eq.s32.totalorder %s14, 1
    %p46 = por %p44, %p45
    %p47 = scmp.ne.s32.totalorder %s36, %s37
    %p48 = scmp.eq.s32.totalorder %s14, 0
    %p49 = por %p47, %p48
    %p50 = scmp.ne.s32.totalorder %s36, %s37
    %p51 = scmp.eq.s32.totalorder %s15, 1
    %p52 = por %p50, %p51
    %p54 = scmp.ne.s32.totalorder %s37, %s53
    %p55 = scmp.eq.s32.totalorder %s15, 0
    %p56 = por %p54, %p55
    %s57 = ssub.s32 %s17, %s24
    %p58 = scmp.eq.s32.totalorder %s57, 0
    %s60 = sadd.s32 %s59, 1
    %s61 = scalar_select %p58, %s59, %s60
    %p64 = pneg %p58
    %p65 = scmp.eq.s32.totalorder %s9, 1
    %p66 = por %p64, %p65
    %p67 = scmp.ne.s32.totalorder %s59, %s62
    %p68 = scmp.eq.s32.totalorder %s9, 0
    %p69 = por %p67, %p68
    %p70 = scmp.ne.s32.totalorder %s59, %s62
    %p71 = scmp.eq.s32.totalorder %s14, 1
    %p72 = por %p70, %p71
    %p73 = scmp.ne.s32.totalorder %s62, %s63
    %p74 = scmp.eq.s32.totalorder %s14, 0
    %p75 = por %p73, %p74
    %p76 = scmp.ne.s32.totalorder %s62, %s63
    %p77 = scmp.eq.s32.totalorder %s15, 1
    %p78 = por %p76, %p77
    %p80 = scmp.ne.s32.totalorder %s63, %s79
    %p81 = scmp.eq.s32.totalorder %s15, 0
    %p82 = por %p80, %p81
    %s84 = sadd.s32 %s83, 1
    %p87 = scmp.eq.s32.totalorder %s9, 1
    %p88 = scmp.ne.s32.totalorder %s83, %s85
    %p89 = scmp.eq.s32.totalorder %s9, 0
    %p90 = por %p88, %p89
    %p91 = scmp.ne.s32.totalorder %s83, %s85
    %p92 = scmp.eq.s32.totalorder %s14, 1
    %p93 = por %p91, %p92
    %p94 = scmp.ne.s32.totalorder %s85, %s86
    %p95 = scmp.eq.s32.totalorder %s14, 0
    %p96 = por %p94, %p95
    %p97 = scmp.ne.s32.totalorder %s85, %s86
    %p98 = scmp.eq.s32.totalorder %s15, 1
    %p99 = por %p97, %p98
    %p101 = scmp.ne.s32.totalorder %s86, %s100
    %p102 = scmp.eq.s32.totalorder %s15, 0
    %p103 = por %p101, %p102
    %s104 = ssub.s32 %s16, %s28
    %p105 = scmp.eq.s32.totalorder %s104, 0
    %s107 = sadd.s32 %s106, 1
    %s108 = scalar_select %p105, %s106, %s107
    %p111 = pneg %p105
    %p112 = scmp.eq.s32.totalorder %s9, 1
    %p113 = por %p111, %p112
    %p114 = scmp.ne.s32.totalorder %s106, %s109
    %p115 = scmp.eq.s32.totalorder %s9, 0
    %p116 = por %p114, %p115
    %p117 = scmp.ne.s32.totalorder %s106, %s109
    %p118 = scmp.eq.s32.totalorder %s14, 1
    %p119 = por %p117, %p118
    %p120 = scmp.ne.s32.totalorder %s109, %s110
    %p121 = scmp.eq.s32.totalorder %s14, 0
    %p122 = por %p120, %p121
    %p123 = scmp.ne.s32.totalorder %s109, %s110
    %p124 = scmp.eq.s32.totalorder %s15, 1
    %p125 = por %p123, %p124
    %p127 = scmp.ne.s32.totalorder %s110, %s126
    %p128 = scmp.eq.s32.totalorder %s15, 0
    %p129 = por %p127, %p128
    %p130 = scmp.le.s32.totalorder 1, %s9
    %p131 = scmp.lt.s32.totalorder %s9, 3
    %p132 = pnand %p130, %p131
    %p133 = pneg %p132
    // Predicated region
    $region9: #{resnet_gen_forward.11} parent=5 // pred_check
      _
    $region10: #{resnet_gen_forward.11} parent=5 // pred_check_branch
      %135 = sbr.rel (%p132) target = $region12
    $region11: #{resnet_gen_forward.11} parent=5 // pred_region
      %s136 = ssub.s32 %s9, 1
      // Predicated region
      $region13: #{resnet_gen_forward.11} parent=11 // pred_check
        %p137 = pneg %p75
      $region14: #{resnet_gen_forward.11} parent=11 // pred_check_branch
        %139 = sbr.rel (%p137) target = $region16
      $region15: #{resnet_gen_forward.11} parent=11 // pred_region
        %s140 = smul.u32 16, %s19
        %p141 = scmp.lt.s32.totalorder %s140, 15
        %s142 = scalar_select %p141, %s140, 15
        %s143 = smul.addr %s142, 4
        %s144 = scalar_lea.vmem %s1, %s143
        %s145 = smul.u32 16, %s19
      $region16: #{resnet_gen_forward.11} parent=11 // pred_fallthru
        _
      // Predicated region
      $region17: #{resnet_gen_forward.11} parent=11 // pred_check
        %p146 = pneg %p96
      $region18: #{resnet_gen_forward.11} parent=11 // pred_check_branch
        %148 = sbr.rel (%p146) target = $region20
      $region19: #{resnet_gen_forward.11} parent=11 // pred_region
        _
      $region20: #{resnet_gen_forward.11} parent=11 // pred_fallthru
        _
    $region12: #{resnet_gen_forward.11} parent=5 // pred_fallthru
      _
    %p149 = scmp.lt.s32.totalorder %s9, 2
    // Predicated region
    $region21: #{resnet_gen_forward.11} parent=5 // pred_check
      %p150 = pneg %p149
    $region22: #{resnet_gen_forward.11} parent=5 // pred_check_branch
      %152 = sbr.rel (%p150) target = $region24
    $region23: #{resnet_gen_forward.11} parent=5 // pred_region
      // Predicated region
      $region25: #{resnet_gen_forward.11} parent=23 // pred_check
        %p153 = pneg %p43
      $region26: #{resnet_gen_forward.11} parent=23 // pred_check_branch
        %155 = sbr.rel (%p153) target = $region28
      $region27: #{resnet_gen_forward.11} parent=23 // pred_region
        %p156 = scmp.lt.s32.totalorder %s16, 1
        %s157 = scalar_select %p156, %s16, 1
        %p158 = scmp.lt.s32.totalorder %s17, 0
        %s159 = scalar_select %p158, %s17, 0
        %s160 = smul.addr %s157, 8
        %s161 = sadd.s32 %s159, %s160
        %s162 = smul.addr %s161, 4
        %s163 = scalar_lea.vmem %s0, %s162
      $region28: #{resnet_gen_forward.11} parent=23 // pred_fallthru
        _
    $region24: #{resnet_gen_forward.11} parent=5 // pred_fallthru
      _
    %p164 = scmp.le.s32.totalorder 1, %s9
    %p165 = scmp.lt.s32.totalorder %s9, 3
    %p166 = pnand %p164, %p165
    %p167 = pneg %p166
    // Predicated region
    $region29: #{resnet_gen_forward.11} parent=5 // pred_check
      _
    $region30: #{resnet_gen_forward.11} parent=5 // pred_check_branch
      %169 = sbr.rel (%p166) target = $region32
    $region31: #{resnet_gen_forward.11} parent=5 // pred_region
      %s170 = ssub.s32 %s9, 1
      %p171 = scmp.lt.s32.totalorder %s18, 1
      %s172 = scalar_select %p171, %s18, 1
      %p173 = scmp.lt.s32.totalorder %s19, 0
      %s174 = scalar_select %p173, %s19, 0
      %s175 = smul.addr %s172, 8
      %s176 = sadd.s32 %s174, %s175
      %s177 = smul.addr %s176, 4
      %s178 = scalar_lea.vmem %s0, %s177
      %p179 = pneg %p49
      %p180 = pneg %p46
      %s181 = smul.u32 16, %s19
      %p182 = scmp.lt.s32.totalorder %s181, 15
      %s183 = scalar_select %p182, %s181, 15
      %s184 = smul.addr %s183, 4
      %s185 = scalar_lea.vmem %s1, %s184
      %p186 = pneg %p75
      %p187 = pneg %p72
      %p188 = pneg %p96
      %p189 = pneg %p93
      %p190 = pneg %p122
      %p191 = pneg %p119
      %p192 = scmp.lt.s32.totalorder %s18, 1
      %s193 = scalar_select %p192, %s18, 1
      %s194 = smul.addr %s193, 8
      %s195 = smul.addr %s194, 8
      %s196 = scalar_lea.vmem %s3, %s195
      %p197 = scmp.lt.s32.totalorder %s18, 1
      %s198 = scalar_select %p197, %s18, 1
      %p199 = scmp.lt.s32.totalorder %s19, 0
      %s200 = scalar_select %p199, %s19, 0
      %s201 = smul.addr %s198, 8
      %s202 = sadd.s32 %s200, %s201
      %s203 = smul.addr %s202, 4
      %s204 = scalar_lea.vmem %s0, %s203
      %s205 = smul.u32 16, %s19
      %p206 = scmp.lt.s32.totalorder %s205, 15
      %s207 = scalar_select %p206, %s205, 15
      %s208 = smul.addr %s207, 4
      %s209 = scalar_lea.vmem %s1, %s208
      %s210 = smul.u32 16, %s19
      %p211 = scmp.lt.s32.totalorder %s18, 1
      %s212 = scalar_select %p211, %s18, 1
      %s213 = smul.addr %s212, 8
      %s214 = smul.addr %s213, 8
      %s215 = scalar_lea.vmem %s3, %s214
      %p216 = scmp.eq.s32.totalorder %s19, 0
      // Predicated region
      $region33: #{resnet_gen_forward.11} parent=31 // pred_check
        %p217 = pneg %p216
      $region34: #{resnet_gen_forward.11} parent=31 // pred_check_branch
        %219 = sbr.rel (%p217) target = $region36
      $region35: #{resnet_gen_forward.11} parent=31 // pred_region
        %220 = vst [vmem:[#allocation2] sm:$0xff] 0.0
        %221 = vst [vmem:[#allocation2 + $0x8] sm:$0xff] 0.0
        %222 = vst [vmem:[#allocation2 + $0x10] sm:$0xff] 0.0
        %223 = vst [vmem:[#allocation2 + $0x18] sm:$0xff] 0.0
        %224 = vst [vmem:[#allocation2 + $0x20] sm:$0xff] 0.0
        %225 = vst [vmem:[#allocation2 + $0x28] sm:$0xff] 0.0
        %226 = vst [vmem:[#allocation2 + $0x30] sm:$0xff] 0.0
        %227 = vst [vmem:[#allocation2 + $0x38] sm:$0xff] 0.0
      $region36: #{resnet_gen_forward.11} parent=31 // pred_fallthru
        _
      %v228 = vld [vmem:[#allocation2] sm:$0xff]
      %v229 = vld [vmem:[#allocation2 + $0x8] sm:$0xff]
      %v230 = vld [vmem:[#allocation2 + $0x10] sm:$0xff]
      %v231 = vld [vmem:[#allocation2 + $0x18] sm:$0xff]
      %v232 = vld [vmem:[#allocation2 + $0x20] sm:$0xff]
      %v233 = vld [vmem:[#allocation2 + $0x28] sm:$0xff]
      %v234 = vld [vmem:[#allocation2 + $0x30] sm:$0xff]
      %v235 = vld [vmem:[#allocation2 + $0x38] sm:$0xff]
      %v236 = vld [vmem:[%s204] sm:$0xf]
      %v237 = vld [vmem:[%s204 + $0x4] sm:$0xf]
      %v238 = vld [vmem:[%s204 + $0x8] sm:$0xf]
      %v239 = vld [vmem:[%s204 + $0xc] sm:$0xf]
      %v240 = vld [vmem:[%s204 + $0x10] sm:$0xf]
      %v241 = vld [vmem:[%s204 + $0x14] sm:$0xf]
      %v242 = vld [vmem:[%s204 + $0x18] sm:$0xf]
      %v243 = vld [vmem:[%s204 + $0x1c] sm:$0xf]
      %v244 = vld [vmem:[%s209] sm:$0xf]
      %v245 = vld [vmem:[%s209 + $0x4] sm:$0xf]
      %v246 = vld [vmem:[%s209 + $0x8] sm:$0xf]
      %v247 = vld [vmem:[%s209 + $0xc] sm:$0xf]
      %v248 = vld [vmem:[%s209 + $0x10] sm:$0xf]
      %v249 = vld [vmem:[%s209 + $0x14] sm:$0xf]
      %v250 = vld [vmem:[%s209 + $0x18] sm:$0xf]
      %v251 = vld [vmem:[%s209 + $0x1c] sm:$0xf]
      %v252 = vld [vmem:[%s209 + $0x20] sm:$0xf]
      %v253 = vld [vmem:[%s209 + $0x24] sm:$0xf]
      %v254 = vld [vmem:[%s209 + $0x28] sm:$0xf]
      %v255 = vld [vmem:[%s209 + $0x2c] sm:$0xf]
      %v256 = vld [vmem:[%s209 + $0x30] sm:$0xf]
      %v257 = vld [vmem:[%s209 + $0x34] sm:$0xf]
      %v258 = vld [vmem:[%s209 + $0x38] sm:$0xf]
      %v259 = vld [vmem:[%s209 + $0x3c] sm:$0xf]
      %v268 = vunpack.c.l.b16 %v236
      %v269 = vunpack.c.l.b16 %v237
      %v270 = vunpack.c.l.b16 %v238
      %v271 = vunpack.c.l.b16 %v239
      %v272 = vunpack.c.l.b16 %v240
      %v273 = vunpack.c.l.b16 %v241
      %v274 = vunpack.c.l.b16 %v242
      %v275 = vunpack.c.l.b16 %v243
      %v276 = vpack.c.b16 %v269, %v268
      %v277 = vpack.c.b16 %v271, %v270
      %v278 = vpack.c.b16 %v273, %v272
      %v279 = vpack.c.b16 %v275, %v274
      %v300 = vunpack.c.l.b16 %v244
      %v301 = vunpack.c.l.b16 %v245
      %v302 = vunpack.c.l.b16 %v246
      %v303 = vunpack.c.l.b16 %v247
      %v304 = vunpack.c.l.b16 %v248
      %v305 = vunpack.c.l.b16 %v249
      %v306 = vunpack.c.l.b16 %v250
      %v307 = vunpack.c.l.b16 %v251
      %v308 = vunpack.c.l.b16 %v252
      %v309 = vunpack.c.l.b16 %v253
      %v310 = vunpack.c.l.b16 %v254
      %v311 = vunpack.c.l.b16 %v255
      %v312 = vunpack.c.l.b16 %v256
      %v313 = vunpack.c.l.b16 %v257
      %v314 = vunpack.c.l.b16 %v258
      %v315 = vunpack.c.l.b16 %v259
      %v316 = vpack.c.b16 %v301, %v300
      %v317 = vpack.c.b16 %v303, %v302
      %v318 = vpack.c.b16 %v305, %v304
      %v319 = vpack.c.b16 %v307, %v306
      %v320 = vpack.c.b16 %v309, %v308
      %v321 = vpack.c.b16 %v311, %v310
      %v322 = vpack.c.b16 %v313, %v312
      %v323 = vpack.c.b16 %v315, %v314
      %332 = vmatpush.bf16.msra.mxu0 %v323
      %333 = vmatpush.bf16.msra.mxu0 %v322
      %334 = vmatpush.bf16.msra.mxu0 %v321
      %335 = vmatpush.bf16.msra.mxu0 %v320
      %336 = vmatpush.bf16.msra.mxu0 %v319
      %337 = vmatpush.bf16.msra.mxu0 %v318
      %338 = vmatpush.bf16.msra.mxu0 %v317
      %339 = vmatpush.bf16.msra.mxu0 %v316
      %340 = vmatmul.bf16.gmra.mxu0 %v276
      %v341 = vpop.f32.mrf.mxu0
      %v342 = vadd.f32 0.0, %v341
      %v343 = vpop.f32.mrf.mxu0
      %v344 = vadd.f32 0.0, %v343
      %345 = vmatmul.bf16.gmra.mxu0 %v277
      %v346 = vpop.f32.mrf.mxu0
      %v347 = vadd.f32 0.0, %v346
      %v348 = vpop.f32.mrf.mxu0
      %v349 = vadd.f32 0.0, %v348
      %350 = vmatmul.bf16.gmra.mxu0 %v278
      %v351 = vpop.f32.mrf.mxu0
      %v352 = vadd.f32 0.0, %v351
      %v353 = vpop.f32.mrf.mxu0
      %v354 = vadd.f32 0.0, %v353
      %355 = vmatmul.bf16.gmra.mxu0 %v279
      %v356 = vpop.f32.mrf.mxu0
      %v357 = vadd.f32 0.0, %v356
      %v358 = vpop.f32.mrf.mxu0
      %v359 = vadd.f32 0.0, %v358
      %360 = vdwg.mxu0
      %v361 = vadd.f32 %v228, %v342
      %v362 = vadd.f32 %v229, %v344
      %v363 = vadd.f32 %v230, %v347
      %v364 = vadd.f32 %v231, %v349
      %v365 = vadd.f32 %v232, %v352
      %v366 = vadd.f32 %v233, %v354
      %v367 = vadd.f32 %v234, %v357
      %v368 = vadd.f32 %v235, %v359
      %369 = vst [vmem:[#allocation2] sm:$0xff] %v361
      %370 = vst [vmem:[#allocation2 + $0x8] sm:$0xff] %v362
      %371 = vst [vmem:[#allocation2 + $0x10] sm:$0xff] %v363
      %372 = vst [vmem:[#allocation2 + $0x18] sm:$0xff] %v364
      %373 = vst [vmem:[#allocation2 + $0x20] sm:$0xff] %v365
      %374 = vst [vmem:[#allocation2 + $0x28] sm:$0xff] %v366
      %375 = vst [vmem:[#allocation2 + $0x30] sm:$0xff] %v367
      %376 = vst [vmem:[#allocation2 + $0x38] sm:$0xff] %v368
      // Predicated region
      $region37: #{resnet_gen_forward.11} parent=31 // pred_check
        %p377 = pneg %p216
      $region38: #{resnet_gen_forward.11} parent=31 // pred_check_branch
        %379 = sbr.rel (%p377) target = $region40
      $region39: #{resnet_gen_forward.11} parent=31 // pred_region
        %v380 = vld [vmem:[#allocation2] sm:$0xff]
        %v381 = vld [vmem:[#allocation2 + $0x8] sm:$0xff]
        %v382 = vld [vmem:[#allocation2 + $0x10] sm:$0xff]
        %v383 = vld [vmem:[#allocation2 + $0x18] sm:$0xff]
        %v384 = vld [vmem:[#allocation2 + $0x20] sm:$0xff]
        %v385 = vld [vmem:[#allocation2 + $0x28] sm:$0xff]
        %v386 = vld [vmem:[#allocation2 + $0x30] sm:$0xff]
        %v387 = vld [vmem:[#allocation2 + $0x38] sm:$0xff]
        %v388 = vld [vmem:[%s2] sm:$0x1]
        %v390 = vperm.slane %v388, 0
        %v392 = vadd.f32 %v380, %v390
        %v393 = vadd.f32 %v381, %v390
        %v394 = vadd.f32 %v382, %v390
        %v395 = vadd.f32 %v383, %v390
        %v396 = vadd.f32 %v384, %v390
        %v397 = vadd.f32 %v385, %v390
        %v398 = vadd.f32 %v386, %v390
        %v399 = vadd.f32 %v387, %v390
        %v400 = vadd.f32 %v392, %v393
        %v401 = vadd.f32 %v400, %v394
        %v402 = vadd.f32 %v401, %v395
        %v403 = vadd.f32 %v402, %v396
        %v404 = vadd.f32 %v403, %v397
        %v405 = vadd.f32 %v404, %v398
        %v406 = vadd.f32 %v405, %v399
        %v407 = vrot.slane %v406, 4
        %v408 = vadd.f32 %v406, %v407
        %v409 = vrot.slane %v408, 2
        %v410 = vadd.f32 %v408, %v409
        %v411 = vrot.slane %v410, 1
        %v412 = vadd.f32 %v410, %v411
        %v413 = vrcp.pop 64.0
        %v414 = vmul.f32 64.0, %v413
        %v415 = vsub.f32 1.0, %v414
        %v416 = vmul.f32 %v413, %v415
        %v417 = vadd.f32 %v413, %v416
        %vm418 = vweird.f32 %v413
        %v419 = vsel %vm418, %v413, %v417
        %v420 = vmul.f32 %v412, %v419
        %v421 = vsub.f32 %v392, %v420
        %v422 = vsub.f32 %v393, %v420
        %v423 = vsub.f32 %v394, %v420
        %v424 = vsub.f32 %v395, %v420
        %v425 = vsub.f32 %v396, %v420
        %v426 = vsub.f32 %v397, %v420
        %v427 = vsub.f32 %v398, %v420
        %v428 = vsub.f32 %v399, %v420
        %v429 = vmul.f32 %v421, %v421
        %v430 = vmul.f32 %v422, %v422
        %v431 = vmul.f32 %v423, %v423
        %v432 = vmul.f32 %v424, %v424
        %v433 = vmul.f32 %v425, %v425
        %v434 = vmul.f32 %v426, %v426
        %v435 = vmul.f32 %v427, %v427
        %v436 = vmul.f32 %v428, %v428
        %v437 = vadd.f32 %v429, %v430
        %v438 = vadd.f32 %v437, %v431
        %v439 = vadd.f32 %v438, %v432
        %v440 = vadd.f32 %v439, %v433
        %v441 = vadd.f32 %v440, %v434
        %v442 = vadd.f32 %v441, %v435
        %v443 = vadd.f32 %v442, %v436
        %v444 = vrot.slane %v443, 4
        %v445 = vadd.f32 %v443, %v444
        %v446 = vrot.slane %v445, 2
        %v447 = vadd.f32 %v445, %v446
        %v448 = vrot.slane %v447, 1
        %v449 = vadd.f32 %v447, %v448
        %v450 = vmul.f32 %v449, %v419
        %v451 = vadd.f32 %v450, 1e-05
        %v452 = vrsqrt.pop %v451
        %v453 = vmul.f32 %v452, %v451
        %v454 = vmul.f32 %v453, %v452
        %v455 = vmul.f32 0.5, %v454
        %v456 = vsub.f32 1.5, %v455
        %v457 = vmul.f32 %v452, %v456
        %vm458 = vweird.f32 %v451
        %vm459 = vweird.f32 %v452
        %vm460 = vmor %vm458, %vm459
        %v461 = vsel %vm460, %v452, %v457
        %v462 = vmul.f32 %v421, %v461
        %v463 = vmul.f32 %v422, %v461
        %v464 = vmul.f32 %v423, %v461
        %v465 = vmul.f32 %v424, %v461
        %v466 = vmul.f32 %v425, %v461
        %v467 = vmul.f32 %v426, %v461
        %v468 = vmul.f32 %v427, %v461
        %v469 = vmul.f32 %v428, %v461
        %v470 = vmax.f32 %v462, 0.0
        %v471 = vmax.f32 %v463, 0.0
        %v472 = vmax.f32 %v464, 0.0
        %v473 = vmax.f32 %v465, 0.0
        %v474 = vmax.f32 %v466, 0.0
        %v475 = vmax.f32 %v467, 0.0
        %v476 = vmax.f32 %v468, 0.0
        %v477 = vmax.f32 %v469, 0.0
        %478 = vst [vmem:[%s215] sm:$0xff] %v470
        %479 = vst [vmem:[%s215 + $0x8] sm:$0xff] %v471
        %480 = vst [vmem:[%s215 + $0x10] sm:$0xff] %v472
        %481 = vst [vmem:[%s215 + $0x18] sm:$0xff] %v473
        %482 = vst [vmem:[%s215 + $0x20] sm:$0xff] %v474
        %483 = vst [vmem:[%s215 + $0x28] sm:$0xff] %v475
        %484 = vst [vmem:[%s215 + $0x30] sm:$0xff] %v476
        %485 = vst [vmem:[%s215 + $0x38] sm:$0xff] %v477
      $region40: #{resnet_gen_forward.11} parent=31 // pred_fallthru
        _
      %p486 = scmp.lt.s32.totalorder %s18, 1
      %s487 = scalar_select %p486, %s18, 1
      %s488 = smul.addr %s487, 8
      %s489 = smul.addr %s488, 8
      %s490 = scalar_lea.vmem %s3, %s489
      // Predicated region
      $region41: #{resnet_gen_forward.11} parent=31 // pred_check
        %p491 = pneg %p119
      $region42: #{resnet_gen_forward.11} parent=31 // pred_check_branch
        %493 = sbr.rel (%p491) target = $region44
      $region43: #{resnet_gen_forward.11} parent=31 // pred_region
        _
      $region44: #{resnet_gen_forward.11} parent=31 // pred_fallthru
        _
    $region32: #{resnet_gen_forward.11} parent=5 // pred_fallthru
      _
    %p494 = scmp.le.s32.totalorder 2, %s9
    // Predicated region
    $region45: #{resnet_gen_forward.11} parent=5 // pred_check
      %p495 = pneg %p494
    $region46: #{resnet_gen_forward.11} parent=5 // pred_check_branch
      %497 = sbr.rel (%p495) target = $region48
    $region47: #{resnet_gen_forward.11} parent=5 // pred_region
      %s498 = ssub.s32 %s9, 2
      // Predicated region
      $region49: #{resnet_gen_forward.11} parent=47 // pred_check
        %p499 = pneg %p125
      $region50: #{resnet_gen_forward.11} parent=47 // pred_check_branch
        %501 = sbr.rel (%p499) target = $region52
      $region51: #{resnet_gen_forward.11} parent=47 // pred_region
        %p502 = scmp.lt.s32.totalorder %s20, 1
        %s503 = scalar_select %p502, %s20, 1
        %s504 = smul.addr %s503, 8
        %s505 = smul.addr %s504, 8
        %s506 = scalar_lea.vmem %s3, %s505
      $region52: #{resnet_gen_forward.11} parent=47 // pred_fallthru
        _
    $region48: #{resnet_gen_forward.11} parent=5 // pred_fallthru
      _
  $region6: #{resnet_gen_forward.11} parent=0 // loop_footer
    %s13 = sadd.s32 1, %s9
  $region7: #{resnet_gen_forward.11} parent=0 // loop_footer_branch
    %8 = sbr.rel target = $region3
  $region8: #{resnet_gen_forward.11} parent=0 // loop_exit
    _

// kernel: resnet_gen_forward.12
$region0: #{resnet_gen_forward.12}
  #allocation0 [shape = 'u32[]', space=smem, size = 0x4, offset = 0x4, fixed_abs, tag = 'smem constant byte address 0x4 - core index']
  #allocation1 [shape = 'u32[72,128]{1,0:T(1,128)}', space=vmem, size = 0x9000, scoped, tag = 'internal scratch']
  #allocation2 [shape = 'f32[16,128]{1,0:T(8,128)}', space=vmem, size = 0x2000, scoped, tag = 'scratch operand']
  %s0 = inlined_call_operand.vmem [shape: bf16[2,16,256], index: 0, kind: input, shape index: {}]
  %s1 = inlined_call_operand.vmem [shape: bf16[256,128], index: 1, kind: input, shape index: {}]
  %s2 = inlined_call_operand.vmem [shape: f32[1,128], index: 2, kind: input, shape index: {}]
  %s3 = inlined_call_operand.vmem [shape: f32[2,16,128], index: 3, kind: output, shape index: {}]
  %s4 = sld [smem:[#allocation0]]
  $region53: #{resnet_gen_forward.12} parent=0
    _
  %s6 = ssub.s32 1, %s4
  %s7 = scalar_select 0, %s6, %s4
  loop: start=0, step=1, limit=4
  $region2: #{resnet_gen_forward.12} parent=0 // loop_pre_header
    _
  $region3: #{resnet_gen_forward.12} parent=0 // loop_header
    %s9 = sphi 0, %s13
    %p10 = scmp.ge.s32.totalorder %s9, 4
    %s16 = sphi 0, %s28
    %s17 = sphi 0, %s24
    %s18 = sphi 0, %s16
    %s19 = sphi 0, %s17
    %s20 = sphi 0, %s18
    %s21 = sphi 0, %s19
    %s33 = sphi 0, %s35
    %s36 = sphi 0, %s33
    %s37 = sphi 0, %s36
    %s53 = sphi 0, %s37
    %s59 = sphi 0, %s61
    %s62 = sphi 0, %s59
    %s63 = sphi 0, %s62
    %s79 = sphi 0, %s63
    %s83 = sphi 0, %s83
    %s85 = sphi 0, %s83
    %s86 = sphi 0, %s85
    %s100 = sphi 0, %s86
    %s106 = sphi 0, %s108
    %s109 = sphi 0, %s106
    %s110 = sphi 0, %s109
    %s126 = sphi 0, %s110
  $region4: #{resnet_gen_forward.12} parent=0 // loop_header_branch
    %12 = sbr.rel (%p10) target = $region8
  $region5: #{resnet_gen_forward.12} parent=0 // loop_body
    %s14 = ssub.s32 %s9, 1
    %s15 = ssub.s32 %s9, 2
    %s22 = sadd.s32 1, %s17
    %p23 = scmp.ge.s32.totalorder %s22, 1
    %s24 = scalar_select %p23, 0, %s22
    %s25 = sadd.s32 1, %s16
    %s26 = scalar_select %p23, %s25, %s16
    %p27 = scmp.ge.s32.totalorder %s26, 2
    %s28 = scalar_select %p27, 0, %s26
    %s29 = ssub.s32 %s16, %s28
    %s30 = ssub.s32 %s17, %s24
    %s31 = sor.u32 %s29, %s30
    %p32 = scmp.eq.s32.totalorder %s31, 0
    %s34 = sadd.s32 %s33, 1
    %s35 = scalar_select %p32, %s33, %s34
    %p38 = pneg %p32
    %p39 = scmp.eq.s32.totalorder %s9, 1
    %p40 = por %p38, %p39
    %p41 = scmp.ne.s32.totalorder %s33, %s36
    %p42 = scmp.eq.s32.totalorder %s9, 0
    %p43 = por %p41, %p42
    %p44 = scmp.ne.s32.totalorder %s33, %s36
    %p45 = scmp.eq.s32.totalorder %s14, 1
    %p46 = por %p44, %p45
    %p47 = scmp.ne.s32.totalorder %s36, %s37
    %p48 = scmp.eq.s32.totalorder %s14, 0
    %p49 = por %p47, %p48
    %p50 = scmp.ne.s32.totalorder %s36, %s37
    %p51 = scmp.eq.s32.totalorder %s15, 1
    %p52 = por %p50, %p51
    %p54 = scmp.ne.s32.totalorder %s37, %s53
    %p55 = scmp.eq.s32.totalorder %s15, 0
    %p56 = por %p54, %p55
    %s57 = ssub.s32 %s17, %s24
    %p58 = scmp.eq.s32.totalorder %s57, 0
    %s60 = sadd.s32 %s59, 1
    %s61 = scalar_select %p58, %s59, %s60
    %p64 = pneg %p58
    %p65 = scmp.eq.s32.totalorder %s9, 1
    %p66 = por %p64, %p65
    %p67 = scmp.ne.s32.totalorder %s59, %s62
    %p68 = scmp.eq.s32.totalorder %s9, 0
    %p69 = por %p67, %p68
    %p70 = scmp.ne.s32.totalorder %s59, %s62
    %p71 = scmp.eq.s32.totalorder %s14, 1
    %p72 = por %p70, %p71
    %p73 = scmp.ne.s32.totalorder %s62, %s63
    %p74 = scmp.eq.s32.totalorder %s14, 0
    %p75 = por %p73, %p74
    %p76 = scmp.ne.s32.totalorder %s62, %s63
    %p77 = scmp.eq.s32.totalorder %s15, 1
    %p78 = por %p76, %p77
    %p80 = scmp.ne.s32.totalorder %s63, %s79
    %p81 = scmp.eq.s32.totalorder %s15, 0
    %p82 = por %p80, %p81
    %s84 = sadd.s32 %s83, 1
    %p87 = scmp.eq.s32.totalorder %s9, 1
    %p88 = scmp.ne.s32.totalorder %s83, %s85
    %p89 = scmp.eq.s32.totalorder %s9, 0
    %p90 = por %p88, %p89
    %p91 = scmp.ne.s32.totalorder %s83, %s85
    %p92 = scmp.eq.s32.totalorder %s14, 1
    %p93 = por %p91, %p92
    %p94 = scmp.ne.s32.totalorder %s85, %s86
    %p95 = scmp.eq.s32.totalorder %s14, 0
    %p96 = por %p94, %p95
    %p97 = scmp.ne.s32.totalorder %s85, %s86
    %p98 = scmp.eq.s32.totalorder %s15, 1
    %p99 = por %p97, %p98
    %p101 = scmp.ne.s32.totalorder %s86, %s100
    %p102 = scmp.eq.s32.totalorder %s15, 0
    %p103 = por %p101, %p102
    %s104 = ssub.s32 %s16, %s28
    %p105 = scmp.eq.s32.totalorder %s104, 0
    %s107 = sadd.s32 %s106, 1
    %s108 = scalar_select %p105, %s106, %s107
    %p111 = pneg %p105
    %p112 = scmp.eq.s32.totalorder %s9, 1
    %p113 = por %p111, %p112
    %p114 = scmp.ne.s32.totalorder %s106, %s109
    %p115 = scmp.eq.s32.totalorder %s9, 0
    %p116 = por %p114, %p115
    %p117 = scmp.ne.s32.totalorder %s106, %s109
    %p118 = scmp.eq.s32.totalorder %s14, 1
    %p119 = por %p117, %p118
    %p120 = scmp.ne.s32.totalorder %s109, %s110
    %p121 = scmp.eq.s32.totalorder %s14, 0
    %p122 = por %p120, %p121
    %p123 = scmp.ne.s32.totalorder %s109, %s110
    %p124 = scmp.eq.s32.totalorder %s15, 1
    %p125 = por %p123, %p124
    %p127 = scmp.ne.s32.totalorder %s110, %s126
    %p128 = scmp.eq.s32.totalorder %s15, 0
    %p129 = por %p127, %p128
    %p130 = scmp.le.s32.totalorder 1, %s9
    %p131 = scmp.lt.s32.totalorder %s9, 3
    %p132 = pnand %p130, %p131
    %p133 = pneg %p132
    // Predicated region
    $region9: #{resnet_gen_forward.12} parent=5 // pred_check
      _
    $region10: #{resnet_gen_forward.12} parent=5 // pred_check_branch
      %135 = sbr.rel (%p132) target = $region12
    $region11: #{resnet_gen_forward.12} parent=5 // pred_region
      %s136 = ssub.s32 %s9, 1
      // Predicated region
      $region13: #{resnet_gen_forward.12} parent=11 // pred_check
        %p137 = pneg %p75
      $region14: #{resnet_gen_forward.12} parent=11 // pred_check_branch
        %139 = sbr.rel (%p137) target = $region16
      $region15: #{resnet_gen_forward.12} parent=11 // pred_region
        %s140 = smul.u32 32, %s19
        %p141 = scmp.lt.s32.totalorder %s140, 31
        %s142 = scalar_select %p141, %s140, 31
        %s143 = smul.addr %s142, 4
        %s144 = scalar_lea.vmem %s1, %s143
        %s145 = smul.u32 32, %s19
      $region16: #{resnet_gen_forward.12} parent=11 // pred_fallthru
        _
      // Predicated region
      $region17: #{resnet_gen_forward.12} parent=11 // pred_check
        %p146 = pneg %p96
      $region18: #{resnet_gen_forward.12} parent=11 // pred_check_branch
        %148 = sbr.rel (%p146) target = $region20
      $region19: #{resnet_gen_forward.12} parent=11 // pred_region
        _
      $region20: #{resnet_gen_forward.12} parent=11 // pred_fallthru
        _
    $region12: #{resnet_gen_forward.12} parent=5 // pred_fallthru
      _
    %p149 = scmp.lt.s32.totalorder %s9, 2
    // Predicated region
    $region21: #{resnet_gen_forward.12} parent=5 // pred_check
      %p150 = pneg %p149
    $region22: #{resnet_gen_forward.12} parent=5 // pred_check_branch
      %152 = sbr.rel (%p150) target = $region24
    $region23: #{resnet_gen_forward.12} parent=5 // pred_region
      // Predicated region
      $region25: #{resnet_gen_forward.12} parent=23 // pred_check
        %p153 = pneg %p43
      $region26: #{resnet_gen_forward.12} parent=23 // pred_check_branch
        %155 = sbr.rel (%p153) target = $region28
      $region27: #{resnet_gen_forward.12} parent=23 // pred_region
        %s156 = smul.u32 2, %s17
        %p157 = scmp.lt.s32.totalorder %s16, 1
        %s158 = scalar_select %p157, %s16, 1
        %p159 = scmp.lt.s32.totalorder %s156, 1
        %s160 = scalar_select %p159, %s156, 1
        %s161 = smul.addr %s158, 4
        %s162 = sadd.s32 %s160, %s161
        %s163 = smul.addr %s162, 4
        %s164 = scalar_lea.vmem %s0, %s163
        %s165 = smul.u32 2, %s17
      $region28: #{resnet_gen_forward.12} parent=23 // pred_fallthru
        _
    $region24: #{resnet_gen_forward.12} parent=5 // pred_fallthru
      _
    %p166 = scmp.le.s32.totalorder 1, %s9
    %p167 = scmp.lt.s32.totalorder %s9, 3
    %p168 = pnand %p166, %p167
    %p169 = pneg %p168
    // Predicated region
    $region29: #{resnet_gen_forward.12} parent=5 // pred_check
      _
    $region30: #{resnet_gen_forward.12} parent=5 // pred_check_branch
      %171 = sbr.rel (%p168) target = $region32
    $region31: #{resnet_gen_forward.12} parent=5 // pred_region
      %s172 = ssub.s32 %s9, 1
      %s173 = smul.u32 2, %s19
      %p174 = scmp.lt.s32.totalorder %s18, 1
      %s175 = scalar_select %p174, %s18, 1
      %p176 = scmp.lt.s32.totalorder %s173, 1
      %s177 = scalar_select %p176, %s173, 1
      %s178 = smul.addr %s175, 4
      %s179 = sadd.s32 %s177, %s178
      %s180 = smul.addr %s179, 4
      %s181 = scalar_lea.vmem %s0, %s180
      %p182 = pneg %p49
      %p183 = pneg %p46
      %s184 = smul.u32 32, %s19
      %p185 = scmp.lt.s32.totalorder %s184, 31
      %s186 = scalar_select %p185, %s184, 31
      %s187 = smul.addr %s186, 4
      %s188 = scalar_lea.vmem %s1, %s187
      %p189 = pneg %p75
      %p190 = pneg %p72
      %p191 = pneg %p96
      %p192 = pneg %p93
      %p193 = pneg %p122
      %p194 = pneg %p119
      %p195 = scmp.lt.s32.totalorder %s18, 1
      %s196 = scalar_select %p195, %s18, 1
      %s197 = smul.addr %s196, 2
      %s198 = smul.addr %s197, 8
      %s199 = scalar_lea.vmem %s3, %s198
      %s200 = smul.u32 2, %s19
      %p201 = scmp.lt.s32.totalorder %s18, 1
      %s202 = scalar_select %p201, %s18, 1
      %p203 = scmp.lt.s32.totalorder %s200, 1
      %s204 = scalar_select %p203, %s200, 1
      %s205 = smul.addr %s202, 4
      %s206 = sadd.s32 %s204, %s205
      %s207 = smul.addr %s206, 4
      %s208 = scalar_lea.vmem %s0, %s207
      %s209 = smul.u32 2, %s19
      %s210 = smul.u32 32, %s19
      %p211 = scmp.lt.s32.totalorder %s210, 31
      %s212 = scalar_select %p211, %s210, 31
      %s213 = smul.addr %s212, 4
      %s214 = scalar_lea.vmem %s1, %s213
      %s215 = smul.u32 32, %s19
      %p216 = scmp.lt.s32.totalorder %s18, 1
      %s217 = scalar_select %p216, %s18, 1
      %s218 = smul.addr %s217, 2
      %s219 = smul.addr %s218, 8
      %s220 = scalar_lea.vmem %s3, %s219
      %p221 = scmp.eq.s32.totalorder %s19, 0
      // Predicated region
      $region33: #{resnet_gen_forward.12} parent=31 // pred_check
        %p222 = pneg %p221
      $region34: #{resnet_gen_forward.12} parent=31 // pred_check_branch
        %224 = sbr.rel (%p222) target = $region36
      $region35: #{resnet_gen_forward.12} parent=31 // pred_region
        %225 = vst [vmem:[#allocation2] sm:$0xff] 0.0
        %226 = vst [vmem:[#allocation2 + $0x8] sm:$0xff] 0.0
      $region36: #{resnet_gen_forward.12} parent=31 // pred_fallthru
        _
      %v227 = vld [vmem:[#allocation2] sm:$0xff]
      %v228 = vld [vmem:[#allocation2 + $0x8] sm:$0xff]
      %v229 = vld [vmem:[%s208] sm:$0xff]
      %v230 = vld [vmem:[%s208 + $0x8] sm:$0xff]
      %v231 = vld [vmem:[%s214] sm:$0xf]
      %v232 = vld [vmem:[%s214 + $0x4] sm:$0xf]
      %v233 = vld [vmem:[%s214 + $0x8] sm:$0xf]
      %v234 = vld [vmem:[%s214 + $0xc] sm:$0xf]
      %v235 = vld [vmem:[%s214 + $0x10] sm:$0xf]
      %v236 = vld [vmem:[%s214 + $0x14] sm:$0xf]
      %v237 = vld [vmem:[%s214 + $0x18] sm:$0xf]
      %v238 = vld [vmem:[%s214 + $0x1c] sm:$0xf]
      %v239 = vld [vmem:[%s214 + $0x20] sm:$0xf]
      %v240 = vld [vmem:[%s214 + $0x24] sm:$0xf]
      %v241 = vld [vmem:[%s214 + $0x28] sm:$0xf]
      %v242 = vld [vmem:[%s214 + $0x2c] sm:$0xf]
      %v243 = vld [vmem:[%s214 + $0x30] sm:$0xf]
      %v244 = vld [vmem:[%s214 + $0x34] sm:$0xf]
      %v245 = vld [vmem:[%s214 + $0x38] sm:$0xf]
      %v246 = vld [vmem:[%s214 + $0x3c] sm:$0xf]
      %v247 = vld [vmem:[%s214 + $0x40] sm:$0xf]
      %v248 = vld [vmem:[%s214 + $0x44] sm:$0xf]
      %v249 = vld [vmem:[%s214 + $0x48] sm:$0xf]
      %v250 = vld [vmem:[%s214 + $0x4c] sm:$0xf]
      %v251 = vld [vmem:[%s214 + $0x50] sm:$0xf]
      %v252 = vld [vmem:[%s214 + $0x54] sm:$0xf]
      %v253 = vld [vmem:[%s214 + $0x58] sm:$0xf]
      %v254 = vld [vmem:[%s214 + $0x5c] sm:$0xf]
      %v255 = vld [vmem:[%s214 + $0x60] sm:$0xf]
      %v256 = vld [vmem:[%s214 + $0x64] sm:$0xf]
      %v257 = vld [vmem:[%s214 + $0x68] sm:$0xf]
      %v258 = vld [vmem:[%s214 + $0x6c] sm:$0xf]
      %v259 = vld [vmem:[%s214 + $0x70] sm:$0xf]
      %v260 = vld [vmem:[%s214 + $0x74] sm:$0xf]
      %v261 = vld [vmem:[%s214 + $0x78] sm:$0xf]
      %v262 = vld [vmem:[%s214 + $0x7c] sm:$0xf]
      %v265 = vunpack.c.l.b16 %v229
      %v266 = vunpack.c.h.b16 %v229
      %v267 = vunpack.c.l.b16 %v230
      %v268 = vunpack.c.h.b16 %v230
      %v269 = vpack.c.b16 %v267, %v265
      %v270 = vpack.c.b16 %v268, %v266
      %v305 = vunpack.c.l.b16 %v231
      %v306 = vunpack.c.l.b16 %v232
      %v307 = vunpack.c.l.b16 %v233
      %v308 = vunpack.c.l.b16 %v234
      %v309 = vunpack.c.l.b16 %v235
      %v310 = vunpack.c.l.b16 %v236
      %v311 = vunpack.c.l.b16 %v237
      %v312 = vunpack.c.l.b16 %v238
      %v313 = vunpack.c.l.b16 %v239
      %v314 = vunpack.c.l.b16 %v240
      %v315 = vunpack.c.l.b16 %v241
      %v316 = vunpack.c.l.b16 %v242
      %v317 = vunpack.c.l.b16 %v243
      %v318 = vunpack.c.l.b16 %v244
      %v319 = vunpack.c.l.b16 %v245
      %v320 = vunpack.c.l.b16 %v246
      %v321 = vunpack.c.l.b16 %v247
      %v322 = vunpack.c.l.b16 %v248
      %v323 = vunpack.c.l.b16 %v249
      %v324 = vunpack.c.l.b16 %v250
      %v325 = vunpack.c.l.b16 %v251
      %v326 = vunpack.c.l.b16 %v252
      %v327 = vunpack.c.l.b16 %v253
      %v328 = vunpack.c.l.b16 %v254
      %v329 = vunpack.c.l.b16 %v255
      %v330 = vunpack.c.l.b16 %v256
      %v331 = vunpack.c.l.b16 %v257
      %v332 = vunpack.c.l.b16 %v258
      %v333 = vunpack.c.l.b16 %v259
      %v334 = vunpack.c.l.b16 %v260
      %v335 = vunpack.c.l.b16 %v261
      %v336 = vunpack.c.l.b16 %v262
      %v337 = vpack.c.b16 %v306, %v305
      %v338 = vpack.c.b16 %v308, %v307
      %v339 = vpack.c.b16 %v310, %v309
      %v340 = vpack.c.b16 %v312, %v311
      %v341 = vpack.c.b16 %v314, %v313
      %v342 = vpack.c.b16 %v316, %v315
      %v343 = vpack.c.b16 %v318, %v317
      %v344 = vpack.c.b16 %v320, %v319
      %v345 = vpack.c.b16 %v322, %v321
      %v346 = vpack.c.b16 %v324, %v323
      %v347 = vpack.c.b16 %v326, %v325
      %v348 = vpack.c.b16 %v328, %v327
      %v349 = vpack.c.b16 %v330, %v329
      %v350 = vpack.c.b16 %v332, %v331
      %v351 = vpack.c.b16 %v334, %v333
      %v352 = vpack.c.b16 %v336, %v335
      %369 = vmatpush.bf16.msra.mxu0 %v344
      %370 = vmatpush.bf16.msra.mxu0 %v343
      %371 = vmatpush.bf16.msra.mxu0 %v342
      %372 = vmatpush.bf16.msra.mxu0 %v341
      %373 = vmatpush.bf16.msra.mxu0 %v340
      %374 = vmatpush.bf16.msra.mxu0 %v339
      %375 = vmatpush.bf16.msra.mxu0 %v338
      %376 = vmatpush.bf16.msra.mxu0 %v337
      %377 = vmatmul.bf16.gmra.mxu0 %v269
      %v378 = vpop.f32.mrf.mxu0
      %v379 = vadd.f32 0.0, %v378
      %v380 = vpop.f32.mrf.mxu0
      %v381 = vadd.f32 0.0, %v380
      %382 = vdwg.mxu0
      %383 = vmatpush.bf16.msra.mxu0 %v352
      %384 = vmatpush.bf16.msra.mxu0 %v351
      %385 = vmatpush.bf16.msra.mxu0 %v350
      %386 = vmatpush.bf16.msra.mxu0 %v349
      %387 = vmatpush.bf16.msra.mxu0 %v348
      %388 = vmatpush.bf16.msra.mxu0 %v347
      %389 = vmatpush.bf16.msra.mxu0 %v346
      %390 = vmatpush.bf16.msra.mxu0 %v345
      %391 = vmatmul.bf16.gmra.mxu0 %v270
      %v392 = vpop.f32.mrf.mxu0
      %v393 = vadd.f32 %v379, %v392
      %v394 = vpop.f32.mrf.mxu0
      %v395 = vadd.f32 %v381, %v394
      %396 = vdwg.mxu0
      %v397 = vadd.f32 %v227, %v393
      %v398 = vadd.f32 %v228, %v395
      %399 = vst [vmem:[#allocation2] sm:$0xff] %v397
      %400 = vst [vmem:[#allocation2 + $0x8] sm:$0xff] %v398
      // Predicated region
      $region37: #{resnet_gen_forward.12} parent=31 // pred_check
        %p401 = pneg %p221
      $region38: #{resnet_gen_forward.12} parent=31 // pred_check_branch
        %403 = sbr.rel (%p401) target = $region40
      $region39: #{resnet_gen_forward.12} parent=31 // pred_region
        %v404 = vld [vmem:[#allocation2] sm:$0xff]
        %v405 = vld [vmem:[#allocation2 + $0x8] sm:$0xff]
        %v406 = vld [vmem:[%s2] sm:$0x1]
        %v408 = vperm.slane %v406, 0
        %v410 = vadd.f32 %v404, %v408
        %v411 = vadd.f32 %v405, %v408
        %v412 = vadd.f32 %v410, %v411
        %v413 = vrot.slane %v412, 4
        %v414 = vadd.f32 %v412, %v413
        %v415 = vrot.slane %v414, 2
        %v416 = vadd.f32 %v414, %v415
        %v417 = vrot.slane %v416, 1
        %v418 = vadd.f32 %v416, %v417
        %v419 = vrcp.pop 16.0
        %v420 = vmul.f32 16.0, %v419
        %v421 = vsub.f32 1.0, %v420
        %v422 = vmul.f32 %v419, %v421
        %v423 = vadd.f32 %v419, %v422
        %vm424 = vweird.f32 %v419
        %v425 = vsel %vm424, %v419, %v423
        %v426 = vmul.f32 %v418, %v425
        %v427 = vsub.f32 %v410, %v426
        %v428 = vsub.f32 %v411, %v426
        %v429 = vmul.f32 %v427, %v427
        %v430 = vmul.f32 %v428, %v428
        %v431 = vadd.f32 %v429, %v430
        %v432 = vrot.slane %v431, 4
        %v433 = vadd.f32 %v431, %v432
        %v434 = vrot.slane %v433, 2
        %v435 = vadd.f32 %v433, %v434
        %v436 = vrot.slane %v435, 1
        %v437 = vadd.f32 %v435, %v436
        %v438 = vmul.f32 %v437, %v425
        %v439 = vadd.f32 %v438, 1e-05
        %v440 = vrsqrt.pop %v439
        %v441 = vmul.f32 %v440, %v439
        %v442 = vmul.f32 %v441, %v440
        %v443 = vmul.f32 0.5, %v442
        %v444 = vsub.f32 1.5, %v443
        %v445 = vmul.f32 %v440, %v444
        %vm446 = vweird.f32 %v439
        %vm447 = vweird.f32 %v440
        %vm448 = vmor %vm446, %vm447
        %v449 = vsel %vm448, %v440, %v445
        %v450 = vmul.f32 %v427, %v449
        %v451 = vmul.f32 %v428, %v449
        %v452 = vmax.f32 %v450, 0.0
        %v453 = vmax.f32 %v451, 0.0
        %454 = vst [vmem:[%s220] sm:$0xff] %v452
        %455 = vst [vmem:[%s220 + $0x8] sm:$0xff] %v453
      $region40: #{resnet_gen_forward.12} parent=31 // pred_fallthru
        _
      %p456 = scmp.lt.s32.totalorder %s18, 1
      %s457 = scalar_select %p456, %s18, 1
      %s458 = smul.addr %s457, 2
      %s459 = smul.addr %s458, 8
      %s460 = scalar_lea.vmem %s3, %s459
      // Predicated region
      $region41: #{resnet_gen_forward.12} parent=31 // pred_check
        %p461 = pneg %p119
      $region42: #{resnet_gen_forward.12} parent=31 // pred_check_branch
        %463 = sbr.rel (%p461) target = $region44
      $region43: #{resnet_gen_forward.12} parent=31 // pred_region
        _
      $region44: #{resnet_gen_forward.12} parent=31 // pred_fallthru
        _
    $region32: #{resnet_gen_forward.12} parent=5 // pred_fallthru
      _
    %p464 = scmp.le.s32.totalorder 2, %s9
    // Predicated region
    $region45: #{resnet_gen_forward.12} parent=5 // pred_check
      %p465 = pneg %p464
    $region46: #{resnet_gen_forward.12} parent=5 // pred_check_branch
      %467 = sbr.rel (%p465) target = $region48
    $region47: #{resnet_gen_forward.12} parent=5 // pred_region
      %s468 = ssub.s32 %s9, 2
      // Predicated region
      $region49: #{resnet_gen_forward.12} parent=47 // pred_check
        %p469 = pneg %p125
      $region50: #{resnet_gen_forward.12} parent=47 // pred_check_branch
        %471 = sbr.rel (%p469) target = $region52
      $region51: #{resnet_gen_forward.12} parent=47 // pred_region
        %p472 = scmp.lt.s32.totalorder %s20, 1
        %s473 = scalar_select %p472, %s20, 1
        %s474 = smul.addr %s473, 2
        %s475 = smul.addr %s474, 8
        %s476 = scalar_lea.vmem %s3, %s475
      $region52: #{resnet_gen_forward.12} parent=47 // pred_fallthru
        _
    $region48: #{resnet_gen_forward.12} parent=5 // pred_fallthru
      _
  $region6: #{resnet_gen_forward.12} parent=0 // loop_footer
    %s13 = sadd.s32 1, %s9
  $region7: #{resnet_gen_forward.12} parent=0 // loop_footer_branch
    %8 = sbr.rel target = $region3
  $region8: #{resnet_gen_forward.12} parent=0 // loop_exit
    _

// kernel: resnet_gen_forward.13
$region0: #{resnet_gen_forward.13}
  #allocation0 [shape = 'u32[]', space=smem, size = 0x4, offset = 0x4, fixed_abs, tag = 'smem constant byte address 0x4 - core index']
  #allocation1 [shape = 'u32[72,128]{1,0:T(1,128)}', space=vmem, size = 0x9000, scoped, tag = 'internal scratch']
  #allocation2 [shape = 'f32[16,128]{1,0:T(8,128)}', space=vmem, size = 0x2000, scoped, tag = 'scratch operand']
  %s0 = inlined_call_operand.vmem [shape: bf16[2,16,384], index: 0, kind: input, shape index: {}]
  %s1 = inlined_call_operand.vmem [shape: bf16[384,128], index: 1, kind: input, shape index: {}]
  %s2 = inlined_call_operand.vmem [shape: f32[1,128], index: 2, kind: input, shape index: {}]
  %s3 = inlined_call_operand.vmem [shape: f32[2,16,128], index: 3, kind: output, shape index: {}]
  %s4 = sld [smem:[#allocation0]]
  $region53: #{resnet_gen_forward.13} parent=0
    _
  %s6 = ssub.s32 1, %s4
  %s7 = scalar_select 0, %s6, %s4
  loop: start=0, step=1, limit=4
  $region2: #{resnet_gen_forward.13} parent=0 // loop_pre_header
    _
  $region3: #{resnet_gen_forward.13} parent=0 // loop_header
    %s9 = sphi 0, %s13
    %p10 = scmp.ge.s32.totalorder %s9, 4
    %s16 = sphi 0, %s28
    %s17 = sphi 0, %s24
    %s18 = sphi 0, %s16
    %s19 = sphi 0, %s17
    %s20 = sphi 0, %s18
    %s21 = sphi 0, %s19
    %s33 = sphi 0, %s35
    %s36 = sphi 0, %s33
    %s37 = sphi 0, %s36
    %s53 = sphi 0, %s37
    %s59 = sphi 0, %s61
    %s62 = sphi 0, %s59
    %s63 = sphi 0, %s62
    %s79 = sphi 0, %s63
    %s83 = sphi 0, %s83
    %s85 = sphi 0, %s83
    %s86 = sphi 0, %s85
    %s100 = sphi 0, %s86
    %s106 = sphi 0, %s108
    %s109 = sphi 0, %s106
    %s110 = sphi 0, %s109
    %s126 = sphi 0, %s110
  $region4: #{resnet_gen_forward.13} parent=0 // loop_header_branch
    %12 = sbr.rel (%p10) target = $region8
  $region5: #{resnet_gen_forward.13} parent=0 // loop_body
    %s14 = ssub.s32 %s9, 1
    %s15 = ssub.s32 %s9, 2
    %s22 = sadd.s32 1, %s17
    %p23 = scmp.ge.s32.totalorder %s22, 1
    %s24 = scalar_select %p23, 0, %s22
    %s25 = sadd.s32 1, %s16
    %s26 = scalar_select %p23, %s25, %s16
    %p27 = scmp.ge.s32.totalorder %s26, 2
    %s28 = scalar_select %p27, 0, %s26
    %s29 = ssub.s32 %s16, %s28
    %s30 = ssub.s32 %s17, %s24
    %s31 = sor.u32 %s29, %s30
    %p32 = scmp.eq.s32.totalorder %s31, 0
    %s34 = sadd.s32 %s33, 1
    %s35 = scalar_select %p32, %s33, %s34
    %p38 = pneg %p32
    %p39 = scmp.eq.s32.totalorder %s9, 1
    %p40 = por %p38, %p39
    %p41 = scmp.ne.s32.totalorder %s33, %s36
    %p42 = scmp.eq.s32.totalorder %s9, 0
    %p43 = por %p41, %p42
    %p44 = scmp.ne.s32.totalorder %s33, %s36
    %p45 = scmp.eq.s32.totalorder %s14, 1
    %p46 = por %p44, %p45
    %p47 = scmp.ne.s32.totalorder %s36, %s37
    %p48 = scmp.eq.s32.totalorder %s14, 0
    %p49 = por %p47, %p48
    %p50 = scmp.ne.s32.totalorder %s36, %s37
    %p51 = scmp.eq.s32.totalorder %s15, 1
    %p52 = por %p50, %p51
    %p54 = scmp.ne.s32.totalorder %s37, %s53
    %p55 = scmp.eq.s32.totalorder %s15, 0
    %p56 = por %p54, %p55
    %s57 = ssub.s32 %s17, %s24
    %p58 = scmp.eq.s32.totalorder %s57, 0
    %s60 = sadd.s32 %s59, 1
    %s61 = scalar_select %p58, %s59, %s60
    %p64 = pneg %p58
    %p65 = scmp.eq.s32.totalorder %s9, 1
    %p66 = por %p64, %p65
    %p67 = scmp.ne.s32.totalorder %s59, %s62
    %p68 = scmp.eq.s32.totalorder %s9, 0
    %p69 = por %p67, %p68
    %p70 = scmp.ne.s32.totalorder %s59, %s62
    %p71 = scmp.eq.s32.totalorder %s14, 1
    %p72 = por %p70, %p71
    %p73 = scmp.ne.s32.totalorder %s62, %s63
    %p74 = scmp.eq.s32.totalorder %s14, 0
    %p75 = por %p73, %p74
    %p76 = scmp.ne.s32.totalorder %s62, %s63
    %p77 = scmp.eq.s32.totalorder %s15, 1
    %p78 = por %p76, %p77
    %p80 = scmp.ne.s32.totalorder %s63, %s79
    %p81 = scmp.eq.s32.totalorder %s15, 0
    %p82 = por %p80, %p81
    %s84 = sadd.s32 %s83, 1
    %p87 = scmp.eq.s32.totalorder %s9, 1
    %p88 = scmp.ne.s32.totalorder %s83, %s85
    %p89 = scmp.eq.s32.totalorder %s9, 0
    %p90 = por %p88, %p89
    %p91 = scmp.ne.s32.totalorder %s83, %s85
    %p92 = scmp.eq.s32.totalorder %s14, 1
    %p93 = por %p91, %p92
    %p94 = scmp.ne.s32.totalorder %s85, %s86
    %p95 = scmp.eq.s32.totalorder %s14, 0
    %p96 = por %p94, %p95
    %p97 = scmp.ne.s32.totalorder %s85, %s86
    %p98 = scmp.eq.s32.totalorder %s15, 1
    %p99 = por %p97, %p98
    %p101 = scmp.ne.s32.totalorder %s86, %s100
    %p102 = scmp.eq.s32.totalorder %s15, 0
    %p103 = por %p101, %p102
    %s104 = ssub.s32 %s16, %s28
    %p105 = scmp.eq.s32.totalorder %s104, 0
    %s107 = sadd.s32 %s106, 1
    %s108 = scalar_select %p105, %s106, %s107
    %p111 = pneg %p105
    %p112 = scmp.eq.s32.totalorder %s9, 1
    %p113 = por %p111, %p112
    %p114 = scmp.ne.s32.totalorder %s106, %s109
    %p115 = scmp.eq.s32.totalorder %s9, 0
    %p116 = por %p114, %p115
    %p117 = scmp.ne.s32.totalorder %s106, %s109
    %p118 = scmp.eq.s32.totalorder %s14, 1
    %p119 = por %p117, %p118
    %p120 = scmp.ne.s32.totalorder %s109, %s110
    %p121 = scmp.eq.s32.totalorder %s14, 0
    %p122 = por %p120, %p121
    %p123 = scmp.ne.s32.totalorder %s109, %s110
    %p124 = scmp.eq.s32.totalorder %s15, 1
    %p125 = por %p123, %p124
    %p127 = scmp.ne.s32.totalorder %s110, %s126
    %p128 = scmp.eq.s32.totalorder %s15, 0
    %p129 = por %p127, %p128
    %p130 = scmp.le.s32.totalorder 1, %s9
    %p131 = scmp.lt.s32.totalorder %s9, 3
    %p132 = pnand %p130, %p131
    %p133 = pneg %p132
    // Predicated region
    $region9: #{resnet_gen_forward.13} parent=5 // pred_check
      _
    $region10: #{resnet_gen_forward.13} parent=5 // pred_check_branch
      %135 = sbr.rel (%p132) target = $region12
    $region11: #{resnet_gen_forward.13} parent=5 // pred_region
      %s136 = ssub.s32 %s9, 1
      // Predicated region
      $region13: #{resnet_gen_forward.13} parent=11 // pred_check
        %p137 = pneg %p75
      $region14: #{resnet_gen_forward.13} parent=11 // pred_check_branch
        %139 = sbr.rel (%p137) target = $region16
      $region15: #{resnet_gen_forward.13} parent=11 // pred_region
        %s140 = smul.u32 48, %s19
        %p141 = scmp.lt.s32.totalorder %s140, 47
        %s142 = scalar_select %p141, %s140, 47
        %s143 = smul.addr %s142, 4
        %s144 = scalar_lea.vmem %s1, %s143
        %s145 = smul.u32 48, %s19
      $region16: #{resnet_gen_forward.13} parent=11 // pred_fallthru
        _
      // Predicated region
      $region17: #{resnet_gen_forward.13} parent=11 // pred_check
        %p146 = pneg %p96
      $region18: #{resnet_gen_forward.13} parent=11 // pred_check_branch
        %148 = sbr.rel (%p146) target = $region20
      $region19: #{resnet_gen_forward.13} parent=11 // pred_region
        _
      $region20: #{resnet_gen_forward.13} parent=11 // pred_fallthru
        _
    $region12: #{resnet_gen_forward.13} parent=5 // pred_fallthru
      _
    %p149 = scmp.lt.s32.totalorder %s9, 2
    // Predicated region
    $region21: #{resnet_gen_forward.13} parent=5 // pred_check
      %p150 = pneg %p149
    $region22: #{resnet_gen_forward.13} parent=5 // pred_check_branch
      %152 = sbr.rel (%p150) target = $region24
    $region23: #{resnet_gen_forward.13} parent=5 // pred_region
      // Predicated region
      $region25: #{resnet_gen_forward.13} parent=23 // pred_check
        %p153 = pneg %p43
      $region26: #{resnet_gen_forward.13} parent=23 // pred_check_branch
        %155 = sbr.rel (%p153) target = $region28
      $region27: #{resnet_gen_forward.13} parent=23 // pred_region
        %s156 = smul.u32 3, %s17
        %p157 = scmp.lt.s32.totalorder %s16, 1
        %s158 = scalar_select %p157, %s16, 1
        %p159 = scmp.lt.s32.totalorder %s156, 2
        %s160 = scalar_select %p159, %s156, 2
        %s161 = smul.addr %s158, 6
        %s162 = sadd.s32 %s160, %s161
        %s163 = smul.addr %s162, 4
        %s164 = scalar_lea.vmem %s0, %s163
        %s165 = smul.u32 3, %s17
      $region28: #{resnet_gen_forward.13} parent=23 // pred_fallthru
        _
    $region24: #{resnet_gen_forward.13} parent=5 // pred_fallthru
      _
    %p166 = scmp.le.s32.totalorder 1, %s9
    %p167 = scmp.lt.s32.totalorder %s9, 3
    %p168 = pnand %p166, %p167
    %p169 = pneg %p168
    // Predicated region
    $region29: #{resnet_gen_forward.13} parent=5 // pred_check
      _
    $region30: #{resnet_gen_forward.13} parent=5 // pred_check_branch
      %171 = sbr.rel (%p168) target = $region32
    $region31: #{resnet_gen_forward.13} parent=5 // pred_region
      %s172 = ssub.s32 %s9, 1
      %s173 = smul.u32 3, %s19
      %p174 = scmp.lt.s32.totalorder %s18, 1
      %s175 = scalar_select %p174, %s18, 1
      %p176 = scmp.lt.s32.totalorder %s173, 2
      %s177 = scalar_select %p176, %s173, 2
      %s178 = smul.addr %s175, 6
      %s179 = sadd.s32 %s177, %s178
      %s180 = smul.addr %s179, 4
      %s181 = scalar_lea.vmem %s0, %s180
      %p182 = pneg %p49
      %p183 = pneg %p46
      %s184 = smul.u32 48, %s19
      %p185 = scmp.lt.s32.totalorder %s184, 47
      %s186 = scalar_select %p185, %s184, 47
      %s187 = smul.addr %s186, 4
      %s188 = scalar_lea.vmem %s1, %s187
      %p189 = pneg %p75
      %p190 = pneg %p72
      %p191 = pneg %p96
      %p192 = pneg %p93
      %p193 = pneg %p122
      %p194 = pneg %p119
      %p195 = scmp.lt.s32.totalorder %s18, 1
      %s196 = scalar_select %p195, %s18, 1
      %s197 = smul.addr %s196, 2
      %s198 = smul.addr %s197, 8
      %s199 = scalar_lea.vmem %s3, %s198
      %s200 = smul.u32 3, %s19
      %p201 = scmp.lt.s32.totalorder %s18, 1
      %s202 = scalar_select %p201, %s18, 1
      %p203 = scmp.lt.s32.totalorder %s200, 2
      %s204 = scalar_select %p203, %s200, 2
      %s205 = smul.addr %s202, 6
      %s206 = sadd.s32 %s204, %s205
      %s207 = smul.addr %s206, 4
      %s208 = scalar_lea.vmem %s0, %s207
      %s209 = smul.u32 3, %s19
      %s210 = smul.u32 48, %s19
      %p211 = scmp.lt.s32.totalorder %s210, 47
      %s212 = scalar_select %p211, %s210, 47
      %s213 = smul.addr %s212, 4
      %s214 = scalar_lea.vmem %s1, %s213
      %s215 = smul.u32 48, %s19
      %p216 = scmp.lt.s32.totalorder %s18, 1
      %s217 = scalar_select %p216, %s18, 1
      %s218 = smul.addr %s217, 2
      %s219 = smul.addr %s218, 8
      %s220 = scalar_lea.vmem %s3, %s219
      %p221 = scmp.eq.s32.totalorder %s19, 0
      // Predicated region
      $region33: #{resnet_gen_forward.13} parent=31 // pred_check
        %p222 = pneg %p221
      $region34: #{resnet_gen_forward.13} parent=31 // pred_check_branch
        %224 = sbr.rel (%p222) target = $region36
      $region35: #{resnet_gen_forward.13} parent=31 // pred_region
        %225 = vst [vmem:[#allocation2] sm:$0xff] 0.0
        %226 = vst [vmem:[#allocation2 + $0x8] sm:$0xff] 0.0
      $region36: #{resnet_gen_forward.13} parent=31 // pred_fallthru
        _
      %v227 = vld [vmem:[#allocation2] sm:$0xff]
      %v228 = vld [vmem:[#allocation2 + $0x8] sm:$0xff]
      %v229 = vld [vmem:[%s208] sm:$0xff]
      %v230 = vld [vmem:[%s208 + $0x8] sm:$0xf]
      %v231 = vld [vmem:[%s208 + $0xc] sm:$0xff]
      %v232 = vld [vmem:[%s208 + $0x14] sm:$0xf]
      %v233 = vld [vmem:[%s214] sm:$0xf]
      %v234 = vld [vmem:[%s214 + $0x4] sm:$0xf]
      %v235 = vld [vmem:[%s214 + $0x8] sm:$0xf]
      %v236 = vld [vmem:[%s214 + $0xc] sm:$0xf]
      %v237 = vld [vmem:[%s214 + $0x10] sm:$0xf]
      %v238 = vld [vmem:[%s214 + $0x14] sm:$0xf]
      %v239 = vld [vmem:[%s214 + $0x18] sm:$0xf]
      %v240 = vld [vmem:[%s214 + $0x1c] sm:$0xf]
      %v241 = vld [vmem:[%s214 + $0x20] sm:$0xf]
      %v242 = vld [vmem:[%s214 + $0x24] sm:$0xf]
      %v243 = vld [vmem:[%s214 + $0x28] sm:$0xf]
      %v244 = vld [vmem:[%s214 + $0x2c] sm:$0xf]
      %v245 = vld [vmem:[%s214 + $0x30] sm:$0xf]
      %v246 = vld [vmem:[%s214 + $0x34] sm:$0xf]
      %v247 = vld [vmem:[%s214 + $0x38] sm:$0xf]
      %v248 = vld [vmem:[%s214 + $0x3c] sm:$0xf]
      %v249 = vld [vmem:[%s214 + $0x40] sm:$0xf]
      %v250 = vld [vmem:[%s214 + $0x44] sm:$0xf]
      %v251 = vld [vmem:[%s214 + $0x48] sm:$0xf]
      %v252 = vld [vmem:[%s214 + $0x4c] sm:$0xf]
      %v253 = vld [vmem:[%s214 + $0x50] sm:$0xf]
      %v254 = vld [vmem:[%s214 + $0x54] sm:$0xf]
      %v255 = vld [vmem:[%s214 + $0x58] sm:$0xf]
      %v256 = vld [vmem:[%s214 + $0x5c] sm:$0xf]
      %v257 = vld [vmem:[%s214 + $0x60] sm:$0xf]
      %v258 = vld [vmem:[%s214 + $0x64] sm:$0xf]
      %v259 = vld [vmem:[%s214 + $0x68] sm:$0xf]
      %v260 = vld [vmem:[%s214 + $0x6c] sm:$0xf]
      %v261 = vld [vmem:[%s214 + $0x70] sm:$0xf]
      %v262 = vld [vmem:[%s214 + $0x74] sm:$0xf]
      %v263 = vld [vmem:[%s214 + $0x78] sm:$0xf]
      %v264 = vld [vmem:[%s214 + $0x7c] sm:$0xf]
      %v265 = vld [vmem:[%s214 + $0x80] sm:$0xf]
      %v266 = vld [vmem:[%s214 + $0x84] sm:$0xf]
      %v267 = vld [vmem:[%s214 + $0x88] sm:$0xf]
      %v268 = vld [vmem:[%s214 + $0x8c] sm:$0xf]
      %v269 = vld [vmem:[%s214 + $0x90] sm:$0xf]
      %v270 = vld [vmem:[%s214 + $0x94] sm:$0xf]
      %v271 = vld [vmem:[%s214 + $0x98] sm:$0xf]
      %v272 = vld [vmem:[%s214 + $0x9c] sm:$0xf]
      %v273 = vld [vmem:[%s214 + $0xa0] sm:$0xf]
      %v274 = vld [vmem:[%s214 + $0xa4] sm:$0xf]
      %v275 = vld [vmem:[%s214 + $0xa8] sm:$0xf]
      %v276 = vld [vmem:[%s214 + $0xac] sm:$0xf]
      %v277 = vld [vmem:[%s214 + $0xb0] sm:$0xf]
      %v278 = vld [vmem:[%s214 + $0xb4] sm:$0xf]
      %v279 = vld [vmem:[%s214 + $0xb8] sm:$0xf]
      %v280 = vld [vmem:[%s214 + $0xbc] sm:$0xf]
      %v285 = vunpack.c.l.b16 %v229
      %v286 = vunpack.c.h.b16 %v229
      %v287 = vunpack.c.l.b16 %v230
      %v288 = vunpack.c.l.b16 %v231
      %v289 = vunpack.c.h.b16 %v231
      %v290 = vunpack.c.l.b16 %v232
      %v291 = vpack.c.b16 %v288, %v285
      %v292 = vpack.c.b16 %v289, %v286
      %v293 = vpack.c.b16 %v290, %v287
      %v345 = vunpack.c.l.b16 %v233
      %v346 = vunpack.c.l.b16 %v234
      %v347 = vunpack.c.l.b16 %v235
      %v348 = vunpack.c.l.b16 %v236
      %v349 = vunpack.c.l.b16 %v237
      %v350 = vunpack.c.l.b16 %v238
      %v351 = vunpack.c.l.b16 %v239
      %v352 = vunpack.c.l.b16 %v240
      %v353 = vunpack.c.l.b16 %v241
      %v354 = vunpack.c.l.b16 %v242
      %v355 = vunpack.c.l.b16 %v243
      %v356 = vunpack.c.l.b16 %v244
      %v357 = vunpack.c.l.b16 %v245
      %v358 = vunpack.c.l.b16 %v246
      %v359 = vunpack.c.l.b16 %v247
      %v360 = vunpack.c.l.b16 %v248
      %v361 = vunpack.c.l.b16 %v249
      %v362 = vunpack.c.l.b16 %v250
      %v363 = vunpack.c.l.b16 %v251
      %v364 = vunpack.c.l.b16 %v252
      %v365 = vunpack.c.l.b16 %v253
      %v366 = vunpack.c.l.b16 %v254
      %v367 = vunpack.c.l.b16 %v255
      %v368 = vunpack.c.l.b16 %v256
      %v369 = vunpack.c.l.b16 %v257
      %v370 = vunpack.c.l.b16 %v258
      %v371 = vunpack.c.l.b16 %v259
      %v372 = vunpack.c.l.b16 %v260
      %v373 = vunpack.c.l.b16 %v261
      %v374 = vunpack.c.l.b16 %v262
      %v375 = vunpack.c.l.b16 %v263
      %v376 = vunpack.c.l.b16 %v264
      %v377 = vunpack.c.l.b16 %v265
      %v378 = vunpack.c.l.b16 %v266
      %v379 = vunpack.c.l.b16 %v267
      %v380 = vunpack.c.l.b16 %v268
      %v381 = vunpack.c.l.b16 %v269
      %v382 = vunpack.c.l.b16 %v270
      %v383 = vunpack.c.l.b16 %v271
      %v384 = vunpack.c.l.b16 %v272
      %v385 = vunpack.c.l.b16 %v273
      %v386 = vunpack.c.l.b16 %v274
      %v387 = vunpack.c.l.b16 %v275
      %v388 = vunpack.c.l.b16 %v276
      %v389 = vunpack.c.l.b16 %v277
      %v390 = vunpack.c.l.b16 %v278
      %v391 = vunpack.c.l.b16 %v279
      %v392 = vunpack.c.l.b16 %v280
      %v393 = vpack.c.b16 %v346, %v345
      %v394 = vpack.c.b16 %v348, %v347
      %v395 = vpack.c.b16 %v350, %v349
      %v396 = vpack.c.b16 %v352, %v351
      %v397 = vpack.c.b16 %v354, %v353
      %v398 = vpack.c.b16 %v356, %v355
      %v399 = vpack.c.b16 %v358, %v357
      %v400 = vpack.c.b16 %v360, %v359
      %v401 = vpack.c.b16 %v362, %v361
      %v402 = vpack.c.b16 %v364, %v363
      %v403 = vpack.c.b16 %v366, %v365
      %v404 = vpack.c.b16 %v368, %v367
      %v405 = vpack.c.b16 %v370, %v369
      %v406 = vpack.c.b16 %v372, %v371
      %v407 = vpack.c.b16 %v374, %v373
      %v408 = vpack.c.b16 %v376, %v375
      %v409 = vpack.c.b16 %v378, %v377
      %v410 = vpack.c.b16 %v380, %v379
      %v411 = vpack.c.b16 %v382, %v381
      %v412 = vpack.c.b16 %v384, %v383
      %v413 = vpack.c.b16 %v386, %v385
      %v414 = vpack.c.b16 %v388, %v387
      %v415 = vpack.c.b16 %v390, %v389
      %v416 = vpack.c.b16 %v392, %v391
      %441 = vmatpush.bf16.msra.mxu0 %v400
      %442 = vmatpush.bf16.msra.mxu0 %v399
      %443 = vmatpush.bf16.msra.mxu0 %v398
      %444 = vmatpush.bf16.msra.mxu0 %v397
      %445 = vmatpush.bf16.msra.mxu0 %v396
      %446 = vmatpush.bf16.msra.mxu0 %v395
      %447 = vmatpush.bf16.msra.mxu0 %v394
      %448 = vmatpush.bf16.msra.mxu0 %v393
      %449 = vmatmul.bf16.gmra.mxu0 %v291
      %v450 = vpop.f32.mrf.mxu0
      %v451 = vadd.f32 0.0, %v450
      %v452 = vpop.f32.mrf.mxu0
      %v453 = vadd.f32 0.0, %v452
      %454 = vdwg.mxu0
      %455 = vmatpush.bf16.msra.mxu0 %v408
      %456 = vmatpush.bf16.msra.mxu0 %v407
      %457 = vmatpush.bf16.msra.mxu0 %v406
      %458 = vmatpush.bf16.msra.mxu0 %v405
      %459 = vmatpush.bf16.msra.mxu0 %v404
      %460 = vmatpush.bf16.msra.mxu0 %v403
      %461 = vmatpush.bf16.msra.mxu0 %v402
      %462 = vmatpush.bf16.msra.mxu0 %v401
      %463 = vmatmul.bf16.gmra.mxu0 %v292
      %v464 = vpop.f32.mrf.mxu0
      %v465 = vadd.f32 %v451, %v464
      %v466 = vpop.f32.mrf.mxu0
      %v467 = vadd.f32 %v453, %v466
      %468 = vdwg.mxu0
      %469 = vmatpush.bf16.msra.mxu0 %v416
      %470 = vmatpush.bf16.msra.mxu0 %v415
      %471 = vmatpush.bf16.msra.mxu0 %v414
      %472 = vmatpush.bf16.msra.mxu0 %v413
      %473 = vmatpush.bf16.msra.mxu0 %v412
      %474 = vmatpush.bf16.msra.mxu0 %v411
      %475 = vmatpush.bf16.msra.mxu0 %v410
      %476 = vmatpush.bf16.msra.mxu0 %v409
      %477 = vmatmul.bf16.gmra.mxu0 %v293
      %v478 = vpop.f32.mrf.mxu0
      %v479 = vadd.f32 %v465, %v478
      %v480 = vpop.f32.mrf.mxu0
      %v481 = vadd.f32 %v467, %v480
      %482 = vdwg.mxu0
      %v483 = vadd.f32 %v227, %v479
      %v484 = vadd.f32 %v228, %v481
      %485 = vst [vmem:[#allocation2] sm:$0xff] %v483
      %486 = vst [vmem:[#allocation2 + $0x8] sm:$0xff] %v484
      // Predicated region
      $region37: #{resnet_gen_forward.13} parent=31 // pred_check
        %p487 = pneg %p221
      $region38: #{resnet_gen_forward.13} parent=31 // pred_check_branch
        %489 = sbr.rel (%p487) target = $region40
      $region39: #{resnet_gen_forward.13} parent=31 // pred_region
        %v490 = vld [vmem:[#allocation2] sm:$0xff]
        %v491 = vld [vmem:[#allocation2 + $0x8] sm:$0xff]
        %v492 = vld [vmem:[%s2] sm:$0x1]
        %v494 = vperm.slane %v492, 0
        %v496 = vadd.f32 %v490, %v494
        %v497 = vadd.f32 %v491, %v494
        %v498 = vadd.f32 %v496, %v497
        %v499 = vrot.slane %v498, 4
        %v500 = vadd.f32 %v498, %v499
        %v501 = vrot.slane %v500, 2
        %v502 = vadd.f32 %v500, %v501
        %v503 = vrot.slane %v502, 1
        %v504 = vadd.f32 %v502, %v503
        %v505 = vrcp.pop 16.0
        %v506 = vmul.f32 16.0, %v505
        %v507 = vsub.f32 1.0, %v506
        %v508 = vmul.f32 %v505, %v507
        %v509 = vadd.f32 %v505, %v508
        %vm510 = vweird.f32 %v505
        %v511 = vsel %vm510, %v505, %v509
        %v512 = vmul.f32 %v504, %v511
        %v513 = vsub.f32 %v496, %v512
        %v514 = vsub.f32 %v497, %v512
        %v515 = vmul.f32 %v513, %v513
        %v516 = vmul.f32 %v514, %v514
        %v517 = vadd.f32 %v515, %v516
        %v518 = vrot.slane %v517, 4
        %v519 = vadd.f32 %v517, %v518
        %v520 = vrot.slane %v519, 2
        %v521 = vadd.f32 %v519, %v520
        %v522 = vrot.slane %v521, 1
        %v523 = vadd.f32 %v521, %v522
        %v524 = vmul.f32 %v523, %v511
        %v525 = vadd.f32 %v524, 1e-05
        %v526 = vrsqrt.pop %v525
        %v527 = vmul.f32 %v526, %v525
        %v528 = vmul.f32 %v527, %v526
        %v529 = vmul.f32 0.5, %v528
        %v530 = vsub.f32 1.5, %v529
        %v531 = vmul.f32 %v526, %v530
        %vm532 = vweird.f32 %v525
        %vm533 = vweird.f32 %v526
        %vm534 = vmor %vm532, %vm533
        %v535 = vsel %vm534, %v526, %v531
        %v536 = vmul.f32 %v513, %v535
        %v537 = vmul.f32 %v514, %v535
        %v538 = vmax.f32 %v536, 0.0
        %v539 = vmax.f32 %v537, 0.0
        %540 = vst [vmem:[%s220] sm:$0xff] %v538
        %541 = vst [vmem:[%s220 + $0x8] sm:$0xff] %v539
      $region40: #{resnet_gen_forward.13} parent=31 // pred_fallthru
        _
      %p542 = scmp.lt.s32.totalorder %s18, 1
      %s543 = scalar_select %p542, %s18, 1
      %s544 = smul.addr %s543, 2
      %s545 = smul.addr %s544, 8
      %s546 = scalar_lea.vmem %s3, %s545
      // Predicated region
      $region41: #{resnet_gen_forward.13} parent=31 // pred_check
        %p547 = pneg %p119
      $region42: #{resnet_gen_forward.13} parent=31 // pred_check_branch
        %549 = sbr.rel (%p547) target = $region44
      $region43: #{resnet_gen_forward.13} parent=31 // pred_region
        _
      $region44: #{resnet_gen_forward.13} parent=31 // pred_fallthru
        _
    $region32: #{resnet_gen_forward.13} parent=5 // pred_fallthru
      _
    %p550 = scmp.le.s32.totalorder 2, %s9
    // Predicated region
    $region45: #{resnet_gen_forward.13} parent=5 // pred_check
      %p551 = pneg %p550
    $region46: #{resnet_gen_forward.13} parent=5 // pred_check_branch
      %553 = sbr.rel (%p551) target = $region48
    $region47: #{resnet_gen_forward.13} parent=5 // pred_region
      %s554 = ssub.s32 %s9, 2
      // Predicated region
      $region49: #{resnet_gen_forward.13} parent=47 // pred_check
        %p555 = pneg %p125
      $region50: #{resnet_gen_forward.13} parent=47 // pred_check_branch
        %557 = sbr.rel (%p555) target = $region52
      $region51: #{resnet_gen_forward.13} parent=47 // pred_region
        %p558 = scmp.lt.s32.totalorder %s20, 1
        %s559 = scalar_select %p558, %s20, 1
        %s560 = smul.addr %s559, 2
        %s561 = smul.addr %s560, 8
        %s562 = scalar_lea.vmem %s3, %s561
      $region52: #{resnet_gen_forward.13} parent=47 // pred_fallthru
        _
    $region48: #{resnet_gen_forward.13} parent=5 // pred_fallthru
      _
  $region6: #{resnet_gen_forward.13} parent=0 // loop_footer
    %s13 = sadd.s32 1, %s9
  $region7: #{resnet_gen_forward.13} parent=0 // loop_footer_branch
    %8 = sbr.rel target = $region3
  $region8: #{resnet_gen_forward.13} parent=0 // loop_exit
    _

// kernel: resnet_gen_forward.14
$region0: #{resnet_gen_forward.14}
  #allocation0 [shape = 'u32[]', space=smem, size = 0x4, offset = 0x4, fixed_abs, tag = 'smem constant byte address 0x4 - core index']
  #allocation1 [shape = 'u32[72,128]{1,0:T(1,128)}', space=vmem, size = 0x9000, scoped, tag = 'internal scratch']
  #allocation2 [shape = 'f32[16,128]{1,0:T(8,128)}', space=vmem, size = 0x2000, scoped, tag = 'scratch operand']
  %s0 = inlined_call_operand.vmem [shape: bf16[2,16,384], index: 0, kind: input, shape index: {}]
  %s1 = inlined_call_operand.vmem [shape: bf16[384,128], index: 1, kind: input, shape index: {}]
  %s2 = inlined_call_operand.vmem [shape: f32[1,128], index: 2, kind: input, shape index: {}]
  %s3 = inlined_call_operand.vmem [shape: f32[2,16,128], index: 3, kind: input, shape index: {}]
  %s4 = inlined_call_operand.vmem [shape: f32[2,16,128], index: 4, kind: output, shape index: {}]
  %s5 = sld [smem:[#allocation0]]
  $region57: #{resnet_gen_forward.14} parent=0
    _
  %s7 = ssub.s32 1, %s5
  %s8 = scalar_select 0, %s7, %s5
  loop: start=0, step=1, limit=4
  $region2: #{resnet_gen_forward.14} parent=0 // loop_pre_header
    _
  $region3: #{resnet_gen_forward.14} parent=0 // loop_header
    %s10 = sphi 0, %s14
    %p11 = scmp.ge.s32.totalorder %s10, 4
    %s17 = sphi 0, %s29
    %s18 = sphi 0, %s25
    %s19 = sphi 0, %s17
    %s20 = sphi 0, %s18
    %s21 = sphi 0, %s19
    %s22 = sphi 0, %s20
    %s34 = sphi 0, %s36
    %s37 = sphi 0, %s34
    %s38 = sphi 0, %s37
    %s54 = sphi 0, %s38
    %s60 = sphi 0, %s62
    %s63 = sphi 0, %s60
    %s64 = sphi 0, %s63
    %s80 = sphi 0, %s64
    %s84 = sphi 0, %s84
    %s86 = sphi 0, %s84
    %s87 = sphi 0, %s86
    %s101 = sphi 0, %s87
    %s107 = sphi 0, %s109
    %s110 = sphi 0, %s107
    %s111 = sphi 0, %s110
    %s127 = sphi 0, %s111
    %s133 = sphi 0, %s135
    %s136 = sphi 0, %s133
    %s137 = sphi 0, %s136
    %s153 = sphi 0, %s137
  $region4: #{resnet_gen_forward.14} parent=0 // loop_header_branch
    %13 = sbr.rel (%p11) target = $region8
  $region5: #{resnet_gen_forward.14} parent=0 // loop_body
    %s15 = ssub.s32 %s10, 1
    %s16 = ssub.s32 %s10, 2
    %s23 = sadd.s32 1, %s18
    %p24 = scmp.ge.s32.totalorder %s23, 1
    %s25 = scalar_select %p24, 0, %s23
    %s26 = sadd.s32 1, %s17
    %s27 = scalar_select %p24, %s26, %s17
    %p28 = scmp.ge.s32.totalorder %s27, 2
    %s29 = scalar_select %p28, 0, %s27
    %s30 = ssub.s32 %s17, %s29
    %s31 = ssub.s32 %s18, %s25
    %s32 = sor.u32 %s30, %s31
    %p33 = scmp.eq.s32.totalorder %s32, 0
    %s35 = sadd.s32 %s34, 1
    %s36 = scalar_select %p33, %s34, %s35
    %p39 = pneg %p33
    %p40 = scmp.eq.s32.totalorder %s10, 1
    %p41 = por %p39, %p40
    %p42 = scmp.ne.s32.totalorder %s34, %s37
    %p43 = scmp.eq.s32.totalorder %s10, 0
    %p44 = por %p42, %p43
    %p45 = scmp.ne.s32.totalorder %s34, %s37
    %p46 = scmp.eq.s32.totalorder %s15, 1
    %p47 = por %p45, %p46
    %p48 = scmp.ne.s32.totalorder %s37, %s38
    %p49 = scmp.eq.s32.totalorder %s15, 0
    %p50 = por %p48, %p49
    %p51 = scmp.ne.s32.totalorder %s37, %s38
    %p52 = scmp.eq.s32.totalorder %s16, 1
    %p53 = por %p51, %p52
    %p55 = scmp.ne.s32.totalorder %s38, %s54
    %p56 = scmp.eq.s32.totalorder %s16, 0
    %p57 = por %p55, %p56
    %s58 = ssub.s32 %s18, %s25
    %p59 = scmp.eq.s32.totalorder %s58, 0
    %s61 = sadd.s32 %s60, 1
    %s62 = scalar_select %p59, %s60, %s61
    %p65 = pneg %p59
    %p66 = scmp.eq.s32.totalorder %s10, 1
    %p67 = por %p65, %p66
    %p68 = scmp.ne.s32.totalorder %s60, %s63
    %p69 = scmp.eq.s32.totalorder %s10, 0
    %p70 = por %p68, %p69
    %p71 = scmp.ne.s32.totalorder %s60, %s63
    %p72 = scmp.eq.s32.totalorder %s15, 1
    %p73 = por %p71, %p72
    %p74 = scmp.ne.s32.totalorder %s63, %s64
    %p75 = scmp.eq.s32.totalorder %s15, 0
    %p76 = por %p74, %p75
    %p77 = scmp.ne.s32.totalorder %s63, %s64
    %p78 = scmp.eq.s32.totalorder %s16, 1
    %p79 = por %p77, %p78
    %p81 = scmp.ne.s32.totalorder %s64, %s80
    %p82 = scmp.eq.s32.totalorder %s16, 0
    %p83 = por %p81, %p82
    %s85 = sadd.s32 %s84, 1
    %p88 = scmp.eq.s32.totalorder %s10, 1
    %p89 = scmp.ne.s32.totalorder %s84, %s86
    %p90 = scmp.eq.s32.totalorder %s10, 0
    %p91 = por %p89, %p90
    %p92 = scmp.ne.s32.totalorder %s84, %s86
    %p93 = scmp.eq.s32.totalorder %s15, 1
    %p94 = por %p92, %p93
    %p95 = scmp.ne.s32.totalorder %s86, %s87
    %p96 = scmp.eq.s32.totalorder %s15, 0
    %p97 = por %p95, %p96
    %p98 = scmp.ne.s32.totalorder %s86, %s87
    %p99 = scmp.eq.s32.totalorder %s16, 1
    %p100 = por %p98, %p99
    %p102 = scmp.ne.s32.totalorder %s87, %s101
    %p103 = scmp.eq.s32.totalorder %s16, 0
    %p104 = por %p102, %p103
    %s105 = ssub.s32 %s17, %s29
    %p106 = scmp.eq.s32.totalorder %s105, 0
    %s108 = sadd.s32 %s107, 1
    %s109 = scalar_select %p106, %s107, %s108
    %p112 = pneg %p106
    %p113 = scmp.eq.s32.totalorder %s10, 1
    %p114 = por %p112, %p113
    %p115 = scmp.ne.s32.totalorder %s107, %s110
    %p116 = scmp.eq.s32.totalorder %s10, 0
    %p117 = por %p115, %p116
    %p118 = scmp.ne.s32.totalorder %s107, %s110
    %p119 = scmp.eq.s32.totalorder %s15, 1
    %p120 = por %p118, %p119
    %p121 = scmp.ne.s32.totalorder %s110, %s111
    %p122 = scmp.eq.s32.totalorder %s15, 0
    %p123 = por %p121, %p122
    %p124 = scmp.ne.s32.totalorder %s110, %s111
    %p125 = scmp.eq.s32.totalorder %s16, 1
    %p126 = por %p124, %p125
    %p128 = scmp.ne.s32.totalorder %s111, %s127
    %p129 = scmp.eq.s32.totalorder %s16, 0
    %p130 = por %p128, %p129
    %s131 = ssub.s32 %s17, %s29
    %p132 = scmp.eq.s32.totalorder %s131, 0
    %s134 = sadd.s32 %s133, 1
    %s135 = scalar_select %p132, %s133, %s134
    %p138 = pneg %p132
    %p139 = scmp.eq.s32.totalorder %s10, 1
    %p140 = por %p138, %p139
    %p141 = scmp.ne.s32.totalorder %s133, %s136
    %p142 = scmp.eq.s32.totalorder %s10, 0
    %p143 = por %p141, %p142
    %p144 = scmp.ne.s32.totalorder %s133, %s136
    %p145 = scmp.eq.s32.totalorder %s15, 1
    %p146 = por %p144, %p145
    %p147 = scmp.ne.s32.totalorder %s136, %s137
    %p148 = scmp.eq.s32.totalorder %s15, 0
    %p149 = por %p147, %p148
    %p150 = scmp.ne.s32.totalorder %s136, %s137
    %p151 = scmp.eq.s32.totalorder %s16, 1
    %p152 = por %p150, %p151
    %p154 = scmp.ne.s32.totalorder %s137, %s153
    %p155 = scmp.eq.s32.totalorder %s16, 0
    %p156 = por %p154, %p155
    %p157 = scmp.le.s32.totalorder 1, %s10
    %p158 = scmp.lt.s32.totalorder %s10, 3
    %p159 = pnand %p157, %p158
    %p160 = pneg %p159
    // Predicated region
    $region9: #{resnet_gen_forward.14} parent=5 // pred_check
      _
    $region10: #{resnet_gen_forward.14} parent=5 // pred_check_branch
      %162 = sbr.rel (%p159) target = $region12
    $region11: #{resnet_gen_forward.14} parent=5 // pred_region
      %s163 = ssub.s32 %s10, 1
      // Predicated region
      $region13: #{resnet_gen_forward.14} parent=11 // pred_check
        %p164 = pneg %p76
      $region14: #{resnet_gen_forward.14} parent=11 // pred_check_branch
        %166 = sbr.rel (%p164) target = $region16
      $region15: #{resnet_gen_forward.14} parent=11 // pred_region
        %s167 = smul.u32 48, %s20
        %p168 = scmp.lt.s32.totalorder %s167, 47
        %s169 = scalar_select %p168, %s167, 47
        %s170 = smul.addr %s169, 4
        %s171 = scalar_lea.vmem %s1, %s170
        %s172 = smul.u32 48, %s20
      $region16: #{resnet_gen_forward.14} parent=11 // pred_fallthru
        _
      // Predicated region
      $region17: #{resnet_gen_forward.14} parent=11 // pred_check
        %p173 = pneg %p97
      $region18: #{resnet_gen_forward.14} parent=11 // pred_check_branch
        %175 = sbr.rel (%p173) target = $region20
      $region19: #{resnet_gen_forward.14} parent=11 // pred_region
        _
      $region20: #{resnet_gen_forward.14} parent=11 // pred_fallthru
        _
    $region12: #{resnet_gen_forward.14} parent=5 // pred_fallthru
      _
    %p176 = scmp.lt.s32.totalorder %s10, 2
    // Predicated region
    $region21: #{resnet_gen_forward.14} parent=5 // pred_check
      %p177 = pneg %p176
    $region22: #{resnet_gen_forward.14} parent=5 // pred_check_branch
      %179 = sbr.rel (%p177) target = $region24
    $region23: #{resnet_gen_forward.14} parent=5 // pred_region
      // Predicated region
      $region25: #{resnet_gen_forward.14} parent=23 // pred_check
        %p180 = pneg %p44
      $region26: #{resnet_gen_forward.14} parent=23 // pred_check_branch
        %182 = sbr.rel (%p180) target = $region28
      $region27: #{resnet_gen_forward.14} parent=23 // pred_region
        %s183 = smul.u32 3, %s18
        %p184 = scmp.lt.s32.totalorder %s17, 1
        %s185 = scalar_select %p184, %s17, 1
        %p186 = scmp.lt.s32.totalorder %s183, 2
        %s187 = scalar_select %p186, %s183, 2
        %s188 = smul.addr %s185, 6
        %s189 = sadd.s32 %s187, %s188
        %s190 = smul.addr %s189, 4
        %s191 = scalar_lea.vmem %s0, %s190
        %s192 = smul.u32 3, %s18
      $region28: #{resnet_gen_forward.14} parent=23 // pred_fallthru
        _
      // Predicated region
      $region29: #{resnet_gen_forward.14} parent=23 // pred_check
        %p193 = pneg %p117
      $region30: #{resnet_gen_forward.14} parent=23 // pred_check_branch
        %195 = sbr.rel (%p193) target = $region32
      $region31: #{resnet_gen_forward.14} parent=23 // pred_region
        %p196 = scmp.lt.s32.totalorder %s17, 1
        %s197 = scalar_select %p196, %s17, 1
        %s198 = smul.addr %s197, 2
        %s199 = smul.addr %s198, 8
        %s200 = scalar_lea.vmem %s3, %s199
      $region32: #{resnet_gen_forward.14} parent=23 // pred_fallthru
        _
    $region24: #{resnet_gen_forward.14} parent=5 // pred_fallthru
      _
    %p201 = scmp.le.s32.totalorder 1, %s10
    %p202 = scmp.lt.s32.totalorder %s10, 3
    %p203 = pnand %p201, %p202
    %p204 = pneg %p203
    // Predicated region
    $region33: #{resnet_gen_forward.14} parent=5 // pred_check
      _
    $region34: #{resnet_gen_forward.14} parent=5 // pred_check_branch
      %206 = sbr.rel (%p203) target = $region36
    $region35: #{resnet_gen_forward.14} parent=5 // pred_region
      %s207 = ssub.s32 %s10, 1
      %s208 = smul.u32 3, %s20
      %p209 = scmp.lt.s32.totalorder %s19, 1
      %s210 = scalar_select %p209, %s19, 1
      %p211 = scmp.lt.s32.totalorder %s208, 2
      %s212 = scalar_select %p211, %s208, 2
      %s213 = smul.addr %s210, 6
      %s214 = sadd.s32 %s212, %s213
      %s215 = smul.addr %s214, 4
      %s216 = scalar_lea.vmem %s0, %s215
      %p217 = pneg %p50
      %p218 = pneg %p47
      %s219 = smul.u32 48, %s20
      %p220 = scmp.lt.s32.totalorder %s219, 47
      %s221 = scalar_select %p220, %s219, 47
      %s222 = smul.addr %s221, 4
      %s223 = scalar_lea.vmem %s1, %s222
      %p224 = pneg %p76
      %p225 = pneg %p73
      %p226 = pneg %p97
      %p227 = pneg %p94
      %p228 = scmp.lt.s32.totalorder %s19, 1
      %s229 = scalar_select %p228, %s19, 1
      %s230 = smul.addr %s229, 2
      %s231 = smul.addr %s230, 8
      %s232 = scalar_lea.vmem %s3, %s231
      %p233 = pneg %p123
      %p234 = pneg %p120
      %p235 = pneg %p149
      %p236 = pneg %p146
      %p237 = scmp.lt.s32.totalorder %s19, 1
      %s238 = scalar_select %p237, %s19, 1
      %s239 = smul.addr %s238, 2
      %s240 = smul.addr %s239, 8
      %s241 = scalar_lea.vmem %s4, %s240
      %s242 = smul.u32 3, %s20
      %p243 = scmp.lt.s32.totalorder %s19, 1
      %s244 = scalar_select %p243, %s19, 1
      %p245 = scmp.lt.s32.totalorder %s242, 2
      %s246 = scalar_select %p245, %s242, 2
      %s247 = smul.addr %s244, 6
      %s248 = sadd.s32 %s246, %s247
      %s249 = smul.addr %s248, 4
      %s250 = scalar_lea.vmem %s0, %s249
      %s251 = smul.u32 3, %s20
      %s252 = smul.u32 48, %s20
      %p253 = scmp.lt.s32.totalorder %s252, 47
      %s254 = scalar_select %p253, %s252, 47
      %s255 = smul.addr %s254, 4
      %s256 = scalar_lea.vmem %s1, %s255
      %s257 = smul.u32 48, %s20
      %p258 = scmp.lt.s32.totalorder %s19, 1
      %s259 = scalar_select %p258, %s19, 1
      %s260 = smul.addr %s259, 2
      %s261 = smul.addr %s260, 8
      %s262 = scalar_lea.vmem %s3, %s261
      %p263 = scmp.lt.s32.totalorder %s19, 1
      %s264 = scalar_select %p263, %s19, 1
      %s265 = smul.addr %s264, 2
      %s266 = smul.addr %s265, 8
      %s267 = scalar_lea.vmem %s4, %s266
      %p268 = scmp.eq.s32.totalorder %s20, 0
      // Predicated region
      $region37: #{resnet_gen_forward.14} parent=35 // pred_check
        %p269 = pneg %p268
      $region38: #{resnet_gen_forward.14} parent=35 // pred_check_branch
        %271 = sbr.rel (%p269) target = $region40
      $region39: #{resnet_gen_forward.14} parent=35 // pred_region
        %272 = vst [vmem:[#allocation2] sm:$0xff] 0.0
        %273 = vst [vmem:[#allocation2 + $0x8] sm:$0xff] 0.0
      $region40: #{resnet_gen_forward.14} parent=35 // pred_fallthru
        _
      %v274 = vld [vmem:[#allocation2] sm:$0xff]
      %v275 = vld [vmem:[#allocation2 + $0x8] sm:$0xff]
      %v276 = vld [vmem:[%s250] sm:$0xff]
      %v277 = vld [vmem:[%s250 + $0x8] sm:$0xf]
      %v278 = vld [vmem:[%s250 + $0xc] sm:$0xff]
      %v279 = vld [vmem:[%s250 + $0x14] sm:$0xf]
      %v280 = vld [vmem:[%s256] sm:$0xf]
      %v281 = vld [vmem:[%s256 + $0x4] sm:$0xf]
      %v282 = vld [vmem:[%s256 + $0x8] sm:$0xf]
      %v283 = vld [vmem:[%s256 + $0xc] sm:$0xf]
      %v284 = vld [vmem:[%s256 + $0x10] sm:$0xf]
      %v285 = vld [vmem:[%s256 + $0x14] sm:$0xf]
      %v286 = vld [vmem:[%s256 + $0x18] sm:$0xf]
      %v287 = vld [vmem:[%s256 + $0x1c] sm:$0xf]
      %v288 = vld [vmem:[%s256 + $0x20] sm:$0xf]
      %v289 = vld [vmem:[%s256 + $0x24] sm:$0xf]
      %v290 = vld [vmem:[%s256 + $0x28] sm:$0xf]
      %v291 = vld [vmem:[%s256 + $0x2c] sm:$0xf]
      %v292 = vld [vmem:[%s256 + $0x30] sm:$0xf]
      %v293 = vld [vmem:[%s256 + $0x34] sm:$0xf]
      %v294 = vld [vmem:[%s256 + $0x38] sm:$0xf]
      %v295 = vld [vmem:[%s256 + $0x3c] sm:$0xf]
      %v296 = vld [vmem:[%s256 + $0x40] sm:$0xf]
      %v297 = vld [vmem:[%s256 + $0x44] sm:$0xf]
      %v298 = vld [vmem:[%s256 + $0x48] sm:$0xf]
      %v299 = vld [vmem:[%s256 + $0x4c] sm:$0xf]
      %v300 = vld [vmem:[%s256 + $0x50] sm:$0xf]
      %v301 = vld [vmem:[%s256 + $0x54] sm:$0xf]
      %v302 = vld [vmem:[%s256 + $0x58] sm:$0xf]
      %v303 = vld [vmem:[%s256 + $0x5c] sm:$0xf]
      %v304 = vld [vmem:[%s256 + $0x60] sm:$0xf]
      %v305 = vld [vmem:[%s256 + $0x64] sm:$0xf]
      %v306 = vld [vmem:[%s256 + $0x68] sm:$0xf]
      %v307 = vld [vmem:[%s256 + $0x6c] sm:$0xf]
      %v308 = vld [vmem:[%s256 + $0x70] sm:$0xf]
      %v309 = vld [vmem:[%s256 + $0x74] sm:$0xf]
      %v310 = vld [vmem:[%s256 + $0x78] sm:$0xf]
      %v311 = vld [vmem:[%s256 + $0x7c] sm:$0xf]
      %v312 = vld [vmem:[%s256 + $0x80] sm:$0xf]
      %v313 = vld [vmem:[%s256 + $0x84] sm:$0xf]
      %v314 = vld [vmem:[%s256 + $0x88] sm:$0xf]
      %v315 = vld [vmem:[%s256 + $0x8c] sm:$0xf]
      %v316 = vld [vmem:[%s256 + $0x90] sm:$0xf]
      %v317 = vld [vmem:[%s256 + $0x94] sm:$0xf]
      %v318 = vld [vmem:[%s256 + $0x98] sm:$0xf]
      %v319 = vld [vmem:[%s256 + $0x9c] sm:$0xf]
      %v320 = vld [vmem:[%s256 + $0xa0] sm:$0xf]
      %v321 = vld [vmem:[%s256 + $0xa4] sm:$0xf]
      %v322 = vld [vmem:[%s256 + $0xa8] sm:$0xf]
      %v323 = vld [vmem:[%s256 + $0xac] sm:$0xf]
      %v324 = vld [vmem:[%s256 + $0xb0] sm:$0xf]
      %v325 = vld [vmem:[%s256 + $0xb4] sm:$0xf]
      %v326 = vld [vmem:[%s256 + $0xb8] sm:$0xf]
      %v327 = vld [vmem:[%s256 + $0xbc] sm:$0xf]
      %v332 = vunpack.c.l.b16 %v276
      %v333 = vunpack.c.h.b16 %v276
      %v334 = vunpack.c.l.b16 %v277
      %v335 = vunpack.c.l.b16 %v278
      %v336 = vunpack.c.h.b16 %v278
      %v337 = vunpack.c.l.b16 %v279
      %v338 = vpack.c.b16 %v335, %v332
      %v339 = vpack.c.b16 %v336, %v333
      %v340 = vpack.c.b16 %v337, %v334
      %v392 = vunpack.c.l.b16 %v280
      %v393 = vunpack.c.l.b16 %v281
      %v394 = vunpack.c.l.b16 %v282
      %v395 = vunpack.c.l.b16 %v283
      %v396 = vunpack.c.l.b16 %v284
      %v397 = vunpack.c.l.b16 %v285
      %v398 = vunpack.c.l.b16 %v286
      %v399 = vunpack.c.l.b16 %v287
      %v400 = vunpack.c.l.b16 %v288
      %v401 = vunpack.c.l.b16 %v289
      %v402 = vunpack.c.l.b16 %v290
      %v403 = vunpack.c.l.b16 %v291
      %v404 = vunpack.c.l.b16 %v292
      %v405 = vunpack.c.l.b16 %v293
      %v406 = vunpack.c.l.b16 %v294
      %v407 = vunpack.c.l.b16 %v295
      %v408 = vunpack.c.l.b16 %v296
      %v409 = vunpack.c.l.b16 %v297
      %v410 = vunpack.c.l.b16 %v298
      %v411 = vunpack.c.l.b16 %v299
      %v412 = vunpack.c.l.b16 %v300
      %v413 = vunpack.c.l.b16 %v301
      %v414 = vunpack.c.l.b16 %v302
      %v415 = vunpack.c.l.b16 %v303
      %v416 = vunpack.c.l.b16 %v304
      %v417 = vunpack.c.l.b16 %v305
      %v418 = vunpack.c.l.b16 %v306
      %v419 = vunpack.c.l.b16 %v307
      %v420 = vunpack.c.l.b16 %v308
      %v421 = vunpack.c.l.b16 %v309
      %v422 = vunpack.c.l.b16 %v310
      %v423 = vunpack.c.l.b16 %v311
      %v424 = vunpack.c.l.b16 %v312
      %v425 = vunpack.c.l.b16 %v313
      %v426 = vunpack.c.l.b16 %v314
      %v427 = vunpack.c.l.b16 %v315
      %v428 = vunpack.c.l.b16 %v316
      %v429 = vunpack.c.l.b16 %v317
      %v430 = vunpack.c.l.b16 %v318
      %v431 = vunpack.c.l.b16 %v319
      %v432 = vunpack.c.l.b16 %v320
      %v433 = vunpack.c.l.b16 %v321
      %v434 = vunpack.c.l.b16 %v322
      %v435 = vunpack.c.l.b16 %v323
      %v436 = vunpack.c.l.b16 %v324
      %v437 = vunpack.c.l.b16 %v325
      %v438 = vunpack.c.l.b16 %v326
      %v439 = vunpack.c.l.b16 %v327
      %v440 = vpack.c.b16 %v393, %v392
      %v441 = vpack.c.b16 %v395, %v394
      %v442 = vpack.c.b16 %v397, %v396
      %v443 = vpack.c.b16 %v399, %v398
      %v444 = vpack.c.b16 %v401, %v400
      %v445 = vpack.c.b16 %v403, %v402
      %v446 = vpack.c.b16 %v405, %v404
      %v447 = vpack.c.b16 %v407, %v406
      %v448 = vpack.c.b16 %v409, %v408
      %v449 = vpack.c.b16 %v411, %v410
      %v450 = vpack.c.b16 %v413, %v412
      %v451 = vpack.c.b16 %v415, %v414
      %v452 = vpack.c.b16 %v417, %v416
      %v453 = vpack.c.b16 %v419, %v418
      %v454 = vpack.c.b16 %v421, %v420
      %v455 = vpack.c.b16 %v423, %v422
      %v456 = vpack.c.b16 %v425, %v424
      %v457 = vpack.c.b16 %v427, %v426
      %v458 = vpack.c.b16 %v429, %v428
      %v459 = vpack.c.b16 %v431, %v430
      %v460 = vpack.c.b16 %v433, %v432
      %v461 = vpack.c.b16 %v435, %v434
      %v462 = vpack.c.b16 %v437, %v436
      %v463 = vpack.c.b16 %v439, %v438
      %488 = vmatpush.bf16.msra.mxu0 %v447
      %489 = vmatpush.bf16.msra.mxu0 %v446
      %490 = vmatpush.bf16.msra.mxu0 %v445
      %491 = vmatpush.bf16.msra.mxu0 %v444
      %492 = vmatpush.bf16.msra.mxu0 %v443
      %493 = vmatpush.bf16.msra.mxu0 %v442
      %494 = vmatpush.bf16.msra.mxu0 %v441
      %495 = vmatpush.bf16.msra.mxu0 %v440
      %496 = vmatmul.bf16.gmra.mxu0 %v338
      %v497 = vpop.f32.mrf.mxu0
      %v498 = vadd.f32 0.0, %v497
      %v499 = vpop.f32.mrf.mxu0
      %v500 = vadd.f32 0.0, %v499
      %501 = vdwg.mxu0
      %502 = vmatpush.bf16.msra.mxu0 %v455
      %503 = vmatpush.bf16.msra.mxu0 %v454
      %504 = vmatpush.bf16.msra.mxu0 %v453
      %505 = vmatpush.bf16.msra.mxu0 %v452
      %506 = vmatpush.bf16.msra.mxu0 %v451
      %507 = vmatpush.bf16.msra.mxu0 %v450
      %508 = vmatpush.bf16.msra.mxu0 %v449
      %509 = vmatpush.bf16.msra.mxu0 %v448
      %510 = vmatmul.bf16.gmra.mxu0 %v339
      %v511 = vpop.f32.mrf.mxu0
      %v512 = vadd.f32 %v498, %v511
      %v513 = vpop.f32.mrf.mxu0
      %v514 = vadd.f32 %v500, %v513
      %515 = vdwg.mxu0
      %516 = vmatpush.bf16.msra.mxu0 %v463
      %517 = vmatpush.bf16.msra.mxu0 %v462
      %518 = vmatpush.bf16.msra.mxu0 %v461
      %519 = vmatpush.bf16.msra.mxu0 %v460
      %520 = vmatpush.bf16.msra.mxu0 %v459
      %521 = vmatpush.bf16.msra.mxu0 %v458
      %522 = vmatpush.bf16.msra.mxu0 %v457
      %523 = vmatpush.bf16.msra.mxu0 %v456
      %524 = vmatmul.bf16.gmra.mxu0 %v340
      %v525 = vpop.f32.mrf.mxu0
      %v526 = vadd.f32 %v512, %v525
      %v527 = vpop.f32.mrf.mxu0
      %v528 = vadd.f32 %v514, %v527
      %529 = vdwg.mxu0
      %v530 = vadd.f32 %v274, %v526
      %v531 = vadd.f32 %v275, %v528
      %532 = vst [vmem:[#allocation2] sm:$0xff] %v530
      %533 = vst [vmem:[#allocation2 + $0x8] sm:$0xff] %v531
      // Predicated region
      $region41: #{resnet_gen_forward.14} parent=35 // pred_check
        %p534 = pneg %p268
      $region42: #{resnet_gen_forward.14} parent=35 // pred_check_branch
        %536 = sbr.rel (%p534) target = $region44
      $region43: #{resnet_gen_forward.14} parent=35 // pred_region
        %v537 = vld [vmem:[#allocation2] sm:$0xff]
        %v538 = vld [vmem:[#allocation2 + $0x8] sm:$0xff]
        %v539 = vld [vmem:[%s2] sm:$0x1]
        %v541 = vperm.slane %v539, 0
        %v543 = vadd.f32 %v537, %v541
        %v544 = vadd.f32 %v538, %v541
        %v545 = vadd.f32 %v543, %v544
        %v546 = vrot.slane %v545, 4
        %v547 = vadd.f32 %v545, %v546
        %v548 = vrot.slane %v547, 2
        %v549 = vadd.f32 %v547, %v548
        %v550 = vrot.slane %v549, 1
        %v551 = vadd.f32 %v549, %v550
        %v552 = vrcp.pop 16.0
        %v553 = vmul.f32 16.0, %v552
        %v554 = vsub.f32 1.0, %v553
        %v555 = vmul.f32 %v552, %v554
        %v556 = vadd.f32 %v552, %v555
        %vm557 = vweird.f32 %v552
        %v558 = vsel %vm557, %v552, %v556
        %v559 = vmul.f32 %v551, %v558
        %v560 = vsub.f32 %v543, %v559
        %v561 = vsub.f32 %v544, %v559
        %v562 = vmul.f32 %v560, %v560
        %v563 = vmul.f32 %v561, %v561
        %v564 = vadd.f32 %v562, %v563
        %v565 = vrot.slane %v564, 4
        %v566 = vadd.f32 %v564, %v565
        %v567 = vrot.slane %v566, 2
        %v568 = vadd.f32 %v566, %v567
        %v569 = vrot.slane %v568, 1
        %v570 = vadd.f32 %v568, %v569
        %v571 = vmul.f32 %v570, %v558
        %v572 = vadd.f32 %v571, 1e-05
        %v573 = vrsqrt.pop %v572
        %v574 = vmul.f32 %v573, %v572
        %v575 = vmul.f32 %v574, %v573
        %v576 = vmul.f32 0.5, %v575
        %v577 = vsub.f32 1.5, %v576
        %v578 = vmul.f32 %v573, %v577
        %vm579 = vweird.f32 %v572
        %vm580 = vweird.f32 %v573
        %vm581 = vmor %vm579, %vm580
        %v582 = vsel %vm581, %v573, %v578
        %v583 = vmul.f32 %v560, %v582
        %v584 = vmul.f32 %v561, %v582
        %v585 = vld [vmem:[%s262] sm:$0xff]
        %v586 = vld [vmem:[%s262 + $0x8] sm:$0xff]
        %v587 = vadd.f32 %v583, %v585
        %v588 = vadd.f32 %v584, %v586
        %589 = vst [vmem:[%s267] sm:$0xff] %v587
        %590 = vst [vmem:[%s267 + $0x8] sm:$0xff] %v588
      $region44: #{resnet_gen_forward.14} parent=35 // pred_fallthru
        _
      %p591 = scmp.lt.s32.totalorder %s19, 1
      %s592 = scalar_select %p591, %s19, 1
      %s593 = smul.addr %s592, 2
      %s594 = smul.addr %s593, 8
      %s595 = scalar_lea.vmem %s4, %s594
      // Predicated region
      $region45: #{resnet_gen_forward.14} parent=35 // pred_check
        %p596 = pneg %p146
      $region46: #{resnet_gen_forward.14} parent=35 // pred_check_branch
        %598 = sbr.rel (%p596) target = $region48
      $region47: #{resnet_gen_forward.14} parent=35 // pred_region
        _
      $region48: #{resnet_gen_forward.14} parent=35 // pred_fallthru
        _
    $region36: #{resnet_gen_forward.14} parent=5 // pred_fallthru
      _
    %p599 = scmp.le.s32.totalorder 2, %s10
    // Predicated region
    $region49: #{resnet_gen_forward.14} parent=5 // pred_check
      %p600 = pneg %p599
    $region50: #{resnet_gen_forward.14} parent=5 // pred_check_branch
      %602 = sbr.rel (%p600) target = $region52
    $region51: #{resnet_gen_forward.14} parent=5 // pred_region
      %s603 = ssub.s32 %s10, 2
      // Predicated region
      $region53: #{resnet_gen_forward.14} parent=51 // pred_check
        %p604 = pneg %p152
      $region54: #{resnet_gen_forward.14} parent=51 // pred_check_branch
        %606 = sbr.rel (%p604) target = $region56
      $region55: #{resnet_gen_forward.14} parent=51 // pred_region
        %p607 = scmp.lt.s32.totalorder %s21, 1
        %s608 = scalar_select %p607, %s21, 1
        %s609 = smul.addr %s608, 2
        %s610 = smul.addr %s609, 8
        %s611 = scalar_lea.vmem %s4, %s610
      $region56: #{resnet_gen_forward.14} parent=51 // pred_fallthru
        _
    $region52: #{resnet_gen_forward.14} parent=5 // pred_fallthru
      _
  $region6: #{resnet_gen_forward.14} parent=0 // loop_footer
    %s14 = sadd.s32 1, %s10
  $region7: #{resnet_gen_forward.14} parent=0 // loop_footer_branch
    %9 = sbr.rel target = $region3
  $region8: #{resnet_gen_forward.14} parent=0 // loop_exit
    _

// kernel: resnet_gen_forward.17
$region0: #{resnet_gen_forward.17}
  #allocation0 [shape = 'u32[]', space=smem, size = 0x4, offset = 0x4, fixed_abs, tag = 'smem constant byte address 0x4 - core index']
  #allocation1 [shape = 'u32[72,128]{1,0:T(1,128)}', space=vmem, size = 0x9000, scoped, tag = 'internal scratch']
  #allocation2 [shape = 'f32[64,128]{1,0:T(8,128)}', space=vmem, size = 0x8000, scoped, tag = 'scratch operand']
  %s0 = inlined_call_operand.vmem [shape: bf16[2,64,384], index: 0, kind: input, shape index: {}]
  %s1 = inlined_call_operand.vmem [shape: bf16[384,128], index: 1, kind: input, shape index: {}]
  %s2 = inlined_call_operand.vmem [shape: f32[1,128], index: 2, kind: input, shape index: {}]
  %s3 = inlined_call_operand.vmem [shape: f32[2,64,128], index: 3, kind: output, shape index: {}]
  %s4 = sld [smem:[#allocation0]]
  $region53: #{resnet_gen_forward.17} parent=0
    _
  %s6 = ssub.s32 1, %s4
  %s7 = scalar_select 0, %s6, %s4
  loop: start=0, step=1, limit=4
  $region2: #{resnet_gen_forward.17} parent=0 // loop_pre_header
    _
  $region3: #{resnet_gen_forward.17} parent=0 // loop_header
    %s9 = sphi 0, %s13
    %p10 = scmp.ge.s32.totalorder %s9, 4
    %s16 = sphi 0, %s28
    %s17 = sphi 0, %s24
    %s18 = sphi 0, %s16
    %s19 = sphi 0, %s17
    %s20 = sphi 0, %s18
    %s21 = sphi 0, %s19
    %s33 = sphi 0, %s35
    %s36 = sphi 0, %s33
    %s37 = sphi 0, %s36
    %s53 = sphi 0, %s37
    %s59 = sphi 0, %s61
    %s62 = sphi 0, %s59
    %s63 = sphi 0, %s62
    %s79 = sphi 0, %s63
    %s83 = sphi 0, %s83
    %s85 = sphi 0, %s83
    %s86 = sphi 0, %s85
    %s100 = sphi 0, %s86
    %s106 = sphi 0, %s108
    %s109 = sphi 0, %s106
    %s110 = sphi 0, %s109
    %s126 = sphi 0, %s110
  $region4: #{resnet_gen_forward.17} parent=0 // loop_header_branch
    %12 = sbr.rel (%p10) target = $region8
  $region5: #{resnet_gen_forward.17} parent=0 // loop_body
    %s14 = ssub.s32 %s9, 1
    %s15 = ssub.s32 %s9, 2
    %s22 = sadd.s32 1, %s17
    %p23 = scmp.ge.s32.totalorder %s22, 1
    %s24 = scalar_select %p23, 0, %s22
    %s25 = sadd.s32 1, %s16
    %s26 = scalar_select %p23, %s25, %s16
    %p27 = scmp.ge.s32.totalorder %s26, 2
    %s28 = scalar_select %p27, 0, %s26
    %s29 = ssub.s32 %s16, %s28
    %s30 = ssub.s32 %s17, %s24
    %s31 = sor.u32 %s29, %s30
    %p32 = scmp.eq.s32.totalorder %s31, 0
    %s34 = sadd.s32 %s33, 1
    %s35 = scalar_select %p32, %s33, %s34
    %p38 = pneg %p32
    %p39 = scmp.eq.s32.totalorder %s9, 1
    %p40 = por %p38, %p39
    %p41 = scmp.ne.s32.totalorder %s33, %s36
    %p42 = scmp.eq.s32.totalorder %s9, 0
    %p43 = por %p41, %p42
    %p44 = scmp.ne.s32.totalorder %s33, %s36
    %p45 = scmp.eq.s32.totalorder %s14, 1
    %p46 = por %p44, %p45
    %p47 = scmp.ne.s32.totalorder %s36, %s37
    %p48 = scmp.eq.s32.totalorder %s14, 0
    %p49 = por %p47, %p48
    %p50 = scmp.ne.s32.totalorder %s36, %s37
    %p51 = scmp.eq.s32.totalorder %s15, 1
    %p52 = por %p50, %p51
    %p54 = scmp.ne.s32.totalorder %s37, %s53
    %p55 = scmp.eq.s32.totalorder %s15, 0
    %p56 = por %p54, %p55
    %s57 = ssub.s32 %s17, %s24
    %p58 = scmp.eq.s32.totalorder %s57, 0
    %s60 = sadd.s32 %s59, 1
    %s61 = scalar_select %p58, %s59, %s60
    %p64 = pneg %p58
    %p65 = scmp.eq.s32.totalorder %s9, 1
    %p66 = por %p64, %p65
    %p67 = scmp.ne.s32.totalorder %s59, %s62
    %p68 = scmp.eq.s32.totalorder %s9, 0
    %p69 = por %p67, %p68
    %p70 = scmp.ne.s32.totalorder %s59, %s62
    %p71 = scmp.eq.s32.totalorder %s14, 1
    %p72 = por %p70, %p71
    %p73 = scmp.ne.s32.totalorder %s62, %s63
    %p74 = scmp.eq.s32.totalorder %s14, 0
    %p75 = por %p73, %p74
    %p76 = scmp.ne.s32.totalorder %s62, %s63
    %p77 = scmp.eq.s32.totalorder %s15, 1
    %p78 = por %p76, %p77
    %p80 = scmp.ne.s32.totalorder %s63, %s79
    %p81 = scmp.eq.s32.totalorder %s15, 0
    %p82 = por %p80, %p81
    %s84 = sadd.s32 %s83, 1
    %p87 = scmp.eq.s32.totalorder %s9, 1
    %p88 = scmp.ne.s32.totalorder %s83, %s85
    %p89 = scmp.eq.s32.totalorder %s9, 0
    %p90 = por %p88, %p89
    %p91 = scmp.ne.s32.totalorder %s83, %s85
    %p92 = scmp.eq.s32.totalorder %s14, 1
    %p93 = por %p91, %p92
    %p94 = scmp.ne.s32.totalorder %s85, %s86
    %p95 = scmp.eq.s32.totalorder %s14, 0
    %p96 = por %p94, %p95
    %p97 = scmp.ne.s32.totalorder %s85, %s86
    %p98 = scmp.eq.s32.totalorder %s15, 1
    %p99 = por %p97, %p98
    %p101 = scmp.ne.s32.totalorder %s86, %s100
    %p102 = scmp.eq.s32.totalorder %s15, 0
    %p103 = por %p101, %p102
    %s104 = ssub.s32 %s16, %s28
    %p105 = scmp.eq.s32.totalorder %s104, 0
    %s107 = sadd.s32 %s106, 1
    %s108 = scalar_select %p105, %s106, %s107
    %p111 = pneg %p105
    %p112 = scmp.eq.s32.totalorder %s9, 1
    %p113 = por %p111, %p112
    %p114 = scmp.ne.s32.totalorder %s106, %s109
    %p115 = scmp.eq.s32.totalorder %s9, 0
    %p116 = por %p114, %p115
    %p117 = scmp.ne.s32.totalorder %s106, %s109
    %p118 = scmp.eq.s32.totalorder %s14, 1
    %p119 = por %p117, %p118
    %p120 = scmp.ne.s32.totalorder %s109, %s110
    %p121 = scmp.eq.s32.totalorder %s14, 0
    %p122 = por %p120, %p121
    %p123 = scmp.ne.s32.totalorder %s109, %s110
    %p124 = scmp.eq.s32.totalorder %s15, 1
    %p125 = por %p123, %p124
    %p127 = scmp.ne.s32.totalorder %s110, %s126
    %p128 = scmp.eq.s32.totalorder %s15, 0
    %p129 = por %p127, %p128
    %p130 = scmp.le.s32.totalorder 1, %s9
    %p131 = scmp.lt.s32.totalorder %s9, 3
    %p132 = pnand %p130, %p131
    %p133 = pneg %p132
    // Predicated region
    $region9: #{resnet_gen_forward.17} parent=5 // pred_check
      _
    $region10: #{resnet_gen_forward.17} parent=5 // pred_check_branch
      %135 = sbr.rel (%p132) target = $region12
    $region11: #{resnet_gen_forward.17} parent=5 // pred_region
      %s136 = ssub.s32 %s9, 1
      // Predicated region
      $region13: #{resnet_gen_forward.17} parent=11 // pred_check
        %p137 = pneg %p75
      $region14: #{resnet_gen_forward.17} parent=11 // pred_check_branch
        %139 = sbr.rel (%p137) target = $region16
      $region15: #{resnet_gen_forward.17} parent=11 // pred_region
        %s140 = smul.u32 48, %s19
        %p141 = scmp.lt.s32.totalorder %s140, 47
        %s142 = scalar_select %p141, %s140, 47
        %s143 = smul.addr %s142, 4
        %s144 = scalar_lea.vmem %s1, %s143
        %s145 = smul.u32 48, %s19
      $region16: #{resnet_gen_forward.17} parent=11 // pred_fallthru
        _
      // Predicated region
      $region17: #{resnet_gen_forward.17} parent=11 // pred_check
        %p146 = pneg %p96
      $region18: #{resnet_gen_forward.17} parent=11 // pred_check_branch
        %148 = sbr.rel (%p146) target = $region20
      $region19: #{resnet_gen_forward.17} parent=11 // pred_region
        _
      $region20: #{resnet_gen_forward.17} parent=11 // pred_fallthru
        _
    $region12: #{resnet_gen_forward.17} parent=5 // pred_fallthru
      _
    %p149 = scmp.lt.s32.totalorder %s9, 2
    // Predicated region
    $region21: #{resnet_gen_forward.17} parent=5 // pred_check
      %p150 = pneg %p149
    $region22: #{resnet_gen_forward.17} parent=5 // pred_check_branch
      %152 = sbr.rel (%p150) target = $region24
    $region23: #{resnet_gen_forward.17} parent=5 // pred_region
      // Predicated region
      $region25: #{resnet_gen_forward.17} parent=23 // pred_check
        %p153 = pneg %p43
      $region26: #{resnet_gen_forward.17} parent=23 // pred_check_branch
        %155 = sbr.rel (%p153) target = $region28
      $region27: #{resnet_gen_forward.17} parent=23 // pred_region
        %s156 = smul.u32 3, %s17
        %p157 = scmp.lt.s32.totalorder %s16, 1
        %s158 = scalar_select %p157, %s16, 1
        %p159 = scmp.lt.s32.totalorder %s156, 2
        %s160 = scalar_select %p159, %s156, 2
        %s161 = smul.addr %s158, 24
        %s162 = sadd.s32 %s160, %s161
        %s163 = smul.addr %s162, 4
        %s164 = scalar_lea.vmem %s0, %s163
        %s165 = smul.u32 3, %s17
      $region28: #{resnet_gen_forward.17} parent=23 // pred_fallthru
        _
    $region24: #{resnet_gen_forward.17} parent=5 // pred_fallthru
      _
    %p166 = scmp.le.s32.totalorder 1, %s9
    %p167 = scmp.lt.s32.totalorder %s9, 3
    %p168 = pnand %p166, %p167
    %p169 = pneg %p168
    // Predicated region
    $region29: #{resnet_gen_forward.17} parent=5 // pred_check
      _
    $region30: #{resnet_gen_forward.17} parent=5 // pred_check_branch
      %171 = sbr.rel (%p168) target = $region32
    $region31: #{resnet_gen_forward.17} parent=5 // pred_region
      %s172 = ssub.s32 %s9, 1
      %s173 = smul.u32 3, %s19
      %p174 = scmp.lt.s32.totalorder %s18, 1
      %s175 = scalar_select %p174, %s18, 1
      %p176 = scmp.lt.s32.totalorder %s173, 2
      %s177 = scalar_select %p176, %s173, 2
      %s178 = smul.addr %s175, 24
      %s179 = sadd.s32 %s177, %s178
      %s180 = smul.addr %s179, 4
      %s181 = scalar_lea.vmem %s0, %s180
      %p182 = pneg %p49
      %p183 = pneg %p46
      %s184 = smul.u32 48, %s19
      %p185 = scmp.lt.s32.totalorder %s184, 47
      %s186 = scalar_select %p185, %s184, 47
      %s187 = smul.addr %s186, 4
      %s188 = scalar_lea.vmem %s1, %s187
      %p189 = pneg %p75
      %p190 = pneg %p72
      %p191 = pneg %p96
      %p192 = pneg %p93
      %p193 = pneg %p122
      %p194 = pneg %p119
      %p195 = scmp.lt.s32.totalorder %s18, 1
      %s196 = scalar_select %p195, %s18, 1
      %s197 = smul.addr %s196, 8
      %s198 = smul.addr %s197, 8
      %s199 = scalar_lea.vmem %s3, %s198
      %s200 = smul.u32 3, %s19
      %p201 = scmp.lt.s32.totalorder %s18, 1
      %s202 = scalar_select %p201, %s18, 1
      %p203 = scmp.lt.s32.totalorder %s200, 2
      %s204 = scalar_select %p203, %s200, 2
      %s205 = smul.addr %s202, 24
      %s206 = sadd.s32 %s204, %s205
      %s207 = smul.addr %s206, 4
      %s208 = scalar_lea.vmem %s0, %s207
      %s209 = smul.u32 3, %s19
      %s210 = smul.u32 48, %s19
      %p211 = scmp.lt.s32.totalorder %s210, 47
      %s212 = scalar_select %p211, %s210, 47
      %s213 = smul.addr %s212, 4
      %s214 = scalar_lea.vmem %s1, %s213
      %s215 = smul.u32 48, %s19
      %p216 = scmp.lt.s32.totalorder %s18, 1
      %s217 = scalar_select %p216, %s18, 1
      %s218 = smul.addr %s217, 8
      %s219 = smul.addr %s218, 8
      %s220 = scalar_lea.vmem %s3, %s219
      %p221 = scmp.eq.s32.totalorder %s19, 0
      // Predicated region
      $region33: #{resnet_gen_forward.17} parent=31 // pred_check
        %p222 = pneg %p221
      $region34: #{resnet_gen_forward.17} parent=31 // pred_check_branch
        %224 = sbr.rel (%p222) target = $region36
      $region35: #{resnet_gen_forward.17} parent=31 // pred_region
        %225 = vst [vmem:[#allocation2] sm:$0xff] 0.0
        %226 = vst [vmem:[#allocation2 + $0x8] sm:$0xff] 0.0
        %227 = vst [vmem:[#allocation2 + $0x10] sm:$0xff] 0.0
        %228 = vst [vmem:[#allocation2 + $0x18] sm:$0xff] 0.0
        %229 = vst [vmem:[#allocation2 + $0x20] sm:$0xff] 0.0
        %230 = vst [vmem:[#allocation2 + $0x28] sm:$0xff] 0.0
        %231 = vst [vmem:[#allocation2 + $0x30] sm:$0xff] 0.0
        %232 = vst [vmem:[#allocation2 + $0x38] sm:$0xff] 0.0
      $region36: #{resnet_gen_forward.17} parent=31 // pred_fallthru
        _
      %v233 = vld [vmem:[#allocation2] sm:$0xff]
      %v234 = vld [vmem:[#allocation2 + $0x8] sm:$0xff]
      %v235 = vld [vmem:[#allocation2 + $0x10] sm:$0xff]
      %v236 = vld [vmem:[#allocation2 + $0x18] sm:$0xff]
      %v237 = vld [vmem:[#allocation2 + $0x20] sm:$0xff]
      %v238 = vld [vmem:[#allocation2 + $0x28] sm:$0xff]
      %v239 = vld [vmem:[#allocation2 + $0x30] sm:$0xff]
      %v240 = vld [vmem:[#allocation2 + $0x38] sm:$0xff]
      %v241 = vld [vmem:[%s208] sm:$0xff]
      %v242 = vld [vmem:[%s208 + $0x8] sm:$0xf]
      %v243 = vld [vmem:[%s208 + $0xc] sm:$0xff]
      %v244 = vld [vmem:[%s208 + $0x14] sm:$0xf]
      %v245 = vld [vmem:[%s208 + $0x18] sm:$0xff]
      %v246 = vld [vmem:[%s208 + $0x20] sm:$0xf]
      %v247 = vld [vmem:[%s208 + $0x24] sm:$0xff]
      %v248 = vld [vmem:[%s208 + $0x2c] sm:$0xf]
      %v249 = vld [vmem:[%s208 + $0x30] sm:$0xff]
      %v250 = vld [vmem:[%s208 + $0x38] sm:$0xf]
      %v251 = vld [vmem:[%s208 + $0x3c] sm:$0xff]
      %v252 = vld [vmem:[%s208 + $0x44] sm:$0xf]
      %v253 = vld [vmem:[%s208 + $0x48] sm:$0xff]
      %v254 = vld [vmem:[%s208 + $0x50] sm:$0xf]
      %v255 = vld [vmem:[%s208 + $0x54] sm:$0xff]
      %v256 = vld [vmem:[%s208 + $0x5c] sm:$0xf]
      %v257 = vld [vmem:[%s214] sm:$0xf]
      %v258 = vld [vmem:[%s214 + $0x4] sm:$0xf]
      %v259 = vld [vmem:[%s214 + $0x8] sm:$0xf]
      %v260 = vld [vmem:[%s214 + $0xc] sm:$0xf]
      %v261 = vld [vmem:[%s214 + $0x10] sm:$0xf]
      %v262 = vld [vmem:[%s214 + $0x14] sm:$0xf]
      %v263 = vld [vmem:[%s214 + $0x18] sm:$0xf]
      %v264 = vld [vmem:[%s214 + $0x1c] sm:$0xf]
      %v265 = vld [vmem:[%s214 + $0x20] sm:$0xf]
      %v266 = vld [vmem:[%s214 + $0x24] sm:$0xf]
      %v267 = vld [vmem:[%s214 + $0x28] sm:$0xf]
      %v268 = vld [vmem:[%s214 + $0x2c] sm:$0xf]
      %v269 = vld [vmem:[%s214 + $0x30] sm:$0xf]
      %v270 = vld [vmem:[%s214 + $0x34] sm:$0xf]
      %v271 = vld [vmem:[%s214 + $0x38] sm:$0xf]
      %v272 = vld [vmem:[%s214 + $0x3c] sm:$0xf]
      %v273 = vld [vmem:[%s214 + $0x40] sm:$0xf]
      %v274 = vld [vmem:[%s214 + $0x44] sm:$0xf]
      %v275 = vld [vmem:[%s214 + $0x48] sm:$0xf]
      %v276 = vld [vmem:[%s214 + $0x4c] sm:$0xf]
      %v277 = vld [vmem:[%s214 + $0x50] sm:$0xf]
      %v278 = vld [vmem:[%s214 + $0x54] sm:$0xf]
      %v279 = vld [vmem:[%s214 + $0x58] sm:$0xf]
      %v280 = vld [vmem:[%s214 + $0x5c] sm:$0xf]
      %v281 = vld [vmem:[%s214 + $0x60] sm:$0xf]
      %v282 = vld [vmem:[%s214 + $0x64] sm:$0xf]
      %v283 = vld [vmem:[%s214 + $0x68] sm:$0xf]
      %v284 = vld [vmem:[%s214 + $0x6c] sm:$0xf]
      %v285 = vld [vmem:[%s214 + $0x70] sm:$0xf]
      %v286 = vld [vmem:[%s214 + $0x74] sm:$0xf]
      %v287 = vld [vmem:[%s214 + $0x78] sm:$0xf]
      %v288 = vld [vmem:[%s214 + $0x7c] sm:$0xf]
      %v289 = vld [vmem:[%s214 + $0x80] sm:$0xf]
      %v290 = vld [vmem:[%s214 + $0x84] sm:$0xf]
      %v291 = vld [vmem:[%s214 + $0x88] sm:$0xf]
      %v292 = vld [vmem:[%s214 + $0x8c] sm:$0xf]
      %v293 = vld [vmem:[%s214 + $0x90] sm:$0xf]
      %v294 = vld [vmem:[%s214 + $0x94] sm:$0xf]
      %v295 = vld [vmem:[%s214 + $0x98] sm:$0xf]
      %v296 = vld [vmem:[%s214 + $0x9c] sm:$0xf]
      %v297 = vld [vmem:[%s214 + $0xa0] sm:$0xf]
      %v298 = vld [vmem:[%s214 + $0xa4] sm:$0xf]
      %v299 = vld [vmem:[%s214 + $0xa8] sm:$0xf]
      %v300 = vld [vmem:[%s214 + $0xac] sm:$0xf]
      %v301 = vld [vmem:[%s214 + $0xb0] sm:$0xf]
      %v302 = vld [vmem:[%s214 + $0xb4] sm:$0xf]
      %v303 = vld [vmem:[%s214 + $0xb8] sm:$0xf]
      %v304 = vld [vmem:[%s214 + $0xbc] sm:$0xf]
      %v321 = vunpack.c.l.b16 %v241
      %v322 = vunpack.c.h.b16 %v241
      %v323 = vunpack.c.l.b16 %v242
      %v324 = vunpack.c.l.b16 %v243
      %v325 = vunpack.c.h.b16 %v243
      %v326 = vunpack.c.l.b16 %v244
      %v327 = vunpack.c.l.b16 %v245
      %v328 = vunpack.c.h.b16 %v245
      %v329 = vunpack.c.l.b16 %v246
      %v330 = vunpack.c.l.b16 %v247
      %v331 = vunpack.c.h.b16 %v247
      %v332 = vunpack.c.l.b16 %v248
      %v333 = vunpack.c.l.b16 %v249
      %v334 = vunpack.c.h.b16 %v249
      %v335 = vunpack.c.l.b16 %v250
      %v336 = vunpack.c.l.b16 %v251
      %v337 = vunpack.c.h.b16 %v251
      %v338 = vunpack.c.l.b16 %v252
      %v339 = vunpack.c.l.b16 %v253
      %v340 = vunpack.c.h.b16 %v253
      %v341 = vunpack.c.l.b16 %v254
      %v342 = vunpack.c.l.b16 %v255
      %v343 = vunpack.c.h.b16 %v255
      %v344 = vunpack.c.l.b16 %v256
      %v345 = vpack.c.b16 %v324, %v321
      %v346 = vpack.c.b16 %v325, %v322
      %v347 = vpack.c.b16 %v326, %v323
      %v348 = vpack.c.b16 %v330, %v327
      %v349 = vpack.c.b16 %v331, %v328
      %v350 = vpack.c.b16 %v332, %v329
      %v351 = vpack.c.b16 %v336, %v333
      %v352 = vpack.c.b16 %v337, %v334
      %v353 = vpack.c.b16 %v338, %v335
      %v354 = vpack.c.b16 %v342, %v339
      %v355 = vpack.c.b16 %v343, %v340
      %v356 = vpack.c.b16 %v344, %v341
      %v417 = vunpack.c.l.b16 %v257
      %v418 = vunpack.c.l.b16 %v258
      %v419 = vunpack.c.l.b16 %v259
      %v420 = vunpack.c.l.b16 %v260
      %v421 = vunpack.c.l.b16 %v261
      %v422 = vunpack.c.l.b16 %v262
      %v423 = vunpack.c.l.b16 %v263
      %v424 = vunpack.c.l.b16 %v264
      %v425 = vunpack.c.l.b16 %v265
      %v426 = vunpack.c.l.b16 %v266
      %v427 = vunpack.c.l.b16 %v267
      %v428 = vunpack.c.l.b16 %v268
      %v429 = vunpack.c.l.b16 %v269
      %v430 = vunpack.c.l.b16 %v270
      %v431 = vunpack.c.l.b16 %v271
      %v432 = vunpack.c.l.b16 %v272
      %v433 = vunpack.c.l.b16 %v273
      %v434 = vunpack.c.l.b16 %v274
      %v435 = vunpack.c.l.b16 %v275
      %v436 = vunpack.c.l.b16 %v276
      %v437 = vunpack.c.l.b16 %v277
      %v438 = vunpack.c.l.b16 %v278
      %v439 = vunpack.c.l.b16 %v279
      %v440 = vunpack.c.l.b16 %v280
      %v441 = vunpack.c.l.b16 %v281
      %v442 = vunpack.c.l.b16 %v282
      %v443 = vunpack.c.l.b16 %v283
      %v444 = vunpack.c.l.b16 %v284
      %v445 = vunpack.c.l.b16 %v285
      %v446 = vunpack.c.l.b16 %v286
      %v447 = vunpack.c.l.b16 %v287
      %v448 = vunpack.c.l.b16 %v288
      %v449 = vunpack.c.l.b16 %v289
      %v450 = vunpack.c.l.b16 %v290
      %v451 = vunpack.c.l.b16 %v291
      %v452 = vunpack.c.l.b16 %v292
      %v453 = vunpack.c.l.b16 %v293
      %v454 = vunpack.c.l.b16 %v294
      %v455 = vunpack.c.l.b16 %v295
      %v456 = vunpack.c.l.b16 %v296
      %v457 = vunpack.c.l.b16 %v297
      %v458 = vunpack.c.l.b16 %v298
      %v459 = vunpack.c.l.b16 %v299
      %v460 = vunpack.c.l.b16 %v300
      %v461 = vunpack.c.l.b16 %v301
      %v462 = vunpack.c.l.b16 %v302
      %v463 = vunpack.c.l.b16 %v303
      %v464 = vunpack.c.l.b16 %v304
      %v465 = vpack.c.b16 %v418, %v417
      %v466 = vpack.c.b16 %v420, %v419
      %v467 = vpack.c.b16 %v422, %v421
      %v468 = vpack.c.b16 %v424, %v423
      %v469 = vpack.c.b16 %v426, %v425
      %v470 = vpack.c.b16 %v428, %v427
      %v471 = vpack.c.b16 %v430, %v429
      %v472 = vpack.c.b16 %v432, %v431
      %v473 = vpack.c.b16 %v434, %v433
      %v474 = vpack.c.b16 %v436, %v435
      %v475 = vpack.c.b16 %v438, %v437
      %v476 = vpack.c.b16 %v440, %v439
      %v477 = vpack.c.b16 %v442, %v441
      %v478 = vpack.c.b16 %v444, %v443
      %v479 = vpack.c.b16 %v446, %v445
      %v480 = vpack.c.b16 %v448, %v447
      %v481 = vpack.c.b16 %v450, %v449
      %v482 = vpack.c.b16 %v452, %v451
      %v483 = vpack.c.b16 %v454, %v453
      %v484 = vpack.c.b16 %v456, %v455
      %v485 = vpack.c.b16 %v458, %v457
      %v486 = vpack.c.b16 %v460, %v459
      %v487 = vpack.c.b16 %v462, %v461
      %v488 = vpack.c.b16 %v464, %v463
      %513 = vmatpush.bf16.msra.mxu0 %v472
      %514 = vmatpush.bf16.msra.mxu0 %v471
      %515 = vmatpush.bf16.msra.mxu0 %v470
      %516 = vmatpush.bf16.msra.mxu0 %v469
      %517 = vmatpush.bf16.msra.mxu0 %v468
      %518 = vmatpush.bf16.msra.mxu0 %v467
      %519 = vmatpush.bf16.msra.mxu0 %v466
      %520 = vmatpush.bf16.msra.mxu0 %v465
      %521 = vmatmul.bf16.gmra.mxu0 %v345
      %v522 = vpop.f32.mrf.mxu0
      %v523 = vadd.f32 0.0, %v522
      %v524 = vpop.f32.mrf.mxu0
      %v525 = vadd.f32 0.0, %v524
      %526 = vmatmul.bf16.gmra.mxu0 %v348
      %v527 = vpop.f32.mrf.mxu0
      %v528 = vadd.f32 0.0, %v527
      %v529 = vpop.f32.mrf.mxu0
      %v530 = vadd.f32 0.0, %v529
      %531 = vmatmul.bf16.gmra.mxu0 %v351
      %v532 = vpop.f32.mrf.mxu0
      %v533 = vadd.f32 0.0, %v532
      %v534 = vpop.f32.mrf.mxu0
      %v535 = vadd.f32 0.0, %v534
      %536 = vmatmul.bf16.gmra.mxu0 %v354
      %v537 = vpop.f32.mrf.mxu0
      %v538 = vadd.f32 0.0, %v537
      %v539 = vpop.f32.mrf.mxu0
      %v540 = vadd.f32 0.0, %v539
      %541 = vdwg.mxu0
      %542 = vmatpush.bf16.msra.mxu0 %v480
      %543 = vmatpush.bf16.msra.mxu0 %v479
      %544 = vmatpush.bf16.msra.mxu0 %v478
      %545 = vmatpush.bf16.msra.mxu0 %v477
      %546 = vmatpush.bf16.msra.mxu0 %v476
      %547 = vmatpush.bf16.msra.mxu0 %v475
      %548 = vmatpush.bf16.msra.mxu0 %v474
      %549 = vmatpush.bf16.msra.mxu0 %v473
      %550 = vmatmul.bf16.gmra.mxu0 %v346
      %v551 = vpop.f32.mrf.mxu0
      %v552 = vadd.f32 %v523, %v551
      %v553 = vpop.f32.mrf.mxu0
      %v554 = vadd.f32 %v525, %v553
      %555 = vmatmul.bf16.gmra.mxu0 %v349
      %v556 = vpop.f32.mrf.mxu0
      %v557 = vadd.f32 %v528, %v556
      %v558 = vpop.f32.mrf.mxu0
      %v559 = vadd.f32 %v530, %v558
      %560 = vmatmul.bf16.gmra.mxu0 %v352
      %v561 = vpop.f32.mrf.mxu0
      %v562 = vadd.f32 %v533, %v561
      %v563 = vpop.f32.mrf.mxu0
      %v564 = vadd.f32 %v535, %v563
      %565 = vmatmul.bf16.gmra.mxu0 %v355
      %v566 = vpop.f32.mrf.mxu0
      %v567 = vadd.f32 %v538, %v566
      %v568 = vpop.f32.mrf.mxu0
      %v569 = vadd.f32 %v540, %v568
      %570 = vdwg.mxu0
      %571 = vmatpush.bf16.msra.mxu0 %v488
      %572 = vmatpush.bf16.msra.mxu0 %v487
      %573 = vmatpush.bf16.msra.mxu0 %v486
      %574 = vmatpush.bf16.msra.mxu0 %v485
      %575 = vmatpush.bf16.msra.mxu0 %v484
      %576 = vmatpush.bf16.msra.mxu0 %v483
      %577 = vmatpush.bf16.msra.mxu0 %v482
      %578 = vmatpush.bf16.msra.mxu0 %v481
      %579 = vmatmul.bf16.gmra.mxu0 %v347
      %v580 = vpop.f32.mrf.mxu0
      %v581 = vadd.f32 %v552, %v580
      %v582 = vpop.f32.mrf.mxu0
      %v583 = vadd.f32 %v554, %v582
      %584 = vmatmul.bf16.gmra.mxu0 %v350
      %v585 = vpop.f32.mrf.mxu0
      %v586 = vadd.f32 %v557, %v585
      %v587 = vpop.f32.mrf.mxu0
      %v588 = vadd.f32 %v559, %v587
      %589 = vmatmul.bf16.gmra.mxu0 %v353
      %v590 = vpop.f32.mrf.mxu0
      %v591 = vadd.f32 %v562, %v590
      %v592 = vpop.f32.mrf.mxu0
      %v593 = vadd.f32 %v564, %v592
      %594 = vmatmul.bf16.gmra.mxu0 %v356
      %v595 = vpop.f32.mrf.mxu0
      %v596 = vadd.f32 %v567, %v595
      %v597 = vpop.f32.mrf.mxu0
      %v598 = vadd.f32 %v569, %v597
      %599 = vdwg.mxu0
      %v600 = vadd.f32 %v233, %v581
      %v601 = vadd.f32 %v234, %v583
      %v602 = vadd.f32 %v235, %v586
      %v603 = vadd.f32 %v236, %v588
      %v604 = vadd.f32 %v237, %v591
      %v605 = vadd.f32 %v238, %v593
      %v606 = vadd.f32 %v239, %v596
      %v607 = vadd.f32 %v240, %v598
      %608 = vst [vmem:[#allocation2] sm:$0xff] %v600
      %609 = vst [vmem:[#allocation2 + $0x8] sm:$0xff] %v601
      %610 = vst [vmem:[#allocation2 + $0x10] sm:$0xff] %v602
      %611 = vst [vmem:[#allocation2 + $0x18] sm:$0xff] %v603
      %612 = vst [vmem:[#allocation2 + $0x20] sm:$0xff] %v604
      %613 = vst [vmem:[#allocation2 + $0x28] sm:$0xff] %v605
      %614 = vst [vmem:[#allocation2 + $0x30] sm:$0xff] %v606
      %615 = vst [vmem:[#allocation2 + $0x38] sm:$0xff] %v607
      // Predicated region
      $region37: #{resnet_gen_forward.17} parent=31 // pred_check
        %p616 = pneg %p221
      $region38: #{resnet_gen_forward.17} parent=31 // pred_check_branch
        %618 = sbr.rel (%p616) target = $region40
      $region39: #{resnet_gen_forward.17} parent=31 // pred_region
        %v619 = vld [vmem:[#allocation2] sm:$0xff]
        %v620 = vld [vmem:[#allocation2 + $0x8] sm:$0xff]
        %v621 = vld [vmem:[#allocation2 + $0x10] sm:$0xff]
        %v622 = vld [vmem:[#allocation2 + $0x18] sm:$0xff]
        %v623 = vld [vmem:[#allocation2 + $0x20] sm:$0xff]
        %v624 = vld [vmem:[#allocation2 + $0x28] sm:$0xff]
        %v625 = vld [vmem:[#allocation2 + $0x30] sm:$0xff]
        %v626 = vld [vmem:[#allocation2 + $0x38] sm:$0xff]
        %v627 = vld [vmem:[%s2] sm:$0x1]
        %v629 = vperm.slane %v627, 0
        %v631 = vadd.f32 %v619, %v629
        %v632 = vadd.f32 %v620, %v629
        %v633 = vadd.f32 %v621, %v629
        %v634 = vadd.f32 %v622, %v629
        %v635 = vadd.f32 %v623, %v629
        %v636 = vadd.f32 %v624, %v629
        %v637 = vadd.f32 %v625, %v629
        %v638 = vadd.f32 %v626, %v629
        %v639 = vadd.f32 %v631, %v632
        %v640 = vadd.f32 %v639, %v633
        %v641 = vadd.f32 %v640, %v634
        %v642 = vadd.f32 %v641, %v635
        %v643 = vadd.f32 %v642, %v636
        %v644 = vadd.f32 %v643, %v637
        %v645 = vadd.f32 %v644, %v638
        %v646 = vrot.slane %v645, 4
        %v647 = vadd.f32 %v645, %v646
        %v648 = vrot.slane %v647, 2
        %v649 = vadd.f32 %v647, %v648
        %v650 = vrot.slane %v649, 1
        %v651 = vadd.f32 %v649, %v650
        %v652 = vrcp.pop 64.0
        %v653 = vmul.f32 64.0, %v652
        %v654 = vsub.f32 1.0, %v653
        %v655 = vmul.f32 %v652, %v654
        %v656 = vadd.f32 %v652, %v655
        %vm657 = vweird.f32 %v652
        %v658 = vsel %vm657, %v652, %v656
        %v659 = vmul.f32 %v651, %v658
        %v660 = vsub.f32 %v631, %v659
        %v661 = vsub.f32 %v632, %v659
        %v662 = vsub.f32 %v633, %v659
        %v663 = vsub.f32 %v634, %v659
        %v664 = vsub.f32 %v635, %v659
        %v665 = vsub.f32 %v636, %v659
        %v666 = vsub.f32 %v637, %v659
        %v667 = vsub.f32 %v638, %v659
        %v668 = vmul.f32 %v660, %v660
        %v669 = vmul.f32 %v661, %v661
        %v670 = vmul.f32 %v662, %v662
        %v671 = vmul.f32 %v663, %v663
        %v672 = vmul.f32 %v664, %v664
        %v673 = vmul.f32 %v665, %v665
        %v674 = vmul.f32 %v666, %v666
        %v675 = vmul.f32 %v667, %v667
        %v676 = vadd.f32 %v668, %v669
        %v677 = vadd.f32 %v676, %v670
        %v678 = vadd.f32 %v677, %v671
        %v679 = vadd.f32 %v678, %v672
        %v680 = vadd.f32 %v679, %v673
        %v681 = vadd.f32 %v680, %v674
        %v682 = vadd.f32 %v681, %v675
        %v683 = vrot.slane %v682, 4
        %v684 = vadd.f32 %v682, %v683
        %v685 = vrot.slane %v684, 2
        %v686 = vadd.f32 %v684, %v685
        %v687 = vrot.slane %v686, 1
        %v688 = vadd.f32 %v686, %v687
        %v689 = vmul.f32 %v688, %v658
        %v690 = vadd.f32 %v689, 1e-05
        %v691 = vrsqrt.pop %v690
        %v692 = vmul.f32 %v691, %v690
        %v693 = vmul.f32 %v692, %v691
        %v694 = vmul.f32 0.5, %v693
        %v695 = vsub.f32 1.5, %v694
        %v696 = vmul.f32 %v691, %v695
        %vm697 = vweird.f32 %v690
        %vm698 = vweird.f32 %v691
        %vm699 = vmor %vm697, %vm698
        %v700 = vsel %vm699, %v691, %v696
        %v701 = vmul.f32 %v660, %v700
        %v702 = vmul.f32 %v661, %v700
        %v703 = vmul.f32 %v662, %v700
        %v704 = vmul.f32 %v663, %v700
        %v705 = vmul.f32 %v664, %v700
        %v706 = vmul.f32 %v665, %v700
        %v707 = vmul.f32 %v666, %v700
        %v708 = vmul.f32 %v667, %v700
        %v709 = vmax.f32 %v701, 0.0
        %v710 = vmax.f32 %v702, 0.0
        %v711 = vmax.f32 %v703, 0.0
        %v712 = vmax.f32 %v704, 0.0
        %v713 = vmax.f32 %v705, 0.0
        %v714 = vmax.f32 %v706, 0.0
        %v715 = vmax.f32 %v707, 0.0
        %v716 = vmax.f32 %v708, 0.0
        %717 = vst [vmem:[%s220] sm:$0xff] %v709
        %718 = vst [vmem:[%s220 + $0x8] sm:$0xff] %v710
        %719 = vst [vmem:[%s220 + $0x10] sm:$0xff] %v711
        %720 = vst [vmem:[%s220 + $0x18] sm:$0xff] %v712
        %721 = vst [vmem:[%s220 + $0x20] sm:$0xff] %v713
        %722 = vst [vmem:[%s220 + $0x28] sm:$0xff] %v714
        %723 = vst [vmem:[%s220 + $0x30] sm:$0xff] %v715
        %724 = vst [vmem:[%s220 + $0x38] sm:$0xff] %v716
      $region40: #{resnet_gen_forward.17} parent=31 // pred_fallthru
        _
      %p725 = scmp.lt.s32.totalorder %s18, 1
      %s726 = scalar_select %p725, %s18, 1
      %s727 = smul.addr %s726, 8
      %s728 = smul.addr %s727, 8
      %s729 = scalar_lea.vmem %s3, %s728
      // Predicated region
      $region41: #{resnet_gen_forward.17} parent=31 // pred_check
        %p730 = pneg %p119
      $region42: #{resnet_gen_forward.17} parent=31 // pred_check_branch
        %732 = sbr.rel (%p730) target = $region44
      $region43: #{resnet_gen_forward.17} parent=31 // pred_region
        _
      $region44: #{resnet_gen_forward.17} parent=31 // pred_fallthru
        _
    $region32: #{resnet_gen_forward.17} parent=5 // pred_fallthru
      _
    %p733 = scmp.le.s32.totalorder 2, %s9
    // Predicated region
    $region45: #{resnet_gen_forward.17} parent=5 // pred_check
      %p734 = pneg %p733
    $region46: #{resnet_gen_forward.17} parent=5 // pred_check_branch
      %736 = sbr.rel (%p734) target = $region48
    $region47: #{resnet_gen_forward.17} parent=5 // pred_region
      %s737 = ssub.s32 %s9, 2
      // Predicated region
      $region49: #{resnet_gen_forward.17} parent=47 // pred_check
        %p738 = pneg %p125
      $region50: #{resnet_gen_forward.17} parent=47 // pred_check_branch
        %740 = sbr.rel (%p738) target = $region52
      $region51: #{resnet_gen_forward.17} parent=47 // pred_region
        %p741 = scmp.lt.s32.totalorder %s20, 1
        %s742 = scalar_select %p741, %s20, 1
        %s743 = smul.addr %s742, 8
        %s744 = smul.addr %s743, 8
        %s745 = scalar_lea.vmem %s3, %s744
      $region52: #{resnet_gen_forward.17} parent=47 // pred_fallthru
        _
    $region48: #{resnet_gen_forward.17} parent=5 // pred_fallthru
      _
  $region6: #{resnet_gen_forward.17} parent=0 // loop_footer
    %s13 = sadd.s32 1, %s9
  $region7: #{resnet_gen_forward.17} parent=0 // loop_footer_branch
    %8 = sbr.rel target = $region3
  $region8: #{resnet_gen_forward.17} parent=0 // loop_exit
    _

// kernel: resnet_gen_forward.18
$region0: #{resnet_gen_forward.18}
  #allocation0 [shape = 'u32[]', space=smem, size = 0x4, offset = 0x4, fixed_abs, tag = 'smem constant byte address 0x4 - core index']
  #allocation1 [shape = 'u32[72,128]{1,0:T(1,128)}', space=vmem, size = 0x9000, scoped, tag = 'internal scratch']
  #allocation2 [shape = 'f32[256,128]{1,0:T(8,128)}', space=vmem, size = 0x20000, scoped, tag = 'scratch operand']
  %s0 = inlined_call_operand.vmem [shape: bf16[2,256,256], index: 0, kind: input, shape index: {}]
  %s1 = inlined_call_operand.vmem [shape: bf16[256,128], index: 1, kind: input, shape index: {}]
  %s2 = inlined_call_operand.vmem [shape: f32[1,128], index: 2, kind: input, shape index: {}]
  %s3 = inlined_call_operand.vmem [shape: f32[2,256,128], index: 3, kind: output, shape index: {}]
  %s4 = sld [smem:[#allocation0]]
  $region53: #{resnet_gen_forward.18} parent=0
    _
  %s6 = ssub.s32 1, %s4
  %s7 = scalar_select 0, %s6, %s4
  loop: start=0, step=1, limit=4
  $region2: #{resnet_gen_forward.18} parent=0 // loop_pre_header
    _
  $region3: #{resnet_gen_forward.18} parent=0 // loop_header
    %s9 = sphi 0, %s13
    %p10 = scmp.ge.s32.totalorder %s9, 4
    %s16 = sphi 0, %s28
    %s17 = sphi 0, %s24
    %s18 = sphi 0, %s16
    %s19 = sphi 0, %s17
    %s20 = sphi 0, %s18
    %s21 = sphi 0, %s19
    %s33 = sphi 0, %s35
    %s36 = sphi 0, %s33
    %s37 = sphi 0, %s36
    %s53 = sphi 0, %s37
    %s59 = sphi 0, %s61
    %s62 = sphi 0, %s59
    %s63 = sphi 0, %s62
    %s79 = sphi 0, %s63
    %s83 = sphi 0, %s83
    %s85 = sphi 0, %s83
    %s86 = sphi 0, %s85
    %s100 = sphi 0, %s86
    %s106 = sphi 0, %s108
    %s109 = sphi 0, %s106
    %s110 = sphi 0, %s109
    %s126 = sphi 0, %s110
  $region4: #{resnet_gen_forward.18} parent=0 // loop_header_branch
    %12 = sbr.rel (%p10) target = $region8
  $region5: #{resnet_gen_forward.18} parent=0 // loop_body
    %s14 = ssub.s32 %s9, 1
    %s15 = ssub.s32 %s9, 2
    %s22 = sadd.s32 1, %s17
    %p23 = scmp.ge.s32.totalorder %s22, 1
    %s24 = scalar_select %p23, 0, %s22
    %s25 = sadd.s32 1, %s16
    %s26 = scalar_select %p23, %s25, %s16
    %p27 = scmp.ge.s32.totalorder %s26, 2
    %s28 = scalar_select %p27, 0, %s26
    %s29 = ssub.s32 %s16, %s28
    %s30 = ssub.s32 %s17, %s24
    %s31 = sor.u32 %s29, %s30
    %p32 = scmp.eq.s32.totalorder %s31, 0
    %s34 = sadd.s32 %s33, 1
    %s35 = scalar_select %p32, %s33, %s34
    %p38 = pneg %p32
    %p39 = scmp.eq.s32.totalorder %s9, 1
    %p40 = por %p38, %p39
    %p41 = scmp.ne.s32.totalorder %s33, %s36
    %p42 = scmp.eq.s32.totalorder %s9, 0
    %p43 = por %p41, %p42
    %p44 = scmp.ne.s32.totalorder %s33, %s36
    %p45 = scmp.eq.s32.totalorder %s14, 1
    %p46 = por %p44, %p45
    %p47 = scmp.ne.s32.totalorder %s36, %s37
    %p48 = scmp.eq.s32.totalorder %s14, 0
    %p49 = por %p47, %p48
    %p50 = scmp.ne.s32.totalorder %s36, %s37
    %p51 = scmp.eq.s32.totalorder %s15, 1
    %p52 = por %p50, %p51
    %p54 = scmp.ne.s32.totalorder %s37, %s53
    %p55 = scmp.eq.s32.totalorder %s15, 0
    %p56 = por %p54, %p55
    %s57 = ssub.s32 %s17, %s24
    %p58 = scmp.eq.s32.totalorder %s57, 0
    %s60 = sadd.s32 %s59, 1
    %s61 = scalar_select %p58, %s59, %s60
    %p64 = pneg %p58
    %p65 = scmp.eq.s32.totalorder %s9, 1
    %p66 = por %p64, %p65
    %p67 = scmp.ne.s32.totalorder %s59, %s62
    %p68 = scmp.eq.s32.totalorder %s9, 0
    %p69 = por %p67, %p68
    %p70 = scmp.ne.s32.totalorder %s59, %s62
    %p71 = scmp.eq.s32.totalorder %s14, 1
    %p72 = por %p70, %p71
    %p73 = scmp.ne.s32.totalorder %s62, %s63
    %p74 = scmp.eq.s32.totalorder %s14, 0
    %p75 = por %p73, %p74
    %p76 = scmp.ne.s32.totalorder %s62, %s63
    %p77 = scmp.eq.s32.totalorder %s15, 1
    %p78 = por %p76, %p77
    %p80 = scmp.ne.s32.totalorder %s63, %s79
    %p81 = scmp.eq.s32.totalorder %s15, 0
    %p82 = por %p80, %p81
    %s84 = sadd.s32 %s83, 1
    %p87 = scmp.eq.s32.totalorder %s9, 1
    %p88 = scmp.ne.s32.totalorder %s83, %s85
    %p89 = scmp.eq.s32.totalorder %s9, 0
    %p90 = por %p88, %p89
    %p91 = scmp.ne.s32.totalorder %s83, %s85
    %p92 = scmp.eq.s32.totalorder %s14, 1
    %p93 = por %p91, %p92
    %p94 = scmp.ne.s32.totalorder %s85, %s86
    %p95 = scmp.eq.s32.totalorder %s14, 0
    %p96 = por %p94, %p95
    %p97 = scmp.ne.s32.totalorder %s85, %s86
    %p98 = scmp.eq.s32.totalorder %s15, 1
    %p99 = por %p97, %p98
    %p101 = scmp.ne.s32.totalorder %s86, %s100
    %p102 = scmp.eq.s32.totalorder %s15, 0
    %p103 = por %p101, %p102
    %s104 = ssub.s32 %s16, %s28
    %p105 = scmp.eq.s32.totalorder %s104, 0
    %s107 = sadd.s32 %s106, 1
    %s108 = scalar_select %p105, %s106, %s107
    %p111 = pneg %p105
    %p112 = scmp.eq.s32.totalorder %s9, 1
    %p113 = por %p111, %p112
    %p114 = scmp.ne.s32.totalorder %s106, %s109
    %p115 = scmp.eq.s32.totalorder %s9, 0
    %p116 = por %p114, %p115
    %p117 = scmp.ne.s32.totalorder %s106, %s109
    %p118 = scmp.eq.s32.totalorder %s14, 1
    %p119 = por %p117, %p118
    %p120 = scmp.ne.s32.totalorder %s109, %s110
    %p121 = scmp.eq.s32.totalorder %s14, 0
    %p122 = por %p120, %p121
    %p123 = scmp.ne.s32.totalorder %s109, %s110
    %p124 = scmp.eq.s32.totalorder %s15, 1
    %p125 = por %p123, %p124
    %p127 = scmp.ne.s32.totalorder %s110, %s126
    %p128 = scmp.eq.s32.totalorder %s15, 0
    %p129 = por %p127, %p128
    %p130 = scmp.le.s32.totalorder 1, %s9
    %p131 = scmp.lt.s32.totalorder %s9, 3
    %p132 = pnand %p130, %p131
    %p133 = pneg %p132
    // Predicated region
    $region9: #{resnet_gen_forward.18} parent=5 // pred_check
      _
    $region10: #{resnet_gen_forward.18} parent=5 // pred_check_branch
      %135 = sbr.rel (%p132) target = $region12
    $region11: #{resnet_gen_forward.18} parent=5 // pred_region
      %s136 = ssub.s32 %s9, 1
      // Predicated region
      $region13: #{resnet_gen_forward.18} parent=11 // pred_check
        %p137 = pneg %p75
      $region14: #{resnet_gen_forward.18} parent=11 // pred_check_branch
        %139 = sbr.rel (%p137) target = $region16
      $region15: #{resnet_gen_forward.18} parent=11 // pred_region
        %s140 = smul.u32 32, %s19
        %p141 = scmp.lt.s32.totalorder %s140, 31
        %s142 = scalar_select %p141, %s140, 31
        %s143 = smul.addr %s142, 4
        %s144 = scalar_lea.vmem %s1, %s143
        %s145 = smul.u32 32, %s19
      $region16: #{resnet_gen_forward.18} parent=11 // pred_fallthru
        _
      // Predicated region
      $region17: #{resnet_gen_forward.18} parent=11 // pred_check
        %p146 = pneg %p96
      $region18: #{resnet_gen_forward.18} parent=11 // pred_check_branch
        %148 = sbr.rel (%p146) target = $region20
      $region19: #{resnet_gen_forward.18} parent=11 // pred_region
        _
      $region20: #{resnet_gen_forward.18} parent=11 // pred_fallthru
        _
    $region12: #{resnet_gen_forward.18} parent=5 // pred_fallthru
      _
    %p149 = scmp.lt.s32.totalorder %s9, 2
    // Predicated region
    $region21: #{resnet_gen_forward.18} parent=5 // pred_check
      %p150 = pneg %p149
    $region22: #{resnet_gen_forward.18} parent=5 // pred_check_branch
      %152 = sbr.rel (%p150) target = $region24
    $region23: #{resnet_gen_forward.18} parent=5 // pred_region
      // Predicated region
      $region25: #{resnet_gen_forward.18} parent=23 // pred_check
        %p153 = pneg %p43
      $region26: #{resnet_gen_forward.18} parent=23 // pred_check_branch
        %155 = sbr.rel (%p153) target = $region28
      $region27: #{resnet_gen_forward.18} parent=23 // pred_region
        %s156 = smul.u32 2, %s17
        %p157 = scmp.lt.s32.totalorder %s16, 1
        %s158 = scalar_select %p157, %s16, 1
        %p159 = scmp.lt.s32.totalorder %s156, 1
        %s160 = scalar_select %p159, %s156, 1
        %s161 = smul.addr %s158, 64
        %s162 = sadd.s32 %s160, %s161
        %s163 = smul.addr %s162, 4
        %s164 = scalar_lea.vmem %s0, %s163
        %s165 = smul.u32 2, %s17
      $region28: #{resnet_gen_forward.18} parent=23 // pred_fallthru
        _
    $region24: #{resnet_gen_forward.18} parent=5 // pred_fallthru
      _
    %p166 = scmp.le.s32.totalorder 1, %s9
    %p167 = scmp.lt.s32.totalorder %s9, 3
    %p168 = pnand %p166, %p167
    %p169 = pneg %p168
    // Predicated region
    $region29: #{resnet_gen_forward.18} parent=5 // pred_check
      _
    $region30: #{resnet_gen_forward.18} parent=5 // pred_check_branch
      %171 = sbr.rel (%p168) target = $region32
    $region31: #{resnet_gen_forward.18} parent=5 // pred_region
      %s172 = ssub.s32 %s9, 1
      %s173 = smul.u32 2, %s19
      %p174 = scmp.lt.s32.totalorder %s18, 1
      %s175 = scalar_select %p174, %s18, 1
      %p176 = scmp.lt.s32.totalorder %s173, 1
      %s177 = scalar_select %p176, %s173, 1
      %s178 = smul.addr %s175, 64
      %s179 = sadd.s32 %s177, %s178
      %s180 = smul.addr %s179, 4
      %s181 = scalar_lea.vmem %s0, %s180
      %p182 = pneg %p49
      %p183 = pneg %p46
      %s184 = smul.u32 32, %s19
      %p185 = scmp.lt.s32.totalorder %s184, 31
      %s186 = scalar_select %p185, %s184, 31
      %s187 = smul.addr %s186, 4
      %s188 = scalar_lea.vmem %s1, %s187
      %p189 = pneg %p75
      %p190 = pneg %p72
      %p191 = pneg %p96
      %p192 = pneg %p93
      %p193 = pneg %p122
      %p194 = pneg %p119
      %p195 = scmp.lt.s32.totalorder %s18, 1
      %s196 = scalar_select %p195, %s18, 1
      %s197 = smul.addr %s196, 32
      %s198 = smul.addr %s197, 8
      %s199 = scalar_lea.vmem %s3, %s198
      %s200 = smul.u32 2, %s19
      %p201 = scmp.lt.s32.totalorder %s18, 1
      %s202 = scalar_select %p201, %s18, 1
      %p203 = scmp.lt.s32.totalorder %s200, 1
      %s204 = scalar_select %p203, %s200, 1
      %s205 = smul.addr %s202, 64
      %s206 = sadd.s32 %s204, %s205
      %s207 = smul.addr %s206, 4
      %s208 = scalar_lea.vmem %s0, %s207
      %s209 = smul.u32 2, %s19
      %s210 = smul.u32 32, %s19
      %p211 = scmp.lt.s32.totalorder %s210, 31
      %s212 = scalar_select %p211, %s210, 31
      %s213 = smul.addr %s212, 4
      %s214 = scalar_lea.vmem %s1, %s213
      %s215 = smul.u32 32, %s19
      %p216 = scmp.lt.s32.totalorder %s18, 1
      %s217 = scalar_select %p216, %s18, 1
      %s218 = smul.addr %s217, 32
      %s219 = smul.addr %s218, 8
      %s220 = scalar_lea.vmem %s3, %s219
      %p221 = scmp.eq.s32.totalorder %s19, 0
      // Predicated region
      $region33: #{resnet_gen_forward.18} parent=31 // pred_check
        %p222 = pneg %p221
      $region34: #{resnet_gen_forward.18} parent=31 // pred_check_branch
        %224 = sbr.rel (%p222) target = $region36
      $region35: #{resnet_gen_forward.18} parent=31 // pred_region
        %225 = vst [vmem:[#allocation2] sm:$0xff] 0.0
        %226 = vst [vmem:[#allocation2 + $0x8] sm:$0xff] 0.0
        %227 = vst [vmem:[#allocation2 + $0x10] sm:$0xff] 0.0
        %228 = vst [vmem:[#allocation2 + $0x18] sm:$0xff] 0.0
        %229 = vst [vmem:[#allocation2 + $0x20] sm:$0xff] 0.0
        %230 = vst [vmem:[#allocation2 + $0x28] sm:$0xff] 0.0
        %231 = vst [vmem:[#allocation2 + $0x30] sm:$0xff] 0.0
        %232 = vst [vmem:[#allocation2 + $0x38] sm:$0xff] 0.0
        %233 = vst [vmem:[#allocation2 + $0x40] sm:$0xff] 0.0
        %234 = vst [vmem:[#allocation2 + $0x48] sm:$0xff] 0.0
        %235 = vst [vmem:[#allocation2 + $0x50] sm:$0xff] 0.0
        %236 = vst [vmem:[#allocation2 + $0x58] sm:$0xff] 0.0
        %237 = vst [vmem:[#allocation2 + $0x60] sm:$0xff] 0.0
        %238 = vst [vmem:[#allocation2 + $0x68] sm:$0xff] 0.0
        %239 = vst [vmem:[#allocation2 + $0x70] sm:$0xff] 0.0
        %240 = vst [vmem:[#allocation2 + $0x78] sm:$0xff] 0.0
        %241 = vst [vmem:[#allocation2 + $0x80] sm:$0xff] 0.0
        %242 = vst [vmem:[#allocation2 + $0x88] sm:$0xff] 0.0
        %243 = vst [vmem:[#allocation2 + $0x90] sm:$0xff] 0.0
        %244 = vst [vmem:[#allocation2 + $0x98] sm:$0xff] 0.0
        %245 = vst [vmem:[#allocation2 + $0xa0] sm:$0xff] 0.0
        %246 = vst [vmem:[#allocation2 + $0xa8] sm:$0xff] 0.0
        %247 = vst [vmem:[#allocation2 + $0xb0] sm:$0xff] 0.0
        %248 = vst [vmem:[#allocation2 + $0xb8] sm:$0xff] 0.0
        %249 = vst [vmem:[#allocation2 + $0xc0] sm:$0xff] 0.0
        %250 = vst [vmem:[#allocation2 + $0xc8] sm:$0xff] 0.0
        %251 = vst [vmem:[#allocation2 + $0xd0] sm:$0xff] 0.0
        %252 = vst [vmem:[#allocation2 + $0xd8] sm:$0xff] 0.0
        %253 = vst [vmem:[#allocation2 + $0xe0] sm:$0xff] 0.0
        %254 = vst [vmem:[#allocation2 + $0xe8] sm:$0xff] 0.0
        %255 = vst [vmem:[#allocation2 + $0xf0] sm:$0xff] 0.0
        %256 = vst [vmem:[#allocation2 + $0xf8] sm:$0xff] 0.0
      $region36: #{resnet_gen_forward.18} parent=31 // pred_fallthru
        _
      %v257 = vld [vmem:[#allocation2] sm:$0xff]
      %v258 = vld [vmem:[#allocation2 + $0x8] sm:$0xff]
      %v259 = vld [vmem:[#allocation2 + $0x10] sm:$0xff]
      %v260 = vld [vmem:[#allocation2 + $0x18] sm:$0xff]
      %v261 = vld [vmem:[#allocation2 + $0x20] sm:$0xff]
      %v262 = vld [vmem:[#allocation2 + $0x28] sm:$0xff]
      %v263 = vld [vmem:[#allocation2 + $0x30] sm:$0xff]
      %v264 = vld [vmem:[#allocation2 + $0x38] sm:$0xff]
      %v265 = vld [vmem:[#allocation2 + $0x40] sm:$0xff]
      %v266 = vld [vmem:[#allocation2 + $0x48] sm:$0xff]
      %v267 = vld [vmem:[#allocation2 + $0x50] sm:$0xff]
      %v268 = vld [vmem:[#allocation2 + $0x58] sm:$0xff]
      %v269 = vld [vmem:[#allocation2 + $0x60] sm:$0xff]
      %v270 = vld [vmem:[#allocation2 + $0x68] sm:$0xff]
      %v271 = vld [vmem:[#allocation2 + $0x70] sm:$0xff]
      %v272 = vld [vmem:[#allocation2 + $0x78] sm:$0xff]
      %v273 = vld [vmem:[#allocation2 + $0x80] sm:$0xff]
      %v274 = vld [vmem:[#allocation2 + $0x88] sm:$0xff]
      %v275 = vld [vmem:[#allocation2 + $0x90] sm:$0xff]
      %v276 = vld [vmem:[#allocation2 + $0x98] sm:$0xff]
      %v277 = vld [vmem:[#allocation2 + $0xa0] sm:$0xff]
      %v278 = vld [vmem:[#allocation2 + $0xa8] sm:$0xff]
      %v279 = vld [vmem:[#allocation2 + $0xb0] sm:$0xff]
      %v280 = vld [vmem:[#allocation2 + $0xb8] sm:$0xff]
      %v281 = vld [vmem:[#allocation2 + $0xc0] sm:$0xff]
      %v282 = vld [vmem:[#allocation2 + $0xc8] sm:$0xff]
      %v283 = vld [vmem:[#allocation2 + $0xd0] sm:$0xff]
      %v284 = vld [vmem:[#allocation2 + $0xd8] sm:$0xff]
      %v285 = vld [vmem:[#allocation2 + $0xe0] sm:$0xff]
      %v286 = vld [vmem:[#allocation2 + $0xe8] sm:$0xff]
      %v287 = vld [vmem:[#allocation2 + $0xf0] sm:$0xff]
      %v288 = vld [vmem:[#allocation2 + $0xf8] sm:$0xff]
      %v289 = vld [vmem:[%s208] sm:$0xff]
      %v290 = vld [vmem:[%s208 + $0x8] sm:$0xff]
      %v291 = vld [vmem:[%s208 + $0x10] sm:$0xff]
      %v292 = vld [vmem:[%s208 + $0x18] sm:$0xff]
      %v293 = vld [vmem:[%s208 + $0x20] sm:$0xff]
      %v294 = vld [vmem:[%s208 + $0x28] sm:$0xff]
      %v295 = vld [vmem:[%s208 + $0x30] sm:$0xff]
      %v296 = vld [vmem:[%s208 + $0x38] sm:$0xff]
      %v297 = vld [vmem:[%s208 + $0x40] sm:$0xff]
      %v298 = vld [vmem:[%s208 + $0x48] sm:$0xff]
      %v299 = vld [vmem:[%s208 + $0x50] sm:$0xff]
      %v300 = vld [vmem:[%s208 + $0x58] sm:$0xff]
      %v301 = vld [vmem:[%s208 + $0x60] sm:$0xff]
      %v302 = vld [vmem:[%s208 + $0x68] sm:$0xff]
      %v303 = vld [vmem:[%s208 + $0x70] sm:$0xff]
      %v304 = vld [vmem:[%s208 + $0x78] sm:$0xff]
      %v305 = vld [vmem:[%s208 + $0x80] sm:$0xff]
      %v306 = vld [vmem:[%s208 + $0x88] sm:$0xff]
      %v307 = vld [vmem:[%s208 + $0x90] sm:$0xff]
      %v308 = vld [vmem:[%s208 + $0x98] sm:$0xff]
      %v309 = vld [vmem:[%s208 + $0xa0] sm:$0xff]
      %v310 = vld [vmem:[%s208 + $0xa8] sm:$0xff]
      %v311 = vld [vmem:[%s208 + $0xb0] sm:$0xff]
      %v312 = vld [vmem:[%s208 + $0xb8] sm:$0xff]
      %v313 = vld [vmem:[%s208 + $0xc0] sm:$0xff]
      %v314 = vld [vmem:[%s208 + $0xc8] sm:$0xff]
      %v315 = vld [vmem:[%s208 + $0xd0] sm:$0xff]
      %v316 = vld [vmem:[%s208 + $0xd8] sm:$0xff]
      %v317 = vld [vmem:[%s208 + $0xe0] sm:$0xff]
      %v318 = vld [vmem:[%s208 + $0xe8] sm:$0xff]
      %v319 = vld [vmem:[%s208 + $0xf0] sm:$0xff]
      %v320 = vld [vmem:[%s208 + $0xf8] sm:$0xff]
      %v321 = vld [vmem:[%s214] sm:$0xf]
      %v322 = vld [vmem:[%s214 + $0x4] sm:$0xf]
      %v323 = vld [vmem:[%s214 + $0x8] sm:$0xf]
      %v324 = vld [vmem:[%s214 + $0xc] sm:$0xf]
      %v325 = vld [vmem:[%s214 + $0x10] sm:$0xf]
      %v326 = vld [vmem:[%s214 + $0x14] sm:$0xf]
      %v327 = vld [vmem:[%s214 + $0x18] sm:$0xf]
      %v328 = vld [vmem:[%s214 + $0x1c] sm:$0xf]
      %v329 = vld [vmem:[%s214 + $0x20] sm:$0xf]
      %v330 = vld [vmem:[%s214 + $0x24] sm:$0xf]
      %v331 = vld [vmem:[%s214 + $0x28] sm:$0xf]
      %v332 = vld [vmem:[%s214 + $0x2c] sm:$0xf]
      %v333 = vld [vmem:[%s214 + $0x30] sm:$0xf]
      %v334 = vld [vmem:[%s214 + $0x34] sm:$0xf]
      %v335 = vld [vmem:[%s214 + $0x38] sm:$0xf]
      %v336 = vld [vmem:[%s214 + $0x3c] sm:$0xf]
      %v337 = vld [vmem:[%s214 + $0x40] sm:$0xf]
      %v338 = vld [vmem:[%s214 + $0x44] sm:$0xf]
      %v339 = vld [vmem:[%s214 + $0x48] sm:$0xf]
      %v340 = vld [vmem:[%s214 + $0x4c] sm:$0xf]
      %v341 = vld [vmem:[%s214 + $0x50] sm:$0xf]
      %v342 = vld [vmem:[%s214 + $0x54] sm:$0xf]
      %v343 = vld [vmem:[%s214 + $0x58] sm:$0xf]
      %v344 = vld [vmem:[%s214 + $0x5c] sm:$0xf]
      %v345 = vld [vmem:[%s214 + $0x60] sm:$0xf]
      %v346 = vld [vmem:[%s214 + $0x64] sm:$0xf]
      %v347 = vld [vmem:[%s214 + $0x68] sm:$0xf]
      %v348 = vld [vmem:[%s214 + $0x6c] sm:$0xf]
      %v349 = vld [vmem:[%s214 + $0x70] sm:$0xf]
      %v350 = vld [vmem:[%s214 + $0x74] sm:$0xf]
      %v351 = vld [vmem:[%s214 + $0x78] sm:$0xf]
      %v352 = vld [vmem:[%s214 + $0x7c] sm:$0xf]
      %v385 = vunpack.c.l.b16 %v289
      %v386 = vunpack.c.h.b16 %v289
      %v387 = vunpack.c.l.b16 %v290
      %v388 = vunpack.c.h.b16 %v290
      %v389 = vunpack.c.l.b16 %v291
      %v390 = vunpack.c.h.b16 %v291
      %v391 = vunpack.c.l.b16 %v292
      %v392 = vunpack.c.h.b16 %v292
      %v393 = vunpack.c.l.b16 %v293
      %v394 = vunpack.c.h.b16 %v293
      %v395 = vunpack.c.l.b16 %v294
      %v396 = vunpack.c.h.b16 %v294
      %v397 = vunpack.c.l.b16 %v295
      %v398 = vunpack.c.h.b16 %v295
      %v399 = vunpack.c.l.b16 %v296
      %v400 = vunpack.c.h.b16 %v296
      %v401 = vunpack.c.l.b16 %v297
      %v402 = vunpack.c.h.b16 %v297
      %v403 = vunpack.c.l.b16 %v298
      %v404 = vunpack.c.h.b16 %v298
      %v405 = vunpack.c.l.b16 %v299
      %v406 = vunpack.c.h.b16 %v299
      %v407 = vunpack.c.l.b16 %v300
      %v408 = vunpack.c.h.b16 %v300
      %v409 = vunpack.c.l.b16 %v301
      %v410 = vunpack.c.h.b16 %v301
      %v411 = vunpack.c.l.b16 %v302
      %v412 = vunpack.c.h.b16 %v302
      %v413 = vunpack.c.l.b16 %v303
      %v414 = vunpack.c.h.b16 %v303
      %v415 = vunpack.c.l.b16 %v304
      %v416 = vunpack.c.h.b16 %v304
      %v417 = vunpack.c.l.b16 %v305
      %v418 = vunpack.c.h.b16 %v305
      %v419 = vunpack.c.l.b16 %v306
      %v420 = vunpack.c.h.b16 %v306
      %v421 = vunpack.c.l.b16 %v307
      %v422 = vunpack.c.h.b16 %v307
      %v423 = vunpack.c.l.b16 %v308
      %v424 = vunpack.c.h.b16 %v308
      %v425 = vunpack.c.l.b16 %v309
      %v426 = vunpack.c.h.b16 %v309
      %v427 = vunpack.c.l.b16 %v310
      %v428 = vunpack.c.h.b16 %v310
      %v429 = vunpack.c.l.b16 %v311
      %v430 = vunpack.c.h.b16 %v311
      %v431 = vunpack.c.l.b16 %v312
      %v432 = vunpack.c.h.b16 %v312
      %v433 = vunpack.c.l.b16 %v313
      %v434 = vunpack.c.h.b16 %v313
      %v435 = vunpack.c.l.b16 %v314
      %v436 = vunpack.c.h.b16 %v314
      %v437 = vunpack.c.l.b16 %v315
      %v438 = vunpack.c.h.b16 %v315
      %v439 = vunpack.c.l.b16 %v316
      %v440 = vunpack.c.h.b16 %v316
      %v441 = vunpack.c.l.b16 %v317
      %v442 = vunpack.c.h.b16 %v317
      %v443 = vunpack.c.l.b16 %v318
      %v444 = vunpack.c.h.b16 %v318
      %v445 = vunpack.c.l.b16 %v319
      %v446 = vunpack.c.h.b16 %v319
      %v447 = vunpack.c.l.b16 %v320
      %v448 = vunpack.c.h.b16 %v320
      %v449 = vpack.c.b16 %v387, %v385
      %v450 = vpack.c.b16 %v388, %v386
      %v451 = vpack.c.b16 %v391, %v389
      %v452 = vpack.c.b16 %v392, %v390
      %v453 = vpack.c.b16 %v395, %v393
      %v454 = vpack.c.b16 %v396, %v394
      %v455 = vpack.c.b16 %v399, %v397
      %v456 = vpack.c.b16 %v400, %v398
      %v457 = vpack.c.b16 %v403, %v401
      %v458 = vpack.c.b16 %v404, %v402
      %v459 = vpack.c.b16 %v407, %v405
      %v460 = vpack.c.b16 %v408, %v406
      %v461 = vpack.c.b16 %v411, %v409
      %v462 = vpack.c.b16 %v412, %v410
      %v463 = vpack.c.b16 %v415, %v413
      %v464 = vpack.c.b16 %v416, %v414
      %v465 = vpack.c.b16 %v419, %v417
      %v466 = vpack.c.b16 %v420, %v418
      %v467 = vpack.c.b16 %v423, %v421
      %v468 = vpack.c.b16 %v424, %v422
      %v469 = vpack.c.b16 %v427, %v425
      %v470 = vpack.c.b16 %v428, %v426
      %v471 = vpack.c.b16 %v431, %v429
      %v472 = vpack.c.b16 %v432, %v430
      %v473 = vpack.c.b16 %v435, %v433
      %v474 = vpack.c.b16 %v436, %v434
      %v475 = vpack.c.b16 %v439, %v437
      %v476 = vpack.c.b16 %v440, %v438
      %v477 = vpack.c.b16 %v443, %v441
      %v478 = vpack.c.b16 %v444, %v442
      %v479 = vpack.c.b16 %v447, %v445
      %v480 = vpack.c.b16 %v448, %v446
      %v545 = vunpack.c.l.b16 %v321
      %v546 = vunpack.c.l.b16 %v322
      %v547 = vunpack.c.l.b16 %v323
      %v548 = vunpack.c.l.b16 %v324
      %v549 = vunpack.c.l.b16 %v325
      %v550 = vunpack.c.l.b16 %v326
      %v551 = vunpack.c.l.b16 %v327
      %v552 = vunpack.c.l.b16 %v328
      %v553 = vunpack.c.l.b16 %v329
      %v554 = vunpack.c.l.b16 %v330
      %v555 = vunpack.c.l.b16 %v331
      %v556 = vunpack.c.l.b16 %v332
      %v557 = vunpack.c.l.b16 %v333
      %v558 = vunpack.c.l.b16 %v334
      %v559 = vunpack.c.l.b16 %v335
      %v560 = vunpack.c.l.b16 %v336
      %v561 = vunpack.c.l.b16 %v337
      %v562 = vunpack.c.l.b16 %v338
      %v563 = vunpack.c.l.b16 %v339
      %v564 = vunpack.c.l.b16 %v340
      %v565 = vunpack.c.l.b16 %v341
      %v566 = vunpack.c.l.b16 %v342
      %v567 = vunpack.c.l.b16 %v343
      %v568 = vunpack.c.l.b16 %v344
      %v569 = vunpack.c.l.b16 %v345
      %v570 = vunpack.c.l.b16 %v346
      %v571 = vunpack.c.l.b16 %v347
      %v572 = vunpack.c.l.b16 %v348
      %v573 = vunpack.c.l.b16 %v349
      %v574 = vunpack.c.l.b16 %v350
      %v575 = vunpack.c.l.b16 %v351
      %v576 = vunpack.c.l.b16 %v352
      %v577 = vpack.c.b16 %v546, %v545
      %v578 = vpack.c.b16 %v548, %v547
      %v579 = vpack.c.b16 %v550, %v549
      %v580 = vpack.c.b16 %v552, %v551
      %v581 = vpack.c.b16 %v554, %v553
      %v582 = vpack.c.b16 %v556, %v555
      %v583 = vpack.c.b16 %v558, %v557
      %v584 = vpack.c.b16 %v560, %v559
      %v585 = vpack.c.b16 %v562, %v561
      %v586 = vpack.c.b16 %v564, %v563
      %v587 = vpack.c.b16 %v566, %v565
      %v588 = vpack.c.b16 %v568, %v567
      %v589 = vpack.c.b16 %v570, %v569
      %v590 = vpack.c.b16 %v572, %v571
      %v591 = vpack.c.b16 %v574, %v573
      %v592 = vpack.c.b16 %v576, %v575
      %609 = vmatpush.bf16.msra.mxu0 %v584
      %610 = vmatpush.bf16.msra.mxu0 %v583
      %611 = vmatpush.bf16.msra.mxu0 %v582
      %612 = vmatpush.bf16.msra.mxu0 %v581
      %613 = vmatpush.bf16.msra.mxu0 %v580
      %614 = vmatpush.bf16.msra.mxu0 %v579
      %615 = vmatpush.bf16.msra.mxu0 %v578
      %616 = vmatpush.bf16.msra.mxu0 %v577
      %617 = vmatmul.bf16.gmra.mxu0 %v449
      %v618 = vpop.f32.mrf.mxu0
      %v619 = vadd.f32 0.0, %v618
      %v620 = vpop.f32.mrf.mxu0
      %v621 = vadd.f32 0.0, %v620
      %622 = vmatmul.bf16.gmra.mxu0 %v451
      %v623 = vpop.f32.mrf.mxu0
      %v624 = vadd.f32 0.0, %v623
      %v625 = vpop.f32.mrf.mxu0
      %v626 = vadd.f32 0.0, %v625
      %627 = vmatmul.bf16.gmra.mxu0 %v453
      %v628 = vpop.f32.mrf.mxu0
      %v629 = vadd.f32 0.0, %v628
      %v630 = vpop.f32.mrf.mxu0
      %v631 = vadd.f32 0.0, %v630
      %632 = vmatmul.bf16.gmra.mxu0 %v455
      %v633 = vpop.f32.mrf.mxu0
      %v634 = vadd.f32 0.0, %v633
      %v635 = vpop.f32.mrf.mxu0
      %v636 = vadd.f32 0.0, %v635
      %637 = vmatmul.bf16.gmra.mxu0 %v457
      %v638 = vpop.f32.mrf.mxu0
      %v639 = vadd.f32 0.0, %v638
      %v640 = vpop.f32.mrf.mxu0
      %v641 = vadd.f32 0.0, %v640
      %642 = vmatmul.bf16.gmra.mxu0 %v459
      %v643 = vpop.f32.mrf.mxu0
      %v644 = vadd.f32 0.0, %v643
      %v645 = vpop.f32.mrf.mxu0
      %v646 = vadd.f32 0.0, %v645
      %647 = vmatmul.bf16.gmra.mxu0 %v461
      %v648 = vpop.f32.mrf.mxu0
      %v649 = vadd.f32 0.0, %v648
      %v650 = vpop.f32.mrf.mxu0
      %v651 = vadd.f32 0.0, %v650
      %652 = vmatmul.bf16.gmra.mxu0 %v463
      %v653 = vpop.f32.mrf.mxu0
      %v654 = vadd.f32 0.0, %v653
      %v655 = vpop.f32.mrf.mxu0
      %v656 = vadd.f32 0.0, %v655
      %657 = vmatmul.bf16.gmra.mxu0 %v465
      %v658 = vpop.f32.mrf.mxu0
      %v659 = vadd.f32 0.0, %v658
      %v660 = vpop.f32.mrf.mxu0
      %v661 = vadd.f32 0.0, %v660
      %662 = vmatmul.bf16.gmra.mxu0 %v467
      %v663 = vpop.f32.mrf.mxu0
      %v664 = vadd.f32 0.0, %v663
      %v665 = vpop.f32.mrf.mxu0
      %v666 = vadd.f32 0.0, %v665
      %667 = vmatmul.bf16.gmra.mxu0 %v469
      %v668 = vpop.f32.mrf.mxu0
      %v669 = vadd.f32 0.0, %v668
      %v670 = vpop.f32.mrf.mxu0
      %v671 = vadd.f32 0.0, %v670
      %672 = vmatmul.bf16.gmra.mxu0 %v471
      %v673 = vpop.f32.mrf.mxu0
      %v674 = vadd.f32 0.0, %v673
      %v675 = vpop.f32.mrf.mxu0
      %v676 = vadd.f32 0.0, %v675
      %677 = vmatmul.bf16.gmra.mxu0 %v473
      %v678 = vpop.f32.mrf.mxu0
      %v679 = vadd.f32 0.0, %v678
      %v680 = vpop.f32.mrf.mxu0
      %v681 = vadd.f32 0.0, %v680
      %682 = vmatmul.bf16.gmra.mxu0 %v475
      %v683 = vpop.f32.mrf.mxu0
      %v684 = vadd.f32 0.0, %v683
      %v685 = vpop.f32.mrf.mxu0
      %v686 = vadd.f32 0.0, %v685
      %687 = vmatmul.bf16.gmra.mxu0 %v477
      %v688 = vpop.f32.mrf.mxu0
      %v689 = vadd.f32 0.0, %v688
      %v690 = vpop.f32.mrf.mxu0
      %v691 = vadd.f32 0.0, %v690
      %692 = vmatmul.bf16.gmra.mxu0 %v479
      %v693 = vpop.f32.mrf.mxu0
      %v694 = vadd.f32 0.0, %v693
      %v695 = vpop.f32.mrf.mxu0
      %v696 = vadd.f32 0.0, %v695
      %697 = vdwg.mxu0
      %698 = vmatpush.bf16.msra.mxu0 %v592
      %699 = vmatpush.bf16.msra.mxu0 %v591
      %700 = vmatpush.bf16.msra.mxu0 %v590
      %701 = vmatpush.bf16.msra.mxu0 %v589
      %702 = vmatpush.bf16.msra.mxu0 %v588
      %703 = vmatpush.bf16.msra.mxu0 %v587
      %704 = vmatpush.bf16.msra.mxu0 %v586
      %705 = vmatpush.bf16.msra.mxu0 %v585
      %706 = vmatmul.bf16.gmra.mxu0 %v450
      %v707 = vpop.f32.mrf.mxu0
      %v708 = vadd.f32 %v619, %v707
      %v709 = vpop.f32.mrf.mxu0
      %v710 = vadd.f32 %v621, %v709
      %711 = vmatmul.bf16.gmra.mxu0 %v452
      %v712 = vpop.f32.mrf.mxu0
      %v713 = vadd.f32 %v624, %v712
      %v714 = vpop.f32.mrf.mxu0
      %v715 = vadd.f32 %v626, %v714
      %716 = vmatmul.bf16.gmra.mxu0 %v454
      %v717 = vpop.f32.mrf.mxu0
      %v718 = vadd.f32 %v629, %v717
      %v719 = vpop.f32.mrf.mxu0
      %v720 = vadd.f32 %v631, %v719
      %721 = vmatmul.bf16.gmra.mxu0 %v456
      %v722 = vpop.f32.mrf.mxu0
      %v723 = vadd.f32 %v634, %v722
      %v724 = vpop.f32.mrf.mxu0
      %v725 = vadd.f32 %v636, %v724
      %726 = vmatmul.bf16.gmra.mxu0 %v458
      %v727 = vpop.f32.mrf.mxu0
      %v728 = vadd.f32 %v639, %v727
      %v729 = vpop.f32.mrf.mxu0
      %v730 = vadd.f32 %v641, %v729
      %731 = vmatmul.bf16.gmra.mxu0 %v460
      %v732 = vpop.f32.mrf.mxu0
      %v733 = vadd.f32 %v644, %v732
      %v734 = vpop.f32.mrf.mxu0
      %v735 = vadd.f32 %v646, %v734
      %736 = vmatmul.bf16.gmra.mxu0 %v462
      %v737 = vpop.f32.mrf.mxu0
      %v738 = vadd.f32 %v649, %v737
      %v739 = vpop.f32.mrf.mxu0
      %v740 = vadd.f32 %v651, %v739
      %741 = vmatmul.bf16.gmra.mxu0 %v464
      %v742 = vpop.f32.mrf.mxu0
      %v743 = vadd.f32 %v654, %v742
      %v744 = vpop.f32.mrf.mxu0
      %v745 = vadd.f32 %v656, %v744
      %746 = vmatmul.bf16.gmra.mxu0 %v466
      %v747 = vpop.f32.mrf.mxu0
      %v748 = vadd.f32 %v659, %v747
      %v749 = vpop.f32.mrf.mxu0
      %v750 = vadd.f32 %v661, %v749
      %751 = vmatmul.bf16.gmra.mxu0 %v468
      %v752 = vpop.f32.mrf.mxu0
      %v753 = vadd.f32 %v664, %v752
      %v754 = vpop.f32.mrf.mxu0
      %v755 = vadd.f32 %v666, %v754
      %756 = vmatmul.bf16.gmra.mxu0 %v470
      %v757 = vpop.f32.mrf.mxu0
      %v758 = vadd.f32 %v669, %v757
      %v759 = vpop.f32.mrf.mxu0
      %v760 = vadd.f32 %v671, %v759
      %761 = vmatmul.bf16.gmra.mxu0 %v472
      %v762 = vpop.f32.mrf.mxu0
      %v763 = vadd.f32 %v674, %v762
      %v764 = vpop.f32.mrf.mxu0
      %v765 = vadd.f32 %v676, %v764
      %766 = vmatmul.bf16.gmra.mxu0 %v474
      %v767 = vpop.f32.mrf.mxu0
      %v768 = vadd.f32 %v679, %v767
      %v769 = vpop.f32.mrf.mxu0
      %v770 = vadd.f32 %v681, %v769
      %771 = vmatmul.bf16.gmra.mxu0 %v476
      %v772 = vpop.f32.mrf.mxu0
      %v773 = vadd.f32 %v684, %v772
      %v774 = vpop.f32.mrf.mxu0
      %v775 = vadd.f32 %v686, %v774
      %776 = vmatmul.bf16.gmra.mxu0 %v478
      %v777 = vpop.f32.mrf.mxu0
      %v778 = vadd.f32 %v689, %v777
      %v779 = vpop.f32.mrf.mxu0
      %v780 = vadd.f32 %v691, %v779
      %781 = vmatmul.bf16.gmra.mxu0 %v480
      %v782 = vpop.f32.mrf.mxu0
      %v783 = vadd.f32 %v694, %v782
      %v784 = vpop.f32.mrf.mxu0
      %v785 = vadd.f32 %v696, %v784
      %786 = vdwg.mxu0
      %v787 = vadd.f32 %v257, %v708
      %v788 = vadd.f32 %v258, %v710
      %v789 = vadd.f32 %v259, %v713
      %v790 = vadd.f32 %v260, %v715
      %v791 = vadd.f32 %v261, %v718
      %v792 = vadd.f32 %v262, %v720
      %v793 = vadd.f32 %v263, %v723
      %v794 = vadd.f32 %v264, %v725
      %v795 = vadd.f32 %v265, %v728
      %v796 = vadd.f32 %v266, %v730
      %v797 = vadd.f32 %v267, %v733
      %v798 = vadd.f32 %v268, %v735
      %v799 = vadd.f32 %v269, %v738
      %v800 = vadd.f32 %v270, %v740
      %v801 = vadd.f32 %v271, %v743
      %v802 = vadd.f32 %v272, %v745
      %v803 = vadd.f32 %v273, %v748
      %v804 = vadd.f32 %v274, %v750
      %v805 = vadd.f32 %v275, %v753
      %v806 = vadd.f32 %v276, %v755
      %v807 = vadd.f32 %v277, %v758
      %v808 = vadd.f32 %v278, %v760
      %v809 = vadd.f32 %v279, %v763
      %v810 = vadd.f32 %v280, %v765
      %v811 = vadd.f32 %v281, %v768
      %v812 = vadd.f32 %v282, %v770
      %v813 = vadd.f32 %v283, %v773
      %v814 = vadd.f32 %v284, %v775
      %v815 = vadd.f32 %v285, %v778
      %v816 = vadd.f32 %v286, %v780
      %v817 = vadd.f32 %v287, %v783
      %v818 = vadd.f32 %v288, %v785
      %819 = vst [vmem:[#allocation2] sm:$0xff] %v787
      %820 = vst [vmem:[#allocation2 + $0x8] sm:$0xff] %v788
      %821 = vst [vmem:[#allocation2 + $0x10] sm:$0xff] %v789
      %822 = vst [vmem:[#allocation2 + $0x18] sm:$0xff] %v790
      %823 = vst [vmem:[#allocation2 + $0x20] sm:$0xff] %v791
      %824 = vst [vmem:[#allocation2 + $0x28] sm:$0xff] %v792
      %825 = vst [vmem:[#allocation2 + $0x30] sm:$0xff] %v793
      %826 = vst [vmem:[#allocation2 + $0x38] sm:$0xff] %v794
      %827 = vst [vmem:[#allocation2 + $0x40] sm:$0xff] %v795
      %828 = vst [vmem:[#allocation2 + $0x48] sm:$0xff] %v796
      %829 = vst [vmem:[#allocation2 + $0x50] sm:$0xff] %v797
      %830 = vst [vmem:[#allocation2 + $0x58] sm:$0xff] %v798
      %831 = vst [vmem:[#allocation2 + $0x60] sm:$0xff] %v799
      %832 = vst [vmem:[#allocation2 + $0x68] sm:$0xff] %v800
      %833 = vst [vmem:[#allocation2 + $0x70] sm:$0xff] %v801
      %834 = vst [vmem:[#allocation2 + $0x78] sm:$0xff] %v802
      %835 = vst [vmem:[#allocation2 + $0x80] sm:$0xff] %v803
      %836 = vst [vmem:[#allocation2 + $0x88] sm:$0xff] %v804
      %837 = vst [vmem:[#allocation2 + $0x90] sm:$0xff] %v805
      %838 = vst [vmem:[#allocation2 + $0x98] sm:$0xff] %v806
      %839 = vst [vmem:[#allocation2 + $0xa0] sm:$0xff] %v807
      %840 = vst [vmem:[#allocation2 + $0xa8] sm:$0xff] %v808
      %841 = vst [vmem:[#allocation2 + $0xb0] sm:$0xff] %v809
      %842 = vst [vmem:[#allocation2 + $0xb8] sm:$0xff] %v810
      %843 = vst [vmem:[#allocation2 + $0xc0] sm:$0xff] %v811
      %844 = vst [vmem:[#allocation2 + $0xc8] sm:$0xff] %v812
      %845 = vst [vmem:[#allocation2 + $0xd0] sm:$0xff] %v813
      %846 = vst [vmem:[#allocation2 + $0xd8] sm:$0xff] %v814
      %847 = vst [vmem:[#allocation2 + $0xe0] sm:$0xff] %v815
      %848 = vst [vmem:[#allocation2 + $0xe8] sm:$0xff] %v816
      %849 = vst [vmem:[#allocation2 + $0xf0] sm:$0xff] %v817
      %850 = vst [vmem:[#allocation2 + $0xf8] sm:$0xff] %v818
      // Predicated region
      $region37: #{resnet_gen_forward.18} parent=31 // pred_check
        %p851 = pneg %p221
      $region38: #{resnet_gen_forward.18} parent=31 // pred_check_branch
        %853 = sbr.rel (%p851) target = $region40
      $region39: #{resnet_gen_forward.18} parent=31 // pred_region
        %v854 = vld [vmem:[#allocation2] sm:$0xff]
        %v855 = vld [vmem:[#allocation2 + $0x8] sm:$0xff]
        %v856 = vld [vmem:[#allocation2 + $0x10] sm:$0xff]
        %v857 = vld [vmem:[#allocation2 + $0x18] sm:$0xff]
        %v858 = vld [vmem:[#allocation2 + $0x20] sm:$0xff]
        %v859 = vld [vmem:[#allocation2 + $0x28] sm:$0xff]
        %v860 = vld [vmem:[#allocation2 + $0x30] sm:$0xff]
        %v861 = vld [vmem:[#allocation2 + $0x38] sm:$0xff]
        %v862 = vld [vmem:[#allocation2 + $0x40] sm:$0xff]
        %v863 = vld [vmem:[#allocation2 + $0x48] sm:$0xff]
        %v864 = vld [vmem:[#allocation2 + $0x50] sm:$0xff]
        %v865 = vld [vmem:[#allocation2 + $0x58] sm:$0xff]
        %v866 = vld [vmem:[#allocation2 + $0x60] sm:$0xff]
        %v867 = vld [vmem:[#allocation2 + $0x68] sm:$0xff]
        %v868 = vld [vmem:[#allocation2 + $0x70] sm:$0xff]
        %v869 = vld [vmem:[#allocation2 + $0x78] sm:$0xff]
        %v870 = vld [vmem:[#allocation2 + $0x80] sm:$0xff]
        %v871 = vld [vmem:[#allocation2 + $0x88] sm:$0xff]
        %v872 = vld [vmem:[#allocation2 + $0x90] sm:$0xff]
        %v873 = vld [vmem:[#allocation2 + $0x98] sm:$0xff]
        %v874 = vld [vmem:[#allocation2 + $0xa0] sm:$0xff]
        %v875 = vld [vmem:[#allocation2 + $0xa8] sm:$0xff]
        %v876 = vld [vmem:[#allocation2 + $0xb0] sm:$0xff]
        %v877 = vld [vmem:[#allocation2 + $0xb8] sm:$0xff]
        %v878 = vld [vmem:[#allocation2 + $0xc0] sm:$0xff]
        %v879 = vld [vmem:[#allocation2 + $0xc8] sm:$0xff]
        %v880 = vld [vmem:[#allocation2 + $0xd0] sm:$0xff]
        %v881 = vld [vmem:[#allocation2 + $0xd8] sm:$0xff]
        %v882 = vld [vmem:[#allocation2 + $0xe0] sm:$0xff]
        %v883 = vld [vmem:[#allocation2 + $0xe8] sm:$0xff]
        %v884 = vld [vmem:[#allocation2 + $0xf0] sm:$0xff]
        %v885 = vld [vmem:[#allocation2 + $0xf8] sm:$0xff]
        %v886 = vld [vmem:[%s2] sm:$0x1]
        %v888 = vperm.slane %v886, 0
        %v890 = vadd.f32 %v854, %v888
        %v891 = vadd.f32 %v855, %v888
        %v892 = vadd.f32 %v856, %v888
        %v893 = vadd.f32 %v857, %v888
        %v894 = vadd.f32 %v858, %v888
        %v895 = vadd.f32 %v859, %v888
        %v896 = vadd.f32 %v860, %v888
        %v897 = vadd.f32 %v861, %v888
        %v898 = vadd.f32 %v862, %v888
        %v899 = vadd.f32 %v863, %v888
        %v900 = vadd.f32 %v864, %v888
        %v901 = vadd.f32 %v865, %v888
        %v902 = vadd.f32 %v866, %v888
        %v903 = vadd.f32 %v867, %v888
        %v904 = vadd.f32 %v868, %v888
        %v905 = vadd.f32 %v869, %v888
        %v906 = vadd.f32 %v870, %v888
        %v907 = vadd.f32 %v871, %v888
        %v908 = vadd.f32 %v872, %v888
        %v909 = vadd.f32 %v873, %v888
        %v910 = vadd.f32 %v874, %v888
        %v911 = vadd.f32 %v875, %v888
        %v912 = vadd.f32 %v876, %v888
        %v913 = vadd.f32 %v877, %v888
        %v914 = vadd.f32 %v878, %v888
        %v915 = vadd.f32 %v879, %v888
        %v916 = vadd.f32 %v880, %v888
        %v917 = vadd.f32 %v881, %v888
        %v918 = vadd.f32 %v882, %v888
        %v919 = vadd.f32 %v883, %v888
        %v920 = vadd.f32 %v884, %v888
        %v921 = vadd.f32 %v885, %v888
        %v922 = vadd.f32 %v890, %v891
        %v923 = vadd.f32 %v922, %v892
        %v924 = vadd.f32 %v923, %v893
        %v925 = vadd.f32 %v924, %v894
        %v926 = vadd.f32 %v925, %v895
        %v927 = vadd.f32 %v926, %v896
        %v928 = vadd.f32 %v927, %v897
        %v929 = vadd.f32 %v928, %v898
        %v930 = vadd.f32 %v929, %v899
        %v931 = vadd.f32 %v930, %v900
        %v932 = vadd.f32 %v931, %v901
        %v933 = vadd.f32 %v932, %v902
        %v934 = vadd.f32 %v933, %v903
        %v935 = vadd.f32 %v934, %v904
        %v936 = vadd.f32 %v935, %v905
        %v937 = vadd.f32 %v936, %v906
        %v938 = vadd.f32 %v937, %v907
        %v939 = vadd.f32 %v938, %v908
        %v940 = vadd.f32 %v939, %v909
        %v941 = vadd.f32 %v940, %v910
        %v942 = vadd.f32 %v941, %v911
        %v943 = vadd.f32 %v942, %v912
        %v944 = vadd.f32 %v943, %v913
        %v945 = vadd.f32 %v944, %v914
        %v946 = vadd.f32 %v945, %v915
        %v947 = vadd.f32 %v946, %v916
        %v948 = vadd.f32 %v947, %v917
        %v949 = vadd.f32 %v948, %v918
        %v950 = vadd.f32 %v949, %v919
        %v951 = vadd.f32 %v950, %v920
        %v952 = vadd.f32 %v951, %v921
        %v953 = vrot.slane %v952, 4
        %v954 = vadd.f32 %v952, %v953
        %v955 = vrot.slane %v954, 2
        %v956 = vadd.f32 %v954, %v955
        %v957 = vrot.slane %v956, 1
        %v958 = vadd.f32 %v956, %v957
        %v959 = vrcp.pop 256.0
        %v960 = vmul.f32 256.0, %v959
        %v961 = vsub.f32 1.0, %v960
        %v962 = vmul.f32 %v959, %v961
        %v963 = vadd.f32 %v959, %v962
        %vm964 = vweird.f32 %v959
        %v965 = vsel %vm964, %v959, %v963
        %v966 = vmul.f32 %v958, %v965
        %v967 = vsub.f32 %v890, %v966
        %v968 = vsub.f32 %v891, %v966
        %v969 = vsub.f32 %v892, %v966
        %v970 = vsub.f32 %v893, %v966
        %v971 = vsub.f32 %v894, %v966
        %v972 = vsub.f32 %v895, %v966
        %v973 = vsub.f32 %v896, %v966
        %v974 = vsub.f32 %v897, %v966
        %v975 = vsub.f32 %v898, %v966
        %v976 = vsub.f32 %v899, %v966
        %v977 = vsub.f32 %v900, %v966
        %v978 = vsub.f32 %v901, %v966
        %v979 = vsub.f32 %v902, %v966
        %v980 = vsub.f32 %v903, %v966
        %v981 = vsub.f32 %v904, %v966
        %v982 = vsub.f32 %v905, %v966
        %v983 = vsub.f32 %v906, %v966
        %v984 = vsub.f32 %v907, %v966
        %v985 = vsub.f32 %v908, %v966
        %v986 = vsub.f32 %v909, %v966
        %v987 = vsub.f32 %v910, %v966
        %v988 = vsub.f32 %v911, %v966
        %v989 = vsub.f32 %v912, %v966
        %v990 = vsub.f32 %v913, %v966
        %v991 = vsub.f32 %v914, %v966
        %v992 = vsub.f32 %v915, %v966
        %v993 = vsub.f32 %v916, %v966
        %v994 = vsub.f32 %v917, %v966
        %v995 = vsub.f32 %v918, %v966
        %v996 = vsub.f32 %v919, %v966
        %v997 = vsub.f32 %v920, %v966
        %v998 = vsub.f32 %v921, %v966
        %v999 = vmul.f32 %v967, %v967
        %v1000 = vmul.f32 %v968, %v968
        %v1001 = vmul.f32 %v969, %v969
        %v1002 = vmul.f32 %v970, %v970
        %v1003 = vmul.f32 %v971, %v971
        %v1004 = vmul.f32 %v972, %v972
        %v1005 = vmul.f32 %v973, %v973
        %v1006 = vmul.f32 %v974, %v974
        %v1007 = vmul.f32 %v975, %v975
        %v1008 = vmul.f32 %v976, %v976
        %v1009 = vmul.f32 %v977, %v977
        %v1010 = vmul.f32 %v978, %v978
        %v1011 = vmul.f32 %v979, %v979
        %v1012 = vmul.f32 %v980, %v980
        %v1013 = vmul.f32 %v981, %v981
        %v1014 = vmul.f32 %v982, %v982
        %v1015 = vmul.f32 %v983, %v983
        %v1016 = vmul.f32 %v984, %v984
        %v1017 = vmul.f32 %v985, %v985
        %v1018 = vmul.f32 %v986, %v986
        %v1019 = vmul.f32 %v987, %v987
        %v1020 = vmul.f32 %v988, %v988
        %v1021 = vmul.f32 %v989, %v989
        %v1022 = vmul.f32 %v990, %v990
        %v1023 = vmul.f32 %v991, %v991
        %v1024 = vmul.f32 %v992, %v992
        %v1025 = vmul.f32 %v993, %v993
        %v1026 = vmul.f32 %v994, %v994
        %v1027 = vmul.f32 %v995, %v995
        %v1028 = vmul.f32 %v996, %v996
        %v1029 = vmul.f32 %v997, %v997
        %v1030 = vmul.f32 %v998, %v998
        %v1031 = vadd.f32 %v999, %v1000
        %v1032 = vadd.f32 %v1031, %v1001
        %v1033 = vadd.f32 %v1032, %v1002
        %v1034 = vadd.f32 %v1033, %v1003
        %v1035 = vadd.f32 %v1034, %v1004
        %v1036 = vadd.f32 %v1035, %v1005
        %v1037 = vadd.f32 %v1036, %v1006
        %v1038 = vadd.f32 %v1037, %v1007
        %v1039 = vadd.f32 %v1038, %v1008
        %v1040 = vadd.f32 %v1039, %v1009
        %v1041 = vadd.f32 %v1040, %v1010
        %v1042 = vadd.f32 %v1041, %v1011
        %v1043 = vadd.f32 %v1042, %v1012
        %v1044 = vadd.f32 %v1043, %v1013
        %v1045 = vadd.f32 %v1044, %v1014
        %v1046 = vadd.f32 %v1045, %v1015
        %v1047 = vadd.f32 %v1046, %v1016
        %v1048 = vadd.f32 %v1047, %v1017
        %v1049 = vadd.f32 %v1048, %v1018
        %v1050 = vadd.f32 %v1049, %v1019
        %v1051 = vadd.f32 %v1050, %v1020
        %v1052 = vadd.f32 %v1051, %v1021
        %v1053 = vadd.f32 %v1052, %v1022
        %v1054 = vadd.f32 %v1053, %v1023
        %v1055 = vadd.f32 %v1054, %v1024
        %v1056 = vadd.f32 %v1055, %v1025
        %v1057 = vadd.f32 %v1056, %v1026
        %v1058 = vadd.f32 %v1057, %v1027
        %v1059 = vadd.f32 %v1058, %v1028
        %v1060 = vadd.f32 %v1059, %v1029
        %v1061 = vadd.f32 %v1060, %v1030
        %v1062 = vrot.slane %v1061, 4
        %v1063 = vadd.f32 %v1061, %v1062
        %v1064 = vrot.slane %v1063, 2
        %v1065 = vadd.f32 %v1063, %v1064
        %v1066 = vrot.slane %v1065, 1
        %v1067 = vadd.f32 %v1065, %v1066
        %v1068 = vmul.f32 %v1067, %v965
        %v1069 = vadd.f32 %v1068, 1e-05
        %v1070 = vrsqrt.pop %v1069
        %v1071 = vmul.f32 %v1070, %v1069
        %v1072 = vmul.f32 %v1071, %v1070
        %v1073 = vmul.f32 0.5, %v1072
        %v1074 = vsub.f32 1.5, %v1073
        %v1075 = vmul.f32 %v1070, %v1074
        %vm1076 = vweird.f32 %v1069
        %vm1077 = vweird.f32 %v1070
        %vm1078 = vmor %vm1076, %vm1077
        %v1079 = vsel %vm1078, %v1070, %v1075
        %v1080 = vmul.f32 %v967, %v1079
        %v1081 = vmul.f32 %v968, %v1079
        %v1082 = vmul.f32 %v969, %v1079
        %v1083 = vmul.f32 %v970, %v1079
        %v1084 = vmul.f32 %v971, %v1079
        %v1085 = vmul.f32 %v972, %v1079
        %v1086 = vmul.f32 %v973, %v1079
        %v1087 = vmul.f32 %v974, %v1079
        %v1088 = vmul.f32 %v975, %v1079
        %v1089 = vmul.f32 %v976, %v1079
        %v1090 = vmul.f32 %v977, %v1079
        %v1091 = vmul.f32 %v978, %v1079
        %v1092 = vmul.f32 %v979, %v1079
        %v1093 = vmul.f32 %v980, %v1079
        %v1094 = vmul.f32 %v981, %v1079
        %v1095 = vmul.f32 %v982, %v1079
        %v1096 = vmul.f32 %v983, %v1079
        %v1097 = vmul.f32 %v984, %v1079
        %v1098 = vmul.f32 %v985, %v1079
        %v1099 = vmul.f32 %v986, %v1079
        %v1100 = vmul.f32 %v987, %v1079
        %v1101 = vmul.f32 %v988, %v1079
        %v1102 = vmul.f32 %v989, %v1079
        %v1103 = vmul.f32 %v990, %v1079
        %v1104 = vmul.f32 %v991, %v1079
        %v1105 = vmul.f32 %v992, %v1079
        %v1106 = vmul.f32 %v993, %v1079
        %v1107 = vmul.f32 %v994, %v1079
        %v1108 = vmul.f32 %v995, %v1079
        %v1109 = vmul.f32 %v996, %v1079
        %v1110 = vmul.f32 %v997, %v1079
        %v1111 = vmul.f32 %v998, %v1079
        %v1112 = vmax.f32 %v1080, 0.0
        %v1113 = vmax.f32 %v1081, 0.0
        %v1114 = vmax.f32 %v1082, 0.0
        %v1115 = vmax.f32 %v1083, 0.0
        %v1116 = vmax.f32 %v1084, 0.0
        %v1117 = vmax.f32 %v1085, 0.0
        %v1118 = vmax.f32 %v1086, 0.0
        %v1119 = vmax.f32 %v1087, 0.0
        %v1120 = vmax.f32 %v1088, 0.0
        %v1121 = vmax.f32 %v1089, 0.0
        %v1122 = vmax.f32 %v1090, 0.0
        %v1123 = vmax.f32 %v1091, 0.0
        %v1124 = vmax.f32 %v1092, 0.0
        %v1125 = vmax.f32 %v1093, 0.0
        %v1126 = vmax.f32 %v1094, 0.0
        %v1127 = vmax.f32 %v1095, 0.0
        %v1128 = vmax.f32 %v1096, 0.0
        %v1129 = vmax.f32 %v1097, 0.0
        %v1130 = vmax.f32 %v1098, 0.0
        %v1131 = vmax.f32 %v1099, 0.0
        %v1132 = vmax.f32 %v1100, 0.0
        %v1133 = vmax.f32 %v1101, 0.0
        %v1134 = vmax.f32 %v1102, 0.0
        %v1135 = vmax.f32 %v1103, 0.0
        %v1136 = vmax.f32 %v1104, 0.0
        %v1137 = vmax.f32 %v1105, 0.0
        %v1138 = vmax.f32 %v1106, 0.0
        %v1139 = vmax.f32 %v1107, 0.0
        %v1140 = vmax.f32 %v1108, 0.0
        %v1141 = vmax.f32 %v1109, 0.0
        %v1142 = vmax.f32 %v1110, 0.0
        %v1143 = vmax.f32 %v1111, 0.0
        %1144 = vst [vmem:[%s220] sm:$0xff] %v1112
        %1145 = vst [vmem:[%s220 + $0x8] sm:$0xff] %v1113
        %1146 = vst [vmem:[%s220 + $0x10] sm:$0xff] %v1114
        %1147 = vst [vmem:[%s220 + $0x18] sm:$0xff] %v1115
        %1148 = vst [vmem:[%s220 + $0x20] sm:$0xff] %v1116
        %1149 = vst [vmem:[%s220 + $0x28] sm:$0xff] %v1117
        %1150 = vst [vmem:[%s220 + $0x30] sm:$0xff] %v1118
        %1151 = vst [vmem:[%s220 + $0x38] sm:$0xff] %v1119
        %1152 = vst [vmem:[%s220 + $0x40] sm:$0xff] %v1120
        %1153 = vst [vmem:[%s220 + $0x48] sm:$0xff] %v1121
        %1154 = vst [vmem:[%s220 + $0x50] sm:$0xff] %v1122
        %1155 = vst [vmem:[%s220 + $0x58] sm:$0xff] %v1123
        %1156 = vst [vmem:[%s220 + $0x60] sm:$0xff] %v1124
        %1157 = vst [vmem:[%s220 + $0x68] sm:$0xff] %v1125
        %1158 = vst [vmem:[%s220 + $0x70] sm:$0xff] %v1126
        %1159 = vst [vmem:[%s220 + $0x78] sm:$0xff] %v1127
        %1160 = vst [vmem:[%s220 + $0x80] sm:$0xff] %v1128
        %1161 = vst [vmem:[%s220 + $0x88] sm:$0xff] %v1129
        %1162 = vst [vmem:[%s220 + $0x90] sm:$0xff] %v1130
        %1163 = vst [vmem:[%s220 + $0x98] sm:$0xff] %v1131
        %1164 = vst [vmem:[%s220 + $0xa0] sm:$0xff] %v1132
        %1165 = vst [vmem:[%s220 + $0xa8] sm:$0xff] %v1133
        %1166 = vst [vmem:[%s220 + $0xb0] sm:$0xff] %v1134
        %1167 = vst [vmem:[%s220 + $0xb8] sm:$0xff] %v1135
        %1168 = vst [vmem:[%s220 + $0xc0] sm:$0xff] %v1136
        %1169 = vst [vmem:[%s220 + $0xc8] sm:$0xff] %v1137
        %1170 = vst [vmem:[%s220 + $0xd0] sm:$0xff] %v1138
        %1171 = vst [vmem:[%s220 + $0xd8] sm:$0xff] %v1139
        %1172 = vst [vmem:[%s220 + $0xe0] sm:$0xff] %v1140
        %1173 = vst [vmem:[%s220 + $0xe8] sm:$0xff] %v1141
        %1174 = vst [vmem:[%s220 + $0xf0] sm:$0xff] %v1142
        %1175 = vst [vmem:[%s220 + $0xf8] sm:$0xff] %v1143
      $region40: #{resnet_gen_forward.18} parent=31 // pred_fallthru
        _
      %p1176 = scmp.lt.s32.totalorder %s18, 1
      %s1177 = scalar_select %p1176, %s18, 1
      %s1178 = smul.addr %s1177, 32
      %s1179 = smul.addr %s1178, 8
      %s1180 = scalar_lea.vmem %s3, %s1179
      // Predicated region
      $region41: #{resnet_gen_forward.18} parent=31 // pred_check
        %p1181 = pneg %p119
      $region42: #{resnet_gen_forward.18} parent=31 // pred_check_branch
        %1183 = sbr.rel (%p1181) target = $region44
      $region43: #{resnet_gen_forward.18} parent=31 // pred_region
        _
      $region44: #{resnet_gen_forward.18} parent=31 // pred_fallthru
        _
    $region32: #{resnet_gen_forward.18} parent=5 // pred_fallthru
      _
    %p1184 = scmp.le.s32.totalorder 2, %s9
    // Predicated region
    $region45: #{resnet_gen_forward.18} parent=5 // pred_check
      %p1185 = pneg %p1184
    $region46: #{resnet_gen_forward.18} parent=5 // pred_check_branch
      %1187 = sbr.rel (%p1185) target = $region48
    $region47: #{resnet_gen_forward.18} parent=5 // pred_region
      %s1188 = ssub.s32 %s9, 2
      // Predicated region
      $region49: #{resnet_gen_forward.18} parent=47 // pred_check
        %p1189 = pneg %p125
      $region50: #{resnet_gen_forward.18} parent=47 // pred_check_branch
        %1191 = sbr.rel (%p1189) target = $region52
      $region51: #{resnet_gen_forward.18} parent=47 // pred_region
        %p1192 = scmp.lt.s32.totalorder %s20, 1
        %s1193 = scalar_select %p1192, %s20, 1
        %s1194 = smul.addr %s1193, 32
        %s1195 = smul.addr %s1194, 8
        %s1196 = scalar_lea.vmem %s3, %s1195
      $region52: #{resnet_gen_forward.18} parent=47 // pred_fallthru
        _
    $region48: #{resnet_gen_forward.18} parent=5 // pred_fallthru
      _
  $region6: #{resnet_gen_forward.18} parent=0 // loop_footer
    %s13 = sadd.s32 1, %s9
  $region7: #{resnet_gen_forward.18} parent=0 // loop_footer_branch
    %8 = sbr.rel target = $region3
  $region8: #{resnet_gen_forward.18} parent=0 // loop_exit
    _

// kernel: resnet_gen_forward.19
$region0: #{resnet_gen_forward.19}
  #allocation0 [shape = 'u32[]', space=smem, size = 0x4, offset = 0x4, fixed_abs, tag = 'smem constant byte address 0x4 - core index']
  #allocation1 [shape = 'u32[72,128]{1,0:T(1,128)}', space=vmem, size = 0x9000, scoped, tag = 'internal scratch']
  #allocation2 [shape = 'f32[256,128]{1,0:T(8,128)}', space=vmem, size = 0x20000, scoped, tag = 'scratch operand']
  %s0 = inlined_call_operand.vmem [shape: bf16[2,256,768], index: 0, kind: input, shape index: {}]
  %s1 = inlined_call_operand.vmem [shape: bf16[768,128], index: 1, kind: input, shape index: {}]
  %s2 = inlined_call_operand.vmem [shape: f32[1,128], index: 2, kind: input, shape index: {}]
  %s3 = inlined_call_operand.vmem [shape: f32[2,256,128], index: 3, kind: output, shape index: {}]
  %s4 = sld [smem:[#allocation0]]
  $region53: #{resnet_gen_forward.19} parent=0
    _
  %s6 = ssub.s32 1, %s4
  %s7 = scalar_select 0, %s6, %s4
  loop: start=0, step=1, limit=4
  $region2: #{resnet_gen_forward.19} parent=0 // loop_pre_header
    _
  $region3: #{resnet_gen_forward.19} parent=0 // loop_header
    %s9 = sphi 0, %s13
    %p10 = scmp.ge.s32.totalorder %s9, 4
    %s16 = sphi 0, %s28
    %s17 = sphi 0, %s24
    %s18 = sphi 0, %s16
    %s19 = sphi 0, %s17
    %s20 = sphi 0, %s18
    %s21 = sphi 0, %s19
    %s33 = sphi 0, %s35
    %s36 = sphi 0, %s33
    %s37 = sphi 0, %s36
    %s53 = sphi 0, %s37
    %s59 = sphi 0, %s61
    %s62 = sphi 0, %s59
    %s63 = sphi 0, %s62
    %s79 = sphi 0, %s63
    %s83 = sphi 0, %s83
    %s85 = sphi 0, %s83
    %s86 = sphi 0, %s85
    %s100 = sphi 0, %s86
    %s106 = sphi 0, %s108
    %s109 = sphi 0, %s106
    %s110 = sphi 0, %s109
    %s126 = sphi 0, %s110
  $region4: #{resnet_gen_forward.19} parent=0 // loop_header_branch
    %12 = sbr.rel (%p10) target = $region8
  $region5: #{resnet_gen_forward.19} parent=0 // loop_body
    %s14 = ssub.s32 %s9, 1
    %s15 = ssub.s32 %s9, 2
    %s22 = sadd.s32 1, %s17
    %p23 = scmp.ge.s32.totalorder %s22, 1
    %s24 = scalar_select %p23, 0, %s22
    %s25 = sadd.s32 1, %s16
    %s26 = scalar_select %p23, %s25, %s16
    %p27 = scmp.ge.s32.totalorder %s26, 2
    %s28 = scalar_select %p27, 0, %s26
    %s29 = ssub.s32 %s16, %s28
    %s30 = ssub.s32 %s17, %s24
    %s31 = sor.u32 %s29, %s30
    %p32 = scmp.eq.s32.totalorder %s31, 0
    %s34 = sadd.s32 %s33, 1
    %s35 = scalar_select %p32, %s33, %s34
    %p38 = pneg %p32
    %p39 = scmp.eq.s32.totalorder %s9, 1
    %p40 = por %p38, %p39
    %p41 = scmp.ne.s32.totalorder %s33, %s36
    %p42 = scmp.eq.s32.totalorder %s9, 0
    %p43 = por %p41, %p42
    %p44 = scmp.ne.s32.totalorder %s33, %s36
    %p45 = scmp.eq.s32.totalorder %s14, 1
    %p46 = por %p44, %p45
    %p47 = scmp.ne.s32.totalorder %s36, %s37
    %p48 = scmp.eq.s32.totalorder %s14, 0
    %p49 = por %p47, %p48
    %p50 = scmp.ne.s32.totalorder %s36, %s37
    %p51 = scmp.eq.s32.totalorder %s15, 1
    %p52 = por %p50, %p51
    %p54 = scmp.ne.s32.totalorder %s37, %s53
    %p55 = scmp.eq.s32.totalorder %s15, 0
    %p56 = por %p54, %p55
    %s57 = ssub.s32 %s17, %s24
    %p58 = scmp.eq.s32.totalorder %s57, 0
    %s60 = sadd.s32 %s59, 1
    %s61 = scalar_select %p58, %s59, %s60
    %p64 = pneg %p58
    %p65 = scmp.eq.s32.totalorder %s9, 1
    %p66 = por %p64, %p65
    %p67 = scmp.ne.s32.totalorder %s59, %s62
    %p68 = scmp.eq.s32.totalorder %s9, 0
    %p69 = por %p67, %p68
    %p70 = scmp.ne.s32.totalorder %s59, %s62
    %p71 = scmp.eq.s32.totalorder %s14, 1
    %p72 = por %p70, %p71
    %p73 = scmp.ne.s32.totalorder %s62, %s63
    %p74 = scmp.eq.s32.totalorder %s14, 0
    %p75 = por %p73, %p74
    %p76 = scmp.ne.s32.totalorder %s62, %s63
    %p77 = scmp.eq.s32.totalorder %s15, 1
    %p78 = por %p76, %p77
    %p80 = scmp.ne.s32.totalorder %s63, %s79
    %p81 = scmp.eq.s32.totalorder %s15, 0
    %p82 = por %p80, %p81
    %s84 = sadd.s32 %s83, 1
    %p87 = scmp.eq.s32.totalorder %s9, 1
    %p88 = scmp.ne.s32.totalorder %s83, %s85
    %p89 = scmp.eq.s32.totalorder %s9, 0
    %p90 = por %p88, %p89
    %p91 = scmp.ne.s32.totalorder %s83, %s85
    %p92 = scmp.eq.s32.totalorder %s14, 1
    %p93 = por %p91, %p92
    %p94 = scmp.ne.s32.totalorder %s85, %s86
    %p95 = scmp.eq.s32.totalorder %s14, 0
    %p96 = por %p94, %p95
    %p97 = scmp.ne.s32.totalorder %s85, %s86
    %p98 = scmp.eq.s32.totalorder %s15, 1
    %p99 = por %p97, %p98
    %p101 = scmp.ne.s32.totalorder %s86, %s100
    %p102 = scmp.eq.s32.totalorder %s15, 0
    %p103 = por %p101, %p102
    %s104 = ssub.s32 %s16, %s28
    %p105 = scmp.eq.s32.totalorder %s104, 0
    %s107 = sadd.s32 %s106, 1
    %s108 = scalar_select %p105, %s106, %s107
    %p111 = pneg %p105
    %p112 = scmp.eq.s32.totalorder %s9, 1
    %p113 = por %p111, %p112
    %p114 = scmp.ne.s32.totalorder %s106, %s109
    %p115 = scmp.eq.s32.totalorder %s9, 0
    %p116 = por %p114, %p115
    %p117 = scmp.ne.s32.totalorder %s106, %s109
    %p118 = scmp.eq.s32.totalorder %s14, 1
    %p119 = por %p117, %p118
    %p120 = scmp.ne.s32.totalorder %s109, %s110
    %p121 = scmp.eq.s32.totalorder %s14, 0
    %p122 = por %p120, %p121
    %p123 = scmp.ne.s32.totalorder %s109, %s110
    %p124 = scmp.eq.s32.totalorder %s15, 1
    %p125 = por %p123, %p124
    %p127 = scmp.ne.s32.totalorder %s110, %s126
    %p128 = scmp.eq.s32.totalorder %s15, 0
    %p129 = por %p127, %p128
    %p130 = scmp.le.s32.totalorder 1, %s9
    %p131 = scmp.lt.s32.totalorder %s9, 3
    %p132 = pnand %p130, %p131
    %p133 = pneg %p132
    // Predicated region
    $region9: #{resnet_gen_forward.19} parent=5 // pred_check
      _
    $region10: #{resnet_gen_forward.19} parent=5 // pred_check_branch
      %135 = sbr.rel (%p132) target = $region12
    $region11: #{resnet_gen_forward.19} parent=5 // pred_region
      %s136 = ssub.s32 %s9, 1
      // Predicated region
      $region13: #{resnet_gen_forward.19} parent=11 // pred_check
        %p137 = pneg %p75
      $region14: #{resnet_gen_forward.19} parent=11 // pred_check_branch
        %139 = sbr.rel (%p137) target = $region16
      $region15: #{resnet_gen_forward.19} parent=11 // pred_region
        %s140 = smul.u32 96, %s19
        %p141 = scmp.lt.s32.totalorder %s140, 95
        %s142 = scalar_select %p141, %s140, 95
        %s143 = smul.addr %s142, 4
        %s144 = scalar_lea.vmem %s1, %s143
        %s145 = smul.u32 96, %s19
      $region16: #{resnet_gen_forward.19} parent=11 // pred_fallthru
        _
      // Predicated region
      $region17: #{resnet_gen_forward.19} parent=11 // pred_check
        %p146 = pneg %p96
      $region18: #{resnet_gen_forward.19} parent=11 // pred_check_branch
        %148 = sbr.rel (%p146) target = $region20
      $region19: #{resnet_gen_forward.19} parent=11 // pred_region
        _
      $region20: #{resnet_gen_forward.19} parent=11 // pred_fallthru
        _
    $region12: #{resnet_gen_forward.19} parent=5 // pred_fallthru
      _
    %p149 = scmp.lt.s32.totalorder %s9, 2
    // Predicated region
    $region21: #{resnet_gen_forward.19} parent=5 // pred_check
      %p150 = pneg %p149
    $region22: #{resnet_gen_forward.19} parent=5 // pred_check_branch
      %152 = sbr.rel (%p150) target = $region24
    $region23: #{resnet_gen_forward.19} parent=5 // pred_region
      // Predicated region
      $region25: #{resnet_gen_forward.19} parent=23 // pred_check
        %p153 = pneg %p43
      $region26: #{resnet_gen_forward.19} parent=23 // pred_check_branch
        %155 = sbr.rel (%p153) target = $region28
      $region27: #{resnet_gen_forward.19} parent=23 // pred_region
        %s156 = smul.u32 6, %s17
        %p157 = scmp.lt.s32.totalorder %s16, 1
        %s158 = scalar_select %p157, %s16, 1
        %p159 = scmp.lt.s32.totalorder %s156, 5
        %s160 = scalar_select %p159, %s156, 5
        %s161 = smul.addr %s158, 192
        %s162 = sadd.s32 %s160, %s161
        %s163 = smul.addr %s162, 4
        %s164 = scalar_lea.vmem %s0, %s163
        %s165 = smul.u32 6, %s17
      $region28: #{resnet_gen_forward.19} parent=23 // pred_fallthru
        _
    $region24: #{resnet_gen_forward.19} parent=5 // pred_fallthru
      _
    %p166 = scmp.le.s32.totalorder 1, %s9
    %p167 = scmp.lt.s32.totalorder %s9, 3
    %p168 = pnand %p166, %p167
    %p169 = pneg %p168
    // Predicated region
    $region29: #{resnet_gen_forward.19} parent=5 // pred_check
      _
    $region30: #{resnet_gen_forward.19} parent=5 // pred_check_branch
      %171 = sbr.rel (%p168) target = $region32
    $region31: #{resnet_gen_forward.19} parent=5 // pred_region
      %s172 = ssub.s32 %s9, 1
      %s173 = smul.u32 6, %s19
      %p174 = scmp.lt.s32.totalorder %s18, 1
      %s175 = scalar_select %p174, %s18, 1
      %p176 = scmp.lt.s32.totalorder %s173, 5
      %s177 = scalar_select %p176, %s173, 5
      %s178 = smul.addr %s175, 192
      %s179 = sadd.s32 %s177, %s178
      %s180 = smul.addr %s179, 4
      %s181 = scalar_lea.vmem %s0, %s180
      %p182 = pneg %p49
      %p183 = pneg %p46
      %s184 = smul.u32 96, %s19
      %p185 = scmp.lt.s32.totalorder %s184, 95
      %s186 = scalar_select %p185, %s184, 95
      %s187 = smul.addr %s186, 4
      %s188 = scalar_lea.vmem %s1, %s187
      %p189 = pneg %p75
      %p190 = pneg %p72
      %p191 = pneg %p96
      %p192 = pneg %p93
      %p193 = pneg %p122
      %p194 = pneg %p119
      %p195 = scmp.lt.s32.totalorder %s18, 1
      %s196 = scalar_select %p195, %s18, 1
      %s197 = smul.addr %s196, 32
      %s198 = smul.addr %s197, 8
      %s199 = scalar_lea.vmem %s3, %s198
      %s200 = smul.u32 6, %s19
      %p201 = scmp.lt.s32.totalorder %s18, 1
      %s202 = scalar_select %p201, %s18, 1
      %p203 = scmp.lt.s32.totalorder %s200, 5
      %s204 = scalar_select %p203, %s200, 5
      %s205 = smul.addr %s202, 192
      %s206 = sadd.s32 %s204, %s205
      %s207 = smul.addr %s206, 4
      %s208 = scalar_lea.vmem %s0, %s207
      %s209 = smul.u32 6, %s19
      %s210 = smul.u32 96, %s19
      %p211 = scmp.lt.s32.totalorder %s210, 95
      %s212 = scalar_select %p211, %s210, 95
      %s213 = smul.addr %s212, 4
      %s214 = scalar_lea.vmem %s1, %s213
      %s215 = smul.u32 96, %s19
      %p216 = scmp.lt.s32.totalorder %s18, 1
      %s217 = scalar_select %p216, %s18, 1
      %s218 = smul.addr %s217, 32
      %s219 = smul.addr %s218, 8
      %s220 = scalar_lea.vmem %s3, %s219
      %p221 = scmp.eq.s32.totalorder %s19, 0
      // Predicated region
      $region33: #{resnet_gen_forward.19} parent=31 // pred_check
        %p222 = pneg %p221
      $region34: #{resnet_gen_forward.19} parent=31 // pred_check_branch
        %224 = sbr.rel (%p222) target = $region36
      $region35: #{resnet_gen_forward.19} parent=31 // pred_region
        %225 = vst [vmem:[#allocation2] sm:$0xff] 0.0
        %226 = vst [vmem:[#allocation2 + $0x8] sm:$0xff] 0.0
        %227 = vst [vmem:[#allocation2 + $0x10] sm:$0xff] 0.0
        %228 = vst [vmem:[#allocation2 + $0x18] sm:$0xff] 0.0
        %229 = vst [vmem:[#allocation2 + $0x20] sm:$0xff] 0.0
        %230 = vst [vmem:[#allocation2 + $0x28] sm:$0xff] 0.0
        %231 = vst [vmem:[#allocation2 + $0x30] sm:$0xff] 0.0
        %232 = vst [vmem:[#allocation2 + $0x38] sm:$0xff] 0.0
        %233 = vst [vmem:[#allocation2 + $0x40] sm:$0xff] 0.0
        %234 = vst [vmem:[#allocation2 + $0x48] sm:$0xff] 0.0
        %235 = vst [vmem:[#allocation2 + $0x50] sm:$0xff] 0.0
        %236 = vst [vmem:[#allocation2 + $0x58] sm:$0xff] 0.0
        %237 = vst [vmem:[#allocation2 + $0x60] sm:$0xff] 0.0
        %238 = vst [vmem:[#allocation2 + $0x68] sm:$0xff] 0.0
        %239 = vst [vmem:[#allocation2 + $0x70] sm:$0xff] 0.0
        %240 = vst [vmem:[#allocation2 + $0x78] sm:$0xff] 0.0
        %241 = vst [vmem:[#allocation2 + $0x80] sm:$0xff] 0.0
        %242 = vst [vmem:[#allocation2 + $0x88] sm:$0xff] 0.0
        %243 = vst [vmem:[#allocation2 + $0x90] sm:$0xff] 0.0
        %244 = vst [vmem:[#allocation2 + $0x98] sm:$0xff] 0.0
        %245 = vst [vmem:[#allocation2 + $0xa0] sm:$0xff] 0.0
        %246 = vst [vmem:[#allocation2 + $0xa8] sm:$0xff] 0.0
        %247 = vst [vmem:[#allocation2 + $0xb0] sm:$0xff] 0.0
        %248 = vst [vmem:[#allocation2 + $0xb8] sm:$0xff] 0.0
        %249 = vst [vmem:[#allocation2 + $0xc0] sm:$0xff] 0.0
        %250 = vst [vmem:[#allocation2 + $0xc8] sm:$0xff] 0.0
        %251 = vst [vmem:[#allocation2 + $0xd0] sm:$0xff] 0.0
        %252 = vst [vmem:[#allocation2 + $0xd8] sm:$0xff] 0.0
        %253 = vst [vmem:[#allocation2 + $0xe0] sm:$0xff] 0.0
        %254 = vst [vmem:[#allocation2 + $0xe8] sm:$0xff] 0.0
        %255 = vst [vmem:[#allocation2 + $0xf0] sm:$0xff] 0.0
        %256 = vst [vmem:[#allocation2 + $0xf8] sm:$0xff] 0.0
      $region36: #{resnet_gen_forward.19} parent=31 // pred_fallthru
        _
      %v257 = vld [vmem:[#allocation2] sm:$0xff]
      %v258 = vld [vmem:[#allocation2 + $0x8] sm:$0xff]
      %v259 = vld [vmem:[#allocation2 + $0x10] sm:$0xff]
      %v260 = vld [vmem:[#allocation2 + $0x18] sm:$0xff]
      %v261 = vld [vmem:[#allocation2 + $0x20] sm:$0xff]
      %v262 = vld [vmem:[#allocation2 + $0x28] sm:$0xff]
      %v263 = vld [vmem:[#allocation2 + $0x30] sm:$0xff]
      %v264 = vld [vmem:[#allocation2 + $0x38] sm:$0xff]
      %v265 = vld [vmem:[#allocation2 + $0x40] sm:$0xff]
      %v266 = vld [vmem:[#allocation2 + $0x48] sm:$0xff]
      %v267 = vld [vmem:[#allocation2 + $0x50] sm:$0xff]
      %v268 = vld [vmem:[#allocation2 + $0x58] sm:$0xff]
      %v269 = vld [vmem:[#allocation2 + $0x60] sm:$0xff]
      %v270 = vld [vmem:[#allocation2 + $0x68] sm:$0xff]
      %v271 = vld [vmem:[#allocation2 + $0x70] sm:$0xff]
      %v272 = vld [vmem:[#allocation2 + $0x78] sm:$0xff]
      %v273 = vld [vmem:[#allocation2 + $0x80] sm:$0xff]
      %v274 = vld [vmem:[#allocation2 + $0x88] sm:$0xff]
      %v275 = vld [vmem:[#allocation2 + $0x90] sm:$0xff]
      %v276 = vld [vmem:[#allocation2 + $0x98] sm:$0xff]
      %v277 = vld [vmem:[#allocation2 + $0xa0] sm:$0xff]
      %v278 = vld [vmem:[#allocation2 + $0xa8] sm:$0xff]
      %v279 = vld [vmem:[#allocation2 + $0xb0] sm:$0xff]
      %v280 = vld [vmem:[#allocation2 + $0xb8] sm:$0xff]
      %v281 = vld [vmem:[#allocation2 + $0xc0] sm:$0xff]
      %v282 = vld [vmem:[#allocation2 + $0xc8] sm:$0xff]
      %v283 = vld [vmem:[#allocation2 + $0xd0] sm:$0xff]
      %v284 = vld [vmem:[#allocation2 + $0xd8] sm:$0xff]
      %v285 = vld [vmem:[#allocation2 + $0xe0] sm:$0xff]
      %v286 = vld [vmem:[#allocation2 + $0xe8] sm:$0xff]
      %v287 = vld [vmem:[#allocation2 + $0xf0] sm:$0xff]
      %v288 = vld [vmem:[#allocation2 + $0xf8] sm:$0xff]
      %v289 = vld [vmem:[%s208] sm:$0xff]
      %v290 = vld [vmem:[%s208 + $0x8] sm:$0xff]
      %v291 = vld [vmem:[%s208 + $0x10] sm:$0xff]
      %v292 = vld [vmem:[%s208 + $0x18] sm:$0xff]
      %v293 = vld [vmem:[%s208 + $0x20] sm:$0xff]
      %v294 = vld [vmem:[%s208 + $0x28] sm:$0xff]
      %v295 = vld [vmem:[%s208 + $0x30] sm:$0xff]
      %v296 = vld [vmem:[%s208 + $0x38] sm:$0xff]
      %v297 = vld [vmem:[%s208 + $0x40] sm:$0xff]
      %v298 = vld [vmem:[%s208 + $0x48] sm:$0xff]
      %v299 = vld [vmem:[%s208 + $0x50] sm:$0xff]
      %v300 = vld [vmem:[%s208 + $0x58] sm:$0xff]
      %v301 = vld [vmem:[%s208 + $0x60] sm:$0xff]
      %v302 = vld [vmem:[%s208 + $0x68] sm:$0xff]
      %v303 = vld [vmem:[%s208 + $0x70] sm:$0xff]
      %v304 = vld [vmem:[%s208 + $0x78] sm:$0xff]
      %v305 = vld [vmem:[%s208 + $0x80] sm:$0xff]
      %v306 = vld [vmem:[%s208 + $0x88] sm:$0xff]
      %v307 = vld [vmem:[%s208 + $0x90] sm:$0xff]
      %v308 = vld [vmem:[%s208 + $0x98] sm:$0xff]
      %v309 = vld [vmem:[%s208 + $0xa0] sm:$0xff]
      %v310 = vld [vmem:[%s208 + $0xa8] sm:$0xff]
      %v311 = vld [vmem:[%s208 + $0xb0] sm:$0xff]
      %v312 = vld [vmem:[%s208 + $0xb8] sm:$0xff]
      %v313 = vld [vmem:[%s208 + $0xc0] sm:$0xff]
      %v314 = vld [vmem:[%s208 + $0xc8] sm:$0xff]
      %v315 = vld [vmem:[%s208 + $0xd0] sm:$0xff]
      %v316 = vld [vmem:[%s208 + $0xd8] sm:$0xff]
      %v317 = vld [vmem:[%s208 + $0xe0] sm:$0xff]
      %v318 = vld [vmem:[%s208 + $0xe8] sm:$0xff]
      %v319 = vld [vmem:[%s208 + $0xf0] sm:$0xff]
      %v320 = vld [vmem:[%s208 + $0xf8] sm:$0xff]
      %v321 = vld [vmem:[%s208 + $0x100] sm:$0xff]
      %v322 = vld [vmem:[%s208 + $0x108] sm:$0xff]
      %v323 = vld [vmem:[%s208 + $0x110] sm:$0xff]
      %v324 = vld [vmem:[%s208 + $0x118] sm:$0xff]
      %v325 = vld [vmem:[%s208 + $0x120] sm:$0xff]
      %v326 = vld [vmem:[%s208 + $0x128] sm:$0xff]
      %v327 = vld [vmem:[%s208 + $0x130] sm:$0xff]
      %v328 = vld [vmem:[%s208 + $0x138] sm:$0xff]
      %v329 = vld [vmem:[%s208 + $0x140] sm:$0xff]
      %v330 = vld [vmem:[%s208 + $0x148] sm:$0xff]
      %v331 = vld [vmem:[%s208 + $0x150] sm:$0xff]
      %v332 = vld [vmem:[%s208 + $0x158] sm:$0xff]
      %v333 = vld [vmem:[%s208 + $0x160] sm:$0xff]
      %v334 = vld [vmem:[%s208 + $0x168] sm:$0xff]
      %v335 = vld [vmem:[%s208 + $0x170] sm:$0xff]
      %v336 = vld [vmem:[%s208 + $0x178] sm:$0xff]
      %v337 = vld [vmem:[%s208 + $0x180] sm:$0xff]
      %v338 = vld [vmem:[%s208 + $0x188] sm:$0xff]
      %v339 = vld [vmem:[%s208 + $0x190] sm:$0xff]
      %v340 = vld [vmem:[%s208 + $0x198] sm:$0xff]
      %v341 = vld [vmem:[%s208 + $0x1a0] sm:$0xff]
      %v342 = vld [vmem:[%s208 + $0x1a8] sm:$0xff]
      %v343 = vld [vmem:[%s208 + $0x1b0] sm:$0xff]
      %v344 = vld [vmem:[%s208 + $0x1b8] sm:$0xff]
      %v345 = vld [vmem:[%s208 + $0x1c0] sm:$0xff]
      %v346 = vld [vmem:[%s208 + $0x1c8] sm:$0xff]
      %v347 = vld [vmem:[%s208 + $0x1d0] sm:$0xff]
      %v348 = vld [vmem:[%s208 + $0x1d8] sm:$0xff]
      %v349 = vld [vmem:[%s208 + $0x1e0] sm:$0xff]
      %v350 = vld [vmem:[%s208 + $0x1e8] sm:$0xff]
      %v351 = vld [vmem:[%s208 + $0x1f0] sm:$0xff]
      %v352 = vld [vmem:[%s208 + $0x1f8] sm:$0xff]
      %v353 = vld [vmem:[%s208 + $0x200] sm:$0xff]
      %v354 = vld [vmem:[%s208 + $0x208] sm:$0xff]
      %v355 = vld [vmem:[%s208 + $0x210] sm:$0xff]
      %v356 = vld [vmem:[%s208 + $0x218] sm:$0xff]
      %v357 = vld [vmem:[%s208 + $0x220] sm:$0xff]
      %v358 = vld [vmem:[%s208 + $0x228] sm:$0xff]
      %v359 = vld [vmem:[%s208 + $0x230] sm:$0xff]
      %v360 = vld [vmem:[%s208 + $0x238] sm:$0xff]
      %v361 = vld [vmem:[%s208 + $0x240] sm:$0xff]
      %v362 = vld [vmem:[%s208 + $0x248] sm:$0xff]
      %v363 = vld [vmem:[%s208 + $0x250] sm:$0xff]
      %v364 = vld [vmem:[%s208 + $0x258] sm:$0xff]
      %v365 = vld [vmem:[%s208 + $0x260] sm:$0xff]
      %v366 = vld [vmem:[%s208 + $0x268] sm:$0xff]
      %v367 = vld [vmem:[%s208 + $0x270] sm:$0xff]
      %v368 = vld [vmem:[%s208 + $0x278] sm:$0xff]
      %v369 = vld [vmem:[%s208 + $0x280] sm:$0xff]
      %v370 = vld [vmem:[%s208 + $0x288] sm:$0xff]
      %v371 = vld [vmem:[%s208 + $0x290] sm:$0xff]
      %v372 = vld [vmem:[%s208 + $0x298] sm:$0xff]
      %v373 = vld [vmem:[%s208 + $0x2a0] sm:$0xff]
      %v374 = vld [vmem:[%s208 + $0x2a8] sm:$0xff]
      %v375 = vld [vmem:[%s208 + $0x2b0] sm:$0xff]
      %v376 = vld [vmem:[%s208 + $0x2b8] sm:$0xff]
      %v377 = vld [vmem:[%s208 + $0x2c0] sm:$0xff]
      %v378 = vld [vmem:[%s208 + $0x2c8] sm:$0xff]
      %v379 = vld [vmem:[%s208 + $0x2d0] sm:$0xff]
      %v380 = vld [vmem:[%s208 + $0x2d8] sm:$0xff]
      %v381 = vld [vmem:[%s208 + $0x2e0] sm:$0xff]
      %v382 = vld [vmem:[%s208 + $0x2e8] sm:$0xff]
      %v383 = vld [vmem:[%s208 + $0x2f0] sm:$0xff]
      %v384 = vld [vmem:[%s208 + $0x2f8] sm:$0xff]
      %v385 = vld [vmem:[%s214] sm:$0xf]
      %v386 = vld [vmem:[%s214 + $0x4] sm:$0xf]
      %v387 = vld [vmem:[%s214 + $0x8] sm:$0xf]
      %v388 = vld [vmem:[%s214 + $0xc] sm:$0xf]
      %v389 = vld [vmem:[%s214 + $0x10] sm:$0xf]
      %v390 = vld [vmem:[%s214 + $0x14] sm:$0xf]
      %v391 = vld [vmem:[%s214 + $0x18] sm:$0xf]
      %v392 = vld [vmem:[%s214 + $0x1c] sm:$0xf]
      %v393 = vld [vmem:[%s214 + $0x20] sm:$0xf]
      %v394 = vld [vmem:[%s214 + $0x24] sm:$0xf]
      %v395 = vld [vmem:[%s214 + $0x28] sm:$0xf]
      %v396 = vld [vmem:[%s214 + $0x2c] sm:$0xf]
      %v397 = vld [vmem:[%s214 + $0x30] sm:$0xf]
      %v398 = vld [vmem:[%s214 + $0x34] sm:$0xf]
      %v399 = vld [vmem:[%s214 + $0x38] sm:$0xf]
      %v400 = vld [vmem:[%s214 + $0x3c] sm:$0xf]
      %v401 = vld [vmem:[%s214 + $0x40] sm:$0xf]
      %v402 = vld [vmem:[%s214 + $0x44] sm:$0xf]
      %v403 = vld [vmem:[%s214 + $0x48] sm:$0xf]
      %v404 = vld [vmem:[%s214 + $0x4c] sm:$0xf]
      %v405 = vld [vmem:[%s214 + $0x50] sm:$0xf]
      %v406 = vld [vmem:[%s214 + $0x54] sm:$0xf]
      %v407 = vld [vmem:[%s214 + $0x58] sm:$0xf]
      %v408 = vld [vmem:[%s214 + $0x5c] sm:$0xf]
      %v409 = vld [vmem:[%s214 + $0x60] sm:$0xf]
      %v410 = vld [vmem:[%s214 + $0x64] sm:$0xf]
      %v411 = vld [vmem:[%s214 + $0x68] sm:$0xf]
      %v412 = vld [vmem:[%s214 + $0x6c] sm:$0xf]
      %v413 = vld [vmem:[%s214 + $0x70] sm:$0xf]
      %v414 = vld [vmem:[%s214 + $0x74] sm:$0xf]
      %v415 = vld [vmem:[%s214 + $0x78] sm:$0xf]
      %v416 = vld [vmem:[%s214 + $0x7c] sm:$0xf]
      %v417 = vld [vmem:[%s214 + $0x80] sm:$0xf]
      %v418 = vld [vmem:[%s214 + $0x84] sm:$0xf]
      %v419 = vld [vmem:[%s214 + $0x88] sm:$0xf]
      %v420 = vld [vmem:[%s214 + $0x8c] sm:$0xf]
      %v421 = vld [vmem:[%s214 + $0x90] sm:$0xf]
      %v422 = vld [vmem:[%s214 + $0x94] sm:$0xf]
      %v423 = vld [vmem:[%s214 + $0x98] sm:$0xf]
      %v424 = vld [vmem:[%s214 + $0x9c] sm:$0xf]
      %v425 = vld [vmem:[%s214 + $0xa0] sm:$0xf]
      %v426 = vld [vmem:[%s214 + $0xa4] sm:$0xf]
      %v427 = vld [vmem:[%s214 + $0xa8] sm:$0xf]
      %v428 = vld [vmem:[%s214 + $0xac] sm:$0xf]
      %v429 = vld [vmem:[%s214 + $0xb0] sm:$0xf]
      %v430 = vld [vmem:[%s214 + $0xb4] sm:$0xf]
      %v431 = vld [vmem:[%s214 + $0xb8] sm:$0xf]
      %v432 = vld [vmem:[%s214 + $0xbc] sm:$0xf]
      %v433 = vld [vmem:[%s214 + $0xc0] sm:$0xf]
      %v434 = vld [vmem:[%s214 + $0xc4] sm:$0xf]
      %v435 = vld [vmem:[%s214 + $0xc8] sm:$0xf]
      %v436 = vld [vmem:[%s214 + $0xcc] sm:$0xf]
      %v437 = vld [vmem:[%s214 + $0xd0] sm:$0xf]
      %v438 = vld [vmem:[%s214 + $0xd4] sm:$0xf]
      %v439 = vld [vmem:[%s214 + $0xd8] sm:$0xf]
      %v440 = vld [vmem:[%s214 + $0xdc] sm:$0xf]
      %v441 = vld [vmem:[%s214 + $0xe0] sm:$0xf]
      %v442 = vld [vmem:[%s214 + $0xe4] sm:$0xf]
      %v443 = vld [vmem:[%s214 + $0xe8] sm:$0xf]
      %v444 = vld [vmem:[%s214 + $0xec] sm:$0xf]
      %v445 = vld [vmem:[%s214 + $0xf0] sm:$0xf]
      %v446 = vld [vmem:[%s214 + $0xf4] sm:$0xf]
      %v447 = vld [vmem:[%s214 + $0xf8] sm:$0xf]
      %v448 = vld [vmem:[%s214 + $0xfc] sm:$0xf]
      %v449 = vld [vmem:[%s214 + $0x100] sm:$0xf]
      %v450 = vld [vmem:[%s214 + $0x104] sm:$0xf]
      %v451 = vld [vmem:[%s214 + $0x108] sm:$0xf]
      %v452 = vld [vmem:[%s214 + $0x10c] sm:$0xf]
      %v453 = vld [vmem:[%s214 + $0x110] sm:$0xf]
      %v454 = vld [vmem:[%s214 + $0x114] sm:$0xf]
      %v455 = vld [vmem:[%s214 + $0x118] sm:$0xf]
      %v456 = vld [vmem:[%s214 + $0x11c] sm:$0xf]
      %v457 = vld [vmem:[%s214 + $0x120] sm:$0xf]
      %v458 = vld [vmem:[%s214 + $0x124] sm:$0xf]
      %v459 = vld [vmem:[%s214 + $0x128] sm:$0xf]
      %v460 = vld [vmem:[%s214 + $0x12c] sm:$0xf]
      %v461 = vld [vmem:[%s214 + $0x130] sm:$0xf]
      %v462 = vld [vmem:[%s214 + $0x134] sm:$0xf]
      %v463 = vld [vmem:[%s214 + $0x138] sm:$0xf]
      %v464 = vld [vmem:[%s214 + $0x13c] sm:$0xf]
      %v465 = vld [vmem:[%s214 + $0x140] sm:$0xf]
      %v466 = vld [vmem:[%s214 + $0x144] sm:$0xf]
      %v467 = vld [vmem:[%s214 + $0x148] sm:$0xf]
      %v468 = vld [vmem:[%s214 + $0x14c] sm:$0xf]
      %v469 = vld [vmem:[%s214 + $0x150] sm:$0xf]
      %v470 = vld [vmem:[%s214 + $0x154] sm:$0xf]
      %v471 = vld [vmem:[%s214 + $0x158] sm:$0xf]
      %v472 = vld [vmem:[%s214 + $0x15c] sm:$0xf]
      %v473 = vld [vmem:[%s214 + $0x160] sm:$0xf]
      %v474 = vld [vmem:[%s214 + $0x164] sm:$0xf]
      %v475 = vld [vmem:[%s214 + $0x168] sm:$0xf]
      %v476 = vld [vmem:[%s214 + $0x16c] sm:$0xf]
      %v477 = vld [vmem:[%s214 + $0x170] sm:$0xf]
      %v478 = vld [vmem:[%s214 + $0x174] sm:$0xf]
      %v479 = vld [vmem:[%s214 + $0x178] sm:$0xf]
      %v480 = vld [vmem:[%s214 + $0x17c] sm:$0xf]
      %v577 = vunpack.c.l.b16 %v289
      %v578 = vunpack.c.h.b16 %v289
      %v579 = vunpack.c.l.b16 %v290
      %v580 = vunpack.c.h.b16 %v290
      %v581 = vunpack.c.l.b16 %v291
      %v582 = vunpack.c.h.b16 %v291
      %v583 = vunpack.c.l.b16 %v292
      %v584 = vunpack.c.h.b16 %v292
      %v585 = vunpack.c.l.b16 %v293
      %v586 = vunpack.c.h.b16 %v293
      %v587 = vunpack.c.l.b16 %v294
      %v588 = vunpack.c.h.b16 %v294
      %v589 = vunpack.c.l.b16 %v295
      %v590 = vunpack.c.h.b16 %v295
      %v591 = vunpack.c.l.b16 %v296
      %v592 = vunpack.c.h.b16 %v296
      %v593 = vunpack.c.l.b16 %v297
      %v594 = vunpack.c.h.b16 %v297
      %v595 = vunpack.c.l.b16 %v298
      %v596 = vunpack.c.h.b16 %v298
      %v597 = vunpack.c.l.b16 %v299
      %v598 = vunpack.c.h.b16 %v299
      %v599 = vunpack.c.l.b16 %v300
      %v600 = vunpack.c.h.b16 %v300
      %v601 = vunpack.c.l.b16 %v301
      %v602 = vunpack.c.h.b16 %v301
      %v603 = vunpack.c.l.b16 %v302
      %v604 = vunpack.c.h.b16 %v302
      %v605 = vunpack.c.l.b16 %v303
      %v606 = vunpack.c.h.b16 %v303
      %v607 = vunpack.c.l.b16 %v304
      %v608 = vunpack.c.h.b16 %v304
      %v609 = vunpack.c.l.b16 %v305
      %v610 = vunpack.c.h.b16 %v305
      %v611 = vunpack.c.l.b16 %v306
      %v612 = vunpack.c.h.b16 %v306
      %v613 = vunpack.c.l.b16 %v307
      %v614 = vunpack.c.h.b16 %v307
      %v615 = vunpack.c.l.b16 %v308
      %v616 = vunpack.c.h.b16 %v308
      %v617 = vunpack.c.l.b16 %v309
      %v618 = vunpack.c.h.b16 %v309
      %v619 = vunpack.c.l.b16 %v310
      %v620 = vunpack.c.h.b16 %v310
      %v621 = vunpack.c.l.b16 %v311
      %v622 = vunpack.c.h.b16 %v311
      %v623 = vunpack.c.l.b16 %v312
      %v624 = vunpack.c.h.b16 %v312
      %v625 = vunpack.c.l.b16 %v313
      %v626 = vunpack.c.h.b16 %v313
      %v627 = vunpack.c.l.b16 %v314
      %v628 = vunpack.c.h.b16 %v314
      %v629 = vunpack.c.l.b16 %v315
      %v630 = vunpack.c.h.b16 %v315
      %v631 = vunpack.c.l.b16 %v316
      %v632 = vunpack.c.h.b16 %v316
      %v633 = vunpack.c.l.b16 %v317
      %v634 = vunpack.c.h.b16 %v317
      %v635 = vunpack.c.l.b16 %v318
      %v636 = vunpack.c.h.b16 %v318
      %v637 = vunpack.c.l.b16 %v319
      %v638 = vunpack.c.h.b16 %v319
      %v639 = vunpack.c.l.b16 %v320
      %v640 = vunpack.c.h.b16 %v320
      %v641 = vunpack.c.l.b16 %v321
      %v642 = vunpack.c.h.b16 %v321
      %v643 = vunpack.c.l.b16 %v322
      %v644 = vunpack.c.h.b16 %v322
      %v645 = vunpack.c.l.b16 %v323
      %v646 = vunpack.c.h.b16 %v323
      %v647 = vunpack.c.l.b16 %v324
      %v648 = vunpack.c.h.b16 %v324
      %v649 = vunpack.c.l.b16 %v325
      %v650 = vunpack.c.h.b16 %v325
      %v651 = vunpack.c.l.b16 %v326
      %v652 = vunpack.c.h.b16 %v326
      %v653 = vunpack.c.l.b16 %v327
      %v654 = vunpack.c.h.b16 %v327
      %v655 = vunpack.c.l.b16 %v328
      %v656 = vunpack.c.h.b16 %v328
      %v657 = vunpack.c.l.b16 %v329
      %v658 = vunpack.c.h.b16 %v329
      %v659 = vunpack.c.l.b16 %v330
      %v660 = vunpack.c.h.b16 %v330
      %v661 = vunpack.c.l.b16 %v331
      %v662 = vunpack.c.h.b16 %v331
      %v663 = vunpack.c.l.b16 %v332
      %v664 = vunpack.c.h.b16 %v332
      %v665 = vunpack.c.l.b16 %v333
      %v666 = vunpack.c.h.b16 %v333
      %v667 = vunpack.c.l.b16 %v334
      %v668 = vunpack.c.h.b16 %v334
      %v669 = vunpack.c.l.b16 %v335
      %v670 = vunpack.c.h.b16 %v335
      %v671 = vunpack.c.l.b16 %v336
      %v672 = vunpack.c.h.b16 %v336
      %v673 = vunpack.c.l.b16 %v337
      %v674 = vunpack.c.h.b16 %v337
      %v675 = vunpack.c.l.b16 %v338
      %v676 = vunpack.c.h.b16 %v338
      %v677 = vunpack.c.l.b16 %v339
      %v678 = vunpack.c.h.b16 %v339
      %v679 = vunpack.c.l.b16 %v340
      %v680 = vunpack.c.h.b16 %v340
      %v681 = vunpack.c.l.b16 %v341
      %v682 = vunpack.c.h.b16 %v341
      %v683 = vunpack.c.l.b16 %v342
      %v684 = vunpack.c.h.b16 %v342
      %v685 = vunpack.c.l.b16 %v343
      %v686 = vunpack.c.h.b16 %v343
      %v687 = vunpack.c.l.b16 %v344
      %v688 = vunpack.c.h.b16 %v344
      %v689 = vunpack.c.l.b16 %v345
      %v690 = vunpack.c.h.b16 %v345
      %v691 = vunpack.c.l.b16 %v346
      %v692 = vunpack.c.h.b16 %v346
      %v693 = vunpack.c.l.b16 %v347
      %v694 = vunpack.c.h.b16 %v347
      %v695 = vunpack.c.l.b16 %v348
      %v696 = vunpack.c.h.b16 %v348
      %v697 = vunpack.c.l.b16 %v349
      %v698 = vunpack.c.h.b16 %v349
      %v699 = vunpack.c.l.b16 %v350
      %v700 = vunpack.c.h.b16 %v350
      %v701 = vunpack.c.l.b16 %v351
      %v702 = vunpack.c.h.b16 %v351
      %v703 = vunpack.c.l.b16 %v352
      %v704 = vunpack.c.h.b16 %v352
      %v705 = vunpack.c.l.b16 %v353
      %v706 = vunpack.c.h.b16 %v353
      %v707 = vunpack.c.l.b16 %v354
      %v708 = vunpack.c.h.b16 %v354
      %v709 = vunpack.c.l.b16 %v355
      %v710 = vunpack.c.h.b16 %v355
      %v711 = vunpack.c.l.b16 %v356
      %v712 = vunpack.c.h.b16 %v356
      %v713 = vunpack.c.l.b16 %v357
      %v714 = vunpack.c.h.b16 %v357
      %v715 = vunpack.c.l.b16 %v358
      %v716 = vunpack.c.h.b16 %v358
      %v717 = vunpack.c.l.b16 %v359
      %v718 = vunpack.c.h.b16 %v359
      %v719 = vunpack.c.l.b16 %v360
      %v720 = vunpack.c.h.b16 %v360
      %v721 = vunpack.c.l.b16 %v361
      %v722 = vunpack.c.h.b16 %v361
      %v723 = vunpack.c.l.b16 %v362
      %v724 = vunpack.c.h.b16 %v362
      %v725 = vunpack.c.l.b16 %v363
      %v726 = vunpack.c.h.b16 %v363
      %v727 = vunpack.c.l.b16 %v364
      %v728 = vunpack.c.h.b16 %v364
      %v729 = vunpack.c.l.b16 %v365
      %v730 = vunpack.c.h.b16 %v365
      %v731 = vunpack.c.l.b16 %v366
      %v732 = vunpack.c.h.b16 %v366
      %v733 = vunpack.c.l.b16 %v367
      %v734 = vunpack.c.h.b16 %v367
      %v735 = vunpack.c.l.b16 %v368
      %v736 = vunpack.c.h.b16 %v368
      %v737 = vunpack.c.l.b16 %v369
      %v738 = vunpack.c.h.b16 %v369
      %v739 = vunpack.c.l.b16 %v370
      %v740 = vunpack.c.h.b16 %v370
      %v741 = vunpack.c.l.b16 %v371
      %v742 = vunpack.c.h.b16 %v371
      %v743 = vunpack.c.l.b16 %v372
      %v744 = vunpack.c.h.b16 %v372
      %v745 = vunpack.c.l.b16 %v373
      %v746 = vunpack.c.h.b16 %v373
      %v747 = vunpack.c.l.b16 %v374
      %v748 = vunpack.c.h.b16 %v374
      %v749 = vunpack.c.l.b16 %v375
      %v750 = vunpack.c.h.b16 %v375
      %v751 = vunpack.c.l.b16 %v376
      %v752 = vunpack.c.h.b16 %v376
      %v753 = vunpack.c.l.b16 %v377
      %v754 = vunpack.c.h.b16 %v377
      %v755 = vunpack.c.l.b16 %v378
      %v756 = vunpack.c.h.b16 %v378
      %v757 = vunpack.c.l.b16 %v379
      %v758 = vunpack.c.h.b16 %v379
      %v759 = vunpack.c.l.b16 %v380
      %v760 = vunpack.c.h.b16 %v380
      %v761 = vunpack.c.l.b16 %v381
      %v762 = vunpack.c.h.b16 %v381
      %v763 = vunpack.c.l.b16 %v382
      %v764 = vunpack.c.h.b16 %v382
      %v765 = vunpack.c.l.b16 %v383
      %v766 = vunpack.c.h.b16 %v383
      %v767 = vunpack.c.l.b16 %v384
      %v768 = vunpack.c.h.b16 %v384
      %v769 = vpack.c.b16 %v583, %v577
      %v770 = vpack.c.b16 %v584, %v578
      %v771 = vpack.c.b16 %v585, %v579
      %v772 = vpack.c.b16 %v586, %v580
      %v773 = vpack.c.b16 %v587, %v581
      %v774 = vpack.c.b16 %v588, %v582
      %v775 = vpack.c.b16 %v595, %v589
      %v776 = vpack.c.b16 %v596, %v590
      %v777 = vpack.c.b16 %v597, %v591
      %v778 = vpack.c.b16 %v598, %v592
      %v779 = vpack.c.b16 %v599, %v593
      %v780 = vpack.c.b16 %v600, %v594
      %v781 = vpack.c.b16 %v607, %v601
      %v782 = vpack.c.b16 %v608, %v602
      %v783 = vpack.c.b16 %v609, %v603
      %v784 = vpack.c.b16 %v610, %v604
      %v785 = vpack.c.b16 %v611, %v605
      %v786 = vpack.c.b16 %v612, %v606
      %v787 = vpack.c.b16 %v619, %v613
      %v788 = vpack.c.b16 %v620, %v614
      %v789 = vpack.c.b16 %v621, %v615
      %v790 = vpack.c.b16 %v622, %v616
      %v791 = vpack.c.b16 %v623, %v617
      %v792 = vpack.c.b16 %v624, %v618
      %v793 = vpack.c.b16 %v631, %v625
      %v794 = vpack.c.b16 %v632, %v626
      %v795 = vpack.c.b16 %v633, %v627
      %v796 = vpack.c.b16 %v634, %v628
      %v797 = vpack.c.b16 %v635, %v629
      %v798 = vpack.c.b16 %v636, %v630
      %v799 = vpack.c.b16 %v643, %v637
      %v800 = vpack.c.b16 %v644, %v638
      %v801 = vpack.c.b16 %v645, %v639
      %v802 = vpack.c.b16 %v646, %v640
      %v803 = vpack.c.b16 %v647, %v641
      %v804 = vpack.c.b16 %v648, %v642
      %v805 = vpack.c.b16 %v655, %v649
      %v806 = vpack.c.b16 %v656, %v650
      %v807 = vpack.c.b16 %v657, %v651
      %v808 = vpack.c.b16 %v658, %v652
      %v809 = vpack.c.b16 %v659, %v653
      %v810 = vpack.c.b16 %v660, %v654
      %v811 = vpack.c.b16 %v667, %v661
      %v812 = vpack.c.b16 %v668, %v662
      %v813 = vpack.c.b16 %v669, %v663
      %v814 = vpack.c.b16 %v670, %v664
      %v815 = vpack.c.b16 %v671, %v665
      %v816 = vpack.c.b16 %v672, %v666
      %v817 = vpack.c.b16 %v679, %v673
      %v818 = vpack.c.b16 %v680, %v674
      %v819 = vpack.c.b16 %v681, %v675
      %v820 = vpack.c.b16 %v682, %v676
      %v821 = vpack.c.b16 %v683, %v677
      %v822 = vpack.c.b16 %v684, %v678
      %v823 = vpack.c.b16 %v691, %v685
      %v824 = vpack.c.b16 %v692, %v686
      %v825 = vpack.c.b16 %v693, %v687
      %v826 = vpack.c.b16 %v694, %v688
      %v827 = vpack.c.b16 %v695, %v689
      %v828 = vpack.c.b16 %v696, %v690
      %v829 = vpack.c.b16 %v703, %v697
      %v830 = vpack.c.b16 %v704, %v698
      %v831 = vpack.c.b16 %v705, %v699
      %v832 = vpack.c.b16 %v706, %v700
      %v833 = vpack.c.b16 %v707, %v701
      %v834 = vpack.c.b16 %v708, %v702
      %v835 = vpack.c.b16 %v715, %v709
      %v836 = vpack.c.b16 %v716, %v710
      %v837 = vpack.c.b16 %v717, %v711
      %v838 = vpack.c.b16 %v718, %v712
      %v839 = vpack.c.b16 %v719, %v713
      %v840 = vpack.c.b16 %v720, %v714
      %v841 = vpack.c.b16 %v727, %v721
      %v842 = vpack.c.b16 %v728, %v722
      %v843 = vpack.c.b16 %v729, %v723
      %v844 = vpack.c.b16 %v730, %v724
      %v845 = vpack.c.b16 %v731, %v725
      %v846 = vpack.c.b16 %v732, %v726
      %v847 = vpack.c.b16 %v739, %v733
      %v848 = vpack.c.b16 %v740, %v734
      %v849 = vpack.c.b16 %v741, %v735
      %v850 = vpack.c.b16 %v742, %v736
      %v851 = vpack.c.b16 %v743, %v737
      %v852 = vpack.c.b16 %v744, %v738
      %v853 = vpack.c.b16 %v751, %v745
      %v854 = vpack.c.b16 %v752, %v746
      %v855 = vpack.c.b16 %v753, %v747
      %v856 = vpack.c.b16 %v754, %v748
      %v857 = vpack.c.b16 %v755, %v749
      %v858 = vpack.c.b16 %v756, %v750
      %v859 = vpack.c.b16 %v763, %v757
      %v860 = vpack.c.b16 %v764, %v758
      %v861 = vpack.c.b16 %v765, %v759
      %v862 = vpack.c.b16 %v766, %v760
      %v863 = vpack.c.b16 %v767, %v761
      %v864 = vpack.c.b16 %v768, %v762
      %v1057 = vunpack.c.l.b16 %v385
      %v1058 = vunpack.c.l.b16 %v386
      %v1059 = vunpack.c.l.b16 %v387
      %v1060 = vunpack.c.l.b16 %v388
      %v1061 = vunpack.c.l.b16 %v389
      %v1062 = vunpack.c.l.b16 %v390
      %v1063 = vunpack.c.l.b16 %v391
      %v1064 = vunpack.c.l.b16 %v392
      %v1065 = vunpack.c.l.b16 %v393
      %v1066 = vunpack.c.l.b16 %v394
      %v1067 = vunpack.c.l.b16 %v395
      %v1068 = vunpack.c.l.b16 %v396
      %v1069 = vunpack.c.l.b16 %v397
      %v1070 = vunpack.c.l.b16 %v398
      %v1071 = vunpack.c.l.b16 %v399
      %v1072 = vunpack.c.l.b16 %v400
      %v1073 = vunpack.c.l.b16 %v401
      %v1074 = vunpack.c.l.b16 %v402
      %v1075 = vunpack.c.l.b16 %v403
      %v1076 = vunpack.c.l.b16 %v404
      %v1077 = vunpack.c.l.b16 %v405
      %v1078 = vunpack.c.l.b16 %v406
      %v1079 = vunpack.c.l.b16 %v407
      %v1080 = vunpack.c.l.b16 %v408
      %v1081 = vunpack.c.l.b16 %v409
      %v1082 = vunpack.c.l.b16 %v410
      %v1083 = vunpack.c.l.b16 %v411
      %v1084 = vunpack.c.l.b16 %v412
      %v1085 = vunpack.c.l.b16 %v413
      %v1086 = vunpack.c.l.b16 %v414
      %v1087 = vunpack.c.l.b16 %v415
      %v1088 = vunpack.c.l.b16 %v416
      %v1089 = vunpack.c.l.b16 %v417
      %v1090 = vunpack.c.l.b16 %v418
      %v1091 = vunpack.c.l.b16 %v419
      %v1092 = vunpack.c.l.b16 %v420
      %v1093 = vunpack.c.l.b16 %v421
      %v1094 = vunpack.c.l.b16 %v422
      %v1095 = vunpack.c.l.b16 %v423
      %v1096 = vunpack.c.l.b16 %v424
      %v1097 = vunpack.c.l.b16 %v425
      %v1098 = vunpack.c.l.b16 %v426
      %v1099 = vunpack.c.l.b16 %v427
      %v1100 = vunpack.c.l.b16 %v428
      %v1101 = vunpack.c.l.b16 %v429
      %v1102 = vunpack.c.l.b16 %v430
      %v1103 = vunpack.c.l.b16 %v431
      %v1104 = vunpack.c.l.b16 %v432
      %v1105 = vunpack.c.l.b16 %v433
      %v1106 = vunpack.c.l.b16 %v434
      %v1107 = vunpack.c.l.b16 %v435
      %v1108 = vunpack.c.l.b16 %v436
      %v1109 = vunpack.c.l.b16 %v437
      %v1110 = vunpack.c.l.b16 %v438
      %v1111 = vunpack.c.l.b16 %v439
      %v1112 = vunpack.c.l.b16 %v440
      %v1113 = vunpack.c.l.b16 %v441
      %v1114 = vunpack.c.l.b16 %v442
      %v1115 = vunpack.c.l.b16 %v443
      %v1116 = vunpack.c.l.b16 %v444
      %v1117 = vunpack.c.l.b16 %v445
      %v1118 = vunpack.c.l.b16 %v446
      %v1119 = vunpack.c.l.b16 %v447
      %v1120 = vunpack.c.l.b16 %v448
      %v1121 = vunpack.c.l.b16 %v449
      %v1122 = vunpack.c.l.b16 %v450
      %v1123 = vunpack.c.l.b16 %v451
      %v1124 = vunpack.c.l.b16 %v452
      %v1125 = vunpack.c.l.b16 %v453
      %v1126 = vunpack.c.l.b16 %v454
      %v1127 = vunpack.c.l.b16 %v455
      %v1128 = vunpack.c.l.b16 %v456
      %v1129 = vunpack.c.l.b16 %v457
      %v1130 = vunpack.c.l.b16 %v458
      %v1131 = vunpack.c.l.b16 %v459
      %v1132 = vunpack.c.l.b16 %v460
      %v1133 = vunpack.c.l.b16 %v461
      %v1134 = vunpack.c.l.b16 %v462
      %v1135 = vunpack.c.l.b16 %v463
      %v1136 = vunpack.c.l.b16 %v464
      %v1137 = vunpack.c.l.b16 %v465
      %v1138 = vunpack.c.l.b16 %v466
      %v1139 = vunpack.c.l.b16 %v467
      %v1140 = vunpack.c.l.b16 %v468
      %v1141 = vunpack.c.l.b16 %v469
      %v1142 = vunpack.c.l.b16 %v470
      %v1143 = vunpack.c.l.b16 %v471
      %v1144 = vunpack.c.l.b16 %v472
      %v1145 = vunpack.c.l.b16 %v473
      %v1146 = vunpack.c.l.b16 %v474
      %v1147 = vunpack.c.l.b16 %v475
      %v1148 = vunpack.c.l.b16 %v476
      %v1149 = vunpack.c.l.b16 %v477
      %v1150 = vunpack.c.l.b16 %v478
      %v1151 = vunpack.c.l.b16 %v479
      %v1152 = vunpack.c.l.b16 %v480
      %v1153 = vpack.c.b16 %v1058, %v1057
      %v1154 = vpack.c.b16 %v1060, %v1059
      %v1155 = vpack.c.b16 %v1062, %v1061
      %v1156 = vpack.c.b16 %v1064, %v1063
      %v1157 = vpack.c.b16 %v1066, %v1065
      %v1158 = vpack.c.b16 %v1068, %v1067
      %v1159 = vpack.c.b16 %v1070, %v1069
      %v1160 = vpack.c.b16 %v1072, %v1071
      %v1161 = vpack.c.b16 %v1074, %v1073
      %v1162 = vpack.c.b16 %v1076, %v1075
      %v1163 = vpack.c.b16 %v1078, %v1077
      %v1164 = vpack.c.b16 %v1080, %v1079
      %v1165 = vpack.c.b16 %v1082, %v1081
      %v1166 = vpack.c.b16 %v1084, %v1083
      %v1167 = vpack.c.b16 %v1086, %v1085
      %v1168 = vpack.c.b16 %v1088, %v1087
      %v1169 = vpack.c.b16 %v1090, %v1089
      %v1170 = vpack.c.b16 %v1092, %v1091
      %v1171 = vpack.c.b16 %v1094, %v1093
      %v1172 = vpack.c.b16 %v1096, %v1095
      %v1173 = vpack.c.b16 %v1098, %v1097
      %v1174 = vpack.c.b16 %v1100, %v1099
      %v1175 = vpack.c.b16 %v1102, %v1101
      %v1176 = vpack.c.b16 %v1104, %v1103
      %v1177 = vpack.c.b16 %v1106, %v1105
      %v1178 = vpack.c.b16 %v1108, %v1107
      %v1179 = vpack.c.b16 %v1110, %v1109
      %v1180 = vpack.c.b16 %v1112, %v1111
      %v1181 = vpack.c.b16 %v1114, %v1113
      %v1182 = vpack.c.b16 %v1116, %v1115
      %v1183 = vpack.c.b16 %v1118, %v1117
      %v1184 = vpack.c.b16 %v1120, %v1119
      %v1185 = vpack.c.b16 %v1122, %v1121
      %v1186 = vpack.c.b16 %v1124, %v1123
      %v1187 = vpack.c.b16 %v1126, %v1125
      %v1188 = vpack.c.b16 %v1128, %v1127
      %v1189 = vpack.c.b16 %v1130, %v1129
      %v1190 = vpack.c.b16 %v1132, %v1131
      %v1191 = vpack.c.b16 %v1134, %v1133
      %v1192 = vpack.c.b16 %v1136, %v1135
      %v1193 = vpack.c.b16 %v1138, %v1137
      %v1194 = vpack.c.b16 %v1140, %v1139
      %v1195 = vpack.c.b16 %v1142, %v1141
      %v1196 = vpack.c.b16 %v1144, %v1143
      %v1197 = vpack.c.b16 %v1146, %v1145
      %v1198 = vpack.c.b16 %v1148, %v1147
      %v1199 = vpack.c.b16 %v1150, %v1149
      %v1200 = vpack.c.b16 %v1152, %v1151
      %1249 = vmatpush.bf16.msra.mxu0 %v1160
      %1250 = vmatpush.bf16.msra.mxu0 %v1159
      %1251 = vmatpush.bf16.msra.mxu0 %v1158
      %1252 = vmatpush.bf16.msra.mxu0 %v1157
      %1253 = vmatpush.bf16.msra.mxu0 %v1156
      %1254 = vmatpush.bf16.msra.mxu0 %v1155
      %1255 = vmatpush.bf16.msra.mxu0 %v1154
      %1256 = vmatpush.bf16.msra.mxu0 %v1153
      %1257 = vmatmul.bf16.gmra.mxu0 %v769
      %v1258 = vpop.f32.mrf.mxu0
      %v1259 = vadd.f32 0.0, %v1258
      %v1260 = vpop.f32.mrf.mxu0
      %v1261 = vadd.f32 0.0, %v1260
      %1262 = vmatmul.bf16.gmra.mxu0 %v775
      %v1263 = vpop.f32.mrf.mxu0
      %v1264 = vadd.f32 0.0, %v1263
      %v1265 = vpop.f32.mrf.mxu0
      %v1266 = vadd.f32 0.0, %v1265
      %1267 = vmatmul.bf16.gmra.mxu0 %v781
      %v1268 = vpop.f32.mrf.mxu0
      %v1269 = vadd.f32 0.0, %v1268
      %v1270 = vpop.f32.mrf.mxu0
      %v1271 = vadd.f32 0.0, %v1270
      %1272 = vmatmul.bf16.gmra.mxu0 %v787
      %v1273 = vpop.f32.mrf.mxu0
      %v1274 = vadd.f32 0.0, %v1273
      %v1275 = vpop.f32.mrf.mxu0
      %v1276 = vadd.f32 0.0, %v1275
      %1277 = vmatmul.bf16.gmra.mxu0 %v793
      %v1278 = vpop.f32.mrf.mxu0
      %v1279 = vadd.f32 0.0, %v1278
      %v1280 = vpop.f32.mrf.mxu0
      %v1281 = vadd.f32 0.0, %v1280
      %1282 = vmatmul.bf16.gmra.mxu0 %v799
      %v1283 = vpop.f32.mrf.mxu0
      %v1284 = vadd.f32 0.0, %v1283
      %v1285 = vpop.f32.mrf.mxu0
      %v1286 = vadd.f32 0.0, %v1285
      %1287 = vmatmul.bf16.gmra.mxu0 %v805
      %v1288 = vpop.f32.mrf.mxu0
      %v1289 = vadd.f32 0.0, %v1288
      %v1290 = vpop.f32.mrf.mxu0
      %v1291 = vadd.f32 0.0, %v1290
      %1292 = vmatmul.bf16.gmra.mxu0 %v811
      %v1293 = vpop.f32.mrf.mxu0
      %v1294 = vadd.f32 0.0, %v1293
      %v1295 = vpop.f32.mrf.mxu0
      %v1296 = vadd.f32 0.0, %v1295
      %1297 = vmatmul.bf16.gmra.mxu0 %v817
      %v1298 = vpop.f32.mrf.mxu0
      %v1299 = vadd.f32 0.0, %v1298
      %v1300 = vpop.f32.mrf.mxu0
      %v1301 = vadd.f32 0.0, %v1300
      %1302 = vmatmul.bf16.gmra.mxu0 %v823
      %v1303 = vpop.f32.mrf.mxu0
      %v1304 = vadd.f32 0.0, %v1303
      %v1305 = vpop.f32.mrf.mxu0
      %v1306 = vadd.f32 0.0, %v1305
      %1307 = vmatmul.bf16.gmra.mxu0 %v829
      %v1308 = vpop.f32.mrf.mxu0
      %v1309 = vadd.f32 0.0, %v1308
      %v1310 = vpop.f32.mrf.mxu0
      %v1311 = vadd.f32 0.0, %v1310
      %1312 = vmatmul.bf16.gmra.mxu0 %v835
      %v1313 = vpop.f32.mrf.mxu0
      %v1314 = vadd.f32 0.0, %v1313
      %v1315 = vpop.f32.mrf.mxu0
      %v1316 = vadd.f32 0.0, %v1315
      %1317 = vmatmul.bf16.gmra.mxu0 %v841
      %v1318 = vpop.f32.mrf.mxu0
      %v1319 = vadd.f32 0.0, %v1318
      %v1320 = vpop.f32.mrf.mxu0
      %v1321 = vadd.f32 0.0, %v1320
      %1322 = vmatmul.bf16.gmra.mxu0 %v847
      %v1323 = vpop.f32.mrf.mxu0
      %v1324 = vadd.f32 0.0, %v1323
      %v1325 = vpop.f32.mrf.mxu0
      %v1326 = vadd.f32 0.0, %v1325
      %1327 = vmatmul.bf16.gmra.mxu0 %v853
      %v1328 = vpop.f32.mrf.mxu0
      %v1329 = vadd.f32 0.0, %v1328
      %v1330 = vpop.f32.mrf.mxu0
      %v1331 = vadd.f32 0.0, %v1330
      %1332 = vmatmul.bf16.gmra.mxu0 %v859
      %v1333 = vpop.f32.mrf.mxu0
      %v1334 = vadd.f32 0.0, %v1333
      %v1335 = vpop.f32.mrf.mxu0
      %v1336 = vadd.f32 0.0, %v1335
      %1337 = vdwg.mxu0
      %1338 = vmatpush.bf16.msra.mxu0 %v1168
      %1339 = vmatpush.bf16.msra.mxu0 %v1167
      %1340 = vmatpush.bf16.msra.mxu0 %v1166
      %1341 = vmatpush.bf16.msra.mxu0 %v1165
      %1342 = vmatpush.bf16.msra.mxu0 %v1164
      %1343 = vmatpush.bf16.msra.mxu0 %v1163
      %1344 = vmatpush.bf16.msra.mxu0 %v1162
      %1345 = vmatpush.bf16.msra.mxu0 %v1161
      %1346 = vmatmul.bf16.gmra.mxu0 %v770
      %v1347 = vpop.f32.mrf.mxu0
      %v1348 = vadd.f32 %v1259, %v1347
      %v1349 = vpop.f32.mrf.mxu0
      %v1350 = vadd.f32 %v1261, %v1349
      %1351 = vmatmul.bf16.gmra.mxu0 %v776
      %v1352 = vpop.f32.mrf.mxu0
      %v1353 = vadd.f32 %v1264, %v1352
      %v1354 = vpop.f32.mrf.mxu0
      %v1355 = vadd.f32 %v1266, %v1354
      %1356 = vmatmul.bf16.gmra.mxu0 %v782
      %v1357 = vpop.f32.mrf.mxu0
      %v1358 = vadd.f32 %v1269, %v1357
      %v1359 = vpop.f32.mrf.mxu0
      %v1360 = vadd.f32 %v1271, %v1359
      %1361 = vmatmul.bf16.gmra.mxu0 %v788
      %v1362 = vpop.f32.mrf.mxu0
      %v1363 = vadd.f32 %v1274, %v1362
      %v1364 = vpop.f32.mrf.mxu0
      %v1365 = vadd.f32 %v1276, %v1364
      %1366 = vmatmul.bf16.gmra.mxu0 %v794
      %v1367 = vpop.f32.mrf.mxu0
      %v1368 = vadd.f32 %v1279, %v1367
      %v1369 = vpop.f32.mrf.mxu0
      %v1370 = vadd.f32 %v1281, %v1369
      %1371 = vmatmul.bf16.gmra.mxu0 %v800
      %v1372 = vpop.f32.mrf.mxu0
      %v1373 = vadd.f32 %v1284, %v1372
      %v1374 = vpop.f32.mrf.mxu0
      %v1375 = vadd.f32 %v1286, %v1374
      %1376 = vmatmul.bf16.gmra.mxu0 %v806
      %v1377 = vpop.f32.mrf.mxu0
      %v1378 = vadd.f32 %v1289, %v1377
      %v1379 = vpop.f32.mrf.mxu0
      %v1380 = vadd.f32 %v1291, %v1379
      %1381 = vmatmul.bf16.gmra.mxu0 %v812
      %v1382 = vpop.f32.mrf.mxu0
      %v1383 = vadd.f32 %v1294, %v1382
      %v1384 = vpop.f32.mrf.mxu0
      %v1385 = vadd.f32 %v1296, %v1384
      %1386 = vmatmul.bf16.gmra.mxu0 %v818
      %v1387 = vpop.f32.mrf.mxu0
      %v1388 = vadd.f32 %v1299, %v1387
      %v1389 = vpop.f32.mrf.mxu0
      %v1390 = vadd.f32 %v1301, %v1389
      %1391 = vmatmul.bf16.gmra.mxu0 %v824
      %v1392 = vpop.f32.mrf.mxu0
      %v1393 = vadd.f32 %v1304, %v1392
      %v1394 = vpop.f32.mrf.mxu0
      %v1395 = vadd.f32 %v1306, %v1394
      %1396 = vmatmul.bf16.gmra.mxu0 %v830
      %v1397 = vpop.f32.mrf.mxu0
      %v1398 = vadd.f32 %v1309, %v1397
      %v1399 = vpop.f32.mrf.mxu0
      %v1400 = vadd.f32 %v1311, %v1399
      %1401 = vmatmul.bf16.gmra.mxu0 %v836
      %v1402 = vpop.f32.mrf.mxu0
      %v1403 = vadd.f32 %v1314, %v1402
      %v1404 = vpop.f32.mrf.mxu0
      %v1405 = vadd.f32 %v1316, %v1404
      %1406 = vmatmul.bf16.gmra.mxu0 %v842
      %v1407 = vpop.f32.mrf.mxu0
      %v1408 = vadd.f32 %v1319, %v1407
      %v1409 = vpop.f32.mrf.mxu0
      %v1410 = vadd.f32 %v1321, %v1409
      %1411 = vmatmul.bf16.gmra.mxu0 %v848
      %v1412 = vpop.f32.mrf.mxu0
      %v1413 = vadd.f32 %v1324, %v1412
      %v1414 = vpop.f32.mrf.mxu0
      %v1415 = vadd.f32 %v1326, %v1414
      %1416 = vmatmul.bf16.gmra.mxu0 %v854
      %v1417 = vpop.f32.mrf.mxu0
      %v1418 = vadd.f32 %v1329, %v1417
      %v1419 = vpop.f32.mrf.mxu0
      %v1420 = vadd.f32 %v1331, %v1419
      %1421 = vmatmul.bf16.gmra.mxu0 %v860
      %v1422 = vpop.f32.mrf.mxu0
      %v1423 = vadd.f32 %v1334, %v1422
      %v1424 = vpop.f32.mrf.mxu0
      %v1425 = vadd.f32 %v1336, %v1424
      %1426 = vdwg.mxu0
      %1427 = vmatpush.bf16.msra.mxu0 %v1176
      %1428 = vmatpush.bf16.msra.mxu0 %v1175
      %1429 = vmatpush.bf16.msra.mxu0 %v1174
      %1430 = vmatpush.bf16.msra.mxu0 %v1173
      %1431 = vmatpush.bf16.msra.mxu0 %v1172
      %1432 = vmatpush.bf16.msra.mxu0 %v1171
      %1433 = vmatpush.bf16.msra.mxu0 %v1170
      %1434 = vmatpush.bf16.msra.mxu0 %v1169
      %1435 = vmatmul.bf16.gmra.mxu0 %v771
      %v1436 = vpop.f32.mrf.mxu0
      %v1437 = vadd.f32 %v1348, %v1436
      %v1438 = vpop.f32.mrf.mxu0
      %v1439 = vadd.f32 %v1350, %v1438
      %1440 = vmatmul.bf16.gmra.mxu0 %v777
      %v1441 = vpop.f32.mrf.mxu0
      %v1442 = vadd.f32 %v1353, %v1441
      %v1443 = vpop.f32.mrf.mxu0
      %v1444 = vadd.f32 %v1355, %v1443
      %1445 = vmatmul.bf16.gmra.mxu0 %v783
      %v1446 = vpop.f32.mrf.mxu0
      %v1447 = vadd.f32 %v1358, %v1446
      %v1448 = vpop.f32.mrf.mxu0
      %v1449 = vadd.f32 %v1360, %v1448
      %1450 = vmatmul.bf16.gmra.mxu0 %v789
      %v1451 = vpop.f32.mrf.mxu0
      %v1452 = vadd.f32 %v1363, %v1451
      %v1453 = vpop.f32.mrf.mxu0
      %v1454 = vadd.f32 %v1365, %v1453
      %1455 = vmatmul.bf16.gmra.mxu0 %v795
      %v1456 = vpop.f32.mrf.mxu0
      %v1457 = vadd.f32 %v1368, %v1456
      %v1458 = vpop.f32.mrf.mxu0
      %v1459 = vadd.f32 %v1370, %v1458
      %1460 = vmatmul.bf16.gmra.mxu0 %v801
      %v1461 = vpop.f32.mrf.mxu0
      %v1462 = vadd.f32 %v1373, %v1461
      %v1463 = vpop.f32.mrf.mxu0
      %v1464 = vadd.f32 %v1375, %v1463
      %1465 = vmatmul.bf16.gmra.mxu0 %v807
      %v1466 = vpop.f32.mrf.mxu0
      %v1467 = vadd.f32 %v1378, %v1466
      %v1468 = vpop.f32.mrf.mxu0
      %v1469 = vadd.f32 %v1380, %v1468
      %1470 = vmatmul.bf16.gmra.mxu0 %v813
      %v1471 = vpop.f32.mrf.mxu0
      %v1472 = vadd.f32 %v1383, %v1471
      %v1473 = vpop.f32.mrf.mxu0
      %v1474 = vadd.f32 %v1385, %v1473
      %1475 = vmatmul.bf16.gmra.mxu0 %v819
      %v1476 = vpop.f32.mrf.mxu0
      %v1477 = vadd.f32 %v1388, %v1476
      %v1478 = vpop.f32.mrf.mxu0
      %v1479 = vadd.f32 %v1390, %v1478
      %1480 = vmatmul.bf16.gmra.mxu0 %v825
      %v1481 = vpop.f32.mrf.mxu0
      %v1482 = vadd.f32 %v1393, %v1481
      %v1483 = vpop.f32.mrf.mxu0
      %v1484 = vadd.f32 %v1395, %v1483
      %1485 = vmatmul.bf16.gmra.mxu0 %v831
      %v1486 = vpop.f32.mrf.mxu0
      %v1487 = vadd.f32 %v1398, %v1486
      %v1488 = vpop.f32.mrf.mxu0
      %v1489 = vadd.f32 %v1400, %v1488
      %1490 = vmatmul.bf16.gmra.mxu0 %v837
      %v1491 = vpop.f32.mrf.mxu0
      %v1492 = vadd.f32 %v1403, %v1491
      %v1493 = vpop.f32.mrf.mxu0
      %v1494 = vadd.f32 %v1405, %v1493
      %1495 = vmatmul.bf16.gmra.mxu0 %v843
      %v1496 = vpop.f32.mrf.mxu0
      %v1497 = vadd.f32 %v1408, %v1496
      %v1498 = vpop.f32.mrf.mxu0
      %v1499 = vadd.f32 %v1410, %v1498
      %1500 = vmatmul.bf16.gmra.mxu0 %v849
      %v1501 = vpop.f32.mrf.mxu0
      %v1502 = vadd.f32 %v1413, %v1501
      %v1503 = vpop.f32.mrf.mxu0
      %v1504 = vadd.f32 %v1415, %v1503
      %1505 = vmatmul.bf16.gmra.mxu0 %v855
      %v1506 = vpop.f32.mrf.mxu0
      %v1507 = vadd.f32 %v1418, %v1506
      %v1508 = vpop.f32.mrf.mxu0
      %v1509 = vadd.f32 %v1420, %v1508
      %1510 = vmatmul.bf16.gmra.mxu0 %v861
      %v1511 = vpop.f32.mrf.mxu0
      %v1512 = vadd.f32 %v1423, %v1511
      %v1513 = vpop.f32.mrf.mxu0
      %v1514 = vadd.f32 %v1425, %v1513
      %1515 = vdwg.mxu0
      %1516 = vmatpush.bf16.msra.mxu0 %v1184
      %1517 = vmatpush.bf16.msra.mxu0 %v1183
      %1518 = vmatpush.bf16.msra.mxu0 %v1182
      %1519 = vmatpush.bf16.msra.mxu0 %v1181
      %1520 = vmatpush.bf16.msra.mxu0 %v1180
      %1521 = vmatpush.bf16.msra.mxu0 %v1179
      %1522 = vmatpush.bf16.msra.mxu0 %v1178
      %1523 = vmatpush.bf16.msra.mxu0 %v1177
      %1524 = vmatmul.bf16.gmra.mxu0 %v772
      %v1525 = vpop.f32.mrf.mxu0
      %v1526 = vadd.f32 %v1437, %v1525
      %v1527 = vpop.f32.mrf.mxu0
      %v1528 = vadd.f32 %v1439, %v1527
      %1529 = vmatmul.bf16.gmra.mxu0 %v778
      %v1530 = vpop.f32.mrf.mxu0
      %v1531 = vadd.f32 %v1442, %v1530
      %v1532 = vpop.f32.mrf.mxu0
      %v1533 = vadd.f32 %v1444, %v1532
      %1534 = vmatmul.bf16.gmra.mxu0 %v784
      %v1535 = vpop.f32.mrf.mxu0
      %v1536 = vadd.f32 %v1447, %v1535
      %v1537 = vpop.f32.mrf.mxu0
      %v1538 = vadd.f32 %v1449, %v1537
      %1539 = vmatmul.bf16.gmra.mxu0 %v790
      %v1540 = vpop.f32.mrf.mxu0
      %v1541 = vadd.f32 %v1452, %v1540
      %v1542 = vpop.f32.mrf.mxu0
      %v1543 = vadd.f32 %v1454, %v1542
      %1544 = vmatmul.bf16.gmra.mxu0 %v796
      %v1545 = vpop.f32.mrf.mxu0
      %v1546 = vadd.f32 %v1457, %v1545
      %v1547 = vpop.f32.mrf.mxu0
      %v1548 = vadd.f32 %v1459, %v1547
      %1549 = vmatmul.bf16.gmra.mxu0 %v802
      %v1550 = vpop.f32.mrf.mxu0
      %v1551 = vadd.f32 %v1462, %v1550
      %v1552 = vpop.f32.mrf.mxu0
      %v1553 = vadd.f32 %v1464, %v1552
      %1554 = vmatmul.bf16.gmra.mxu0 %v808
      %v1555 = vpop.f32.mrf.mxu0
      %v1556 = vadd.f32 %v1467, %v1555
      %v1557 = vpop.f32.mrf.mxu0
      %v1558 = vadd.f32 %v1469, %v1557
      %1559 = vmatmul.bf16.gmra.mxu0 %v814
      %v1560 = vpop.f32.mrf.mxu0
      %v1561 = vadd.f32 %v1472, %v1560
      %v1562 = vpop.f32.mrf.mxu0
      %v1563 = vadd.f32 %v1474, %v1562
      %1564 = vmatmul.bf16.gmra.mxu0 %v820
      %v1565 = vpop.f32.mrf.mxu0
      %v1566 = vadd.f32 %v1477, %v1565
      %v1567 = vpop.f32.mrf.mxu0
      %v1568 = vadd.f32 %v1479, %v1567
      %1569 = vmatmul.bf16.gmra.mxu0 %v826
      %v1570 = vpop.f32.mrf.mxu0
      %v1571 = vadd.f32 %v1482, %v1570
      %v1572 = vpop.f32.mrf.mxu0
      %v1573 = vadd.f32 %v1484, %v1572
      %1574 = vmatmul.bf16.gmra.mxu0 %v832
      %v1575 = vpop.f32.mrf.mxu0
      %v1576 = vadd.f32 %v1487, %v1575
      %v1577 = vpop.f32.mrf.mxu0
      %v1578 = vadd.f32 %v1489, %v1577
      %1579 = vmatmul.bf16.gmra.mxu0 %v838
      %v1580 = vpop.f32.mrf.mxu0
      %v1581 = vadd.f32 %v1492, %v1580
      %v1582 = vpop.f32.mrf.mxu0
      %v1583 = vadd.f32 %v1494, %v1582
      %1584 = vmatmul.bf16.gmra.mxu0 %v844
      %v1585 = vpop.f32.mrf.mxu0
      %v1586 = vadd.f32 %v1497, %v1585
      %v1587 = vpop.f32.mrf.mxu0
      %v1588 = vadd.f32 %v1499, %v1587
      %1589 = vmatmul.bf16.gmra.mxu0 %v850
      %v1590 = vpop.f32.mrf.mxu0
      %v1591 = vadd.f32 %v1502, %v1590
      %v1592 = vpop.f32.mrf.mxu0
      %v1593 = vadd.f32 %v1504, %v1592
      %1594 = vmatmul.bf16.gmra.mxu0 %v856
      %v1595 = vpop.f32.mrf.mxu0
      %v1596 = vadd.f32 %v1507, %v1595
      %v1597 = vpop.f32.mrf.mxu0
      %v1598 = vadd.f32 %v1509, %v1597
      %1599 = vmatmul.bf16.gmra.mxu0 %v862
      %v1600 = vpop.f32.mrf.mxu0
      %v1601 = vadd.f32 %v1512, %v1600
      %v1602 = vpop.f32.mrf.mxu0
      %v1603 = vadd.f32 %v1514, %v1602
      %1604 = vdwg.mxu0
      %1605 = vmatpush.bf16.msra.mxu0 %v1192
      %1606 = vmatpush.bf16.msra.mxu0 %v1191
      %1607 = vmatpush.bf16.msra.mxu0 %v1190
      %1608 = vmatpush.bf16.msra.mxu0 %v1189
      %1609 = vmatpush.bf16.msra.mxu0 %v1188
      %1610 = vmatpush.bf16.msra.mxu0 %v1187
      %1611 = vmatpush.bf16.msra.mxu0 %v1186
      %1612 = vmatpush.bf16.msra.mxu0 %v1185
      %1613 = vmatmul.bf16.gmra.mxu0 %v773
      %v1614 = vpop.f32.mrf.mxu0
      %v1615 = vadd.f32 %v1526, %v1614
      %v1616 = vpop.f32.mrf.mxu0
      %v1617 = vadd.f32 %v1528, %v1616
      %1618 = vmatmul.bf16.gmra.mxu0 %v779
      %v1619 = vpop.f32.mrf.mxu0
      %v1620 = vadd.f32 %v1531, %v1619
      %v1621 = vpop.f32.mrf.mxu0
      %v1622 = vadd.f32 %v1533, %v1621
      %1623 = vmatmul.bf16.gmra.mxu0 %v785
      %v1624 = vpop.f32.mrf.mxu0
      %v1625 = vadd.f32 %v1536, %v1624
      %v1626 = vpop.f32.mrf.mxu0
      %v1627 = vadd.f32 %v1538, %v1626
      %1628 = vmatmul.bf16.gmra.mxu0 %v791
      %v1629 = vpop.f32.mrf.mxu0
      %v1630 = vadd.f32 %v1541, %v1629
      %v1631 = vpop.f32.mrf.mxu0
      %v1632 = vadd.f32 %v1543, %v1631
      %1633 = vmatmul.bf16.gmra.mxu0 %v797
      %v1634 = vpop.f32.mrf.mxu0
      %v1635 = vadd.f32 %v1546, %v1634
      %v1636 = vpop.f32.mrf.mxu0
      %v1637 = vadd.f32 %v1548, %v1636
      %1638 = vmatmul.bf16.gmra.mxu0 %v803
      %v1639 = vpop.f32.mrf.mxu0
      %v1640 = vadd.f32 %v1551, %v1639
      %v1641 = vpop.f32.mrf.mxu0
      %v1642 = vadd.f32 %v1553, %v1641
      %1643 = vmatmul.bf16.gmra.mxu0 %v809
      %v1644 = vpop.f32.mrf.mxu0
      %v1645 = vadd.f32 %v1556, %v1644
      %v1646 = vpop.f32.mrf.mxu0
      %v1647 = vadd.f32 %v1558, %v1646
      %1648 = vmatmul.bf16.gmra.mxu0 %v815
      %v1649 = vpop.f32.mrf.mxu0
      %v1650 = vadd.f32 %v1561, %v1649
      %v1651 = vpop.f32.mrf.mxu0
      %v1652 = vadd.f32 %v1563, %v1651
      %1653 = vmatmul.bf16.gmra.mxu0 %v821
      %v1654 = vpop.f32.mrf.mxu0
      %v1655 = vadd.f32 %v1566, %v1654
      %v1656 = vpop.f32.mrf.mxu0
      %v1657 = vadd.f32 %v1568, %v1656
      %1658 = vmatmul.bf16.gmra.mxu0 %v827
      %v1659 = vpop.f32.mrf.mxu0
      %v1660 = vadd.f32 %v1571, %v1659
      %v1661 = vpop.f32.mrf.mxu0
      %v1662 = vadd.f32 %v1573, %v1661
      %1663 = vmatmul.bf16.gmra.mxu0 %v833
      %v1664 = vpop.f32.mrf.mxu0
      %v1665 = vadd.f32 %v1576, %v1664
      %v1666 = vpop.f32.mrf.mxu0
      %v1667 = vadd.f32 %v1578, %v1666
      %1668 = vmatmul.bf16.gmra.mxu0 %v839
      %v1669 = vpop.f32.mrf.mxu0
      %v1670 = vadd.f32 %v1581, %v1669
      %v1671 = vpop.f32.mrf.mxu0
      %v1672 = vadd.f32 %v1583, %v1671
      %1673 = vmatmul.bf16.gmra.mxu0 %v845
      %v1674 = vpop.f32.mrf.mxu0
      %v1675 = vadd.f32 %v1586, %v1674
      %v1676 = vpop.f32.mrf.mxu0
      %v1677 = vadd.f32 %v1588, %v1676
      %1678 = vmatmul.bf16.gmra.mxu0 %v851
      %v1679 = vpop.f32.mrf.mxu0
      %v1680 = vadd.f32 %v1591, %v1679
      %v1681 = vpop.f32.mrf.mxu0
      %v1682 = vadd.f32 %v1593, %v1681
      %1683 = vmatmul.bf16.gmra.mxu0 %v857
      %v1684 = vpop.f32.mrf.mxu0
      %v1685 = vadd.f32 %v1596, %v1684
      %v1686 = vpop.f32.mrf.mxu0
      %v1687 = vadd.f32 %v1598, %v1686
      %1688 = vmatmul.bf16.gmra.mxu0 %v863
      %v1689 = vpop.f32.mrf.mxu0
      %v1690 = vadd.f32 %v1601, %v1689
      %v1691 = vpop.f32.mrf.mxu0
      %v1692 = vadd.f32 %v1603, %v1691
      %1693 = vdwg.mxu0
      %1694 = vmatpush.bf16.msra.mxu0 %v1200
      %1695 = vmatpush.bf16.msra.mxu0 %v1199
      %1696 = vmatpush.bf16.msra.mxu0 %v1198
      %1697 = vmatpush.bf16.msra.mxu0 %v1197
      %1698 = vmatpush.bf16.msra.mxu0 %v1196
      %1699 = vmatpush.bf16.msra.mxu0 %v1195
      %1700 = vmatpush.bf16.msra.mxu0 %v1194
      %1701 = vmatpush.bf16.msra.mxu0 %v1193
      %1702 = vmatmul.bf16.gmra.mxu0 %v774
      %v1703 = vpop.f32.mrf.mxu0
      %v1704 = vadd.f32 %v1615, %v1703
      %v1705 = vpop.f32.mrf.mxu0
      %v1706 = vadd.f32 %v1617, %v1705
      %1707 = vmatmul.bf16.gmra.mxu0 %v780
      %v1708 = vpop.f32.mrf.mxu0
      %v1709 = vadd.f32 %v1620, %v1708
      %v1710 = vpop.f32.mrf.mxu0
      %v1711 = vadd.f32 %v1622, %v1710
      %1712 = vmatmul.bf16.gmra.mxu0 %v786
      %v1713 = vpop.f32.mrf.mxu0
      %v1714 = vadd.f32 %v1625, %v1713
      %v1715 = vpop.f32.mrf.mxu0
      %v1716 = vadd.f32 %v1627, %v1715
      %1717 = vmatmul.bf16.gmra.mxu0 %v792
      %v1718 = vpop.f32.mrf.mxu0
      %v1719 = vadd.f32 %v1630, %v1718
      %v1720 = vpop.f32.mrf.mxu0
      %v1721 = vadd.f32 %v1632, %v1720
      %1722 = vmatmul.bf16.gmra.mxu0 %v798
      %v1723 = vpop.f32.mrf.mxu0
      %v1724 = vadd.f32 %v1635, %v1723
      %v1725 = vpop.f32.mrf.mxu0
      %v1726 = vadd.f32 %v1637, %v1725
      %1727 = vmatmul.bf16.gmra.mxu0 %v804
      %v1728 = vpop.f32.mrf.mxu0
      %v1729 = vadd.f32 %v1640, %v1728
      %v1730 = vpop.f32.mrf.mxu0
      %v1731 = vadd.f32 %v1642, %v1730
      %1732 = vmatmul.bf16.gmra.mxu0 %v810
      %v1733 = vpop.f32.mrf.mxu0
      %v1734 = vadd.f32 %v1645, %v1733
      %v1735 = vpop.f32.mrf.mxu0
      %v1736 = vadd.f32 %v1647, %v1735
      %1737 = vmatmul.bf16.gmra.mxu0 %v816
      %v1738 = vpop.f32.mrf.mxu0
      %v1739 = vadd.f32 %v1650, %v1738
      %v1740 = vpop.f32.mrf.mxu0
      %v1741 = vadd.f32 %v1652, %v1740
      %1742 = vmatmul.bf16.gmra.mxu0 %v822
      %v1743 = vpop.f32.mrf.mxu0
      %v1744 = vadd.f32 %v1655, %v1743
      %v1745 = vpop.f32.mrf.mxu0
      %v1746 = vadd.f32 %v1657, %v1745
      %1747 = vmatmul.bf16.gmra.mxu0 %v828
      %v1748 = vpop.f32.mrf.mxu0
      %v1749 = vadd.f32 %v1660, %v1748
      %v1750 = vpop.f32.mrf.mxu0
      %v1751 = vadd.f32 %v1662, %v1750
      %1752 = vmatmul.bf16.gmra.mxu0 %v834
      %v1753 = vpop.f32.mrf.mxu0
      %v1754 = vadd.f32 %v1665, %v1753
      %v1755 = vpop.f32.mrf.mxu0
      %v1756 = vadd.f32 %v1667, %v1755
      %1757 = vmatmul.bf16.gmra.mxu0 %v840
      %v1758 = vpop.f32.mrf.mxu0
      %v1759 = vadd.f32 %v1670, %v1758
      %v1760 = vpop.f32.mrf.mxu0
      %v1761 = vadd.f32 %v1672, %v1760
      %1762 = vmatmul.bf16.gmra.mxu0 %v846
      %v1763 = vpop.f32.mrf.mxu0
      %v1764 = vadd.f32 %v1675, %v1763
      %v1765 = vpop.f32.mrf.mxu0
      %v1766 = vadd.f32 %v1677, %v1765
      %1767 = vmatmul.bf16.gmra.mxu0 %v852
      %v1768 = vpop.f32.mrf.mxu0
      %v1769 = vadd.f32 %v1680, %v1768
      %v1770 = vpop.f32.mrf.mxu0
      %v1771 = vadd.f32 %v1682, %v1770
      %1772 = vmatmul.bf16.gmra.mxu0 %v858
      %v1773 = vpop.f32.mrf.mxu0
      %v1774 = vadd.f32 %v1685, %v1773
      %v1775 = vpop.f32.mrf.mxu0
      %v1776 = vadd.f32 %v1687, %v1775
      %1777 = vmatmul.bf16.gmra.mxu0 %v864
      %v1778 = vpop.f32.mrf.mxu0
      %v1779 = vadd.f32 %v1690, %v1778
      %v1780 = vpop.f32.mrf.mxu0
      %v1781 = vadd.f32 %v1692, %v1780
      %1782 = vdwg.mxu0
      %v1783 = vadd.f32 %v257, %v1704
      %v1784 = vadd.f32 %v258, %v1706
      %v1785 = vadd.f32 %v259, %v1709
      %v1786 = vadd.f32 %v260, %v1711
      %v1787 = vadd.f32 %v261, %v1714
      %v1788 = vadd.f32 %v262, %v1716
      %v1789 = vadd.f32 %v263, %v1719
      %v1790 = vadd.f32 %v264, %v1721
      %v1791 = vadd.f32 %v265, %v1724
      %v1792 = vadd.f32 %v266, %v1726
      %v1793 = vadd.f32 %v267, %v1729
      %v1794 = vadd.f32 %v268, %v1731
      %v1795 = vadd.f32 %v269, %v1734
      %v1796 = vadd.f32 %v270, %v1736
      %v1797 = vadd.f32 %v271, %v1739
      %v1798 = vadd.f32 %v272, %v1741
      %v1799 = vadd.f32 %v273, %v1744
      %v1800 = vadd.f32 %v274, %v1746
      %v1801 = vadd.f32 %v275, %v1749
      %v1802 = vadd.f32 %v276, %v1751
      %v1803 = vadd.f32 %v277, %v1754
      %v1804 = vadd.f32 %v278, %v1756
      %v1805 = vadd.f32 %v279, %v1759
      %v1806 = vadd.f32 %v280, %v1761
      %v1807 = vadd.f32 %v281, %v1764
      %v1808 = vadd.f32 %v282, %v1766
      %v1809 = vadd.f32 %v283, %v1769
      %v1810 = vadd.f32 %v284, %v1771
      %v1811 = vadd.f32 %v285, %v1774
      %v1812 = vadd.f32 %v286, %v1776
      %v1813 = vadd.f32 %v287, %v1779
      %v1814 = vadd.f32 %v288, %v1781
      %1815 = vst [vmem:[#allocation2] sm:$0xff] %v1783
      %1816 = vst [vmem:[#allocation2 + $0x8] sm:$0xff] %v1784
      %1817 = vst [vmem:[#allocation2 + $0x10] sm:$0xff] %v1785
      %1818 = vst [vmem:[#allocation2 + $0x18] sm:$0xff] %v1786
      %1819 = vst [vmem:[#allocation2 + $0x20] sm:$0xff] %v1787
      %1820 = vst [vmem:[#allocation2 + $0x28] sm:$0xff] %v1788
      %1821 = vst [vmem:[#allocation2 + $0x30] sm:$0xff] %v1789
      %1822 = vst [vmem:[#allocation2 + $0x38] sm:$0xff] %v1790
      %1823 = vst [vmem:[#allocation2 + $0x40] sm:$0xff] %v1791
      %1824 = vst [vmem:[#allocation2 + $0x48] sm:$0xff] %v1792
      %1825 = vst [vmem:[#allocation2 + $0x50] sm:$0xff] %v1793
      %1826 = vst [vmem:[#allocation2 + $0x58] sm:$0xff] %v1794
      %1827 = vst [vmem:[#allocation2 + $0x60] sm:$0xff] %v1795
      %1828 = vst [vmem:[#allocation2 + $0x68] sm:$0xff] %v1796
      %1829 = vst [vmem:[#allocation2 + $0x70] sm:$0xff] %v1797
      %1830 = vst [vmem:[#allocation2 + $0x78] sm:$0xff] %v1798
      %1831 = vst [vmem:[#allocation2 + $0x80] sm:$0xff] %v1799
      %1832 = vst [vmem:[#allocation2 + $0x88] sm:$0xff] %v1800
      %1833 = vst [vmem:[#allocation2 + $0x90] sm:$0xff] %v1801
      %1834 = vst [vmem:[#allocation2 + $0x98] sm:$0xff] %v1802
      %1835 = vst [vmem:[#allocation2 + $0xa0] sm:$0xff] %v1803
      %1836 = vst [vmem:[#allocation2 + $0xa8] sm:$0xff] %v1804
      %1837 = vst [vmem:[#allocation2 + $0xb0] sm:$0xff] %v1805
      %1838 = vst [vmem:[#allocation2 + $0xb8] sm:$0xff] %v1806
      %1839 = vst [vmem:[#allocation2 + $0xc0] sm:$0xff] %v1807
      %1840 = vst [vmem:[#allocation2 + $0xc8] sm:$0xff] %v1808
      %1841 = vst [vmem:[#allocation2 + $0xd0] sm:$0xff] %v1809
      %1842 = vst [vmem:[#allocation2 + $0xd8] sm:$0xff] %v1810
      %1843 = vst [vmem:[#allocation2 + $0xe0] sm:$0xff] %v1811
      %1844 = vst [vmem:[#allocation2 + $0xe8] sm:$0xff] %v1812
      %1845 = vst [vmem:[#allocation2 + $0xf0] sm:$0xff] %v1813
      %1846 = vst [vmem:[#allocation2 + $0xf8] sm:$0xff] %v1814
      // Predicated region
      $region37: #{resnet_gen_forward.19} parent=31 // pred_check
        %p1847 = pneg %p221
      $region38: #{resnet_gen_forward.19} parent=31 // pred_check_branch
        %1849 = sbr.rel (%p1847) target = $region40
      $region39: #{resnet_gen_forward.19} parent=31 // pred_region
        %v1850 = vld [vmem:[#allocation2] sm:$0xff]
        %v1851 = vld [vmem:[#allocation2 + $0x8] sm:$0xff]
        %v1852 = vld [vmem:[#allocation2 + $0x10] sm:$0xff]
        %v1853 = vld [vmem:[#allocation2 + $0x18] sm:$0xff]
        %v1854 = vld [vmem:[#allocation2 + $0x20] sm:$0xff]
        %v1855 = vld [vmem:[#allocation2 + $0x28] sm:$0xff]
        %v1856 = vld [vmem:[#allocation2 + $0x30] sm:$0xff]
        %v1857 = vld [vmem:[#allocation2 + $0x38] sm:$0xff]
        %v1858 = vld [vmem:[#allocation2 + $0x40] sm:$0xff]
        %v1859 = vld [vmem:[#allocation2 + $0x48] sm:$0xff]
        %v1860 = vld [vmem:[#allocation2 + $0x50] sm:$0xff]
        %v1861 = vld [vmem:[#allocation2 + $0x58] sm:$0xff]
        %v1862 = vld [vmem:[#allocation2 + $0x60] sm:$0xff]
        %v1863 = vld [vmem:[#allocation2 + $0x68] sm:$0xff]
        %v1864 = vld [vmem:[#allocation2 + $0x70] sm:$0xff]
        %v1865 = vld [vmem:[#allocation2 + $0x78] sm:$0xff]
        %v1866 = vld [vmem:[#allocation2 + $0x80] sm:$0xff]
        %v1867 = vld [vmem:[#allocation2 + $0x88] sm:$0xff]
        %v1868 = vld [vmem:[#allocation2 + $0x90] sm:$0xff]
        %v1869 = vld [vmem:[#allocation2 + $0x98] sm:$0xff]
        %v1870 = vld [vmem:[#allocation2 + $0xa0] sm:$0xff]
        %v1871 = vld [vmem:[#allocation2 + $0xa8] sm:$0xff]
        %v1872 = vld [vmem:[#allocation2 + $0xb0] sm:$0xff]
        %v1873 = vld [vmem:[#allocation2 + $0xb8] sm:$0xff]
        %v1874 = vld [vmem:[#allocation2 + $0xc0] sm:$0xff]
        %v1875 = vld [vmem:[#allocation2 + $0xc8] sm:$0xff]
        %v1876 = vld [vmem:[#allocation2 + $0xd0] sm:$0xff]
        %v1877 = vld [vmem:[#allocation2 + $0xd8] sm:$0xff]
        %v1878 = vld [vmem:[#allocation2 + $0xe0] sm:$0xff]
        %v1879 = vld [vmem:[#allocation2 + $0xe8] sm:$0xff]
        %v1880 = vld [vmem:[#allocation2 + $0xf0] sm:$0xff]
        %v1881 = vld [vmem:[#allocation2 + $0xf8] sm:$0xff]
        %v1882 = vld [vmem:[%s2] sm:$0x1]
        %v1884 = vperm.slane %v1882, 0
        %v1886 = vadd.f32 %v1850, %v1884
        %v1887 = vadd.f32 %v1851, %v1884
        %v1888 = vadd.f32 %v1852, %v1884
        %v1889 = vadd.f32 %v1853, %v1884
        %v1890 = vadd.f32 %v1854, %v1884
        %v1891 = vadd.f32 %v1855, %v1884
        %v1892 = vadd.f32 %v1856, %v1884
        %v1893 = vadd.f32 %v1857, %v1884
        %v1894 = vadd.f32 %v1858, %v1884
        %v1895 = vadd.f32 %v1859, %v1884
        %v1896 = vadd.f32 %v1860, %v1884
        %v1897 = vadd.f32 %v1861, %v1884
        %v1898 = vadd.f32 %v1862, %v1884
        %v1899 = vadd.f32 %v1863, %v1884
        %v1900 = vadd.f32 %v1864, %v1884
        %v1901 = vadd.f32 %v1865, %v1884
        %v1902 = vadd.f32 %v1866, %v1884
        %v1903 = vadd.f32 %v1867, %v1884
        %v1904 = vadd.f32 %v1868, %v1884
        %v1905 = vadd.f32 %v1869, %v1884
        %v1906 = vadd.f32 %v1870, %v1884
        %v1907 = vadd.f32 %v1871, %v1884
        %v1908 = vadd.f32 %v1872, %v1884
        %v1909 = vadd.f32 %v1873, %v1884
        %v1910 = vadd.f32 %v1874, %v1884
        %v1911 = vadd.f32 %v1875, %v1884
        %v1912 = vadd.f32 %v1876, %v1884
        %v1913 = vadd.f32 %v1877, %v1884
        %v1914 = vadd.f32 %v1878, %v1884
        %v1915 = vadd.f32 %v1879, %v1884
        %v1916 = vadd.f32 %v1880, %v1884
        %v1917 = vadd.f32 %v1881, %v1884
        %v1918 = vtanh.pop %v1886
        %v1919 = vtanh.pop %v1887
        %v1920 = vtanh.pop %v1888
        %v1921 = vtanh.pop %v1889
        %v1922 = vtanh.pop %v1890
        %v1923 = vtanh.pop %v1891
        %v1924 = vtanh.pop %v1892
        %v1925 = vtanh.pop %v1893
        %v1926 = vtanh.pop %v1894
        %v1927 = vtanh.pop %v1895
        %v1928 = vtanh.pop %v1896
        %v1929 = vtanh.pop %v1897
        %v1930 = vtanh.pop %v1898
        %v1931 = vtanh.pop %v1899
        %v1932 = vtanh.pop %v1900
        %v1933 = vtanh.pop %v1901
        %v1934 = vtanh.pop %v1902
        %v1935 = vtanh.pop %v1903
        %v1936 = vtanh.pop %v1904
        %v1937 = vtanh.pop %v1905
        %v1938 = vtanh.pop %v1906
        %v1939 = vtanh.pop %v1907
        %v1940 = vtanh.pop %v1908
        %v1941 = vtanh.pop %v1909
        %v1942 = vtanh.pop %v1910
        %v1943 = vtanh.pop %v1911
        %v1944 = vtanh.pop %v1912
        %v1945 = vtanh.pop %v1913
        %v1946 = vtanh.pop %v1914
        %v1947 = vtanh.pop %v1915
        %v1948 = vtanh.pop %v1916
        %v1949 = vtanh.pop %v1917
        %1950 = vst [vmem:[%s220] sm:$0xff] %v1918
        %1951 = vst [vmem:[%s220 + $0x8] sm:$0xff] %v1919
        %1952 = vst [vmem:[%s220 + $0x10] sm:$0xff] %v1920
        %1953 = vst [vmem:[%s220 + $0x18] sm:$0xff] %v1921
        %1954 = vst [vmem:[%s220 + $0x20] sm:$0xff] %v1922
        %1955 = vst [vmem:[%s220 + $0x28] sm:$0xff] %v1923
        %1956 = vst [vmem:[%s220 + $0x30] sm:$0xff] %v1924
        %1957 = vst [vmem:[%s220 + $0x38] sm:$0xff] %v1925
        %1958 = vst [vmem:[%s220 + $0x40] sm:$0xff] %v1926
        %1959 = vst [vmem:[%s220 + $0x48] sm:$0xff] %v1927
        %1960 = vst [vmem:[%s220 + $0x50] sm:$0xff] %v1928
        %1961 = vst [vmem:[%s220 + $0x58] sm:$0xff] %v1929
        %1962 = vst [vmem:[%s220 + $0x60] sm:$0xff] %v1930
        %1963 = vst [vmem:[%s220 + $0x68] sm:$0xff] %v1931
        %1964 = vst [vmem:[%s220 + $0x70] sm:$0xff] %v1932
        %1965 = vst [vmem:[%s220 + $0x78] sm:$0xff] %v1933
        %1966 = vst [vmem:[%s220 + $0x80] sm:$0xff] %v1934
        %1967 = vst [vmem:[%s220 + $0x88] sm:$0xff] %v1935
        %1968 = vst [vmem:[%s220 + $0x90] sm:$0xff] %v1936
        %1969 = vst [vmem:[%s220 + $0x98] sm:$0xff] %v1937
        %1970 = vst [vmem:[%s220 + $0xa0] sm:$0xff] %v1938
        %1971 = vst [vmem:[%s220 + $0xa8] sm:$0xff] %v1939
        %1972 = vst [vmem:[%s220 + $0xb0] sm:$0xff] %v1940
        %1973 = vst [vmem:[%s220 + $0xb8] sm:$0xff] %v1941
        %1974 = vst [vmem:[%s220 + $0xc0] sm:$0xff] %v1942
        %1975 = vst [vmem:[%s220 + $0xc8] sm:$0xff] %v1943
        %1976 = vst [vmem:[%s220 + $0xd0] sm:$0xff] %v1944
        %1977 = vst [vmem:[%s220 + $0xd8] sm:$0xff] %v1945
        %1978 = vst [vmem:[%s220 + $0xe0] sm:$0xff] %v1946
        %1979 = vst [vmem:[%s220 + $0xe8] sm:$0xff] %v1947
        %1980 = vst [vmem:[%s220 + $0xf0] sm:$0xff] %v1948
        %1981 = vst [vmem:[%s220 + $0xf8] sm:$0xff] %v1949
      $region40: #{resnet_gen_forward.19} parent=31 // pred_fallthru
        _
      %p1982 = scmp.lt.s32.totalorder %s18, 1
      %s1983 = scalar_select %p1982, %s18, 1
      %s1984 = smul.addr %s1983, 32
      %s1985 = smul.addr %s1984, 8
      %s1986 = scalar_lea.vmem %s3, %s1985
      // Predicated region
      $region41: #{resnet_gen_forward.19} parent=31 // pred_check
        %p1987 = pneg %p119
      $region42: #{resnet_gen_forward.19} parent=31 // pred_check_branch
        %1989 = sbr.rel (%p1987) target = $region44
      $region43: #{resnet_gen_forward.19} parent=31 // pred_region
        _
      $region44: #{resnet_gen_forward.19} parent=31 // pred_fallthru
        _
    $region32: #{resnet_gen_forward.19} parent=5 // pred_fallthru
      _
    %p1990 = scmp.le.s32.totalorder 2, %s9
    // Predicated region
    $region45: #{resnet_gen_forward.19} parent=5 // pred_check
      %p1991 = pneg %p1990
    $region46: #{resnet_gen_forward.19} parent=5 // pred_check_branch
      %1993 = sbr.rel (%p1991) target = $region48
    $region47: #{resnet_gen_forward.19} parent=5 // pred_region
      %s1994 = ssub.s32 %s9, 2
      // Predicated region
      $region49: #{resnet_gen_forward.19} parent=47 // pred_check
        %p1995 = pneg %p125
      $region50: #{resnet_gen_forward.19} parent=47 // pred_check_branch
        %1997 = sbr.rel (%p1995) target = $region52
      $region51: #{resnet_gen_forward.19} parent=47 // pred_region
        %p1998 = scmp.lt.s32.totalorder %s20, 1
        %s1999 = scalar_select %p1998, %s20, 1
        %s2000 = smul.addr %s1999, 32
        %s2001 = smul.addr %s2000, 8
        %s2002 = scalar_lea.vmem %s3, %s2001
      $region52: #{resnet_gen_forward.19} parent=47 // pred_fallthru
        _
    $region48: #{resnet_gen_forward.19} parent=5 // pred_fallthru
      _
  $region6: #{resnet_gen_forward.19} parent=0 // loop_footer
    %s13 = sadd.s32 1, %s9
  $region7: #{resnet_gen_forward.19} parent=0 // loop_footer_branch
    %8 = sbr.rel target = $region3
  $region8: #{resnet_gen_forward.19} parent=0 // loop_exit
    _

</llo_original>
